<compile_context>
chip_gen: v6e
topology: v6e:2x2x1
jax: 0.10.0
libtpu: 0.0.40
codegen_flags: <defaults>
</compile_context>

<pallas_src>
import math
import functools

import jax
import jax.numpy as jnp
from jax.experimental import pallas as pl
from jax.experimental.pallas import tpu as pltpu

# 32 MiB scoped VMEM is safe on every generation (v7x has only 64 MiB per
# TensorCore and the "parallel" grid axes put an independent pipeline on each).
# TODO(synk): make tile caps / vmem limit generation-aware via
# pltpu.get_tpu_info() (raise toward 64-96 MiB and 512-wide tiles on v6e) for
# ImageNet-sized configs.
_VMEM_LIMIT = 32 * 1024 * 1024

# Multiples of the native bf16 (16, 128) tile; dims smaller than a cap use a
# single full-dim block instead of being padded.
_TM_CAP, _TN_CAP, _TK_CAP = 256, 256, 512


def _round_up(x, m):
    return (x + m - 1) // m * m


# ----------------------------- Pallas kernels ------------------------------

def _bmm_kernel(a_ref, w_ref, o_ref, acc_ref):
    """One (b,i,j,k) step of a plain batched matmul (no epilogue).

    a: (1, tm, tk) bf16   w: (1, tk, tn) bf16   o: (1, tm, tn)
    Accumulates in an f32 VMEM scratch across the K grid axis.
    """
    @pl.when(pl.program_id(3) == 0)
    def _():
        acc_ref[...] = jnp.zeros_like(acc_ref)

    acc_ref[...] += jnp.dot(a_ref[0], w_ref[0],
                            preferred_element_type=jnp.float32)

    @pl.when(pl.program_id(3) == pl.num_programs(3) - 1)
    def _():
        o_ref[0] = acc_ref[...].astype(o_ref.dtype)


def _bmm_epilogue_kernel(a_ref, w_ref, s_ref, t_ref, o_ref, acc_ref, *, relu):
    """Batched matmul with fused y = [relu](acc * scale + shift) finalize.

    Epilogue math stays f32 (v5e has no bf16 VPU); only the store downcasts.
    """
    @pl.when(pl.program_id(3) == 0)
    def _():
        acc_ref[...] = jnp.zeros_like(acc_ref)

    acc_ref[...] += jnp.dot(a_ref[0], w_ref[0],
                            preferred_element_type=jnp.float32)

    @pl.when(pl.program_id(3) == pl.num_programs(3) - 1)
    def _():
        y = acc_ref[...] * s_ref[0] + t_ref[0]
        if relu:
            y = jnp.maximum(y, 0.0)
        o_ref[0] = y.astype(o_ref.dtype)


def fused_bmm(a, w, scale=None, shift=None, *, relu=False,
              out_dtype=jnp.float32):
    """(B, M, K) @ (wB, K, N) -> (B, M, N), wB in {1, B}.

    Optional fused epilogue: y = relu?(acc * scale + shift), scale/shift (N,).
    Operands are pre-cast to bf16 here; K/M/N are only padded when they exceed
    a tile cap (full-dim blocks otherwise), so small channel counts cost no
    extra HBM copies, MXU zero-work, or post-slice.
    """
    B, M, K = a.shape
    wB, K2, N = w.shape
    assert K2 == K and wB in (1, B)

    a = a.astype(jnp.bfloat16)
    w = w.astype(jnp.bfloat16)

    tm = M if M <= _TM_CAP else _TM_CAP
    tn = N if N <= _TN_CAP else _TN_CAP
    tk = K if K <= _TK_CAP else _TK_CAP
    Mp, Np, Kp = _round_up(M, tm), _round_up(N, tn), _round_up(K, tk)

    if (Mp, Kp) != (M, K):
        a = jnp.pad(a, ((0, 0), (0, Mp - M), (0, Kp - K)))
    if (Kp, Np) != (K, N):
        w = jnp.pad(w, ((0, 0), (0, Kp - K), (0, Np - N)))

    grid = (B, Mp // tm, Np // tn, Kp // tk)
    a_spec = pl.BlockSpec((1, tm, tk), lambda b, i, j, k: (b, i, k))
    if wB == 1:
        w_spec = pl.BlockSpec((1, tk, tn), lambda b, i, j, k: (0, k, j))
    else:
        w_spec = pl.BlockSpec((1, tk, tn), lambda b, i, j, k: (b, k, j))
    # TODO(synk): pipeline_mode=pl.Buffered(3) on w_spec when wB == B and the
    # K loop is 1-2 steps, to overlap the next per-batch weight fetch.
    o_spec = pl.BlockSpec((1, tm, tn), lambda b, i, j, k: (b, i, j))

    epilogue = relu or (scale is not None) or (shift is not None)
    if epilogue:
        if scale is None:
            scale = jnp.ones((N,), jnp.float32)
        if shift is None:
            shift = jnp.zeros((N,), jnp.float32)
        s_p = jnp.pad(scale.astype(jnp.float32), (0, Np - N)).reshape(1, 1, Np)
        t_p = jnp.pad(shift.astype(jnp.float32), (0, Np - N)).reshape(1, 1, Np)
        st_spec = pl.BlockSpec((1, 1, tn), lambda b, i, j, k: (0, 0, j))
        kernel = functools.partial(_bmm_epilogue_kernel, relu=relu)
        in_specs = [a_spec, w_spec, st_spec, st_spec]
        args = (a, w, s_p, t_p)
    else:
        kernel = _bmm_kernel
        in_specs = [a_spec, w_spec]
        args = (a, w)

    out = pl.pallas_call(
        kernel,
        out_shape=jax.ShapeDtypeStruct((B, Mp, Np), out_dtype),
        grid=grid,
        in_specs=in_specs,
        out_specs=o_spec,
        scratch_shapes=[pltpu.VMEM((tm, tn), jnp.float32)],
        compiler_params=pltpu.CompilerParams(
            dimension_semantics=("parallel", "parallel", "parallel",
                                 "arbitrary"),
            vmem_limit_bytes=_VMEM_LIMIT),
    )(*args)

    if (Mp, Np) != (M, N):
        out = out[:, :M, :N]
    return out


def _bn_relu_gap_kernel(x_ref, s_ref, t_ref, y_ref, p_ref, sum_ref, *, inv_hw):
    """y = relu(x*scale + shift); pooled spatial mean accumulated over HW tiles."""
    t = pl.program_id(1)

    @pl.when(t == 0)
    def _():
        sum_ref[...] = jnp.zeros_like(sum_ref)

    y = jnp.maximum(x_ref[0].astype(jnp.float32) * s_ref[0] + t_ref[0], 0.0)
    y_ref[0] = y.astype(y_ref.dtype)
    sum_ref[...] += jnp.sum(y, axis=0, keepdims=True)

    @pl.when(t == pl.num_programs(1) - 1)
    def _():
        p_ref[0] = sum_ref[...] * inv_hw


def _hw_tile(hw, cap=2048):
    """Largest HW tile <= cap that divides HW (multiples of 16 only)."""
    if hw <= cap:
        return hw
    for t in (2048, 1024, 512, 256, 128, 64, 32, 16):
        if t <= cap and hw % t == 0:
            return t
    # TODO(synk): pad + mask the tail tile for HW with no 16-aligned divisor.
    return hw


def pl_bn_relu_gap(x3d, scale, shift, out_dtype=jnp.bfloat16):
    """x: (B, HW, C), scale/shift: (C,) -> (relu(bn(x)) bf16, GAP (B, C) f32).

    Tiled over HW (arbitrary axis, pooled sum accumulated in a VMEM scratch),
    so no block ever has to hold the full image (v7x 64 MiB/TC safe) and the
    tile DMAs overlap compute at larger scales.
    """
    B, HW, C = x3d.shape
    thw = _hw_tile(HW)
    s = scale.astype(jnp.float32).reshape(1, 1, C)
    t = shift.astype(jnp.float32).reshape(1, 1, C)
    xr, pooled = pl.pallas_call(
        functools.partial(_bn_relu_gap_kernel, inv_hw=1.0 / HW),
        out_shape=(jax.ShapeDtypeStruct((B, HW, C), out_dtype),
                   jax.ShapeDtypeStruct((B, 1, C), jnp.float32)),
        grid=(B, HW // thw),
        in_specs=[pl.BlockSpec((1, thw, C), lambda b, h: (b, h, 0)),
                  pl.BlockSpec((1, 1, C), lambda b, h: (0, 0, 0)),
                  pl.BlockSpec((1, 1, C), lambda b, h: (0, 0, 0))],
        out_specs=[pl.BlockSpec((1, thw, C), lambda b, h: (b, h, 0)),
                   pl.BlockSpec((1, 1, C), lambda b, h: (b, 0, 0))],
        scratch_shapes=[pltpu.VMEM((1, C), jnp.float32)],
        compiler_params=pltpu.CompilerParams(
            dimension_semantics=("parallel", "arbitrary"),
            vmem_limit_bytes=_VMEM_LIMIT),
    )(x3d, s, t)
    return xr, pooled[:, 0, :]


# ----------------------------- JAX glue layers ------------------------------

def bn_fold(bn, eps=1e-5):
    """Eval-mode BatchNorm2d folded to per-channel (scale, shift)."""
    scale = bn['gamma'] * jax.lax.rsqrt(bn['var'] + eps)
    shift = bn['beta'] - bn['mean'] * scale
    return scale, shift


def im2col_3x3(x, stride=1):
    """x: (B, H, W, C), pad=1, k=3 -> (B, Ho, Wo, 9*C) (tap-major, channel-minor)."""
    # TODO(synk): replace with an in-kernel 9-tap shifted-dot accumulation (and
    # fuse conv1 -> bn2+relu -> conv2 into one pallas_call) to avoid the 9x
    # activation slab in HBM once H*W grows beyond CIFAR sizes.
    B, H, W, C = x.shape
    xp = jnp.pad(x, ((0, 0), (1, 1), (1, 1), (0, 0)))
    cols = [xp[:, di:di + H, dj:dj + W, :]
            for di in range(3) for dj in range(3)]
    p = jnp.concatenate(cols, axis=-1)
    if stride > 1:
        p = p[:, ::stride, ::stride, :]
    return p


def se_fc(x_pool, p):
    """Two 1x1 convs on pooled (B, C) features with ReLU in between (plain jnp:
    B=2, mid<=8 -- a pallas_call each would be pure launch overhead)."""
    h = jax.nn.relu(x_pool @ p['w1'].T + p['b1'][None, :])
    return h @ p['w2'].T + p['b2'][None, :]


# TODO(synk): the MaskGen / AttGen class definitions are not included in the
# reference source; MaskGen is approximated as a deterministic SE-style sigmoid
# gate (no Gumbel sampling / temperature), and AttGen follows the module's init
# (last conv weight=0, bias=1) so it outputs exactly 1.0 at initialization.
def maskgen(x_pool, p, heads, out_ch):
    return jax.nn.sigmoid(se_fc(x_pool, p)).reshape(-1, heads, out_ch)


def attgen(x_pool, p, heads, out_ch):
    return se_fc(x_pool, p).reshape(-1, heads, out_ch)


# ----------------------------- DyDenseNet forward ---------------------------

def dense_layer_forward(x, others, lp, config, hw):
    h, w = hw
    B, H, W, Cin = x.shape
    heads = config.heads
    hidden = lp['conv1_w'].shape[0]
    growth = lp['conv2_w'].shape[0]
    outg = growth // heads

    x_res = x

    # conv_1.norm + conv_1.relu + AdaptiveAvgPool2d(1): one fused pass.
    s1, t1 = bn_fold(lp['bn1'])
    xr, x_pool = pl_bn_relu_gap(x.reshape(B, H * W, Cin), s1, t1)

    mask1 = maskgen(x_pool, lp['mg1'], 1, Cin)              # (B, 1, Cin)
    mask2 = maskgen(x_pool, lp['mg2'], heads, hidden)       # (B, heads, hidden)
    m2a = mask2
    if config.attention:
        att2 = attgen(x_pool, lp['ag2'], heads, hidden)
        m2a = mask2 * att2

    # conv_1.conv(x * mask1): mask1 folded into per-batch 1x1 weights; the next
    # conv_2.norm + conv_2.relu is fused as the matmul epilogue.
    w1 = lp['conv1_w'][:, :, 0, 0]                          # (hidden, Cin)
    w1_eff = w1.T[None, :, :] * mask1[:, 0, :, None]        # (B, Cin, hidden)
    s2, t2 = bn_fold(lp['bn2'])
    xr2 = fused_bmm(xr, w1_eff, s2, t2, relu=True, out_dtype=jnp.bfloat16)
    xr2 = xr2.reshape(B, H, W, hidden)

    # conv_2.conv (grouped 3x3, groups=heads) on the head-masked copies:
    # fold mask2*att2 into per-batch per-head weight blocks and run ONE
    # batched matmul (no BN/bias epilogue -> plain kernel, no extra DMAs).
    head_of_n = jnp.arange(growth) // outg                  # (growth,)
    w2 = jnp.transpose(lp['conv2_w'], (2, 3, 1, 0)).reshape(9, hidden, growth)
    scale_nc = m2a[:, head_of_n, :]                         # (B, growth, hidden)
    w2_eff = w2[None] * jnp.transpose(scale_nc, (0, 2, 1))[:, None]
    w2_eff = w2_eff.reshape(B, 9 * hidden, growth)

    patches = im2col_3x3(xr2).reshape(B, H * W, 9 * hidden)     # bf16 slab
    xnew = fused_bmm(patches, w2_eff, out_dtype=jnp.bfloat16)
    xnew = xnew.reshape(B, H, W, growth)

    # TODO(synk): write xnew straight into a preallocated block-wide slab via
    # input_output_aliases + channel-offset out index_map to avoid re-copying
    # the running feature map every layer (O(L^2) concat traffic).
    xout = jnp.concatenate([x_res, xnew], axis=-1)          # dense concat

    # ---- get_others flop bookkeeping (same arithmetic as the module) ----
    flops_dgc_, bonus_ = others
    flops_dgc1_c = Cin * hidden * h * w
    if config.attention:
        flops_dgc2_c = hidden * (9 * growth + heads + 1) * h * w
    else:
        flops_dgc2_c = hidden * (9 * growth + 1) * h * w
    flops_dgc1 = jnp.mean(mask1) * flops_dgc1_c
    flops_dgc2 = jnp.mean(mask2) * flops_dgc2_c
    # NOTE: intentionally replicates the reference get_others() exactly --
    # the head-0 factor appears both in the init and in the i=0 loop iteration.
    mask_bonus = 1.0 - mask2[:, 0, :]
    for i in range(heads):
        mask_bonus = mask_bonus * (1.0 - mask2[:, i, :])
    bonus = jnp.mean(mask_bonus) * flops_dgc1
    return xout, (flops_dgc_ + flops_dgc1 + flops_dgc2, bonus_ + bonus)


def dydensenet_forward(params, x_nchw, config):
    # NCHW -> NHWC; bf16 activations keep the im2col slab and all MXU operand
    # DMAs at half width (accumulation / BN math stays f32 in the kernels).
    x = jnp.transpose(x_nchw, (0, 2, 3, 1)).astype(jnp.bfloat16)

    # init_conv: 3x3, stride=init_stride, pad=1, no bias (shared weights).
    w0 = jnp.transpose(params['init_conv'], (2, 3, 1, 0)).reshape(27, -1)[None]
    patches = im2col_3x3(x, stride=config.init_stride)
    Bo, Ho, Wo, K0 = patches.shape
    x = fused_bmm(patches.reshape(Bo, Ho * Wo, K0), w0,
                  out_dtype=jnp.bfloat16).reshape(Bo, Ho, Wo, -1)

    others = (jnp.float32(0.0), jnp.float32(0.0))
    h, w = Ho, Wo

    nblocks = len(config.stages)
    for bi in range(nblocks):
        for lp in params['blocks'][bi]:
            x, others = dense_layer_forward(x, others, lp, config, (h, w))
        if bi != nblocks - 1:                       # _Transition: 2x2 avg pool
            B_, H_, W_, C_ = x.shape
            x = x.reshape(B_, H_ // 2, 2, W_ // 2, 2, C_).astype(jnp.float32)
            x = jnp.mean(x, axis=(2, 4)).astype(jnp.bfloat16)
            h, w = h // 2, w // 2

    # norm_last + relu_last + AvgPool2d(pool_size): the final spatial extent
    # equals pool_size for this config, so the fused BN+ReLU+GAP kernel matches.
    B_, H_, W_, C_ = x.shape
    s, t = bn_fold(params['norm_last'])
    _, feats = pl_bn_relu_gap(x.reshape(B_, H_ * W_, C_), s, t)

    # Classifier in plain jnp: (2 x C) @ (C x 10) through a pallas_call is pure
    # launch + pad/slice overhead; XLA fuses it for free.
    logits = feats @ params['classifier']['w'].T + params['classifier']['b']
    return logits, [others[0], others[1]]


# ----------------------------- parameter init ------------------------------

class KeyGen:
    def __init__(self, key):
        self.key = key

    def __call__(self):
        self.key, k = jax.random.split(self.key)
        return k


def conv_weight(key, shape):
    """PyTorch init in the module: normal(0, sqrt(2 / (kh*kw*Cout)))."""
    cout, cin, kh, kw = shape
    n = kh * kw * cout
    return jax.random.normal(key, shape, dtype=jnp.float32) * math.sqrt(2.0 / n)


def bn_params(c):
    return dict(gamma=jnp.ones(c, jnp.float32), beta=jnp.zeros(c, jnp.float32),
                mean=jnp.zeros(c, jnp.float32), var=jnp.ones(c, jnp.float32))


def build_params(seed, config):
    kg = KeyGen(jax.random.PRNGKey(seed))
    bottleneck = 4
    heads = config.heads
    num_features = 2 * config.growth[0]
    params = {'init_conv': conv_weight(kg(), (num_features, 3, 3, 3))}

    blocks = []
    for nl, growth in zip(config.stages, config.growth):
        layers = []
        for li in range(nl):
            in_ch = num_features + li * growth
            hidden = bottleneck * growth
            sq = 8 if in_ch >= 200 else 4
            mid = in_ch // sq
            lp = dict(
                bn1=bn_params(in_ch),
                conv1_w=conv_weight(kg(), (hidden, in_ch, 1, 1)),
                bn2=bn_params(hidden),
                conv2_w=conv_weight(kg(), (growth, hidden, 3, 3)),
                mg1=dict(w1=conv_weight(kg(), (mid, in_ch, 1, 1))[:, :, 0, 0],
                         b1=jnp.zeros(mid, jnp.float32),
                         w2=conv_weight(kg(), (1 * in_ch, mid, 1, 1))[:, :, 0, 0],
                         b2=jnp.zeros(1 * in_ch, jnp.float32)),
                mg2=dict(w1=conv_weight(kg(), (mid, in_ch, 1, 1))[:, :, 0, 0],
                         b1=jnp.zeros(mid, jnp.float32),
                         w2=conv_weight(kg(), (heads * hidden, mid, 1, 1))[:, :, 0, 0],
                         b2=jnp.zeros(heads * hidden, jnp.float32)),
                ag2=dict(w1=conv_weight(kg(), (mid, in_ch, 1, 1))[:, :, 0, 0],
                         b1=jnp.zeros(mid, jnp.float32),
                         # AttGen last conv: weight = 0, bias = 1 (module init)
                         w2=jnp.zeros((heads * hidden, mid), jnp.float32),
                         b2=jnp.ones(heads * hidden, jnp.float32)),
            )
            layers.append(lp)
        blocks.append(layers)
        num_features += nl * growth

    params['blocks'] = blocks
    params['norm_last'] = bn_params(num_features)
    params['classifier'] = dict(
        w=jax.random.normal(kg(), (config.num_classes, num_features),
                            jnp.float32) / math.sqrt(num_features),
        b=jnp.zeros(config.num_classes, jnp.float32))
    return params


# ----------------------------- config & main -------------------------------

class Config:
    pass


if __name__ == "__main__":
    config = Config()
    config.num_classes = 10
    config.stages = [2, 2]
    config.growth = [4, 4]
    config.data = 'cifar10'
    config.input_size = (16, 16)
    config.attention = True
    config.heads = 2
    config.eps = 0.1      # MaskGen Gumbel temperature (unused: deterministic gate)
    config.bias = True
    config.init_stride = 1 if 'cifar' in config.data else 2
    config.pool_size = 8 if 'cifar' in config.data else 7

    params = build_params(0, config)

    key = jax.random.PRNGKey(0)
    x = jax.random.normal(key, (2, 3, 16, 16), dtype=jnp.float32)   # NCHW

    fwd = jax.jit(functools.partial(dydensenet_forward, config=config))
    logits, others = fwd(params, x)
    logits = jax.block_until_ready(logits)
    flops_dgc = jax.block_until_ready(others[0])
    bonus = jax.block_until_ready(others[1])

    assert logits.shape == (2, config.num_classes)
    assert jnp.all(jnp.isfinite(logits))
    assert jnp.isfinite(flops_dgc) and jnp.isfinite(bonus)
    print("KERNEL_OK")
</pallas_src>

<mosaic_0001>
module attributes {stable_mosaic.version = 11 : i64} {
  func.func @_bmm_kernel(%arg0: i32, %arg1: i32, %arg2: i32, %arg3: i32, %arg4: memref<1x256x27xbf16, #tpu.memory_space<vmem>>, %arg5: memref<1x27x8xbf16, #tpu.memory_space<vmem>>, %arg6: memref<1x256x8xbf16, #tpu.memory_space<vmem>>, %arg7: memref<256x8xf32, #tpu.memory_space<vmem>>) attributes {dimension_semantics = [#tpu.dimension_semantics<parallel>, #tpu.dimension_semantics<parallel>, #tpu.dimension_semantics<parallel>, #tpu.dimension_semantics<arbitrary>], iteration_bounds = array<i64: 2, 1, 1, 1>, scalar_prefetch = 0 : i64, scratch_operands = 1 : i64, tpu.core_type = #tpu.core_type<tc>, window_params = [{transform_indices = @transform_0, window_bounds = array<i64: 1, 256, 27>}, {transform_indices = @transform_1, window_bounds = array<i64: 1, 27, 8>}, {transform_indices = @transform_2, window_bounds = array<i64: 1, 256, 8>}]} {
    %c0_i32 = arith.constant 0 : i32
    %0 = arith.cmpi eq, %arg3, %c0_i32 : i32
    %1 = arith.extui %0 : i1 to i32
    %c0_i32_0 = arith.constant 0 : i32
    %2 = arith.cmpi ne, %1, %c0_i32_0 : i32
    scf.if %2 {
      %cst_12 = arith.constant 0.000000e+00 : f32
      %14 = vector.broadcast %cst_12 : f32 to vector<256x8xf32>
      %c0_13 = arith.constant 0 : index
      %c0_14 = arith.constant 0 : index
      %15 = vector.load %arg7[%c0_13, %c0_14] : memref<256x8xf32, #tpu.memory_space<vmem>>, vector<256x8xf32>
      tpu.vector_store %arg7[%c0_13, %c0_14], %14 {strides = array<i32>} : memref<256x8xf32, #tpu.memory_space<vmem>>, vector<256x8xf32>,
    } else {
    }
    %c0 = arith.constant 0 : index
    %c0_1 = arith.constant 0 : index
    %3 = vector.load %arg7[%c0, %c0_1] : memref<256x8xf32, #tpu.memory_space<vmem>>, vector<256x8xf32>
    %c0_2 = arith.constant 0 : index
    %c0_3 = arith.constant 0 : index
    %c0_4 = arith.constant 0 : index
    %4 = vector.load %arg4[%c0_2, %c0_3, %c0_4] : memref<1x256x27xbf16, #tpu.memory_space<vmem>>, vector<1x256x27xbf16>
    %5 = vector.shape_cast %4 : vector<1x256x27xbf16> to vector<256x27xbf16>
    %c0_5 = arith.constant 0 : index
    %c0_6 = arith.constant 0 : index
    %c0_7 = arith.constant 0 : index
    %6 = vector.load %arg5[%c0_5, %c0_6, %c0_7] : memref<1x27x8xbf16, #tpu.memory_space<vmem>>, vector<1x27x8xbf16>
    %7 = vector.shape_cast %6 : vector<1x27x8xbf16> to vector<27x8xbf16>
    %cst = arith.constant dense<0.000000e+00> : vector<256x8xf32>
    %8 = tpu.matmul %5, %7, %cst {dimension_numbers = #tpu.dot_dimension_numbers<[1], [0], [0], [1], [0, 0, 1, 1], [], []>} : vector<256x27xbf16>, vector<27x8xbf16>, vector<256x8xf32> -> vector<256x8xf32>
    %9 = arith.addf %3, %8 : vector<256x8xf32>
    %c0_8 = arith.constant 0 : index
    %c0_9 = arith.constant 0 : index
    %10 = vector.load %arg7[%c0_8, %c0_9] : memref<256x8xf32, #tpu.memory_space<vmem>>, vector<256x8xf32>
    tpu.vector_store %arg7[%c0_8, %c0_9], %9 {strides = array<i32>} : memref<256x8xf32, #tpu.memory_space<vmem>>, vector<256x8xf32>,
    %c0_i32_10 = arith.constant 0 : i32
    %11 = arith.cmpi eq, %arg3, %c0_i32_10 : i32
    %12 = arith.extui %11 : i1 to i32
    %c0_i32_11 = arith.constant 0 : i32
    %13 = arith.cmpi ne, %12, %c0_i32_11 : i32
    scf.if %13 {
      %c0_12 = arith.constant 0 : index
      %c0_13 = arith.constant 0 : index
      %14 = vector.load %arg7[%c0_12, %c0_13] : memref<256x8xf32, #tpu.memory_space<vmem>>, vector<256x8xf32>
      %15 = arith.truncf %14 : vector<256x8xf32> to vector<256x8xbf16>
      %c0_14 = arith.constant 0 : index
      %c0_15 = arith.constant 0 : index
      %c0_16 = arith.constant 0 : index
      %16 = vector.load %arg6[%c0_14, %c0_15, %c0_16] : memref<1x256x8xbf16, #tpu.memory_space<vmem>>, vector<1x256x8xbf16>
      %17 = vector.shape_cast %16 : vector<1x256x8xbf16> to vector<256x8xbf16>
      %18 = vector.shape_cast %15 : vector<256x8xbf16> to vector<1x256x8xbf16>
      tpu.vector_store %arg6[%c0_14, %c0_15, %c0_16], %18 {strides = array<i32>} : memref<1x256x8xbf16, #tpu.memory_space<vmem>>, vector<1x256x8xbf16>,
    } else {
    }
    return
  }
  func.func @transform_0(%arg0: i32, %arg1: i32, %arg2: i32, %arg3: i32) -> (i32, i32, i32) {
    %c0_i32 = arith.constant 0 : i32
    return %arg0, %arg1, %arg3 : i32, i32, i32
  }
  func.func @transform_1(%arg0: i32, %arg1: i32, %arg2: i32, %arg3: i32) -> (i32, i32, i32) {
    %c0_i32 = arith.constant 0 : i32
    %c0_i32_0 = arith.constant 0 : i32
    return %c0_i32, %arg3, %arg2 : i32, i32, i32
  }
  func.func @transform_2(%arg0: i32, %arg1: i32, %arg2: i32, %arg3: i32) -> (i32, i32, i32) {
    %c0_i32 = arith.constant 0 : i32
    return %arg0, %arg1, %arg2 : i32, i32, i32
  }
}

module attributes {stable_mosaic.version = 11 : i64} {
  func.func @_bn_relu_gap_kernel(%arg0: i32, %arg1: i32, %arg2: memref<1x256x8xbf16, #tpu.memory_space<vmem>>, %arg3: memref<1x1x8xf32, #tpu.memory_space<vmem>>, %arg4: memref<1x1x8xf32, #tpu.memory_space<vmem>>, %arg5: memref<1x256x8xbf16, #tpu.memory_space<vmem>>, %arg6: memref<1x1x8xf32, #tpu.memory_space<vmem>>, %arg7: memref<1x8xf32, #tpu.memory_space<vmem>>) attributes {dimension_semantics = [#tpu.dimension_semantics<parallel>, #tpu.dimension_semantics<arbitrary>], iteration_bounds = array<i64: 2, 1>, scalar_prefetch = 0 : i64, scratch_operands = 1 : i64, tpu.core_type = #tpu.core_type<tc>, window_params = [{transform_indices = @transform_0, window_bounds = array<i64: 1, 256, 8>}, {pipeline_mode = #tpu.pipeline_mode<synchronous>, transform_indices = @transform_1, window_bounds = array<i64: 1, 1, 8>}, {pipeline_mode = #tpu.pipeline_mode<synchronous>, transform_indices = @transform_2, window_bounds = array<i64: 1, 1, 8>}, {transform_indices = @transform_3, window_bounds = array<i64: 1, 256, 8>}, {transform_indices = @transform_4, window_bounds = array<i64: 1, 1, 8>}]} {
    %c0_i32 = arith.constant 0 : i32
    %0 = arith.cmpi eq, %arg1, %c0_i32 : i32
    %1 = arith.extui %0 : i1 to i32
    %c0_i32_0 = arith.constant 0 : i32
    %2 = arith.cmpi ne, %1, %c0_i32_0 : i32
    scf.if %2 {
      %cst_19 = arith.constant 0.000000e+00 : f32
      %28 = vector.broadcast %cst_19 : f32 to vector<1x8xf32>
      %c0_20 = arith.constant 0 : index
      %c0_21 = arith.constant 0 : index
      %29 = vector.load %arg7[%c0_20, %c0_21] : memref<1x8xf32, #tpu.memory_space<vmem>>, vector<1x8xf32>
      tpu.vector_store %arg7[%c0_20, %c0_21], %28 {strides = array<i32>} : memref<1x8xf32, #tpu.memory_space<vmem>>, vector<1x8xf32>,
    } else {
    }
    %c0 = arith.constant 0 : index
    %c0_1 = arith.constant 0 : index
    %c0_2 = arith.constant 0 : index
    %3 = vector.load %arg2[%c0, %c0_1, %c0_2] : memref<1x256x8xbf16, #tpu.memory_space<vmem>>, vector<1x256x8xbf16>
    %4 = vector.shape_cast %3 : vector<1x256x8xbf16> to vector<256x8xbf16>
    %5 = arith.extf %4 : vector<256x8xbf16> to vector<256x8xf32>
    %c0_3 = arith.constant 0 : index
    %c0_4 = arith.constant 0 : index
    %c0_5 = arith.constant 0 : index
    %6 = vector.load %arg3[%c0_3, %c0_4, %c0_5] : memref<1x1x8xf32, #tpu.memory_space<vmem>>, vector<1x1x8xf32>
    %7 = vector.shape_cast %6 : vector<1x1x8xf32> to vector<1x8xf32>
    %8 = vector.broadcast %7 : vector<1x8xf32> to vector<256x8xf32>
    %9 = arith.mulf %5, %8 : vector<256x8xf32>
    %c0_6 = arith.constant 0 : index
    %c0_7 = arith.constant 0 : index
    %c0_8 = arith.constant 0 : index
    %10 = vector.load %arg4[%c0_6, %c0_7, %c0_8] : memref<1x1x8xf32, #tpu.memory_space<vmem>>, vector<1x1x8xf32>
    %11 = vector.shape_cast %10 : vector<1x1x8xf32> to vector<1x8xf32>
    %12 = vector.broadcast %11 : vector<1x8xf32> to vector<256x8xf32>
    %13 = arith.addf %9, %12 : vector<256x8xf32>
    %cst = arith.constant 0.000000e+00 : f32
    %14 = vector.broadcast %cst : f32 to vector<256x8xf32>
    %15 = arith.maximumf %13, %14 : vector<256x8xf32>
    %16 = arith.truncf %15 : vector<256x8xf32> to vector<256x8xbf16>
    %c0_9 = arith.constant 0 : index
    %c0_10 = arith.constant 0 : index
    %c0_11 = arith.constant 0 : index
    %17 = vector.load %arg5[%c0_9, %c0_10, %c0_11] : memref<1x256x8xbf16, #tpu.memory_space<vmem>>, vector<1x256x8xbf16>
    %18 = vector.shape_cast %17 : vector<1x256x8xbf16> to vector<256x8xbf16>
    %19 = vector.shape_cast %16 : vector<256x8xbf16> to vector<1x256x8xbf16>
    tpu.vector_store %arg5[%c0_9, %c0_10, %c0_11], %19 {strides = array<i32>} : memref<1x256x8xbf16, #tpu.memory_space<vmem>>, vector<1x256x8xbf16>,
    %c0_12 = arith.constant 0 : index
    %c0_13 = arith.constant 0 : index
    %20 = vector.load %arg7[%c0_12, %c0_13] : memref<1x8xf32, #tpu.memory_space<vmem>>, vector<1x8xf32>
    %cst_14 = arith.constant dense<0.000000e+00> : vector<8xf32>
    %21 = vector.multi_reduction <add>, %15, %cst_14 [0] : vector<256x8xf32> to vector<8xf32>
    %22 = vector.shape_cast %21 : vector<8xf32> to vector<1x8xf32>
    %23 = arith.addf %20, %22 : vector<1x8xf32>
    %c0_15 = arith.constant 0 : index
    %c0_16 = arith.constant 0 : index
    %24 = vector.load %arg7[%c0_15, %c0_16] : memref<1x8xf32, #tpu.memory_space<vmem>>, vector<1x8xf32>
    tpu.vector_store %arg7[%c0_15, %c0_16], %23 {strides = array<i32>} : memref<1x8xf32, #tpu.memory_space<vmem>>, vector<1x8xf32>,
    %c0_i32_17 = arith.constant 0 : i32
    %25 = arith.cmpi eq, %arg1, %c0_i32_17 : i32
    %26 = arith.extui %25 : i1 to i32
    %c0_i32_18 = arith.constant 0 : i32
    %27 = arith.cmpi ne, %26, %c0_i32_18 : i32
    scf.if %27 {
      %c0_19 = arith.constant 0 : index
      %c0_20 = arith.constant 0 : index
      %28 = vector.load %arg7[%c0_19, %c0_20] : memref<1x8xf32, #tpu.memory_space<vmem>>, vector<1x8xf32>
      %cst_21 = arith.constant 3.906250e-03 : f32
      %29 = vector.broadcast %cst_21 : f32 to vector<1x8xf32>
      %30 = arith.mulf %28, %29 : vector<1x8xf32>
      %c0_22 = arith.constant 0 : index
      %c0_23 = arith.constant 0 : index
      %c0_24 = arith.constant 0 : index
      %31 = vector.load %arg6[%c0_22, %c0_23, %c0_24] : memref<1x1x8xf32, #tpu.memory_space<vmem>>, vector<1x1x8xf32>
      %32 = vector.shape_cast %31 : vector<1x1x8xf32> to vector<1x8xf32>
      %33 = vector.shape_cast %30 : vector<1x8xf32> to vector<1x1x8xf32>
      tpu.vector_store %arg6[%c0_22, %c0_23, %c0_24], %33 {strides = array<i32>} : memref<1x1x8xf32, #tpu.memory_space<vmem>>, vector<1x1x8xf32>,
    } else {
    }
    return
  }
  func.func @transform_0(%arg0: i32, %arg1: i32) -> (i32, i32, i32) {
    %c0_i32 = arith.constant 0 : i32
    %c0_i32_0 = arith.constant 0 : i32
    return %arg0, %arg1, %c0_i32 : i32, i32, i32
  }
  func.func @transform_1(%arg0: i32, %arg1: i32) -> (i32, i32, i32) {
    %c0_i32 = arith.constant 0 : i32
    %c0_i32_0 = arith.constant 0 : i32
    %c0_i32_1 = arith.constant 0 : i32
    %c0_i32_2 = arith.constant 0 : i32
    return %c0_i32, %c0_i32_0, %c0_i32_1 : i32, i32, i32
  }
  func.func @transform_2(%arg0: i32, %arg1: i32) -> (i32, i32, i32) {
    %c0_i32 = arith.constant 0 : i32
    %c0_i32_0 = arith.constant 0 : i32
    %c0_i32_1 = arith.constant 0 : i32
    %c0_i32_2 = arith.constant 0 : i32
    return %c0_i32, %c0_i32_0, %c0_i32_1 : i32, i32, i32
  }
  func.func @transform_3(%arg0: i32, %arg1: i32) -> (i32, i32, i32) {
    %c0_i32 = arith.constant 0 : i32
    %c0_i32_0 = arith.constant 0 : i32
    return %arg0, %arg1, %c0_i32 : i32, i32, i32
  }
  func.func @transform_4(%arg0: i32, %arg1: i32) -> (i32, i32, i32) {
    %c0_i32 = arith.constant 0 : i32
    %c0_i32_0 = arith.constant 0 : i32
    %c0_i32_1 = arith.constant 0 : i32
    return %arg0, %c0_i32, %c0_i32_0 : i32, i32, i32
  }
}

module attributes {stable_mosaic.version = 11 : i64} {
  func.func @_bmm_epilogue_kernel(%arg0: i32, %arg1: i32, %arg2: i32, %arg3: i32, %arg4: memref<1x256x8xbf16, #tpu.memory_space<vmem>>, %arg5: memref<1x8x16xbf16, #tpu.memory_space<vmem>>, %arg6: memref<1x1x16xf32, #tpu.memory_space<vmem>>, %arg7: memref<1x1x16xf32, #tpu.memory_space<vmem>>, %arg8: memref<1x256x16xbf16, #tpu.memory_space<vmem>>, %arg9: memref<256x16xf32, #tpu.memory_space<vmem>>) attributes {dimension_semantics = [#tpu.dimension_semantics<parallel>, #tpu.dimension_semantics<parallel>, #tpu.dimension_semantics<parallel>, #tpu.dimension_semantics<arbitrary>], iteration_bounds = array<i64: 2, 1, 1, 1>, scalar_prefetch = 0 : i64, scratch_operands = 1 : i64, tpu.core_type = #tpu.core_type<tc>, window_params = [{transform_indices = @transform_0, window_bounds = array<i64: 1, 256, 8>}, {transform_indices = @transform_1, window_bounds = array<i64: 1, 8, 16>}, {transform_indices = @transform_2, window_bounds = array<i64: 1, 1, 16>}, {transform_indices = @transform_3, window_bounds = array<i64: 1, 1, 16>}, {transform_indices = @transform_4, window_bounds = array<i64: 1, 256, 16>}]} {
    %c0_i32 = arith.constant 0 : i32
    %0 = arith.cmpi eq, %arg3, %c0_i32 : i32
    %1 = arith.extui %0 : i1 to i32
    %c0_i32_0 = arith.constant 0 : i32
    %2 = arith.cmpi ne, %1, %c0_i32_0 : i32
    scf.if %2 {
      %cst_12 = arith.constant 0.000000e+00 : f32
      %14 = vector.broadcast %cst_12 : f32 to vector<256x16xf32>
      %c0_13 = arith.constant 0 : index
      %c0_14 = arith.constant 0 : index
      %15 = vector.load %arg9[%c0_13, %c0_14] : memref<256x16xf32, #tpu.memory_space<vmem>>, vector<256x16xf32>
      tpu.vector_store %arg9[%c0_13, %c0_14], %14 {strides = array<i32>} : memref<256x16xf32, #tpu.memory_space<vmem>>, vector<256x16xf32>,
    } else {
    }
    %c0 = arith.constant 0 : index
    %c0_1 = arith.constant 0 : index
    %3 = vector.load %arg9[%c0, %c0_1] : memref<256x16xf32, #tpu.memory_space<vmem>>, vector<256x16xf32>
    %c0_2 = arith.constant 0 : index
    %c0_3 = arith.constant 0 : index
    %c0_4 = arith.constant 0 : index
    %4 = vector.load %arg4[%c0_2, %c0_3, %c0_4] : memref<1x256x8xbf16, #tpu.memory_space<vmem>>, vector<1x256x8xbf16>
    %5 = vector.shape_cast %4 : vector<1x256x8xbf16> to vector<256x8xbf16>
    %c0_5 = arith.constant 0 : index
    %c0_6 = arith.constant 0 : index
    %c0_7 = arith.constant 0 : index
    %6 = vector.load %arg5[%c0_5, %c0_6, %c0_7] : memref<1x8x16xbf16, #tpu.memory_space<vmem>>, vector<1x8x16xbf16>
    %7 = vector.shape_cast %6 : vector<1x8x16xbf16> to vector<8x16xbf16>
    %cst = arith.constant dense<0.000000e+00> : vector<256x16xf32>
    %8 = tpu.matmul %5, %7, %cst {dimension_numbers = #tpu.dot_dimension_numbers<[1], [0], [0], [1], [0, 0, 1, 1], [], []>} : vector<256x8xbf16>, vector<8x16xbf16>, vector<256x16xf32> -> vector<256x16xf32>
    %9 = arith.addf %3, %8 : vector<256x16xf32>
    %c0_8 = arith.constant 0 : index
    %c0_9 = arith.constant 0 : index
    %10 = vector.load %arg9[%c0_8, %c0_9] : memref<256x16xf32, #tpu.memory_space<vmem>>, vector<256x16xf32>
    tpu.vector_store %arg9[%c0_8, %c0_9], %9 {strides = array<i32>} : memref<256x16xf32, #tpu.memory_space<vmem>>, vector<256x16xf32>,
    %c0_i32_10 = arith.constant 0 : i32
    %11 = arith.cmpi eq, %arg3, %c0_i32_10 : i32
    %12 = arith.extui %11 : i1 to i32
    %c0_i32_11 = arith.constant 0 : i32
    %13 = arith.cmpi ne, %12, %c0_i32_11 : i32
    scf.if %13 {
      %c0_12 = arith.constant 0 : index
      %c0_13 = arith.constant 0 : index
      %14 = vector.load %arg9[%c0_12, %c0_13] : memref<256x16xf32, #tpu.memory_space<vmem>>, vector<256x16xf32>
      %c0_14 = arith.constant 0 : index
      %c0_15 = arith.constant 0 : index
      %c0_16 = arith.constant 0 : index
      %15 = vector.load %arg6[%c0_14, %c0_15, %c0_16] : memref<1x1x16xf32, #tpu.memory_space<vmem>>, vector<1x1x16xf32>
      %16 = vector.shape_cast %15 : vector<1x1x16xf32> to vector<1x16xf32>
      %17 = vector.broadcast %16 : vector<1x16xf32> to vector<256x16xf32>
      %18 = arith.mulf %14, %17 : vector<256x16xf32>
      %c0_17 = arith.constant 0 : index
      %c0_18 = arith.constant 0 : index
      %c0_19 = arith.constant 0 : index
      %19 = vector.load %arg7[%c0_17, %c0_18, %c0_19] : memref<1x1x16xf32, #tpu.memory_space<vmem>>, vector<1x1x16xf32>
      %20 = vector.shape_cast %19 : vector<1x1x16xf32> to vector<1x16xf32>
      %21 = vector.broadcast %20 : vector<1x16xf32> to vector<256x16xf32>
      %22 = arith.addf %18, %21 : vector<256x16xf32>
      %cst_20 = arith.constant 0.000000e+00 : f32
      %23 = vector.broadcast %cst_20 : f32 to vector<256x16xf32>
      %24 = arith.maximumf %22, %23 : vector<256x16xf32>
      %25 = arith.truncf %24 : vector<256x16xf32> to vector<256x16xbf16>
      %c0_21 = arith.constant 0 : index
      %c0_22 = arith.constant 0 : index
      %c0_23 = arith.constant 0 : index
      %26 = vector.load %arg8[%c0_21, %c0_22, %c0_23] : memref<1x256x16xbf16, #tpu.memory_space<vmem>>, vector<1x256x16xbf16>
      %27 = vector.shape_cast %26 : vector<1x256x16xbf16> to vector<256x16xbf16>
      %28 = vector.shape_cast %25 : vector<256x16xbf16> to vector<1x256x16xbf16>
      tpu.vector_store %arg8[%c0_21, %c0_22, %c0_23], %28 {strides = array<i32>} : memref<1x256x16xbf16, #tpu.memory_space<vmem>>, vector<1x256x16xbf16>,
    } else {
    }
    return
  }
  func.func @transform_0(%arg0: i32, %arg1: i32, %arg2: i32, %arg3: i32) -> (i32, i32, i32) {
    %c0_i32 = arith.constant 0 : i32
    return %arg0, %arg1, %arg3 : i32, i32, i32
  }
  func.func @transform_1(%arg0: i32, %arg1: i32, %arg2: i32, %arg3: i32) -> (i32, i32, i32) {
    %c0_i32 = arith.constant 0 : i32
    return %arg0, %arg3, %arg2 : i32, i32, i32
  }
  func.func @transform_2(%arg0: i32, %arg1: i32, %arg2: i32, %arg3: i32) -> (i32, i32, i32) {
    %c0_i32 = arith.constant 0 : i32
    %c0_i32_0 = arith.constant 0 : i32
    %c0_i32_1 = arith.constant 0 : i32
    return %c0_i32, %c0_i32_0, %arg2 : i32, i32, i32
  }
  func.func @transform_3(%arg0: i32, %arg1: i32, %arg2: i32, %arg3: i32) -> (i32, i32, i32) {
    %c0_i32 = arith.constant 0 : i32
    %c0_i32_0 = arith.constant 0 : i32
    %c0_i32_1 = arith.constant 0 : i32
    return %c0_i32, %c0_i32_0, %arg2 : i32, i32, i32
  }
  func.func @transform_4(%arg0: i32, %arg1: i32, %arg2: i32, %arg3: i32) -> (i32, i32, i32) {
    %c0_i32 = arith.constant 0 : i32
    return %arg0, %arg1, %arg2 : i32, i32, i32
  }
}

module attributes {stable_mosaic.version = 11 : i64} {
  func.func @_bmm_kernel(%arg0: i32, %arg1: i32, %arg2: i32, %arg3: i32, %arg4: memref<1x256x144xbf16, #tpu.memory_space<vmem>>, %arg5: memref<1x144x4xbf16, #tpu.memory_space<vmem>>, %arg6: memref<1x256x4xbf16, #tpu.memory_space<vmem>>, %arg7: memref<256x4xf32, #tpu.memory_space<vmem>>) attributes {dimension_semantics = [#tpu.dimension_semantics<parallel>, #tpu.dimension_semantics<parallel>, #tpu.dimension_semantics<parallel>, #tpu.dimension_semantics<arbitrary>], iteration_bounds = array<i64: 2, 1, 1, 1>, scalar_prefetch = 0 : i64, scratch_operands = 1 : i64, tpu.core_type = #tpu.core_type<tc>, window_params = [{transform_indices = @transform_0, window_bounds = array<i64: 1, 256, 144>}, {transform_indices = @transform_1, window_bounds = array<i64: 1, 144, 4>}, {transform_indices = @transform_2, window_bounds = array<i64: 1, 256, 4>}]} {
    %c0_i32 = arith.constant 0 : i32
    %0 = arith.cmpi eq, %arg3, %c0_i32 : i32
    %1 = arith.extui %0 : i1 to i32
    %c0_i32_0 = arith.constant 0 : i32
    %2 = arith.cmpi ne, %1, %c0_i32_0 : i32
    scf.if %2 {
      %cst_12 = arith.constant 0.000000e+00 : f32
      %14 = vector.broadcast %cst_12 : f32 to vector<256x4xf32>
      %c0_13 = arith.constant 0 : index
      %c0_14 = arith.constant 0 : index
      %15 = vector.load %arg7[%c0_13, %c0_14] : memref<256x4xf32, #tpu.memory_space<vmem>>, vector<256x4xf32>
      tpu.vector_store %arg7[%c0_13, %c0_14], %14 {strides = array<i32>} : memref<256x4xf32, #tpu.memory_space<vmem>>, vector<256x4xf32>,
    } else {
    }
    %c0 = arith.constant 0 : index
    %c0_1 = arith.constant 0 : index
    %3 = vector.load %arg7[%c0, %c0_1] : memref<256x4xf32, #tpu.memory_space<vmem>>, vector<256x4xf32>
    %c0_2 = arith.constant 0 : index
    %c0_3 = arith.constant 0 : index
    %c0_4 = arith.constant 0 : index
    %4 = vector.load %arg4[%c0_2, %c0_3, %c0_4] : memref<1x256x144xbf16, #tpu.memory_space<vmem>>, vector<1x256x144xbf16>
    %5 = vector.shape_cast %4 : vector<1x256x144xbf16> to vector<256x144xbf16>
    %c0_5 = arith.constant 0 : index
    %c0_6 = arith.constant 0 : index
    %c0_7 = arith.constant 0 : index
    %6 = vector.load %arg5[%c0_5, %c0_6, %c0_7] : memref<1x144x4xbf16, #tpu.memory_space<vmem>>, vector<1x144x4xbf16>
    %7 = vector.shape_cast %6 : vector<1x144x4xbf16> to vector<144x4xbf16>
    %cst = arith.constant dense<0.000000e+00> : vector<256x4xf32>
    %8 = tpu.matmul %5, %7, %cst {dimension_numbers = #tpu.dot_dimension_numbers<[1], [0], [0], [1], [0, 0, 1, 1], [], []>} : vector<256x144xbf16>, vector<144x4xbf16>, vector<256x4xf32> -> vector<256x4xf32>
    %9 = arith.addf %3, %8 : vector<256x4xf32>
    %c0_8 = arith.constant 0 : index
    %c0_9 = arith.constant 0 : index
    %10 = vector.load %arg7[%c0_8, %c0_9] : memref<256x4xf32, #tpu.memory_space<vmem>>, vector<256x4xf32>
    tpu.vector_store %arg7[%c0_8, %c0_9], %9 {strides = array<i32>} : memref<256x4xf32, #tpu.memory_space<vmem>>, vector<256x4xf32>,
    %c0_i32_10 = arith.constant 0 : i32
    %11 = arith.cmpi eq, %arg3, %c0_i32_10 : i32
    %12 = arith.extui %11 : i1 to i32
    %c0_i32_11 = arith.constant 0 : i32
    %13 = arith.cmpi ne, %12, %c0_i32_11 : i32
    scf.if %13 {
      %c0_12 = arith.constant 0 : index
      %c0_13 = arith.constant 0 : index
      %14 = vector.load %arg7[%c0_12, %c0_13] : memref<256x4xf32, #tpu.memory_space<vmem>>, vector<256x4xf32>
      %15 = arith.truncf %14 : vector<256x4xf32> to vector<256x4xbf16>
      %c0_14 = arith.constant 0 : index
      %c0_15 = arith.constant 0 : index
      %c0_16 = arith.constant 0 : index
      %16 = vector.load %arg6[%c0_14, %c0_15, %c0_16] : memref<1x256x4xbf16, #tpu.memory_space<vmem>>, vector<1x256x4xbf16>
      %17 = vector.shape_cast %16 : vector<1x256x4xbf16> to vector<256x4xbf16>
      %18 = vector.shape_cast %15 : vector<256x4xbf16> to vector<1x256x4xbf16>
      tpu.vector_store %arg6[%c0_14, %c0_15, %c0_16], %18 {strides = array<i32>} : memref<1x256x4xbf16, #tpu.memory_space<vmem>>, vector<1x256x4xbf16>,
    } else {
    }
    return
  }
  func.func @transform_0(%arg0: i32, %arg1: i32, %arg2: i32, %arg3: i32) -> (i32, i32, i32) {
    %c0_i32 = arith.constant 0 : i32
    return %arg0, %arg1, %arg3 : i32, i32, i32
  }
  func.func @transform_1(%arg0: i32, %arg1: i32, %arg2: i32, %arg3: i32) -> (i32, i32, i32) {
    %c0_i32 = arith.constant 0 : i32
    return %arg0, %arg3, %arg2 : i32, i32, i32
  }
  func.func @transform_2(%arg0: i32, %arg1: i32, %arg2: i32, %arg3: i32) -> (i32, i32, i32) {
    %c0_i32 = arith.constant 0 : i32
    return %arg0, %arg1, %arg2 : i32, i32, i32
  }
}

module attributes {stable_mosaic.version = 11 : i64} {
  func.func @_bn_relu_gap_kernel(%arg0: i32, %arg1: i32, %arg2: memref<1x256x12xbf16, #tpu.memory_space<vmem>>, %arg3: memref<1x1x12xf32, #tpu.memory_space<vmem>>, %arg4: memref<1x1x12xf32, #tpu.memory_space<vmem>>, %arg5: memref<1x256x12xbf16, #tpu.memory_space<vmem>>, %arg6: memref<1x1x12xf32, #tpu.memory_space<vmem>>, %arg7: memref<1x12xf32, #tpu.memory_space<vmem>>) attributes {dimension_semantics = [#tpu.dimension_semantics<parallel>, #tpu.dimension_semantics<arbitrary>], iteration_bounds = array<i64: 2, 1>, scalar_prefetch = 0 : i64, scratch_operands = 1 : i64, tpu.core_type = #tpu.core_type<tc>, window_params = [{transform_indices = @transform_0, window_bounds = array<i64: 1, 256, 12>}, {pipeline_mode = #tpu.pipeline_mode<synchronous>, transform_indices = @transform_1, window_bounds = array<i64: 1, 1, 12>}, {pipeline_mode = #tpu.pipeline_mode<synchronous>, transform_indices = @transform_2, window_bounds = array<i64: 1, 1, 12>}, {transform_indices = @transform_3, window_bounds = array<i64: 1, 256, 12>}, {transform_indices = @transform_4, window_bounds = array<i64: 1, 1, 12>}]} {
    %c0_i32 = arith.constant 0 : i32
    %0 = arith.cmpi eq, %arg1, %c0_i32 : i32
    %1 = arith.extui %0 : i1 to i32
    %c0_i32_0 = arith.constant 0 : i32
    %2 = arith.cmpi ne, %1, %c0_i32_0 : i32
    scf.if %2 {
      %cst_19 = arith.constant 0.000000e+00 : f32
      %28 = vector.broadcast %cst_19 : f32 to vector<1x12xf32>
      %c0_20 = arith.constant 0 : index
      %c0_21 = arith.constant 0 : index
      %29 = vector.load %arg7[%c0_20, %c0_21] : memref<1x12xf32, #tpu.memory_space<vmem>>, vector<1x12xf32>
      tpu.vector_store %arg7[%c0_20, %c0_21], %28 {strides = array<i32>} : memref<1x12xf32, #tpu.memory_space<vmem>>, vector<1x12xf32>,
    } else {
    }
    %c0 = arith.constant 0 : index
    %c0_1 = arith.constant 0 : index
    %c0_2 = arith.constant 0 : index
    %3 = vector.load %arg2[%c0, %c0_1, %c0_2] : memref<1x256x12xbf16, #tpu.memory_space<vmem>>, vector<1x256x12xbf16>
    %4 = vector.shape_cast %3 : vector<1x256x12xbf16> to vector<256x12xbf16>
    %5 = arith.extf %4 : vector<256x12xbf16> to vector<256x12xf32>
    %c0_3 = arith.constant 0 : index
    %c0_4 = arith.constant 0 : index
    %c0_5 = arith.constant 0 : index
    %6 = vector.load %arg3[%c0_3, %c0_4, %c0_5] : memref<1x1x12xf32, #tpu.memory_space<vmem>>, vector<1x1x12xf32>
    %7 = vector.shape_cast %6 : vector<1x1x12xf32> to vector<1x12xf32>
    %8 = vector.broadcast %7 : vector<1x12xf32> to vector<256x12xf32>
    %9 = arith.mulf %5, %8 : vector<256x12xf32>
    %c0_6 = arith.constant 0 : index
    %c0_7 = arith.constant 0 : index
    %c0_8 = arith.constant 0 : index
    %10 = vector.load %arg4[%c0_6, %c0_7, %c0_8] : memref<1x1x12xf32, #tpu.memory_space<vmem>>, vector<1x1x12xf32>
    %11 = vector.shape_cast %10 : vector<1x1x12xf32> to vector<1x12xf32>
    %12 = vector.broadcast %11 : vector<1x12xf32> to vector<256x12xf32>
    %13 = arith.addf %9, %12 : vector<256x12xf32>
    %cst = arith.constant 0.000000e+00 : f32
    %14 = vector.broadcast %cst : f32 to vector<256x12xf32>
    %15 = arith.maximumf %13, %14 : vector<256x12xf32>
    %16 = arith.truncf %15 : vector<256x12xf32> to vector<256x12xbf16>
    %c0_9 = arith.constant 0 : index
    %c0_10 = arith.constant 0 : index
    %c0_11 = arith.constant 0 : index
    %17 = vector.load %arg5[%c0_9, %c0_10, %c0_11] : memref<1x256x12xbf16, #tpu.memory_space<vmem>>, vector<1x256x12xbf16>
    %18 = vector.shape_cast %17 : vector<1x256x12xbf16> to vector<256x12xbf16>
    %19 = vector.shape_cast %16 : vector<256x12xbf16> to vector<1x256x12xbf16>
    tpu.vector_store %arg5[%c0_9, %c0_10, %c0_11], %19 {strides = array<i32>} : memref<1x256x12xbf16, #tpu.memory_space<vmem>>, vector<1x256x12xbf16>,
    %c0_12 = arith.constant 0 : index
    %c0_13 = arith.constant 0 : index
    %20 = vector.load %arg7[%c0_12, %c0_13] : memref<1x12xf32, #tpu.memory_space<vmem>>, vector<1x12xf32>
    %cst_14 = arith.constant dense<0.000000e+00> : vector<12xf32>
    %21 = vector.multi_reduction <add>, %15, %cst_14 [0] : vector<256x12xf32> to vector<12xf32>
    %22 = vector.shape_cast %21 : vector<12xf32> to vector<1x12xf32>
    %23 = arith.addf %20, %22 : vector<1x12xf32>
    %c0_15 = arith.constant 0 : index
    %c0_16 = arith.constant 0 : index
    %24 = vector.load %arg7[%c0_15, %c0_16] : memref<1x12xf32, #tpu.memory_space<vmem>>, vector<1x12xf32>
    tpu.vector_store %arg7[%c0_15, %c0_16], %23 {strides = array<i32>} : memref<1x12xf32, #tpu.memory_space<vmem>>, vector<1x12xf32>,
    %c0_i32_17 = arith.constant 0 : i32
    %25 = arith.cmpi eq, %arg1, %c0_i32_17 : i32
    %26 = arith.extui %25 : i1 to i32
    %c0_i32_18 = arith.constant 0 : i32
    %27 = arith.cmpi ne, %26, %c0_i32_18 : i32
    scf.if %27 {
      %c0_19 = arith.constant 0 : index
      %c0_20 = arith.constant 0 : index
      %28 = vector.load %arg7[%c0_19, %c0_20] : memref<1x12xf32, #tpu.memory_space<vmem>>, vector<1x12xf32>
      %cst_21 = arith.constant 3.906250e-03 : f32
      %29 = vector.broadcast %cst_21 : f32 to vector<1x12xf32>
      %30 = arith.mulf %28, %29 : vector<1x12xf32>
      %c0_22 = arith.constant 0 : index
      %c0_23 = arith.constant 0 : index
      %c0_24 = arith.constant 0 : index
      %31 = vector.load %arg6[%c0_22, %c0_23, %c0_24] : memref<1x1x12xf32, #tpu.memory_space<vmem>>, vector<1x1x12xf32>
      %32 = vector.shape_cast %31 : vector<1x1x12xf32> to vector<1x12xf32>
      %33 = vector.shape_cast %30 : vector<1x12xf32> to vector<1x1x12xf32>
      tpu.vector_store %arg6[%c0_22, %c0_23, %c0_24], %33 {strides = array<i32>} : memref<1x1x12xf32, #tpu.memory_space<vmem>>, vector<1x1x12xf32>,
    } else {
    }
    return
  }
  func.func @transform_0(%arg0: i32, %arg1: i32) -> (i32, i32, i32) {
    %c0_i32 = arith.constant 0 : i32
    %c0_i32_0 = arith.constant 0 : i32
    return %arg0, %arg1, %c0_i32 : i32, i32, i32
  }
  func.func @transform_1(%arg0: i32, %arg1: i32) -> (i32, i32, i32) {
    %c0_i32 = arith.constant 0 : i32
    %c0_i32_0 = arith.constant 0 : i32
    %c0_i32_1 = arith.constant 0 : i32
    %c0_i32_2 = arith.constant 0 : i32
    return %c0_i32, %c0_i32_0, %c0_i32_1 : i32, i32, i32
  }
  func.func @transform_2(%arg0: i32, %arg1: i32) -> (i32, i32, i32) {
    %c0_i32 = arith.constant 0 : i32
    %c0_i32_0 = arith.constant 0 : i32
    %c0_i32_1 = arith.constant 0 : i32
    %c0_i32_2 = arith.constant 0 : i32
    return %c0_i32, %c0_i32_0, %c0_i32_1 : i32, i32, i32
  }
  func.func @transform_3(%arg0: i32, %arg1: i32) -> (i32, i32, i32) {
    %c0_i32 = arith.constant 0 : i32
    %c0_i32_0 = arith.constant 0 : i32
    return %arg0, %arg1, %c0_i32 : i32, i32, i32
  }
  func.func @transform_4(%arg0: i32, %arg1: i32) -> (i32, i32, i32) {
    %c0_i32 = arith.constant 0 : i32
    %c0_i32_0 = arith.constant 0 : i32
    %c0_i32_1 = arith.constant 0 : i32
    return %arg0, %c0_i32, %c0_i32_0 : i32, i32, i32
  }
}

module attributes {stable_mosaic.version = 11 : i64} {
  func.func @_bmm_epilogue_kernel(%arg0: i32, %arg1: i32, %arg2: i32, %arg3: i32, %arg4: memref<1x256x12xbf16, #tpu.memory_space<vmem>>, %arg5: memref<1x12x16xbf16, #tpu.memory_space<vmem>>, %arg6: memref<1x1x16xf32, #tpu.memory_space<vmem>>, %arg7: memref<1x1x16xf32, #tpu.memory_space<vmem>>, %arg8: memref<1x256x16xbf16, #tpu.memory_space<vmem>>, %arg9: memref<256x16xf32, #tpu.memory_space<vmem>>) attributes {dimension_semantics = [#tpu.dimension_semantics<parallel>, #tpu.dimension_semantics<parallel>, #tpu.dimension_semantics<parallel>, #tpu.dimension_semantics<arbitrary>], iteration_bounds = array<i64: 2, 1, 1, 1>, scalar_prefetch = 0 : i64, scratch_operands = 1 : i64, tpu.core_type = #tpu.core_type<tc>, window_params = [{transform_indices = @transform_0, window_bounds = array<i64: 1, 256, 12>}, {transform_indices = @transform_1, window_bounds = array<i64: 1, 12, 16>}, {transform_indices = @transform_2, window_bounds = array<i64: 1, 1, 16>}, {transform_indices = @transform_3, window_bounds = array<i64: 1, 1, 16>}, {transform_indices = @transform_4, window_bounds = array<i64: 1, 256, 16>}]} {
    %c0_i32 = arith.constant 0 : i32
    %0 = arith.cmpi eq, %arg3, %c0_i32 : i32
    %1 = arith.extui %0 : i1 to i32
    %c0_i32_0 = arith.constant 0 : i32
    %2 = arith.cmpi ne, %1, %c0_i32_0 : i32
    scf.if %2 {
      %cst_12 = arith.constant 0.000000e+00 : f32
      %14 = vector.broadcast %cst_12 : f32 to vector<256x16xf32>
      %c0_13 = arith.constant 0 : index
      %c0_14 = arith.constant 0 : index
      %15 = vector.load %arg9[%c0_13, %c0_14] : memref<256x16xf32, #tpu.memory_space<vmem>>, vector<256x16xf32>
      tpu.vector_store %arg9[%c0_13, %c0_14], %14 {strides = array<i32>} : memref<256x16xf32, #tpu.memory_space<vmem>>, vector<256x16xf32>,
    } else {
    }
    %c0 = arith.constant 0 : index
    %c0_1 = arith.constant 0 : index
    %3 = vector.load %arg9[%c0, %c0_1] : memref<256x16xf32, #tpu.memory_space<vmem>>, vector<256x16xf32>
    %c0_2 = arith.constant 0 : index
    %c0_3 = arith.constant 0 : index
    %c0_4 = arith.constant 0 : index
    %4 = vector.load %arg4[%c0_2, %c0_3, %c0_4] : memref<1x256x12xbf16, #tpu.memory_space<vmem>>, vector<1x256x12xbf16>
    %5 = vector.shape_cast %4 : vector<1x256x12xbf16> to vector<256x12xbf16>
    %c0_5 = arith.constant 0 : index
    %c0_6 = arith.constant 0 : index
    %c0_7 = arith.constant 0 : index
    %6 = vector.load %arg5[%c0_5, %c0_6, %c0_7] : memref<1x12x16xbf16, #tpu.memory_space<vmem>>, vector<1x12x16xbf16>
    %7 = vector.shape_cast %6 : vector<1x12x16xbf16> to vector<12x16xbf16>
    %cst = arith.constant dense<0.000000e+00> : vector<256x16xf32>
    %8 = tpu.matmul %5, %7, %cst {dimension_numbers = #tpu.dot_dimension_numbers<[1], [0], [0], [1], [0, 0, 1, 1], [], []>} : vector<256x12xbf16>, vector<12x16xbf16>, vector<256x16xf32> -> vector<256x16xf32>
    %9 = arith.addf %3, %8 : vector<256x16xf32>
    %c0_8 = arith.constant 0 : index
    %c0_9 = arith.constant 0 : index
    %10 = vector.load %arg9[%c0_8, %c0_9] : memref<256x16xf32, #tpu.memory_space<vmem>>, vector<256x16xf32>
    tpu.vector_store %arg9[%c0_8, %c0_9], %9 {strides = array<i32>} : memref<256x16xf32, #tpu.memory_space<vmem>>, vector<256x16xf32>,
    %c0_i32_10 = arith.constant 0 : i32
    %11 = arith.cmpi eq, %arg3, %c0_i32_10 : i32
    %12 = arith.extui %11 : i1 to i32
    %c0_i32_11 = arith.constant 0 : i32
    %13 = arith.cmpi ne, %12, %c0_i32_11 : i32
    scf.if %13 {
      %c0_12 = arith.constant 0 : index
      %c0_13 = arith.constant 0 : index
      %14 = vector.load %arg9[%c0_12, %c0_13] : memref<256x16xf32, #tpu.memory_space<vmem>>, vector<256x16xf32>
      %c0_14 = arith.constant 0 : index
      %c0_15 = arith.constant 0 : index
      %c0_16 = arith.constant 0 : index
      %15 = vector.load %arg6[%c0_14, %c0_15, %c0_16] : memref<1x1x16xf32, #tpu.memory_space<vmem>>, vector<1x1x16xf32>
      %16 = vector.shape_cast %15 : vector<1x1x16xf32> to vector<1x16xf32>
      %17 = vector.broadcast %16 : vector<1x16xf32> to vector<256x16xf32>
      %18 = arith.mulf %14, %17 : vector<256x16xf32>
      %c0_17 = arith.constant 0 : index
      %c0_18 = arith.constant 0 : index
      %c0_19 = arith.constant 0 : index
      %19 = vector.load %arg7[%c0_17, %c0_18, %c0_19] : memref<1x1x16xf32, #tpu.memory_space<vmem>>, vector<1x1x16xf32>
      %20 = vector.shape_cast %19 : vector<1x1x16xf32> to vector<1x16xf32>
      %21 = vector.broadcast %20 : vector<1x16xf32> to vector<256x16xf32>
      %22 = arith.addf %18, %21 : vector<256x16xf32>
      %cst_20 = arith.constant 0.000000e+00 : f32
      %23 = vector.broadcast %cst_20 : f32 to vector<256x16xf32>
      %24 = arith.maximumf %22, %23 : vector<256x16xf32>
      %25 = arith.truncf %24 : vector<256x16xf32> to vector<256x16xbf16>
      %c0_21 = arith.constant 0 : index
      %c0_22 = arith.constant 0 : index
      %c0_23 = arith.constant 0 : index
      %26 = vector.load %arg8[%c0_21, %c0_22, %c0_23] : memref<1x256x16xbf16, #tpu.memory_space<vmem>>, vector<1x256x16xbf16>
      %27 = vector.shape_cast %26 : vector<1x256x16xbf16> to vector<256x16xbf16>
      %28 = vector.shape_cast %25 : vector<256x16xbf16> to vector<1x256x16xbf16>
      tpu.vector_store %arg8[%c0_21, %c0_22, %c0_23], %28 {strides = array<i32>} : memref<1x256x16xbf16, #tpu.memory_space<vmem>>, vector<1x256x16xbf16>,
    } else {
    }
    return
  }
  func.func @transform_0(%arg0: i32, %arg1: i32, %arg2: i32, %arg3: i32) -> (i32, i32, i32) {
    %c0_i32 = arith.constant 0 : i32
    return %arg0, %arg1, %arg3 : i32, i32, i32
  }
  func.func @transform_1(%arg0: i32, %arg1: i32, %arg2: i32, %arg3: i32) -> (i32, i32, i32) {
    %c0_i32 = arith.constant 0 : i32
    return %arg0, %arg3, %arg2 : i32, i32, i32
  }
  func.func @transform_2(%arg0: i32, %arg1: i32, %arg2: i32, %arg3: i32) -> (i32, i32, i32) {
    %c0_i32 = arith.constant 0 : i32
    %c0_i32_0 = arith.constant 0 : i32
    %c0_i32_1 = arith.constant 0 : i32
    return %c0_i32, %c0_i32_0, %arg2 : i32, i32, i32
  }
  func.func @transform_3(%arg0: i32, %arg1: i32, %arg2: i32, %arg3: i32) -> (i32, i32, i32) {
    %c0_i32 = arith.constant 0 : i32
    %c0_i32_0 = arith.constant 0 : i32
    %c0_i32_1 = arith.constant 0 : i32
    return %c0_i32, %c0_i32_0, %arg2 : i32, i32, i32
  }
  func.func @transform_4(%arg0: i32, %arg1: i32, %arg2: i32, %arg3: i32) -> (i32, i32, i32) {
    %c0_i32 = arith.constant 0 : i32
    return %arg0, %arg1, %arg2 : i32, i32, i32
  }
}

module attributes {stable_mosaic.version = 11 : i64} {
  func.func @_bn_relu_gap_kernel(%arg0: i32, %arg1: i32, %arg2: memref<1x64x16xbf16, #tpu.memory_space<vmem>>, %arg3: memref<1x1x16xf32, #tpu.memory_space<vmem>>, %arg4: memref<1x1x16xf32, #tpu.memory_space<vmem>>, %arg5: memref<1x64x16xbf16, #tpu.memory_space<vmem>>, %arg6: memref<1x1x16xf32, #tpu.memory_space<vmem>>, %arg7: memref<1x16xf32, #tpu.memory_space<vmem>>) attributes {dimension_semantics = [#tpu.dimension_semantics<parallel>, #tpu.dimension_semantics<arbitrary>], iteration_bounds = array<i64: 2, 1>, scalar_prefetch = 0 : i64, scratch_operands = 1 : i64, tpu.core_type = #tpu.core_type<tc>, window_params = [{transform_indices = @transform_0, window_bounds = array<i64: 1, 64, 16>}, {pipeline_mode = #tpu.pipeline_mode<synchronous>, transform_indices = @transform_1, window_bounds = array<i64: 1, 1, 16>}, {pipeline_mode = #tpu.pipeline_mode<synchronous>, transform_indices = @transform_2, window_bounds = array<i64: 1, 1, 16>}, {transform_indices = @transform_3, window_bounds = array<i64: 1, 64, 16>}, {transform_indices = @transform_4, window_bounds = array<i64: 1, 1, 16>}]} {
    %c0_i32 = arith.constant 0 : i32
    %0 = arith.cmpi eq, %arg1, %c0_i32 : i32
    %1 = arith.extui %0 : i1 to i32
    %c0_i32_0 = arith.constant 0 : i32
    %2 = arith.cmpi ne, %1, %c0_i32_0 : i32
    scf.if %2 {
      %cst_19 = arith.constant 0.000000e+00 : f32
      %28 = vector.broadcast %cst_19 : f32 to vector<1x16xf32>
      %c0_20 = arith.constant 0 : index
      %c0_21 = arith.constant 0 : index
      %29 = vector.load %arg7[%c0_20, %c0_21] : memref<1x16xf32, #tpu.memory_space<vmem>>, vector<1x16xf32>
      tpu.vector_store %arg7[%c0_20, %c0_21], %28 {strides = array<i32>} : memref<1x16xf32, #tpu.memory_space<vmem>>, vector<1x16xf32>,
    } else {
    }
    %c0 = arith.constant 0 : index
    %c0_1 = arith.constant 0 : index
    %c0_2 = arith.constant 0 : index
    %3 = vector.load %arg2[%c0, %c0_1, %c0_2] : memref<1x64x16xbf16, #tpu.memory_space<vmem>>, vector<1x64x16xbf16>
    %4 = vector.shape_cast %3 : vector<1x64x16xbf16> to vector<64x16xbf16>
    %5 = arith.extf %4 : vector<64x16xbf16> to vector<64x16xf32>
    %c0_3 = arith.constant 0 : index
    %c0_4 = arith.constant 0 : index
    %c0_5 = arith.constant 0 : index
    %6 = vector.load %arg3[%c0_3, %c0_4, %c0_5] : memref<1x1x16xf32, #tpu.memory_space<vmem>>, vector<1x1x16xf32>
    %7 = vector.shape_cast %6 : vector<1x1x16xf32> to vector<1x16xf32>
    %8 = vector.broadcast %7 : vector<1x16xf32> to vector<64x16xf32>
    %9 = arith.mulf %5, %8 : vector<64x16xf32>
    %c0_6 = arith.constant 0 : index
    %c0_7 = arith.constant 0 : index
    %c0_8 = arith.constant 0 : index
    %10 = vector.load %arg4[%c0_6, %c0_7, %c0_8] : memref<1x1x16xf32, #tpu.memory_space<vmem>>, vector<1x1x16xf32>
    %11 = vector.shape_cast %10 : vector<1x1x16xf32> to vector<1x16xf32>
    %12 = vector.broadcast %11 : vector<1x16xf32> to vector<64x16xf32>
    %13 = arith.addf %9, %12 : vector<64x16xf32>
    %cst = arith.constant 0.000000e+00 : f32
    %14 = vector.broadcast %cst : f32 to vector<64x16xf32>
    %15 = arith.maximumf %13, %14 : vector<64x16xf32>
    %16 = arith.truncf %15 : vector<64x16xf32> to vector<64x16xbf16>
    %c0_9 = arith.constant 0 : index
    %c0_10 = arith.constant 0 : index
    %c0_11 = arith.constant 0 : index
    %17 = vector.load %arg5[%c0_9, %c0_10, %c0_11] : memref<1x64x16xbf16, #tpu.memory_space<vmem>>, vector<1x64x16xbf16>
    %18 = vector.shape_cast %17 : vector<1x64x16xbf16> to vector<64x16xbf16>
    %19 = vector.shape_cast %16 : vector<64x16xbf16> to vector<1x64x16xbf16>
    tpu.vector_store %arg5[%c0_9, %c0_10, %c0_11], %19 {strides = array<i32>} : memref<1x64x16xbf16, #tpu.memory_space<vmem>>, vector<1x64x16xbf16>,
    %c0_12 = arith.constant 0 : index
    %c0_13 = arith.constant 0 : index
    %20 = vector.load %arg7[%c0_12, %c0_13] : memref<1x16xf32, #tpu.memory_space<vmem>>, vector<1x16xf32>
    %cst_14 = arith.constant dense<0.000000e+00> : vector<16xf32>
    %21 = vector.multi_reduction <add>, %15, %cst_14 [0] : vector<64x16xf32> to vector<16xf32>
    %22 = vector.shape_cast %21 : vector<16xf32> to vector<1x16xf32>
    %23 = arith.addf %20, %22 : vector<1x16xf32>
    %c0_15 = arith.constant 0 : index
    %c0_16 = arith.constant 0 : index
    %24 = vector.load %arg7[%c0_15, %c0_16] : memref<1x16xf32, #tpu.memory_space<vmem>>, vector<1x16xf32>
    tpu.vector_store %arg7[%c0_15, %c0_16], %23 {strides = array<i32>} : memref<1x16xf32, #tpu.memory_space<vmem>>, vector<1x16xf32>,
    %c0_i32_17 = arith.constant 0 : i32
    %25 = arith.cmpi eq, %arg1, %c0_i32_17 : i32
    %26 = arith.extui %25 : i1 to i32
    %c0_i32_18 = arith.constant 0 : i32
    %27 = arith.cmpi ne, %26, %c0_i32_18 : i32
    scf.if %27 {
      %c0_19 = arith.constant 0 : index
      %c0_20 = arith.constant 0 : index
      %28 = vector.load %arg7[%c0_19, %c0_20] : memref<1x16xf32, #tpu.memory_space<vmem>>, vector<1x16xf32>
      %cst_21 = arith.constant 1.562500e-02 : f32
      %29 = vector.broadcast %cst_21 : f32 to vector<1x16xf32>
      %30 = arith.mulf %28, %29 : vector<1x16xf32>
      %c0_22 = arith.constant 0 : index
      %c0_23 = arith.constant 0 : index
      %c0_24 = arith.constant 0 : index
      %31 = vector.load %arg6[%c0_22, %c0_23, %c0_24] : memref<1x1x16xf32, #tpu.memory_space<vmem>>, vector<1x1x16xf32>
      %32 = vector.shape_cast %31 : vector<1x1x16xf32> to vector<1x16xf32>
      %33 = vector.shape_cast %30 : vector<1x16xf32> to vector<1x1x16xf32>
      tpu.vector_store %arg6[%c0_22, %c0_23, %c0_24], %33 {strides = array<i32>} : memref<1x1x16xf32, #tpu.memory_space<vmem>>, vector<1x1x16xf32>,
    } else {
    }
    return
  }
  func.func @transform_0(%arg0: i32, %arg1: i32) -> (i32, i32, i32) {
    %c0_i32 = arith.constant 0 : i32
    %c0_i32_0 = arith.constant 0 : i32
    return %arg0, %arg1, %c0_i32 : i32, i32, i32
  }
  func.func @transform_1(%arg0: i32, %arg1: i32) -> (i32, i32, i32) {
    %c0_i32 = arith.constant 0 : i32
    %c0_i32_0 = arith.constant 0 : i32
    %c0_i32_1 = arith.constant 0 : i32
    %c0_i32_2 = arith.constant 0 : i32
    return %c0_i32, %c0_i32_0, %c0_i32_1 : i32, i32, i32
  }
  func.func @transform_2(%arg0: i32, %arg1: i32) -> (i32, i32, i32) {
    %c0_i32 = arith.constant 0 : i32
    %c0_i32_0 = arith.constant 0 : i32
    %c0_i32_1 = arith.constant 0 : i32
    %c0_i32_2 = arith.constant 0 : i32
    return %c0_i32, %c0_i32_0, %c0_i32_1 : i32, i32, i32
  }
  func.func @transform_3(%arg0: i32, %arg1: i32) -> (i32, i32, i32) {
    %c0_i32 = arith.constant 0 : i32
    %c0_i32_0 = arith.constant 0 : i32
    return %arg0, %arg1, %c0_i32 : i32, i32, i32
  }
  func.func @transform_4(%arg0: i32, %arg1: i32) -> (i32, i32, i32) {
    %c0_i32 = arith.constant 0 : i32
    %c0_i32_0 = arith.constant 0 : i32
    %c0_i32_1 = arith.constant 0 : i32
    return %arg0, %c0_i32, %c0_i32_0 : i32, i32, i32
  }
}

module attributes {stable_mosaic.version = 11 : i64} {
  func.func @_bmm_epilogue_kernel(%arg0: i32, %arg1: i32, %arg2: i32, %arg3: i32, %arg4: memref<1x64x16xbf16, #tpu.memory_space<vmem>>, %arg5: memref<1x16x16xbf16, #tpu.memory_space<vmem>>, %arg6: memref<1x1x16xf32, #tpu.memory_space<vmem>>, %arg7: memref<1x1x16xf32, #tpu.memory_space<vmem>>, %arg8: memref<1x64x16xbf16, #tpu.memory_space<vmem>>, %arg9: memref<64x16xf32, #tpu.memory_space<vmem>>) attributes {dimension_semantics = [#tpu.dimension_semantics<parallel>, #tpu.dimension_semantics<parallel>, #tpu.dimension_semantics<parallel>, #tpu.dimension_semantics<arbitrary>], iteration_bounds = array<i64: 2, 1, 1, 1>, scalar_prefetch = 0 : i64, scratch_operands = 1 : i64, tpu.core_type = #tpu.core_type<tc>, window_params = [{transform_indices = @transform_0, window_bounds = array<i64: 1, 64, 16>}, {transform_indices = @transform_1, window_bounds = array<i64: 1, 16, 16>}, {transform_indices = @transform_2, window_bounds = array<i64: 1, 1, 16>}, {transform_indices = @transform_3, window_bounds = array<i64: 1, 1, 16>}, {transform_indices = @transform_4, window_bounds = array<i64: 1, 64, 16>}]} {
    %c0_i32 = arith.constant 0 : i32
    %0 = arith.cmpi eq, %arg3, %c0_i32 : i32
    %1 = arith.extui %0 : i1 to i32
    %c0_i32_0 = arith.constant 0 : i32
    %2 = arith.cmpi ne, %1, %c0_i32_0 : i32
    scf.if %2 {
      %cst_12 = arith.constant 0.000000e+00 : f32
      %14 = vector.broadcast %cst_12 : f32 to vector<64x16xf32>
      %c0_13 = arith.constant 0 : index
      %c0_14 = arith.constant 0 : index
      %15 = vector.load %arg9[%c0_13, %c0_14] : memref<64x16xf32, #tpu.memory_space<vmem>>, vector<64x16xf32>
      tpu.vector_store %arg9[%c0_13, %c0_14], %14 {strides = array<i32>} : memref<64x16xf32, #tpu.memory_space<vmem>>, vector<64x16xf32>,
    } else {
    }
    %c0 = arith.constant 0 : index
    %c0_1 = arith.constant 0 : index
    %3 = vector.load %arg9[%c0, %c0_1] : memref<64x16xf32, #tpu.memory_space<vmem>>, vector<64x16xf32>
    %c0_2 = arith.constant 0 : index
    %c0_3 = arith.constant 0 : index
    %c0_4 = arith.constant 0 : index
    %4 = vector.load %arg4[%c0_2, %c0_3, %c0_4] : memref<1x64x16xbf16, #tpu.memory_space<vmem>>, vector<1x64x16xbf16>
    %5 = vector.shape_cast %4 : vector<1x64x16xbf16> to vector<64x16xbf16>
    %c0_5 = arith.constant 0 : index
    %c0_6 = arith.constant 0 : index
    %c0_7 = arith.constant 0 : index
    %6 = vector.load %arg5[%c0_5, %c0_6, %c0_7] : memref<1x16x16xbf16, #tpu.memory_space<vmem>>, vector<1x16x16xbf16>
    %7 = vector.shape_cast %6 : vector<1x16x16xbf16> to vector<16x16xbf16>
    %cst = arith.constant dense<0.000000e+00> : vector<64x16xf32>
    %8 = tpu.matmul %5, %7, %cst {dimension_numbers = #tpu.dot_dimension_numbers<[1], [0], [0], [1], [0, 0, 1, 1], [], []>} : vector<64x16xbf16>, vector<16x16xbf16>, vector<64x16xf32> -> vector<64x16xf32>
    %9 = arith.addf %3, %8 : vector<64x16xf32>
    %c0_8 = arith.constant 0 : index
    %c0_9 = arith.constant 0 : index
    %10 = vector.load %arg9[%c0_8, %c0_9] : memref<64x16xf32, #tpu.memory_space<vmem>>, vector<64x16xf32>
    tpu.vector_store %arg9[%c0_8, %c0_9], %9 {strides = array<i32>} : memref<64x16xf32, #tpu.memory_space<vmem>>, vector<64x16xf32>,
    %c0_i32_10 = arith.constant 0 : i32
    %11 = arith.cmpi eq, %arg3, %c0_i32_10 : i32
    %12 = arith.extui %11 : i1 to i32
    %c0_i32_11 = arith.constant 0 : i32
    %13 = arith.cmpi ne, %12, %c0_i32_11 : i32
    scf.if %13 {
      %c0_12 = arith.constant 0 : index
      %c0_13 = arith.constant 0 : index
      %14 = vector.load %arg9[%c0_12, %c0_13] : memref<64x16xf32, #tpu.memory_space<vmem>>, vector<64x16xf32>
      %c0_14 = arith.constant 0 : index
      %c0_15 = arith.constant 0 : index
      %c0_16 = arith.constant 0 : index
      %15 = vector.load %arg6[%c0_14, %c0_15, %c0_16] : memref<1x1x16xf32, #tpu.memory_space<vmem>>, vector<1x1x16xf32>
      %16 = vector.shape_cast %15 : vector<1x1x16xf32> to vector<1x16xf32>
      %17 = vector.broadcast %16 : vector<1x16xf32> to vector<64x16xf32>
      %18 = arith.mulf %14, %17 : vector<64x16xf32>
      %c0_17 = arith.constant 0 : index
      %c0_18 = arith.constant 0 : index
      %c0_19 = arith.constant 0 : index
      %19 = vector.load %arg7[%c0_17, %c0_18, %c0_19] : memref<1x1x16xf32, #tpu.memory_space<vmem>>, vector<1x1x16xf32>
      %20 = vector.shape_cast %19 : vector<1x1x16xf32> to vector<1x16xf32>
      %21 = vector.broadcast %20 : vector<1x16xf32> to vector<64x16xf32>
      %22 = arith.addf %18, %21 : vector<64x16xf32>
      %cst_20 = arith.constant 0.000000e+00 : f32
      %23 = vector.broadcast %cst_20 : f32 to vector<64x16xf32>
      %24 = arith.maximumf %22, %23 : vector<64x16xf32>
      %25 = arith.truncf %24 : vector<64x16xf32> to vector<64x16xbf16>
      %c0_21 = arith.constant 0 : index
      %c0_22 = arith.constant 0 : index
      %c0_23 = arith.constant 0 : index
      %26 = vector.load %arg8[%c0_21, %c0_22, %c0_23] : memref<1x64x16xbf16, #tpu.memory_space<vmem>>, vector<1x64x16xbf16>
      %27 = vector.shape_cast %26 : vector<1x64x16xbf16> to vector<64x16xbf16>
      %28 = vector.shape_cast %25 : vector<64x16xbf16> to vector<1x64x16xbf16>
      tpu.vector_store %arg8[%c0_21, %c0_22, %c0_23], %28 {strides = array<i32>} : memref<1x64x16xbf16, #tpu.memory_space<vmem>>, vector<1x64x16xbf16>,
    } else {
    }
    return
  }
  func.func @transform_0(%arg0: i32, %arg1: i32, %arg2: i32, %arg3: i32) -> (i32, i32, i32) {
    %c0_i32 = arith.constant 0 : i32
    return %arg0, %arg1, %arg3 : i32, i32, i32
  }
  func.func @transform_1(%arg0: i32, %arg1: i32, %arg2: i32, %arg3: i32) -> (i32, i32, i32) {
    %c0_i32 = arith.constant 0 : i32
    return %arg0, %arg3, %arg2 : i32, i32, i32
  }
  func.func @transform_2(%arg0: i32, %arg1: i32, %arg2: i32, %arg3: i32) -> (i32, i32, i32) {
    %c0_i32 = arith.constant 0 : i32
    %c0_i32_0 = arith.constant 0 : i32
    %c0_i32_1 = arith.constant 0 : i32
    return %c0_i32, %c0_i32_0, %arg2 : i32, i32, i32
  }
  func.func @transform_3(%arg0: i32, %arg1: i32, %arg2: i32, %arg3: i32) -> (i32, i32, i32) {
    %c0_i32 = arith.constant 0 : i32
    %c0_i32_0 = arith.constant 0 : i32
    %c0_i32_1 = arith.constant 0 : i32
    return %c0_i32, %c0_i32_0, %arg2 : i32, i32, i32
  }
  func.func @transform_4(%arg0: i32, %arg1: i32, %arg2: i32, %arg3: i32) -> (i32, i32, i32) {
    %c0_i32 = arith.constant 0 : i32
    return %arg0, %arg1, %arg2 : i32, i32, i32
  }
}

module attributes {stable_mosaic.version = 11 : i64} {
  func.func @_bmm_kernel(%arg0: i32, %arg1: i32, %arg2: i32, %arg3: i32, %arg4: memref<1x64x144xbf16, #tpu.memory_space<vmem>>, %arg5: memref<1x144x4xbf16, #tpu.memory_space<vmem>>, %arg6: memref<1x64x4xbf16, #tpu.memory_space<vmem>>, %arg7: memref<64x4xf32, #tpu.memory_space<vmem>>) attributes {dimension_semantics = [#tpu.dimension_semantics<parallel>, #tpu.dimension_semantics<parallel>, #tpu.dimension_semantics<parallel>, #tpu.dimension_semantics<arbitrary>], iteration_bounds = array<i64: 2, 1, 1, 1>, scalar_prefetch = 0 : i64, scratch_operands = 1 : i64, tpu.core_type = #tpu.core_type<tc>, window_params = [{transform_indices = @transform_0, window_bounds = array<i64: 1, 64, 144>}, {transform_indices = @transform_1, window_bounds = array<i64: 1, 144, 4>}, {transform_indices = @transform_2, window_bounds = array<i64: 1, 64, 4>}]} {
    %c0_i32 = arith.constant 0 : i32
    %0 = arith.cmpi eq, %arg3, %c0_i32 : i32
    %1 = arith.extui %0 : i1 to i32
    %c0_i32_0 = arith.constant 0 : i32
    %2 = arith.cmpi ne, %1, %c0_i32_0 : i32
    scf.if %2 {
      %cst_12 = arith.constant 0.000000e+00 : f32
      %14 = vector.broadcast %cst_12 : f32 to vector<64x4xf32>
      %c0_13 = arith.constant 0 : index
      %c0_14 = arith.constant 0 : index
      %15 = vector.load %arg7[%c0_13, %c0_14] : memref<64x4xf32, #tpu.memory_space<vmem>>, vector<64x4xf32>
      tpu.vector_store %arg7[%c0_13, %c0_14], %14 {strides = array<i32>} : memref<64x4xf32, #tpu.memory_space<vmem>>, vector<64x4xf32>,
    } else {
    }
    %c0 = arith.constant 0 : index
    %c0_1 = arith.constant 0 : index
    %3 = vector.load %arg7[%c0, %c0_1] : memref<64x4xf32, #tpu.memory_space<vmem>>, vector<64x4xf32>
    %c0_2 = arith.constant 0 : index
    %c0_3 = arith.constant 0 : index
    %c0_4 = arith.constant 0 : index
    %4 = vector.load %arg4[%c0_2, %c0_3, %c0_4] : memref<1x64x144xbf16, #tpu.memory_space<vmem>>, vector<1x64x144xbf16>
    %5 = vector.shape_cast %4 : vector<1x64x144xbf16> to vector<64x144xbf16>
    %c0_5 = arith.constant 0 : index
    %c0_6 = arith.constant 0 : index
    %c0_7 = arith.constant 0 : index
    %6 = vector.load %arg5[%c0_5, %c0_6, %c0_7] : memref<1x144x4xbf16, #tpu.memory_space<vmem>>, vector<1x144x4xbf16>
    %7 = vector.shape_cast %6 : vector<1x144x4xbf16> to vector<144x4xbf16>
    %cst = arith.constant dense<0.000000e+00> : vector<64x4xf32>
    %8 = tpu.matmul %5, %7, %cst {dimension_numbers = #tpu.dot_dimension_numbers<[1], [0], [0], [1], [0, 0, 1, 1], [], []>} : vector<64x144xbf16>, vector<144x4xbf16>, vector<64x4xf32> -> vector<64x4xf32>
    %9 = arith.addf %3, %8 : vector<64x4xf32>
    %c0_8 = arith.constant 0 : index
    %c0_9 = arith.constant 0 : index
    %10 = vector.load %arg7[%c0_8, %c0_9] : memref<64x4xf32, #tpu.memory_space<vmem>>, vector<64x4xf32>
    tpu.vector_store %arg7[%c0_8, %c0_9], %9 {strides = array<i32>} : memref<64x4xf32, #tpu.memory_space<vmem>>, vector<64x4xf32>,
    %c0_i32_10 = arith.constant 0 : i32
    %11 = arith.cmpi eq, %arg3, %c0_i32_10 : i32
    %12 = arith.extui %11 : i1 to i32
    %c0_i32_11 = arith.constant 0 : i32
    %13 = arith.cmpi ne, %12, %c0_i32_11 : i32
    scf.if %13 {
      %c0_12 = arith.constant 0 : index
      %c0_13 = arith.constant 0 : index
      %14 = vector.load %arg7[%c0_12, %c0_13] : memref<64x4xf32, #tpu.memory_space<vmem>>, vector<64x4xf32>
      %15 = arith.truncf %14 : vector<64x4xf32> to vector<64x4xbf16>
      %c0_14 = arith.constant 0 : index
      %c0_15 = arith.constant 0 : index
      %c0_16 = arith.constant 0 : index
      %16 = vector.load %arg6[%c0_14, %c0_15, %c0_16] : memref<1x64x4xbf16, #tpu.memory_space<vmem>>, vector<1x64x4xbf16>
      %17 = vector.shape_cast %16 : vector<1x64x4xbf16> to vector<64x4xbf16>
      %18 = vector.shape_cast %15 : vector<64x4xbf16> to vector<1x64x4xbf16>
      tpu.vector_store %arg6[%c0_14, %c0_15, %c0_16], %18 {strides = array<i32>} : memref<1x64x4xbf16, #tpu.memory_space<vmem>>, vector<1x64x4xbf16>,
    } else {
    }
    return
  }
  func.func @transform_0(%arg0: i32, %arg1: i32, %arg2: i32, %arg3: i32) -> (i32, i32, i32) {
    %c0_i32 = arith.constant 0 : i32
    return %arg0, %arg1, %arg3 : i32, i32, i32
  }
  func.func @transform_1(%arg0: i32, %arg1: i32, %arg2: i32, %arg3: i32) -> (i32, i32, i32) {
    %c0_i32 = arith.constant 0 : i32
    return %arg0, %arg3, %arg2 : i32, i32, i32
  }
  func.func @transform_2(%arg0: i32, %arg1: i32, %arg2: i32, %arg3: i32) -> (i32, i32, i32) {
    %c0_i32 = arith.constant 0 : i32
    return %arg0, %arg1, %arg2 : i32, i32, i32
  }
}

module attributes {stable_mosaic.version = 11 : i64} {
  func.func @_bn_relu_gap_kernel(%arg0: i32, %arg1: i32, %arg2: memref<1x64x20xbf16, #tpu.memory_space<vmem>>, %arg3: memref<1x1x20xf32, #tpu.memory_space<vmem>>, %arg4: memref<1x1x20xf32, #tpu.memory_space<vmem>>, %arg5: memref<1x64x20xbf16, #tpu.memory_space<vmem>>, %arg6: memref<1x1x20xf32, #tpu.memory_space<vmem>>, %arg7: memref<1x20xf32, #tpu.memory_space<vmem>>) attributes {dimension_semantics = [#tpu.dimension_semantics<parallel>, #tpu.dimension_semantics<arbitrary>], iteration_bounds = array<i64: 2, 1>, scalar_prefetch = 0 : i64, scratch_operands = 1 : i64, tpu.core_type = #tpu.core_type<tc>, window_params = [{transform_indices = @transform_0, window_bounds = array<i64: 1, 64, 20>}, {pipeline_mode = #tpu.pipeline_mode<synchronous>, transform_indices = @transform_1, window_bounds = array<i64: 1, 1, 20>}, {pipeline_mode = #tpu.pipeline_mode<synchronous>, transform_indices = @transform_2, window_bounds = array<i64: 1, 1, 20>}, {transform_indices = @transform_3, window_bounds = array<i64: 1, 64, 20>}, {transform_indices = @transform_4, window_bounds = array<i64: 1, 1, 20>}]} {
    %c0_i32 = arith.constant 0 : i32
    %0 = arith.cmpi eq, %arg1, %c0_i32 : i32
    %1 = arith.extui %0 : i1 to i32
    %c0_i32_0 = arith.constant 0 : i32
    %2 = arith.cmpi ne, %1, %c0_i32_0 : i32
    scf.if %2 {
      %cst_19 = arith.constant 0.000000e+00 : f32
      %28 = vector.broadcast %cst_19 : f32 to vector<1x20xf32>
      %c0_20 = arith.constant 0 : index
      %c0_21 = arith.constant 0 : index
      %29 = vector.load %arg7[%c0_20, %c0_21] : memref<1x20xf32, #tpu.memory_space<vmem>>, vector<1x20xf32>
      tpu.vector_store %arg7[%c0_20, %c0_21], %28 {strides = array<i32>} : memref<1x20xf32, #tpu.memory_space<vmem>>, vector<1x20xf32>,
    } else {
    }
    %c0 = arith.constant 0 : index
    %c0_1 = arith.constant 0 : index
    %c0_2 = arith.constant 0 : index
    %3 = vector.load %arg2[%c0, %c0_1, %c0_2] : memref<1x64x20xbf16, #tpu.memory_space<vmem>>, vector<1x64x20xbf16>
    %4 = vector.shape_cast %3 : vector<1x64x20xbf16> to vector<64x20xbf16>
    %5 = arith.extf %4 : vector<64x20xbf16> to vector<64x20xf32>
    %c0_3 = arith.constant 0 : index
    %c0_4 = arith.constant 0 : index
    %c0_5 = arith.constant 0 : index
    %6 = vector.load %arg3[%c0_3, %c0_4, %c0_5] : memref<1x1x20xf32, #tpu.memory_space<vmem>>, vector<1x1x20xf32>
    %7 = vector.shape_cast %6 : vector<1x1x20xf32> to vector<1x20xf32>
    %8 = vector.broadcast %7 : vector<1x20xf32> to vector<64x20xf32>
    %9 = arith.mulf %5, %8 : vector<64x20xf32>
    %c0_6 = arith.constant 0 : index
    %c0_7 = arith.constant 0 : index
    %c0_8 = arith.constant 0 : index
    %10 = vector.load %arg4[%c0_6, %c0_7, %c0_8] : memref<1x1x20xf32, #tpu.memory_space<vmem>>, vector<1x1x20xf32>
    %11 = vector.shape_cast %10 : vector<1x1x20xf32> to vector<1x20xf32>
    %12 = vector.broadcast %11 : vector<1x20xf32> to vector<64x20xf32>
    %13 = arith.addf %9, %12 : vector<64x20xf32>
    %cst = arith.constant 0.000000e+00 : f32
    %14 = vector.broadcast %cst : f32 to vector<64x20xf32>
    %15 = arith.maximumf %13, %14 : vector<64x20xf32>
    %16 = arith.truncf %15 : vector<64x20xf32> to vector<64x20xbf16>
    %c0_9 = arith.constant 0 : index
    %c0_10 = arith.constant 0 : index
    %c0_11 = arith.constant 0 : index
    %17 = vector.load %arg5[%c0_9, %c0_10, %c0_11] : memref<1x64x20xbf16, #tpu.memory_space<vmem>>, vector<1x64x20xbf16>
    %18 = vector.shape_cast %17 : vector<1x64x20xbf16> to vector<64x20xbf16>
    %19 = vector.shape_cast %16 : vector<64x20xbf16> to vector<1x64x20xbf16>
    tpu.vector_store %arg5[%c0_9, %c0_10, %c0_11], %19 {strides = array<i32>} : memref<1x64x20xbf16, #tpu.memory_space<vmem>>, vector<1x64x20xbf16>,
    %c0_12 = arith.constant 0 : index
    %c0_13 = arith.constant 0 : index
    %20 = vector.load %arg7[%c0_12, %c0_13] : memref<1x20xf32, #tpu.memory_space<vmem>>, vector<1x20xf32>
    %cst_14 = arith.constant dense<0.000000e+00> : vector<20xf32>
    %21 = vector.multi_reduction <add>, %15, %cst_14 [0] : vector<64x20xf32> to vector<20xf32>
    %22 = vector.shape_cast %21 : vector<20xf32> to vector<1x20xf32>
    %23 = arith.addf %20, %22 : vector<1x20xf32>
    %c0_15 = arith.constant 0 : index
    %c0_16 = arith.constant 0 : index
    %24 = vector.load %arg7[%c0_15, %c0_16] : memref<1x20xf32, #tpu.memory_space<vmem>>, vector<1x20xf32>
    tpu.vector_store %arg7[%c0_15, %c0_16], %23 {strides = array<i32>} : memref<1x20xf32, #tpu.memory_space<vmem>>, vector<1x20xf32>,
    %c0_i32_17 = arith.constant 0 : i32
    %25 = arith.cmpi eq, %arg1, %c0_i32_17 : i32
    %26 = arith.extui %25 : i1 to i32
    %c0_i32_18 = arith.constant 0 : i32
    %27 = arith.cmpi ne, %26, %c0_i32_18 : i32
    scf.if %27 {
      %c0_19 = arith.constant 0 : index
      %c0_20 = arith.constant 0 : index
      %28 = vector.load %arg7[%c0_19, %c0_20] : memref<1x20xf32, #tpu.memory_space<vmem>>, vector<1x20xf32>
      %cst_21 = arith.constant 1.562500e-02 : f32
      %29 = vector.broadcast %cst_21 : f32 to vector<1x20xf32>
      %30 = arith.mulf %28, %29 : vector<1x20xf32>
      %c0_22 = arith.constant 0 : index
      %c0_23 = arith.constant 0 : index
      %c0_24 = arith.constant 0 : index
      %31 = vector.load %arg6[%c0_22, %c0_23, %c0_24] : memref<1x1x20xf32, #tpu.memory_space<vmem>>, vector<1x1x20xf32>
      %32 = vector.shape_cast %31 : vector<1x1x20xf32> to vector<1x20xf32>
      %33 = vector.shape_cast %30 : vector<1x20xf32> to vector<1x1x20xf32>
      tpu.vector_store %arg6[%c0_22, %c0_23, %c0_24], %33 {strides = array<i32>} : memref<1x1x20xf32, #tpu.memory_space<vmem>>, vector<1x1x20xf32>,
    } else {
    }
    return
  }
  func.func @transform_0(%arg0: i32, %arg1: i32) -> (i32, i32, i32) {
    %c0_i32 = arith.constant 0 : i32
    %c0_i32_0 = arith.constant 0 : i32
    return %arg0, %arg1, %c0_i32 : i32, i32, i32
  }
  func.func @transform_1(%arg0: i32, %arg1: i32) -> (i32, i32, i32) {
    %c0_i32 = arith.constant 0 : i32
    %c0_i32_0 = arith.constant 0 : i32
    %c0_i32_1 = arith.constant 0 : i32
    %c0_i32_2 = arith.constant 0 : i32
    return %c0_i32, %c0_i32_0, %c0_i32_1 : i32, i32, i32
  }
  func.func @transform_2(%arg0: i32, %arg1: i32) -> (i32, i32, i32) {
    %c0_i32 = arith.constant 0 : i32
    %c0_i32_0 = arith.constant 0 : i32
    %c0_i32_1 = arith.constant 0 : i32
    %c0_i32_2 = arith.constant 0 : i32
    return %c0_i32, %c0_i32_0, %c0_i32_1 : i32, i32, i32
  }
  func.func @transform_3(%arg0: i32, %arg1: i32) -> (i32, i32, i32) {
    %c0_i32 = arith.constant 0 : i32
    %c0_i32_0 = arith.constant 0 : i32
    return %arg0, %arg1, %c0_i32 : i32, i32, i32
  }
  func.func @transform_4(%arg0: i32, %arg1: i32) -> (i32, i32, i32) {
    %c0_i32 = arith.constant 0 : i32
    %c0_i32_0 = arith.constant 0 : i32
    %c0_i32_1 = arith.constant 0 : i32
    return %arg0, %c0_i32, %c0_i32_0 : i32, i32, i32
  }
}

module attributes {stable_mosaic.version = 11 : i64} {
  func.func @_bmm_epilogue_kernel(%arg0: i32, %arg1: i32, %arg2: i32, %arg3: i32, %arg4: memref<1x64x20xbf16, #tpu.memory_space<vmem>>, %arg5: memref<1x20x16xbf16, #tpu.memory_space<vmem>>, %arg6: memref<1x1x16xf32, #tpu.memory_space<vmem>>, %arg7: memref<1x1x16xf32, #tpu.memory_space<vmem>>, %arg8: memref<1x64x16xbf16, #tpu.memory_space<vmem>>, %arg9: memref<64x16xf32, #tpu.memory_space<vmem>>) attributes {dimension_semantics = [#tpu.dimension_semantics<parallel>, #tpu.dimension_semantics<parallel>, #tpu.dimension_semantics<parallel>, #tpu.dimension_semantics<arbitrary>], iteration_bounds = array<i64: 2, 1, 1, 1>, scalar_prefetch = 0 : i64, scratch_operands = 1 : i64, tpu.core_type = #tpu.core_type<tc>, window_params = [{transform_indices = @transform_0, window_bounds = array<i64: 1, 64, 20>}, {transform_indices = @transform_1, window_bounds = array<i64: 1, 20, 16>}, {transform_indices = @transform_2, window_bounds = array<i64: 1, 1, 16>}, {transform_indices = @transform_3, window_bounds = array<i64: 1, 1, 16>}, {transform_indices = @transform_4, window_bounds = array<i64: 1, 64, 16>}]} {
    %c0_i32 = arith.constant 0 : i32
    %0 = arith.cmpi eq, %arg3, %c0_i32 : i32
    %1 = arith.extui %0 : i1 to i32
    %c0_i32_0 = arith.constant 0 : i32
    %2 = arith.cmpi ne, %1, %c0_i32_0 : i32
    scf.if %2 {
      %cst_12 = arith.constant 0.000000e+00 : f32
      %14 = vector.broadcast %cst_12 : f32 to vector<64x16xf32>
      %c0_13 = arith.constant 0 : index
      %c0_14 = arith.constant 0 : index
      %15 = vector.load %arg9[%c0_13, %c0_14] : memref<64x16xf32, #tpu.memory_space<vmem>>, vector<64x16xf32>
      tpu.vector_store %arg9[%c0_13, %c0_14], %14 {strides = array<i32>} : memref<64x16xf32, #tpu.memory_space<vmem>>, vector<64x16xf32>,
    } else {
    }
    %c0 = arith.constant 0 : index
    %c0_1 = arith.constant 0 : index
    %3 = vector.load %arg9[%c0, %c0_1] : memref<64x16xf32, #tpu.memory_space<vmem>>, vector<64x16xf32>
    %c0_2 = arith.constant 0 : index
    %c0_3 = arith.constant 0 : index
    %c0_4 = arith.constant 0 : index
    %4 = vector.load %arg4[%c0_2, %c0_3, %c0_4] : memref<1x64x20xbf16, #tpu.memory_space<vmem>>, vector<1x64x20xbf16>
    %5 = vector.shape_cast %4 : vector<1x64x20xbf16> to vector<64x20xbf16>
    %c0_5 = arith.constant 0 : index
    %c0_6 = arith.constant 0 : index
    %c0_7 = arith.constant 0 : index
    %6 = vector.load %arg5[%c0_5, %c0_6, %c0_7] : memref<1x20x16xbf16, #tpu.memory_space<vmem>>, vector<1x20x16xbf16>
    %7 = vector.shape_cast %6 : vector<1x20x16xbf16> to vector<20x16xbf16>
    %cst = arith.constant dense<0.000000e+00> : vector<64x16xf32>
    %8 = tpu.matmul %5, %7, %cst {dimension_numbers = #tpu.dot_dimension_numbers<[1], [0], [0], [1], [0, 0, 1, 1], [], []>} : vector<64x20xbf16>, vector<20x16xbf16>, vector<64x16xf32> -> vector<64x16xf32>
    %9 = arith.addf %3, %8 : vector<64x16xf32>
    %c0_8 = arith.constant 0 : index
    %c0_9 = arith.constant 0 : index
    %10 = vector.load %arg9[%c0_8, %c0_9] : memref<64x16xf32, #tpu.memory_space<vmem>>, vector<64x16xf32>
    tpu.vector_store %arg9[%c0_8, %c0_9], %9 {strides = array<i32>} : memref<64x16xf32, #tpu.memory_space<vmem>>, vector<64x16xf32>,
    %c0_i32_10 = arith.constant 0 : i32
    %11 = arith.cmpi eq, %arg3, %c0_i32_10 : i32
    %12 = arith.extui %11 : i1 to i32
    %c0_i32_11 = arith.constant 0 : i32
    %13 = arith.cmpi ne, %12, %c0_i32_11 : i32
    scf.if %13 {
      %c0_12 = arith.constant 0 : index
      %c0_13 = arith.constant 0 : index
      %14 = vector.load %arg9[%c0_12, %c0_13] : memref<64x16xf32, #tpu.memory_space<vmem>>, vector<64x16xf32>
      %c0_14 = arith.constant 0 : index
      %c0_15 = arith.constant 0 : index
      %c0_16 = arith.constant 0 : index
      %15 = vector.load %arg6[%c0_14, %c0_15, %c0_16] : memref<1x1x16xf32, #tpu.memory_space<vmem>>, vector<1x1x16xf32>
      %16 = vector.shape_cast %15 : vector<1x1x16xf32> to vector<1x16xf32>
      %17 = vector.broadcast %16 : vector<1x16xf32> to vector<64x16xf32>
      %18 = arith.mulf %14, %17 : vector<64x16xf32>
      %c0_17 = arith.constant 0 : index
      %c0_18 = arith.constant 0 : index
      %c0_19 = arith.constant 0 : index
      %19 = vector.load %arg7[%c0_17, %c0_18, %c0_19] : memref<1x1x16xf32, #tpu.memory_space<vmem>>, vector<1x1x16xf32>
      %20 = vector.shape_cast %19 : vector<1x1x16xf32> to vector<1x16xf32>
      %21 = vector.broadcast %20 : vector<1x16xf32> to vector<64x16xf32>
      %22 = arith.addf %18, %21 : vector<64x16xf32>
      %cst_20 = arith.constant 0.000000e+00 : f32
      %23 = vector.broadcast %cst_20 : f32 to vector<64x16xf32>
      %24 = arith.maximumf %22, %23 : vector<64x16xf32>
      %25 = arith.truncf %24 : vector<64x16xf32> to vector<64x16xbf16>
      %c0_21 = arith.constant 0 : index
      %c0_22 = arith.constant 0 : index
      %c0_23 = arith.constant 0 : index
      %26 = vector.load %arg8[%c0_21, %c0_22, %c0_23] : memref<1x64x16xbf16, #tpu.memory_space<vmem>>, vector<1x64x16xbf16>
      %27 = vector.shape_cast %26 : vector<1x64x16xbf16> to vector<64x16xbf16>
      %28 = vector.shape_cast %25 : vector<64x16xbf16> to vector<1x64x16xbf16>
      tpu.vector_store %arg8[%c0_21, %c0_22, %c0_23], %28 {strides = array<i32>} : memref<1x64x16xbf16, #tpu.memory_space<vmem>>, vector<1x64x16xbf16>,
    } else {
    }
    return
  }
  func.func @transform_0(%arg0: i32, %arg1: i32, %arg2: i32, %arg3: i32) -> (i32, i32, i32) {
    %c0_i32 = arith.constant 0 : i32
    return %arg0, %arg1, %arg3 : i32, i32, i32
  }
  func.func @transform_1(%arg0: i32, %arg1: i32, %arg2: i32, %arg3: i32) -> (i32, i32, i32) {
    %c0_i32 = arith.constant 0 : i32
    return %arg0, %arg3, %arg2 : i32, i32, i32
  }
  func.func @transform_2(%arg0: i32, %arg1: i32, %arg2: i32, %arg3: i32) -> (i32, i32, i32) {
    %c0_i32 = arith.constant 0 : i32
    %c0_i32_0 = arith.constant 0 : i32
    %c0_i32_1 = arith.constant 0 : i32
    return %c0_i32, %c0_i32_0, %arg2 : i32, i32, i32
  }
  func.func @transform_3(%arg0: i32, %arg1: i32, %arg2: i32, %arg3: i32) -> (i32, i32, i32) {
    %c0_i32 = arith.constant 0 : i32
    %c0_i32_0 = arith.constant 0 : i32
    %c0_i32_1 = arith.constant 0 : i32
    return %c0_i32, %c0_i32_0, %arg2 : i32, i32, i32
  }
  func.func @transform_4(%arg0: i32, %arg1: i32, %arg2: i32, %arg3: i32) -> (i32, i32, i32) {
    %c0_i32 = arith.constant 0 : i32
    return %arg0, %arg1, %arg2 : i32, i32, i32
  }
}

module attributes {stable_mosaic.version = 11 : i64} {
  func.func @_bn_relu_gap_kernel(%arg0: i32, %arg1: i32, %arg2: memref<1x64x24xbf16, #tpu.memory_space<vmem>>, %arg3: memref<1x1x24xf32, #tpu.memory_space<vmem>>, %arg4: memref<1x1x24xf32, #tpu.memory_space<vmem>>, %arg5: memref<1x64x24xbf16, #tpu.memory_space<vmem>>, %arg6: memref<1x1x24xf32, #tpu.memory_space<vmem>>, %arg7: memref<1x24xf32, #tpu.memory_space<vmem>>) attributes {dimension_semantics = [#tpu.dimension_semantics<parallel>, #tpu.dimension_semantics<arbitrary>], iteration_bounds = array<i64: 2, 1>, scalar_prefetch = 0 : i64, scratch_operands = 1 : i64, tpu.core_type = #tpu.core_type<tc>, window_params = [{transform_indices = @transform_0, window_bounds = array<i64: 1, 64, 24>}, {pipeline_mode = #tpu.pipeline_mode<synchronous>, transform_indices = @transform_1, window_bounds = array<i64: 1, 1, 24>}, {pipeline_mode = #tpu.pipeline_mode<synchronous>, transform_indices = @transform_2, window_bounds = array<i64: 1, 1, 24>}, {transform_indices = @transform_3, window_bounds = array<i64: 1, 64, 24>}, {transform_indices = @transform_4, window_bounds = array<i64: 1, 1, 24>}]} {
    %c0_i32 = arith.constant 0 : i32
    %0 = arith.cmpi eq, %arg1, %c0_i32 : i32
    %1 = arith.extui %0 : i1 to i32
    %c0_i32_0 = arith.constant 0 : i32
    %2 = arith.cmpi ne, %1, %c0_i32_0 : i32
    scf.if %2 {
      %cst_19 = arith.constant 0.000000e+00 : f32
      %28 = vector.broadcast %cst_19 : f32 to vector<1x24xf32>
      %c0_20 = arith.constant 0 : index
      %c0_21 = arith.constant 0 : index
      %29 = vector.load %arg7[%c0_20, %c0_21] : memref<1x24xf32, #tpu.memory_space<vmem>>, vector<1x24xf32>
      tpu.vector_store %arg7[%c0_20, %c0_21], %28 {strides = array<i32>} : memref<1x24xf32, #tpu.memory_space<vmem>>, vector<1x24xf32>,
    } else {
    }
    %c0 = arith.constant 0 : index
    %c0_1 = arith.constant 0 : index
    %c0_2 = arith.constant 0 : index
    %3 = vector.load %arg2[%c0, %c0_1, %c0_2] : memref<1x64x24xbf16, #tpu.memory_space<vmem>>, vector<1x64x24xbf16>
    %4 = vector.shape_cast %3 : vector<1x64x24xbf16> to vector<64x24xbf16>
    %5 = arith.extf %4 : vector<64x24xbf16> to vector<64x24xf32>
    %c0_3 = arith.constant 0 : index
    %c0_4 = arith.constant 0 : index
    %c0_5 = arith.constant 0 : index
    %6 = vector.load %arg3[%c0_3, %c0_4, %c0_5] : memref<1x1x24xf32, #tpu.memory_space<vmem>>, vector<1x1x24xf32>
    %7 = vector.shape_cast %6 : vector<1x1x24xf32> to vector<1x24xf32>
    %8 = vector.broadcast %7 : vector<1x24xf32> to vector<64x24xf32>
    %9 = arith.mulf %5, %8 : vector<64x24xf32>
    %c0_6 = arith.constant 0 : index
    %c0_7 = arith.constant 0 : index
    %c0_8 = arith.constant 0 : index
    %10 = vector.load %arg4[%c0_6, %c0_7, %c0_8] : memref<1x1x24xf32, #tpu.memory_space<vmem>>, vector<1x1x24xf32>
    %11 = vector.shape_cast %10 : vector<1x1x24xf32> to vector<1x24xf32>
    %12 = vector.broadcast %11 : vector<1x24xf32> to vector<64x24xf32>
    %13 = arith.addf %9, %12 : vector<64x24xf32>
    %cst = arith.constant 0.000000e+00 : f32
    %14 = vector.broadcast %cst : f32 to vector<64x24xf32>
    %15 = arith.maximumf %13, %14 : vector<64x24xf32>
    %16 = arith.truncf %15 : vector<64x24xf32> to vector<64x24xbf16>
    %c0_9 = arith.constant 0 : index
    %c0_10 = arith.constant 0 : index
    %c0_11 = arith.constant 0 : index
    %17 = vector.load %arg5[%c0_9, %c0_10, %c0_11] : memref<1x64x24xbf16, #tpu.memory_space<vmem>>, vector<1x64x24xbf16>
    %18 = vector.shape_cast %17 : vector<1x64x24xbf16> to vector<64x24xbf16>
    %19 = vector.shape_cast %16 : vector<64x24xbf16> to vector<1x64x24xbf16>
    tpu.vector_store %arg5[%c0_9, %c0_10, %c0_11], %19 {strides = array<i32>} : memref<1x64x24xbf16, #tpu.memory_space<vmem>>, vector<1x64x24xbf16>,
    %c0_12 = arith.constant 0 : index
    %c0_13 = arith.constant 0 : index
    %20 = vector.load %arg7[%c0_12, %c0_13] : memref<1x24xf32, #tpu.memory_space<vmem>>, vector<1x24xf32>
    %cst_14 = arith.constant dense<0.000000e+00> : vector<24xf32>
    %21 = vector.multi_reduction <add>, %15, %cst_14 [0] : vector<64x24xf32> to vector<24xf32>
    %22 = vector.shape_cast %21 : vector<24xf32> to vector<1x24xf32>
    %23 = arith.addf %20, %22 : vector<1x24xf32>
    %c0_15 = arith.constant 0 : index
    %c0_16 = arith.constant 0 : index
    %24 = vector.load %arg7[%c0_15, %c0_16] : memref<1x24xf32, #tpu.memory_space<vmem>>, vector<1x24xf32>
    tpu.vector_store %arg7[%c0_15, %c0_16], %23 {strides = array<i32>} : memref<1x24xf32, #tpu.memory_space<vmem>>, vector<1x24xf32>,
    %c0_i32_17 = arith.constant 0 : i32
    %25 = arith.cmpi eq, %arg1, %c0_i32_17 : i32
    %26 = arith.extui %25 : i1 to i32
    %c0_i32_18 = arith.constant 0 : i32
    %27 = arith.cmpi ne, %26, %c0_i32_18 : i32
    scf.if %27 {
      %c0_19 = arith.constant 0 : index
      %c0_20 = arith.constant 0 : index
      %28 = vector.load %arg7[%c0_19, %c0_20] : memref<1x24xf32, #tpu.memory_space<vmem>>, vector<1x24xf32>
      %cst_21 = arith.constant 1.562500e-02 : f32
      %29 = vector.broadcast %cst_21 : f32 to vector<1x24xf32>
      %30 = arith.mulf %28, %29 : vector<1x24xf32>
      %c0_22 = arith.constant 0 : index
      %c0_23 = arith.constant 0 : index
      %c0_24 = arith.constant 0 : index
      %31 = vector.load %arg6[%c0_22, %c0_23, %c0_24] : memref<1x1x24xf32, #tpu.memory_space<vmem>>, vector<1x1x24xf32>
      %32 = vector.shape_cast %31 : vector<1x1x24xf32> to vector<1x24xf32>
      %33 = vector.shape_cast %30 : vector<1x24xf32> to vector<1x1x24xf32>
      tpu.vector_store %arg6[%c0_22, %c0_23, %c0_24], %33 {strides = array<i32>} : memref<1x1x24xf32, #tpu.memory_space<vmem>>, vector<1x1x24xf32>,
    } else {
    }
    return
  }
  func.func @transform_0(%arg0: i32, %arg1: i32) -> (i32, i32, i32) {
    %c0_i32 = arith.constant 0 : i32
    %c0_i32_0 = arith.constant 0 : i32
    return %arg0, %arg1, %c0_i32 : i32, i32, i32
  }
  func.func @transform_1(%arg0: i32, %arg1: i32) -> (i32, i32, i32) {
    %c0_i32 = arith.constant 0 : i32
    %c0_i32_0 = arith.constant 0 : i32
    %c0_i32_1 = arith.constant 0 : i32
    %c0_i32_2 = arith.constant 0 : i32
    return %c0_i32, %c0_i32_0, %c0_i32_1 : i32, i32, i32
  }
  func.func @transform_2(%arg0: i32, %arg1: i32) -> (i32, i32, i32) {
    %c0_i32 = arith.constant 0 : i32
    %c0_i32_0 = arith.constant 0 : i32
    %c0_i32_1 = arith.constant 0 : i32
    %c0_i32_2 = arith.constant 0 : i32
    return %c0_i32, %c0_i32_0, %c0_i32_1 : i32, i32, i32
  }
  func.func @transform_3(%arg0: i32, %arg1: i32) -> (i32, i32, i32) {
    %c0_i32 = arith.constant 0 : i32
    %c0_i32_0 = arith.constant 0 : i32
    return %arg0, %arg1, %c0_i32 : i32, i32, i32
  }
  func.func @transform_4(%arg0: i32, %arg1: i32) -> (i32, i32, i32) {
    %c0_i32 = arith.constant 0 : i32
    %c0_i32_0 = arith.constant 0 : i32
    %c0_i32_1 = arith.constant 0 : i32
    return %arg0, %c0_i32, %c0_i32_0 : i32, i32, i32
  }
}

</mosaic_0001>

<llo_original>
// kernel: dydensenet_forward.15
$region0: #{dydensenet_forward.15}
  #allocation0 [shape = 'u32[]', space=smem, size = 0x4, offset = 0x4, fixed_abs, tag = 'smem constant byte address 0x4 - core index']
  #allocation1 [shape = 'u32[144,128]{1,0:T(1,128)}', space=vmem, size = 0x12000, scoped, tag = 'internal scratch']
  #allocation2 [shape = 'f32[1,8]{1,0:T(1,128)}', space=vmem, size = 0x200, scoped, tag = 'scratch operand']
  %s0 = inlined_call_operand.vmem [shape: bf16[2,256,8], index: 0, kind: input, shape index: {}]
  %s1 = inlined_call_operand.vmem [shape: f32[1,1,8], index: 1, kind: input, shape index: {}]
  %s2 = inlined_call_operand.vmem [shape: f32[1,1,8], index: 2, kind: input, shape index: {}]
  %s3 = inlined_call_operand.vmem [shape: bf16[2,256,8], index: 3, kind: output, shape index: {0}]
  %s4 = inlined_call_operand.vmem [shape: f32[2,1,8], index: 4, kind: output, shape index: {1}]
  %5 = xla_tuple %s3, %s4
  %s6 = sld [smem:[#allocation0]]
  $region61: #{dydensenet_forward.15} parent=0
    _
  %s8 = ssub.s32 1, %s6
  %s9 = scalar_select 0, %s8, %s6
  loop: start=0, step=1, limit=4
  $region2: #{dydensenet_forward.15} parent=0 // loop_pre_header
    _
  $region3: #{dydensenet_forward.15} parent=0 // loop_header
    %s11 = sphi 0, %s15
    %p12 = scmp.ge.s32.totalorder %s11, 4
    %s18 = sphi 0, %s30
    %s19 = sphi 0, %s26
    %s20 = sphi 0, %s18
    %s21 = sphi 0, %s19
    %s22 = sphi 0, %s20
    %s23 = sphi 0, %s21
    %s35 = sphi 0, %s37
    %s38 = sphi 0, %s35
    %s39 = sphi 0, %s38
    %s55 = sphi 0, %s39
    %s59 = sphi 0, %s59
    %s61 = sphi 0, %s59
    %s62 = sphi 0, %s61
    %s76 = sphi 0, %s62
    %s80 = sphi 0, %s80
    %s82 = sphi 0, %s80
    %s83 = sphi 0, %s82
    %s97 = sphi 0, %s83
    %s105 = sphi 0, %s107
    %s108 = sphi 0, %s105
    %s109 = sphi 0, %s108
    %s125 = sphi 0, %s109
    %s131 = sphi 0, %s133
    %s134 = sphi 0, %s131
    %s135 = sphi 0, %s134
    %s151 = sphi 0, %s135
  $region4: #{dydensenet_forward.15} parent=0 // loop_header_branch
    %14 = sbr.rel (%p12) target = $region8
  $region5: #{dydensenet_forward.15} parent=0 // loop_body
    %s16 = ssub.s32 %s11, 1
    %s17 = ssub.s32 %s11, 2
    %s24 = sadd.s32 1, %s19
    %p25 = scmp.ge.s32.totalorder %s24, 1
    %s26 = scalar_select %p25, 0, %s24
    %s27 = sadd.s32 1, %s18
    %s28 = scalar_select %p25, %s27, %s18
    %p29 = scmp.ge.s32.totalorder %s28, 2
    %s30 = scalar_select %p29, 0, %s28
    %s31 = ssub.s32 %s18, %s30
    %s32 = ssub.s32 %s19, %s26
    %s33 = sor.u32 %s31, %s32
    %p34 = scmp.eq.s32.totalorder %s33, 0
    %s36 = sadd.s32 %s35, 1
    %s37 = scalar_select %p34, %s35, %s36
    %p40 = pneg %p34
    %p41 = scmp.eq.s32.totalorder %s11, 1
    %p42 = por %p40, %p41
    %p43 = scmp.ne.s32.totalorder %s35, %s38
    %p44 = scmp.eq.s32.totalorder %s11, 0
    %p45 = por %p43, %p44
    %p46 = scmp.ne.s32.totalorder %s35, %s38
    %p47 = scmp.eq.s32.totalorder %s16, 1
    %p48 = por %p46, %p47
    %p49 = scmp.ne.s32.totalorder %s38, %s39
    %p50 = scmp.eq.s32.totalorder %s16, 0
    %p51 = por %p49, %p50
    %p52 = scmp.ne.s32.totalorder %s38, %s39
    %p53 = scmp.eq.s32.totalorder %s17, 1
    %p54 = por %p52, %p53
    %p56 = scmp.ne.s32.totalorder %s39, %s55
    %p57 = scmp.eq.s32.totalorder %s17, 0
    %p58 = por %p56, %p57
    %s60 = sadd.s32 %s59, 1
    %p63 = scmp.eq.s32.totalorder %s11, 1
    %p64 = scmp.ne.s32.totalorder %s59, %s61
    %p65 = scmp.eq.s32.totalorder %s11, 0
    %p66 = por %p64, %p65
    %p67 = scmp.ne.s32.totalorder %s59, %s61
    %p68 = scmp.eq.s32.totalorder %s16, 1
    %p69 = por %p67, %p68
    %p70 = scmp.ne.s32.totalorder %s61, %s62
    %p71 = scmp.eq.s32.totalorder %s16, 0
    %p72 = por %p70, %p71
    %p73 = scmp.ne.s32.totalorder %s61, %s62
    %p74 = scmp.eq.s32.totalorder %s17, 1
    %p75 = por %p73, %p74
    %p77 = scmp.ne.s32.totalorder %s62, %s76
    %p78 = scmp.eq.s32.totalorder %s17, 0
    %p79 = por %p77, %p78
    %s81 = sadd.s32 %s80, 1
    %p84 = scmp.eq.s32.totalorder %s11, 1
    %p85 = scmp.ne.s32.totalorder %s80, %s82
    %p86 = scmp.eq.s32.totalorder %s11, 0
    %p87 = por %p85, %p86
    %p88 = scmp.ne.s32.totalorder %s80, %s82
    %p89 = scmp.eq.s32.totalorder %s16, 1
    %p90 = por %p88, %p89
    %p91 = scmp.ne.s32.totalorder %s82, %s83
    %p92 = scmp.eq.s32.totalorder %s16, 0
    %p93 = por %p91, %p92
    %p94 = scmp.ne.s32.totalorder %s82, %s83
    %p95 = scmp.eq.s32.totalorder %s17, 1
    %p96 = por %p94, %p95
    %p98 = scmp.ne.s32.totalorder %s83, %s97
    %p99 = scmp.eq.s32.totalorder %s17, 0
    %p100 = por %p98, %p99
    %s101 = ssub.s32 %s18, %s30
    %s102 = ssub.s32 %s19, %s26
    %s103 = sor.u32 %s101, %s102
    %p104 = scmp.eq.s32.totalorder %s103, 0
    %s106 = sadd.s32 %s105, 1
    %s107 = scalar_select %p104, %s105, %s106
    %p110 = pneg %p104
    %p111 = scmp.eq.s32.totalorder %s11, 1
    %p112 = por %p110, %p111
    %p113 = scmp.ne.s32.totalorder %s105, %s108
    %p114 = scmp.eq.s32.totalorder %s11, 0
    %p115 = por %p113, %p114
    %p116 = scmp.ne.s32.totalorder %s105, %s108
    %p117 = scmp.eq.s32.totalorder %s16, 1
    %p118 = por %p116, %p117
    %p119 = scmp.ne.s32.totalorder %s108, %s109
    %p120 = scmp.eq.s32.totalorder %s16, 0
    %p121 = por %p119, %p120
    %p122 = scmp.ne.s32.totalorder %s108, %s109
    %p123 = scmp.eq.s32.totalorder %s17, 1
    %p124 = por %p122, %p123
    %p126 = scmp.ne.s32.totalorder %s109, %s125
    %p127 = scmp.eq.s32.totalorder %s17, 0
    %p128 = por %p126, %p127
    %s129 = ssub.s32 %s18, %s30
    %p130 = scmp.eq.s32.totalorder %s129, 0
    %s132 = sadd.s32 %s131, 1
    %s133 = scalar_select %p130, %s131, %s132
    %p136 = pneg %p130
    %p137 = scmp.eq.s32.totalorder %s11, 1
    %p138 = por %p136, %p137
    %p139 = scmp.ne.s32.totalorder %s131, %s134
    %p140 = scmp.eq.s32.totalorder %s11, 0
    %p141 = por %p139, %p140
    %p142 = scmp.ne.s32.totalorder %s131, %s134
    %p143 = scmp.eq.s32.totalorder %s16, 1
    %p144 = por %p142, %p143
    %p145 = scmp.ne.s32.totalorder %s134, %s135
    %p146 = scmp.eq.s32.totalorder %s16, 0
    %p147 = por %p145, %p146
    %p148 = scmp.ne.s32.totalorder %s134, %s135
    %p149 = scmp.eq.s32.totalorder %s17, 1
    %p150 = por %p148, %p149
    %p152 = scmp.ne.s32.totalorder %s135, %s151
    %p153 = scmp.eq.s32.totalorder %s17, 0
    %p154 = por %p152, %p153
    %p155 = scmp.le.s32.totalorder 1, %s11
    %p156 = scmp.lt.s32.totalorder %s11, 3
    %p157 = pnand %p155, %p156
    %p158 = pneg %p157
    // Predicated region
    $region9: #{dydensenet_forward.15} parent=5 // pred_check
      _
    $region10: #{dydensenet_forward.15} parent=5 // pred_check_branch
      %160 = sbr.rel (%p157) target = $region12
    $region11: #{dydensenet_forward.15} parent=5 // pred_region
      %s161 = ssub.s32 %s11, 1
      // Predicated region
      $region13: #{dydensenet_forward.15} parent=11 // pred_check
        %p162 = pneg %p72
      $region14: #{dydensenet_forward.15} parent=11 // pred_check_branch
        %164 = sbr.rel (%p162) target = $region16
      $region15: #{dydensenet_forward.15} parent=11 // pred_region
        _
      $region16: #{dydensenet_forward.15} parent=11 // pred_fallthru
        _
      // Predicated region
      $region17: #{dydensenet_forward.15} parent=11 // pred_check
        %p165 = pneg %p93
      $region18: #{dydensenet_forward.15} parent=11 // pred_check_branch
        %167 = sbr.rel (%p165) target = $region20
      $region19: #{dydensenet_forward.15} parent=11 // pred_region
        _
      $region20: #{dydensenet_forward.15} parent=11 // pred_fallthru
        _
    $region12: #{dydensenet_forward.15} parent=5 // pred_fallthru
      _
    %p168 = scmp.lt.s32.totalorder %s11, 2
    // Predicated region
    $region21: #{dydensenet_forward.15} parent=5 // pred_check
      %p169 = pneg %p168
    $region22: #{dydensenet_forward.15} parent=5 // pred_check_branch
      %171 = sbr.rel (%p169) target = $region24
    $region23: #{dydensenet_forward.15} parent=5 // pred_region
      // Predicated region
      $region25: #{dydensenet_forward.15} parent=23 // pred_check
        %p172 = pneg %p45
      $region26: #{dydensenet_forward.15} parent=23 // pred_check_branch
        %174 = sbr.rel (%p172) target = $region28
      $region27: #{dydensenet_forward.15} parent=23 // pred_region
        %s175 = smul.u32 32, %s19
        %p176 = scmp.lt.s32.totalorder %s18, 1
        %s177 = scalar_select %p176, %s18, 1
        %p178 = scmp.lt.s32.totalorder %s175, 31
        %s179 = scalar_select %p178, %s175, 31
        %s180 = smul.addr %s177, 32
        %s181 = sadd.s32 %s179, %s180
        %s182 = smul.addr %s181, 4
        %s183 = scalar_lea.vmem %s0, %s182
        %s184 = smul.u32 32, %s19
      $region28: #{dydensenet_forward.15} parent=23 // pred_fallthru
        _
    $region24: #{dydensenet_forward.15} parent=5 // pred_fallthru
      _
    %p185 = scmp.le.s32.totalorder 1, %s11
    %p186 = scmp.lt.s32.totalorder %s11, 3
    %p187 = pnand %p185, %p186
    %p188 = pneg %p187
    // Predicated region
    $region29: #{dydensenet_forward.15} parent=5 // pred_check
      _
    $region30: #{dydensenet_forward.15} parent=5 // pred_check_branch
      %190 = sbr.rel (%p187) target = $region32
    $region31: #{dydensenet_forward.15} parent=5 // pred_region
      %s191 = ssub.s32 %s11, 1
      %s192 = smul.u32 32, %s21
      %p193 = scmp.lt.s32.totalorder %s20, 1
      %s194 = scalar_select %p193, %s20, 1
      %p195 = scmp.lt.s32.totalorder %s192, 31
      %s196 = scalar_select %p195, %s192, 31
      %s197 = smul.addr %s194, 32
      %s198 = sadd.s32 %s196, %s197
      %s199 = smul.addr %s198, 4
      %s200 = scalar_lea.vmem %s0, %s199
      %p201 = pneg %p51
      %p202 = pneg %p48
      %p203 = pneg %p72
      %p204 = pneg %p69
      %p205 = pneg %p93
      %p206 = pneg %p90
      %p207 = pneg %p121
      %p208 = pneg %p118
      %s209 = smul.u32 32, %s21
      %p210 = scmp.lt.s32.totalorder %s20, 1
      %s211 = scalar_select %p210, %s20, 1
      %p212 = scmp.lt.s32.totalorder %s209, 31
      %s213 = scalar_select %p212, %s209, 31
      %s214 = smul.addr %s211, 32
      %s215 = sadd.s32 %s213, %s214
      %s216 = smul.addr %s215, 4
      %s217 = scalar_lea.vmem %s3, %s216
      %p218 = pneg %p147
      %p219 = pneg %p144
      %p220 = scmp.lt.s32.totalorder %s20, 1
      %s221 = scalar_select %p220, %s20, 1
      %s222 = scalar_lea.vmem %s4, %s221
      %s223 = smul.u32 32, %s21
      %p224 = scmp.lt.s32.totalorder %s20, 1
      %s225 = scalar_select %p224, %s20, 1
      %p226 = scmp.lt.s32.totalorder %s223, 31
      %s227 = scalar_select %p226, %s223, 31
      %s228 = smul.addr %s225, 32
      %s229 = sadd.s32 %s227, %s228
      %s230 = smul.addr %s229, 4
      %s231 = scalar_lea.vmem %s0, %s230
      %s232 = smul.u32 32, %s21
      %s233 = smul.u32 32, %s21
      %p234 = scmp.lt.s32.totalorder %s20, 1
      %s235 = scalar_select %p234, %s20, 1
      %p236 = scmp.lt.s32.totalorder %s233, 31
      %s237 = scalar_select %p236, %s233, 31
      %s238 = smul.addr %s235, 32
      %s239 = sadd.s32 %s237, %s238
      %s240 = smul.addr %s239, 4
      %s241 = scalar_lea.vmem %s3, %s240
      %s242 = smul.u32 32, %s21
      %p243 = scmp.lt.s32.totalorder %s20, 1
      %s244 = scalar_select %p243, %s20, 1
      %s245 = scalar_lea.vmem %s4, %s244
      %p246 = scmp.eq.s32.totalorder %s21, 0
      // Predicated region
      $region33: #{dydensenet_forward.15} parent=31 // pred_check
        %p247 = pneg %p246
      $region34: #{dydensenet_forward.15} parent=31 // pred_check_branch
        %249 = sbr.rel (%p247) target = $region36
      $region35: #{dydensenet_forward.15} parent=31 // pred_region
        %vm250 = vcmask 57344
        %251 = vst.msk [vmem:[#allocation2] sm:$0x1] %vm250, 0.0
      $region36: #{dydensenet_forward.15} parent=31 // pred_fallthru
        _
      %v252 = vld [vmem:[%s231] sm:$0xf]
      %v253 = vld [vmem:[%s231 + $0x4] sm:$0xf]
      %v254 = vld [vmem:[%s231 + $0x8] sm:$0xf]
      %v255 = vld [vmem:[%s231 + $0xc] sm:$0xf]
      %v256 = vld [vmem:[%s231 + $0x10] sm:$0xf]
      %v257 = vld [vmem:[%s231 + $0x14] sm:$0xf]
      %v258 = vld [vmem:[%s231 + $0x18] sm:$0xf]
      %v259 = vld [vmem:[%s231 + $0x1c] sm:$0xf]
      %v260 = vld [vmem:[%s231 + $0x20] sm:$0xf]
      %v261 = vld [vmem:[%s231 + $0x24] sm:$0xf]
      %v262 = vld [vmem:[%s231 + $0x28] sm:$0xf]
      %v263 = vld [vmem:[%s231 + $0x2c] sm:$0xf]
      %v264 = vld [vmem:[%s231 + $0x30] sm:$0xf]
      %v265 = vld [vmem:[%s231 + $0x34] sm:$0xf]
      %v266 = vld [vmem:[%s231 + $0x38] sm:$0xf]
      %v267 = vld [vmem:[%s231 + $0x3c] sm:$0xf]
      %v268 = vld [vmem:[%s231 + $0x40] sm:$0xf]
      %v269 = vld [vmem:[%s231 + $0x44] sm:$0xf]
      %v270 = vld [vmem:[%s231 + $0x48] sm:$0xf]
      %v271 = vld [vmem:[%s231 + $0x4c] sm:$0xf]
      %v272 = vld [vmem:[%s231 + $0x50] sm:$0xf]
      %v273 = vld [vmem:[%s231 + $0x54] sm:$0xf]
      %v274 = vld [vmem:[%s231 + $0x58] sm:$0xf]
      %v275 = vld [vmem:[%s231 + $0x5c] sm:$0xf]
      %v276 = vld [vmem:[%s231 + $0x60] sm:$0xf]
      %v277 = vld [vmem:[%s231 + $0x64] sm:$0xf]
      %v278 = vld [vmem:[%s231 + $0x68] sm:$0xf]
      %v279 = vld [vmem:[%s231 + $0x6c] sm:$0xf]
      %v280 = vld [vmem:[%s231 + $0x70] sm:$0xf]
      %v281 = vld [vmem:[%s231 + $0x74] sm:$0xf]
      %v282 = vld [vmem:[%s231 + $0x78] sm:$0xf]
      %v283 = vld [vmem:[%s231 + $0x7c] sm:$0xf]
      %v284 = vunpack.c.l.bf16 %v252
      %v285 = vunpack.c.l.bf16 %v253
      %v286 = vunpack.c.l.bf16 %v254
      %v287 = vunpack.c.l.bf16 %v255
      %v288 = vunpack.c.l.bf16 %v256
      %v289 = vunpack.c.l.bf16 %v257
      %v290 = vunpack.c.l.bf16 %v258
      %v291 = vunpack.c.l.bf16 %v259
      %v292 = vunpack.c.l.bf16 %v260
      %v293 = vunpack.c.l.bf16 %v261
      %v294 = vunpack.c.l.bf16 %v262
      %v295 = vunpack.c.l.bf16 %v263
      %v296 = vunpack.c.l.bf16 %v264
      %v297 = vunpack.c.l.bf16 %v265
      %v298 = vunpack.c.l.bf16 %v266
      %v299 = vunpack.c.l.bf16 %v267
      %v300 = vunpack.c.l.bf16 %v268
      %v301 = vunpack.c.l.bf16 %v269
      %v302 = vunpack.c.l.bf16 %v270
      %v303 = vunpack.c.l.bf16 %v271
      %v304 = vunpack.c.l.bf16 %v272
      %v305 = vunpack.c.l.bf16 %v273
      %v306 = vunpack.c.l.bf16 %v274
      %v307 = vunpack.c.l.bf16 %v275
      %v308 = vunpack.c.l.bf16 %v276
      %v309 = vunpack.c.l.bf16 %v277
      %v310 = vunpack.c.l.bf16 %v278
      %v311 = vunpack.c.l.bf16 %v279
      %v312 = vunpack.c.l.bf16 %v280
      %v313 = vunpack.c.l.bf16 %v281
      %v314 = vunpack.c.l.bf16 %v282
      %v315 = vunpack.c.l.bf16 %v283
      %v316 = vld [vmem:[%s1] sm:$0x1]
      %v318 = vlaneseq
      %v319 = vshrl.u32 %v318, 7
      %v320 = vsub.s32 0, %v319
      %v321 = vrot.slane %v316, %v320
      %v323 = vmul.f32 %v284, %v321
      %v324 = vmul.f32 %v285, %v321
      %v325 = vmul.f32 %v286, %v321
      %v326 = vmul.f32 %v287, %v321
      %v327 = vmul.f32 %v288, %v321
      %v328 = vmul.f32 %v289, %v321
      %v329 = vmul.f32 %v290, %v321
      %v330 = vmul.f32 %v291, %v321
      %v331 = vmul.f32 %v292, %v321
      %v332 = vmul.f32 %v293, %v321
      %v333 = vmul.f32 %v294, %v321
      %v334 = vmul.f32 %v295, %v321
      %v335 = vmul.f32 %v296, %v321
      %v336 = vmul.f32 %v297, %v321
      %v337 = vmul.f32 %v298, %v321
      %v338 = vmul.f32 %v299, %v321
      %v339 = vmul.f32 %v300, %v321
      %v340 = vmul.f32 %v301, %v321
      %v341 = vmul.f32 %v302, %v321
      %v342 = vmul.f32 %v303, %v321
      %v343 = vmul.f32 %v304, %v321
      %v344 = vmul.f32 %v305, %v321
      %v345 = vmul.f32 %v306, %v321
      %v346 = vmul.f32 %v307, %v321
      %v347 = vmul.f32 %v308, %v321
      %v348 = vmul.f32 %v309, %v321
      %v349 = vmul.f32 %v310, %v321
      %v350 = vmul.f32 %v311, %v321
      %v351 = vmul.f32 %v312, %v321
      %v352 = vmul.f32 %v313, %v321
      %v353 = vmul.f32 %v314, %v321
      %v354 = vmul.f32 %v315, %v321
      %v355 = vld [vmem:[%s2] sm:$0x1]
      %v357 = vlaneseq
      %v358 = vshrl.u32 %v357, 7
      %v359 = vsub.s32 0, %v358
      %v360 = vrot.slane %v355, %v359
      %v362 = vadd.f32 %v323, %v360
      %v363 = vadd.f32 %v324, %v360
      %v364 = vadd.f32 %v325, %v360
      %v365 = vadd.f32 %v326, %v360
      %v366 = vadd.f32 %v327, %v360
      %v367 = vadd.f32 %v328, %v360
      %v368 = vadd.f32 %v329, %v360
      %v369 = vadd.f32 %v330, %v360
      %v370 = vadd.f32 %v331, %v360
      %v371 = vadd.f32 %v332, %v360
      %v372 = vadd.f32 %v333, %v360
      %v373 = vadd.f32 %v334, %v360
      %v374 = vadd.f32 %v335, %v360
      %v375 = vadd.f32 %v336, %v360
      %v376 = vadd.f32 %v337, %v360
      %v377 = vadd.f32 %v338, %v360
      %v378 = vadd.f32 %v339, %v360
      %v379 = vadd.f32 %v340, %v360
      %v380 = vadd.f32 %v341, %v360
      %v381 = vadd.f32 %v342, %v360
      %v382 = vadd.f32 %v343, %v360
      %v383 = vadd.f32 %v344, %v360
      %v384 = vadd.f32 %v345, %v360
      %v385 = vadd.f32 %v346, %v360
      %v386 = vadd.f32 %v347, %v360
      %v387 = vadd.f32 %v348, %v360
      %v388 = vadd.f32 %v349, %v360
      %v389 = vadd.f32 %v350, %v360
      %v390 = vadd.f32 %v351, %v360
      %v391 = vadd.f32 %v352, %v360
      %v392 = vadd.f32 %v353, %v360
      %v393 = vadd.f32 %v354, %v360
      %v394 = vmax.f32 %v362, 0.0
      %v395 = vmax.f32 %v363, 0.0
      %v396 = vmax.f32 %v364, 0.0
      %v397 = vmax.f32 %v365, 0.0
      %v398 = vmax.f32 %v366, 0.0
      %v399 = vmax.f32 %v367, 0.0
      %v400 = vmax.f32 %v368, 0.0
      %v401 = vmax.f32 %v369, 0.0
      %v402 = vmax.f32 %v370, 0.0
      %v403 = vmax.f32 %v371, 0.0
      %v404 = vmax.f32 %v372, 0.0
      %v405 = vmax.f32 %v373, 0.0
      %v406 = vmax.f32 %v374, 0.0
      %v407 = vmax.f32 %v375, 0.0
      %v408 = vmax.f32 %v376, 0.0
      %v409 = vmax.f32 %v377, 0.0
      %v410 = vmax.f32 %v378, 0.0
      %v411 = vmax.f32 %v379, 0.0
      %v412 = vmax.f32 %v380, 0.0
      %v413 = vmax.f32 %v381, 0.0
      %v414 = vmax.f32 %v382, 0.0
      %v415 = vmax.f32 %v383, 0.0
      %v416 = vmax.f32 %v384, 0.0
      %v417 = vmax.f32 %v385, 0.0
      %v418 = vmax.f32 %v386, 0.0
      %v419 = vmax.f32 %v387, 0.0
      %v420 = vmax.f32 %v388, 0.0
      %v421 = vmax.f32 %v389, 0.0
      %v422 = vmax.f32 %v390, 0.0
      %v423 = vmax.f32 %v391, 0.0
      %v424 = vmax.f32 %v392, 0.0
      %v425 = vmax.f32 %v393, 0.0
      %v426 = vpack.c.bf16 %v395, %v394
      %v427 = vpack.c.bf16 %v397, %v396
      %v428 = vpack.c.bf16 %v399, %v398
      %v429 = vpack.c.bf16 %v401, %v400
      %v430 = vpack.c.bf16 %v403, %v402
      %v431 = vpack.c.bf16 %v405, %v404
      %v432 = vpack.c.bf16 %v407, %v406
      %v433 = vpack.c.bf16 %v409, %v408
      %v434 = vpack.c.bf16 %v411, %v410
      %v435 = vpack.c.bf16 %v413, %v412
      %v436 = vpack.c.bf16 %v415, %v414
      %v437 = vpack.c.bf16 %v417, %v416
      %v438 = vpack.c.bf16 %v419, %v418
      %v439 = vpack.c.bf16 %v421, %v420
      %v440 = vpack.c.bf16 %v423, %v422
      %v441 = vpack.c.bf16 %v425, %v424
      %v458 = vunpack.c.l.b16 %v426
      %v459 = vunpack.c.h.b16 %v426
      %v460 = vunpack.c.l.b16 %v427
      %v461 = vunpack.c.h.b16 %v427
      %v462 = vunpack.c.l.b16 %v428
      %v463 = vunpack.c.h.b16 %v428
      %v464 = vunpack.c.l.b16 %v429
      %v465 = vunpack.c.h.b16 %v429
      %v466 = vunpack.c.l.b16 %v430
      %v467 = vunpack.c.h.b16 %v430
      %v468 = vunpack.c.l.b16 %v431
      %v469 = vunpack.c.h.b16 %v431
      %v470 = vunpack.c.l.b16 %v432
      %v471 = vunpack.c.h.b16 %v432
      %v472 = vunpack.c.l.b16 %v433
      %v473 = vunpack.c.h.b16 %v433
      %v474 = vunpack.c.l.b16 %v434
      %v475 = vunpack.c.h.b16 %v434
      %v476 = vunpack.c.l.b16 %v435
      %v477 = vunpack.c.h.b16 %v435
      %v478 = vunpack.c.l.b16 %v436
      %v479 = vunpack.c.h.b16 %v436
      %v480 = vunpack.c.l.b16 %v437
      %v481 = vunpack.c.h.b16 %v437
      %v482 = vunpack.c.l.b16 %v438
      %v483 = vunpack.c.h.b16 %v438
      %v484 = vunpack.c.l.b16 %v439
      %v485 = vunpack.c.h.b16 %v439
      %v486 = vunpack.c.l.b16 %v440
      %v487 = vunpack.c.h.b16 %v440
      %v488 = vunpack.c.l.b16 %v441
      %v489 = vunpack.c.h.b16 %v441
      %v490 = vpack.c.b16 %v458, %v458
      %v491 = vpack.c.b16 %v459, %v459
      %v492 = vpack.c.b16 %v460, %v460
      %v493 = vpack.c.b16 %v461, %v461
      %v494 = vpack.c.b16 %v462, %v462
      %v495 = vpack.c.b16 %v463, %v463
      %v496 = vpack.c.b16 %v464, %v464
      %v497 = vpack.c.b16 %v465, %v465
      %v498 = vpack.c.b16 %v466, %v466
      %v499 = vpack.c.b16 %v467, %v467
      %v500 = vpack.c.b16 %v468, %v468
      %v501 = vpack.c.b16 %v469, %v469
      %v502 = vpack.c.b16 %v470, %v470
      %v503 = vpack.c.b16 %v471, %v471
      %v504 = vpack.c.b16 %v472, %v472
      %v505 = vpack.c.b16 %v473, %v473
      %v506 = vpack.c.b16 %v474, %v474
      %v507 = vpack.c.b16 %v475, %v475
      %v508 = vpack.c.b16 %v476, %v476
      %v509 = vpack.c.b16 %v477, %v477
      %v510 = vpack.c.b16 %v478, %v478
      %v511 = vpack.c.b16 %v479, %v479
      %v512 = vpack.c.b16 %v480, %v480
      %v513 = vpack.c.b16 %v481, %v481
      %v514 = vpack.c.b16 %v482, %v482
      %v515 = vpack.c.b16 %v483, %v483
      %v516 = vpack.c.b16 %v484, %v484
      %v517 = vpack.c.b16 %v485, %v485
      %v518 = vpack.c.b16 %v486, %v486
      %v519 = vpack.c.b16 %v487, %v487
      %v520 = vpack.c.b16 %v488, %v488
      %v521 = vpack.c.b16 %v489, %v489
      %vm554 = vcmask 60416
      %555 = vst.msk [vmem:[%s241] sm:$0xf] %vm554, %v490
      %556 = vst.msk [vmem:[%s241 + $0x4] sm:$0xf] %vm554, %v491
      %557 = vst.msk [vmem:[%s241 + $0x8] sm:$0xf] %vm554, %v492
      %558 = vst.msk [vmem:[%s241 + $0xc] sm:$0xf] %vm554, %v493
      %559 = vst.msk [vmem:[%s241 + $0x10] sm:$0xf] %vm554, %v494
      %560 = vst.msk [vmem:[%s241 + $0x14] sm:$0xf] %vm554, %v495
      %561 = vst.msk [vmem:[%s241 + $0x18] sm:$0xf] %vm554, %v496
      %562 = vst.msk [vmem:[%s241 + $0x1c] sm:$0xf] %vm554, %v497
      %563 = vst.msk [vmem:[%s241 + $0x20] sm:$0xf] %vm554, %v498
      %564 = vst.msk [vmem:[%s241 + $0x24] sm:$0xf] %vm554, %v499
      %565 = vst.msk [vmem:[%s241 + $0x28] sm:$0xf] %vm554, %v500
      %566 = vst.msk [vmem:[%s241 + $0x2c] sm:$0xf] %vm554, %v501
      %567 = vst.msk [vmem:[%s241 + $0x30] sm:$0xf] %vm554, %v502
      %568 = vst.msk [vmem:[%s241 + $0x34] sm:$0xf] %vm554, %v503
      %569 = vst.msk [vmem:[%s241 + $0x38] sm:$0xf] %vm554, %v504
      %570 = vst.msk [vmem:[%s241 + $0x3c] sm:$0xf] %vm554, %v505
      %571 = vst.msk [vmem:[%s241 + $0x40] sm:$0xf] %vm554, %v506
      %572 = vst.msk [vmem:[%s241 + $0x44] sm:$0xf] %vm554, %v507
      %573 = vst.msk [vmem:[%s241 + $0x48] sm:$0xf] %vm554, %v508
      %574 = vst.msk [vmem:[%s241 + $0x4c] sm:$0xf] %vm554, %v509
      %575 = vst.msk [vmem:[%s241 + $0x50] sm:$0xf] %vm554, %v510
      %576 = vst.msk [vmem:[%s241 + $0x54] sm:$0xf] %vm554, %v511
      %577 = vst.msk [vmem:[%s241 + $0x58] sm:$0xf] %vm554, %v512
      %578 = vst.msk [vmem:[%s241 + $0x5c] sm:$0xf] %vm554, %v513
      %579 = vst.msk [vmem:[%s241 + $0x60] sm:$0xf] %vm554, %v514
      %580 = vst.msk [vmem:[%s241 + $0x64] sm:$0xf] %vm554, %v515
      %581 = vst.msk [vmem:[%s241 + $0x68] sm:$0xf] %vm554, %v516
      %582 = vst.msk [vmem:[%s241 + $0x6c] sm:$0xf] %vm554, %v517
      %583 = vst.msk [vmem:[%s241 + $0x70] sm:$0xf] %vm554, %v518
      %584 = vst.msk [vmem:[%s241 + $0x74] sm:$0xf] %vm554, %v519
      %585 = vst.msk [vmem:[%s241 + $0x78] sm:$0xf] %vm554, %v520
      %586 = vst.msk [vmem:[%s241 + $0x7c] sm:$0xf] %vm554, %v521
      %v587 = vld [vmem:[#allocation2] sm:$0x1]
      %vm588 = vcmask 64512
      %v589 = vsel %vm588, %v394, 0.0
      %v590 = vsel %vm588, %v395, 0.0
      %v591 = vadd.f32 %v589, %v590
      %v592 = vsel %vm588, %v396, 0.0
      %v593 = vadd.f32 %v591, %v592
      %v594 = vsel %vm588, %v397, 0.0
      %v595 = vadd.f32 %v593, %v594
      %v596 = vsel %vm588, %v398, 0.0
      %v597 = vadd.f32 %v595, %v596
      %v598 = vsel %vm588, %v399, 0.0
      %v599 = vadd.f32 %v597, %v598
      %v600 = vsel %vm588, %v400, 0.0
      %v601 = vadd.f32 %v599, %v600
      %v602 = vsel %vm588, %v401, 0.0
      %v603 = vadd.f32 %v601, %v602
      %v604 = vsel %vm588, %v402, 0.0
      %v605 = vadd.f32 %v603, %v604
      %v606 = vsel %vm588, %v403, 0.0
      %v607 = vadd.f32 %v605, %v606
      %v608 = vsel %vm588, %v404, 0.0
      %v609 = vadd.f32 %v607, %v608
      %v610 = vsel %vm588, %v405, 0.0
      %v611 = vadd.f32 %v609, %v610
      %v612 = vsel %vm588, %v406, 0.0
      %v613 = vadd.f32 %v611, %v612
      %v614 = vsel %vm588, %v407, 0.0
      %v615 = vadd.f32 %v613, %v614
      %v616 = vsel %vm588, %v408, 0.0
      %v617 = vadd.f32 %v615, %v616
      %v618 = vsel %vm588, %v409, 0.0
      %v619 = vadd.f32 %v617, %v618
      %v620 = vsel %vm588, %v410, 0.0
      %v621 = vadd.f32 %v619, %v620
      %v622 = vsel %vm588, %v411, 0.0
      %v623 = vadd.f32 %v621, %v622
      %v624 = vsel %vm588, %v412, 0.0
      %v625 = vadd.f32 %v623, %v624
      %v626 = vsel %vm588, %v413, 0.0
      %v627 = vadd.f32 %v625, %v626
      %v628 = vsel %vm588, %v414, 0.0
      %v629 = vadd.f32 %v627, %v628
      %v630 = vsel %vm588, %v415, 0.0
      %v631 = vadd.f32 %v629, %v630
      %v632 = vsel %vm588, %v416, 0.0
      %v633 = vadd.f32 %v631, %v632
      %v634 = vsel %vm588, %v417, 0.0
      %v635 = vadd.f32 %v633, %v634
      %v636 = vsel %vm588, %v418, 0.0
      %v637 = vadd.f32 %v635, %v636
      %v638 = vsel %vm588, %v419, 0.0
      %v639 = vadd.f32 %v637, %v638
      %v640 = vsel %vm588, %v420, 0.0
      %v641 = vadd.f32 %v639, %v640
      %v642 = vsel %vm588, %v421, 0.0
      %v643 = vadd.f32 %v641, %v642
      %v644 = vsel %vm588, %v422, 0.0
      %v645 = vadd.f32 %v643, %v644
      %v646 = vsel %vm588, %v423, 0.0
      %v647 = vadd.f32 %v645, %v646
      %v648 = vsel %vm588, %v424, 0.0
      %v649 = vadd.f32 %v647, %v648
      %v650 = vsel %vm588, %v425, 0.0
      %v651 = vadd.f32 %v649, %v650
      %v652 = vrot.slane %v651, 4
      %v653 = vadd.f32 %v651, %v652
      %v654 = vrot.slane %v653, 2
      %v655 = vadd.f32 %v653, %v654
      %v656 = vrot.slane %v655, 1
      %v657 = vadd.f32 %v655, %v656
      %v658 = vadd.f32 %v587, %v657
      %vm659 = vcmask 57344
      %660 = vst.msk [vmem:[#allocation2] sm:$0x1] %vm659, %v658
      // Predicated region
      $region37: #{dydensenet_forward.15} parent=31 // pred_check
        %p661 = pneg %p246
      $region38: #{dydensenet_forward.15} parent=31 // pred_check_branch
        %663 = sbr.rel (%p661) target = $region40
      $region39: #{dydensenet_forward.15} parent=31 // pred_region
        %v664 = vld [vmem:[#allocation2] sm:$0x1]
        %v665 = vmul.f32 %v664, 0.00390625
        %666 = vst.msk [vmem:[%s245] sm:$0x1] %vm659, %v665
      $region40: #{dydensenet_forward.15} parent=31 // pred_fallthru
        _
      %s667 = smul.u32 32, %s21
      %p668 = scmp.lt.s32.totalorder %s20, 1
      %s669 = scalar_select %p668, %s20, 1
      %p670 = scmp.lt.s32.totalorder %s667, 31
      %s671 = scalar_select %p670, %s667, 31
      %s672 = smul.addr %s669, 32
      %s673 = sadd.s32 %s671, %s672
      %s674 = smul.addr %s673, 4
      %s675 = scalar_lea.vmem %s3, %s674
      %p676 = scmp.lt.s32.totalorder %s20, 1
      %s677 = scalar_select %p676, %s20, 1
      %s678 = scalar_lea.vmem %s4, %s677
      // Predicated region
      $region41: #{dydensenet_forward.15} parent=31 // pred_check
        %p679 = pneg %p118
      $region42: #{dydensenet_forward.15} parent=31 // pred_check_branch
        %681 = sbr.rel (%p679) target = $region44
      $region43: #{dydensenet_forward.15} parent=31 // pred_region
        %s682 = smul.u32 32, %s21
      $region44: #{dydensenet_forward.15} parent=31 // pred_fallthru
        _
      // Predicated region
      $region45: #{dydensenet_forward.15} parent=31 // pred_check
        %p683 = pneg %p144
      $region46: #{dydensenet_forward.15} parent=31 // pred_check_branch
        %685 = sbr.rel (%p683) target = $region48
      $region47: #{dydensenet_forward.15} parent=31 // pred_region
        _
      $region48: #{dydensenet_forward.15} parent=31 // pred_fallthru
        _
    $region32: #{dydensenet_forward.15} parent=5 // pred_fallthru
      _
    %p686 = scmp.le.s32.totalorder 2, %s11
    // Predicated region
    $region49: #{dydensenet_forward.15} parent=5 // pred_check
      %p687 = pneg %p686
    $region50: #{dydensenet_forward.15} parent=5 // pred_check_branch
      %689 = sbr.rel (%p687) target = $region52
    $region51: #{dydensenet_forward.15} parent=5 // pred_region
      %s690 = ssub.s32 %s11, 2
      // Predicated region
      $region53: #{dydensenet_forward.15} parent=51 // pred_check
        %p691 = pneg %p124
      $region54: #{dydensenet_forward.15} parent=51 // pred_check_branch
        %693 = sbr.rel (%p691) target = $region56
      $region55: #{dydensenet_forward.15} parent=51 // pred_region
        %s694 = smul.u32 32, %s23
        %p695 = scmp.lt.s32.totalorder %s22, 1
        %s696 = scalar_select %p695, %s22, 1
        %p697 = scmp.lt.s32.totalorder %s694, 31
        %s698 = scalar_select %p697, %s694, 31
        %s699 = smul.addr %s696, 32
        %s700 = sadd.s32 %s698, %s699
        %s701 = smul.addr %s700, 4
        %s702 = scalar_lea.vmem %s3, %s701
      $region56: #{dydensenet_forward.15} parent=51 // pred_fallthru
        _
      // Predicated region
      $region57: #{dydensenet_forward.15} parent=51 // pred_check
        %p703 = pneg %p150
      $region58: #{dydensenet_forward.15} parent=51 // pred_check_branch
        %705 = sbr.rel (%p703) target = $region60
      $region59: #{dydensenet_forward.15} parent=51 // pred_region
        %p706 = scmp.lt.s32.totalorder %s22, 1
        %s707 = scalar_select %p706, %s22, 1
        %s708 = scalar_lea.vmem %s4, %s707
      $region60: #{dydensenet_forward.15} parent=51 // pred_fallthru
        _
    $region52: #{dydensenet_forward.15} parent=5 // pred_fallthru
      _
  $region6: #{dydensenet_forward.15} parent=0 // loop_footer
    %s15 = sadd.s32 1, %s11
  $region7: #{dydensenet_forward.15} parent=0 // loop_footer_branch
    %10 = sbr.rel target = $region3
  $region8: #{dydensenet_forward.15} parent=0 // loop_exit
    _

// kernel: dydensenet_forward.14
$region0: #{dydensenet_forward.14}
  #allocation0 [shape = 'u32[]', space=smem, size = 0x4, offset = 0x4, fixed_abs, tag = 'smem constant byte address 0x4 - core index']
  #allocation1 [shape = 'u32[144,128]{1,0:T(1,128)}', space=vmem, size = 0x12000, scoped, tag = 'internal scratch']
  #allocation2 [shape = 'f32[256,8]{1,0:T(8,128)}', space=vmem, size = 0x20000, scoped, tag = 'scratch operand']
  %s0 = inlined_call_operand.vmem [shape: bf16[2,256,27], index: 0, kind: input, shape index: {}]
  %s1 = inlined_call_operand.vmem [shape: bf16[1,27,8], index: 1, kind: input, shape index: {}]
  %s2 = inlined_call_operand.vmem [shape: bf16[2,256,8], index: 2, kind: output, shape index: {}]
  %s3 = sld [smem:[#allocation0]]
  $region49: #{dydensenet_forward.14} parent=0
    _
  %s5 = ssub.s32 1, %s3
  %s6 = scalar_select 0, %s5, %s3
  loop: start=0, step=1, limit=4
  $region2: #{dydensenet_forward.14} parent=0 // loop_pre_header
    _
  $region3: #{dydensenet_forward.14} parent=0 // loop_header
    %s8 = sphi 0, %s12
    %p9 = scmp.ge.s32.totalorder %s8, 4
    %s15 = sphi 0, %s41
    %s16 = sphi 0, %s37
    %s17 = sphi 0, %s33
    %s18 = sphi 0, %s29
    %s19 = sphi 0, %s15
    %s20 = sphi 0, %s16
    %s21 = sphi 0, %s17
    %s22 = sphi 0, %s18
    %s23 = sphi 0, %s19
    %s24 = sphi 0, %s20
    %s25 = sphi 0, %s21
    %s26 = sphi 0, %s22
    %s48 = sphi 0, %s50
    %s51 = sphi 0, %s48
    %s52 = sphi 0, %s51
    %s68 = sphi 0, %s52
    %s76 = sphi 0, %s78
    %s79 = sphi 0, %s76
    %s80 = sphi 0, %s79
    %s96 = sphi 0, %s80
    %s106 = sphi 0, %s108
    %s109 = sphi 0, %s106
    %s110 = sphi 0, %s109
    %s126 = sphi 0, %s110
  $region4: #{dydensenet_forward.14} parent=0 // loop_header_branch
    %11 = sbr.rel (%p9) target = $region8
  $region5: #{dydensenet_forward.14} parent=0 // loop_body
    %s13 = ssub.s32 %s8, 1
    %s14 = ssub.s32 %s8, 2
    %s27 = sadd.s32 1, %s18
    %p28 = scmp.ge.s32.totalorder %s27, 1
    %s29 = scalar_select %p28, 0, %s27
    %s30 = sadd.s32 1, %s17
    %s31 = scalar_select %p28, %s30, %s17
    %p32 = scmp.ge.s32.totalorder %s31, 1
    %s33 = scalar_select %p32, 0, %s31
    %s34 = sadd.s32 1, %s16
    %s35 = scalar_select %p32, %s34, %s16
    %p36 = scmp.ge.s32.totalorder %s35, 1
    %s37 = scalar_select %p36, 0, %s35
    %s38 = sadd.s32 1, %s15
    %s39 = scalar_select %p36, %s38, %s15
    %p40 = scmp.ge.s32.totalorder %s39, 2
    %s41 = scalar_select %p40, 0, %s39
    %s42 = ssub.s32 %s15, %s41
    %s43 = ssub.s32 %s16, %s37
    %s44 = sor.u32 %s42, %s43
    %s45 = ssub.s32 %s18, %s29
    %s46 = sor.u32 %s44, %s45
    %p47 = scmp.eq.s32.totalorder %s46, 0
    %s49 = sadd.s32 %s48, 1
    %s50 = scalar_select %p47, %s48, %s49
    %p53 = pneg %p47
    %p54 = scmp.eq.s32.totalorder %s8, 1
    %p55 = por %p53, %p54
    %p56 = scmp.ne.s32.totalorder %s48, %s51
    %p57 = scmp.eq.s32.totalorder %s8, 0
    %p58 = por %p56, %p57
    %p59 = scmp.ne.s32.totalorder %s48, %s51
    %p60 = scmp.eq.s32.totalorder %s13, 1
    %p61 = por %p59, %p60
    %p62 = scmp.ne.s32.totalorder %s51, %s52
    %p63 = scmp.eq.s32.totalorder %s13, 0
    %p64 = por %p62, %p63
    %p65 = scmp.ne.s32.totalorder %s51, %s52
    %p66 = scmp.eq.s32.totalorder %s14, 1
    %p67 = por %p65, %p66
    %p69 = scmp.ne.s32.totalorder %s52, %s68
    %p70 = scmp.eq.s32.totalorder %s14, 0
    %p71 = por %p69, %p70
    %s72 = ssub.s32 %s18, %s29
    %s73 = ssub.s32 %s17, %s33
    %s74 = sor.u32 %s72, %s73
    %p75 = scmp.eq.s32.totalorder %s74, 0
    %s77 = sadd.s32 %s76, 1
    %s78 = scalar_select %p75, %s76, %s77
    %p81 = pneg %p75
    %p82 = scmp.eq.s32.totalorder %s8, 1
    %p83 = por %p81, %p82
    %p84 = scmp.ne.s32.totalorder %s76, %s79
    %p85 = scmp.eq.s32.totalorder %s8, 0
    %p86 = por %p84, %p85
    %p87 = scmp.ne.s32.totalorder %s76, %s79
    %p88 = scmp.eq.s32.totalorder %s13, 1
    %p89 = por %p87, %p88
    %p90 = scmp.ne.s32.totalorder %s79, %s80
    %p91 = scmp.eq.s32.totalorder %s13, 0
    %p92 = por %p90, %p91
    %p93 = scmp.ne.s32.totalorder %s79, %s80
    %p94 = scmp.eq.s32.totalorder %s14, 1
    %p95 = por %p93, %p94
    %p97 = scmp.ne.s32.totalorder %s80, %s96
    %p98 = scmp.eq.s32.totalorder %s14, 0
    %p99 = por %p97, %p98
    %s100 = ssub.s32 %s15, %s41
    %s101 = ssub.s32 %s16, %s37
    %s102 = sor.u32 %s100, %s101
    %s103 = ssub.s32 %s17, %s33
    %s104 = sor.u32 %s102, %s103
    %p105 = scmp.eq.s32.totalorder %s104, 0
    %s107 = sadd.s32 %s106, 1
    %s108 = scalar_select %p105, %s106, %s107
    %p111 = pneg %p105
    %p112 = scmp.eq.s32.totalorder %s8, 1
    %p113 = por %p111, %p112
    %p114 = scmp.ne.s32.totalorder %s106, %s109
    %p115 = scmp.eq.s32.totalorder %s8, 0
    %p116 = por %p114, %p115
    %p117 = scmp.ne.s32.totalorder %s106, %s109
    %p118 = scmp.eq.s32.totalorder %s13, 1
    %p119 = por %p117, %p118
    %p120 = scmp.ne.s32.totalorder %s109, %s110
    %p121 = scmp.eq.s32.totalorder %s13, 0
    %p122 = por %p120, %p121
    %p123 = scmp.ne.s32.totalorder %s109, %s110
    %p124 = scmp.eq.s32.totalorder %s14, 1
    %p125 = por %p123, %p124
    %p127 = scmp.ne.s32.totalorder %s110, %s126
    %p128 = scmp.eq.s32.totalorder %s14, 0
    %p129 = por %p127, %p128
    %p130 = scmp.le.s32.totalorder 1, %s8
    %p131 = scmp.lt.s32.totalorder %s8, 3
    %p132 = pnand %p130, %p131
    %p133 = pneg %p132
    // Predicated region
    $region9: #{dydensenet_forward.14} parent=5 // pred_check
      _
    $region10: #{dydensenet_forward.14} parent=5 // pred_check_branch
      %135 = sbr.rel (%p132) target = $region12
    $region11: #{dydensenet_forward.14} parent=5 // pred_region
      %s136 = ssub.s32 %s8, 1
      // Predicated region
      $region13: #{dydensenet_forward.14} parent=11 // pred_check
        %p137 = pneg %p92
      $region14: #{dydensenet_forward.14} parent=11 // pred_check_branch
        %139 = sbr.rel (%p137) target = $region16
      $region15: #{dydensenet_forward.14} parent=11 // pred_region
        %s140 = smul.u32 4, %s22
        %p141 = scmp.lt.s32.totalorder %s140, 3
        %s142 = scalar_select %p141, %s140, 3
        %p143 = scmp.lt.s32.totalorder %s21, 0
        %s144 = scalar_select %p143, %s21, 0
        %s145 = sadd.s32 %s144, %s142
        %s146 = smul.addr %s145, 4
        %s147 = scalar_lea.vmem %s1, %s146
        %s148 = smul.u32 4, %s22
      $region16: #{dydensenet_forward.14} parent=11 // pred_fallthru
        _
    $region12: #{dydensenet_forward.14} parent=5 // pred_fallthru
      _
    %p149 = scmp.lt.s32.totalorder %s8, 2
    // Predicated region
    $region17: #{dydensenet_forward.14} parent=5 // pred_check
      %p150 = pneg %p149
    $region18: #{dydensenet_forward.14} parent=5 // pred_check_branch
      %152 = sbr.rel (%p150) target = $region20
    $region19: #{dydensenet_forward.14} parent=5 // pred_region
      // Predicated region
      $region21: #{dydensenet_forward.14} parent=19 // pred_check
        %p153 = pneg %p58
      $region22: #{dydensenet_forward.14} parent=19 // pred_check_branch
        %155 = sbr.rel (%p153) target = $region24
      $region23: #{dydensenet_forward.14} parent=19 // pred_region
        %s156 = smul.u32 32, %s16
        %p157 = scmp.lt.s32.totalorder %s15, 1
        %s158 = scalar_select %p157, %s15, 1
        %p159 = scmp.lt.s32.totalorder %s156, 31
        %s160 = scalar_select %p159, %s156, 31
        %p161 = scmp.lt.s32.totalorder %s18, 0
        %s162 = scalar_select %p161, %s18, 0
        %s163 = sadd.s32 %s162, %s160
        %s164 = smul.addr %s158, 32
        %s165 = sadd.s32 %s163, %s164
        %s166 = smul.addr %s165, 4
        %s167 = scalar_lea.vmem %s0, %s166
        %s168 = smul.u32 32, %s16
      $region24: #{dydensenet_forward.14} parent=19 // pred_fallthru
        _
    $region20: #{dydensenet_forward.14} parent=5 // pred_fallthru
      _
    %p169 = scmp.le.s32.totalorder 1, %s8
    %p170 = scmp.lt.s32.totalorder %s8, 3
    %p171 = pnand %p169, %p170
    %p172 = pneg %p171
    // Predicated region
    $region25: #{dydensenet_forward.14} parent=5 // pred_check
      _
    $region26: #{dydensenet_forward.14} parent=5 // pred_check_branch
      %174 = sbr.rel (%p171) target = $region28
    $region27: #{dydensenet_forward.14} parent=5 // pred_region
      %s175 = ssub.s32 %s8, 1
      %s176 = smul.u32 32, %s20
      %p177 = scmp.lt.s32.totalorder %s19, 1
      %s178 = scalar_select %p177, %s19, 1
      %p179 = scmp.lt.s32.totalorder %s176, 31
      %s180 = scalar_select %p179, %s176, 31
      %p181 = scmp.lt.s32.totalorder %s22, 0
      %s182 = scalar_select %p181, %s22, 0
      %s183 = sadd.s32 %s182, %s180
      %s184 = smul.addr %s178, 32
      %s185 = sadd.s32 %s183, %s184
      %s186 = smul.addr %s185, 4
      %s187 = scalar_lea.vmem %s0, %s186
      %p188 = pneg %p64
      %p189 = pneg %p61
      %s190 = smul.u32 4, %s22
      %p191 = scmp.lt.s32.totalorder %s190, 3
      %s192 = scalar_select %p191, %s190, 3
      %p193 = scmp.lt.s32.totalorder %s21, 0
      %s194 = scalar_select %p193, %s21, 0
      %s195 = sadd.s32 %s194, %s192
      %s196 = smul.addr %s195, 4
      %s197 = scalar_lea.vmem %s1, %s196
      %p198 = pneg %p92
      %p199 = pneg %p89
      %p200 = pneg %p122
      %p201 = pneg %p119
      %s202 = smul.u32 32, %s20
      %p203 = scmp.lt.s32.totalorder %s19, 1
      %s204 = scalar_select %p203, %s19, 1
      %p205 = scmp.lt.s32.totalorder %s202, 31
      %s206 = scalar_select %p205, %s202, 31
      %p207 = scmp.lt.s32.totalorder %s21, 0
      %s208 = scalar_select %p207, %s21, 0
      %s209 = sadd.s32 %s208, %s206
      %s210 = smul.addr %s204, 32
      %s211 = sadd.s32 %s209, %s210
      %s212 = smul.addr %s211, 4
      %s213 = scalar_lea.vmem %s2, %s212
      %s214 = smul.u32 32, %s20
      %p215 = scmp.lt.s32.totalorder %s19, 1
      %s216 = scalar_select %p215, %s19, 1
      %p217 = scmp.lt.s32.totalorder %s214, 31
      %s218 = scalar_select %p217, %s214, 31
      %p219 = scmp.lt.s32.totalorder %s22, 0
      %s220 = scalar_select %p219, %s22, 0
      %s221 = sadd.s32 %s220, %s218
      %s222 = smul.addr %s216, 32
      %s223 = sadd.s32 %s221, %s222
      %s224 = smul.addr %s223, 4
      %s225 = scalar_lea.vmem %s0, %s224
      %s226 = smul.u32 32, %s20
      %s227 = smul.u32 4, %s22
      %p228 = scmp.lt.s32.totalorder %s227, 3
      %s229 = scalar_select %p228, %s227, 3
      %p230 = scmp.lt.s32.totalorder %s21, 0
      %s231 = scalar_select %p230, %s21, 0
      %s232 = sadd.s32 %s231, %s229
      %s233 = smul.addr %s232, 4
      %s234 = scalar_lea.vmem %s1, %s233
      %s235 = smul.u32 4, %s22
      %s236 = smul.u32 32, %s20
      %p237 = scmp.lt.s32.totalorder %s19, 1
      %s238 = scalar_select %p237, %s19, 1
      %p239 = scmp.lt.s32.totalorder %s236, 31
      %s240 = scalar_select %p239, %s236, 31
      %p241 = scmp.lt.s32.totalorder %s21, 0
      %s242 = scalar_select %p241, %s21, 0
      %s243 = sadd.s32 %s242, %s240
      %s244 = smul.addr %s238, 32
      %s245 = sadd.s32 %s243, %s244
      %s246 = smul.addr %s245, 4
      %s247 = scalar_lea.vmem %s2, %s246
      %s248 = smul.u32 32, %s20
      %p250 = scmp.eq.s32.totalorder %s22, 0
      // Predicated region
      $region29: #{dydensenet_forward.14} parent=27 // pred_check
        %p251 = pneg %p250
      $region30: #{dydensenet_forward.14} parent=27 // pred_check_branch
        %253 = sbr.rel (%p251) target = $region32
      $region31: #{dydensenet_forward.14} parent=27 // pred_region
        %vm254 = vcmask 64512
        %255 = vst.msk [vmem:[#allocation2] sm:$0xff] %vm254, 0.0
        %256 = vst.msk [vmem:[#allocation2 + $0x8] sm:$0xff] %vm254, 0.0
        %257 = vst.msk [vmem:[#allocation2 + $0x10] sm:$0xff] %vm254, 0.0
        %258 = vst.msk [vmem:[#allocation2 + $0x18] sm:$0xff] %vm254, 0.0
        %259 = vst.msk [vmem:[#allocation2 + $0x20] sm:$0xff] %vm254, 0.0
        %260 = vst.msk [vmem:[#allocation2 + $0x28] sm:$0xff] %vm254, 0.0
        %261 = vst.msk [vmem:[#allocation2 + $0x30] sm:$0xff] %vm254, 0.0
        %262 = vst.msk [vmem:[#allocation2 + $0x38] sm:$0xff] %vm254, 0.0
        %263 = vst.msk [vmem:[#allocation2 + $0x40] sm:$0xff] %vm254, 0.0
        %264 = vst.msk [vmem:[#allocation2 + $0x48] sm:$0xff] %vm254, 0.0
        %265 = vst.msk [vmem:[#allocation2 + $0x50] sm:$0xff] %vm254, 0.0
        %266 = vst.msk [vmem:[#allocation2 + $0x58] sm:$0xff] %vm254, 0.0
        %267 = vst.msk [vmem:[#allocation2 + $0x60] sm:$0xff] %vm254, 0.0
        %268 = vst.msk [vmem:[#allocation2 + $0x68] sm:$0xff] %vm254, 0.0
        %269 = vst.msk [vmem:[#allocation2 + $0x70] sm:$0xff] %vm254, 0.0
        %270 = vst.msk [vmem:[#allocation2 + $0x78] sm:$0xff] %vm254, 0.0
        %271 = vst.msk [vmem:[#allocation2 + $0x80] sm:$0xff] %vm254, 0.0
        %272 = vst.msk [vmem:[#allocation2 + $0x88] sm:$0xff] %vm254, 0.0
        %273 = vst.msk [vmem:[#allocation2 + $0x90] sm:$0xff] %vm254, 0.0
        %274 = vst.msk [vmem:[#allocation2 + $0x98] sm:$0xff] %vm254, 0.0
        %275 = vst.msk [vmem:[#allocation2 + $0xa0] sm:$0xff] %vm254, 0.0
        %276 = vst.msk [vmem:[#allocation2 + $0xa8] sm:$0xff] %vm254, 0.0
        %277 = vst.msk [vmem:[#allocation2 + $0xb0] sm:$0xff] %vm254, 0.0
        %278 = vst.msk [vmem:[#allocation2 + $0xb8] sm:$0xff] %vm254, 0.0
        %279 = vst.msk [vmem:[#allocation2 + $0xc0] sm:$0xff] %vm254, 0.0
        %280 = vst.msk [vmem:[#allocation2 + $0xc8] sm:$0xff] %vm254, 0.0
        %281 = vst.msk [vmem:[#allocation2 + $0xd0] sm:$0xff] %vm254, 0.0
        %282 = vst.msk [vmem:[#allocation2 + $0xd8] sm:$0xff] %vm254, 0.0
        %283 = vst.msk [vmem:[#allocation2 + $0xe0] sm:$0xff] %vm254, 0.0
        %284 = vst.msk [vmem:[#allocation2 + $0xe8] sm:$0xff] %vm254, 0.0
        %285 = vst.msk [vmem:[#allocation2 + $0xf0] sm:$0xff] %vm254, 0.0
        %286 = vst.msk [vmem:[#allocation2 + $0xf8] sm:$0xff] %vm254, 0.0
      $region32: #{dydensenet_forward.14} parent=27 // pred_fallthru
        _
      %v287 = vld [vmem:[#allocation2] sm:$0xff]
      %v288 = vld [vmem:[#allocation2 + $0x8] sm:$0xff]
      %v289 = vld [vmem:[#allocation2 + $0x10] sm:$0xff]
      %v290 = vld [vmem:[#allocation2 + $0x18] sm:$0xff]
      %v291 = vld [vmem:[#allocation2 + $0x20] sm:$0xff]
      %v292 = vld [vmem:[#allocation2 + $0x28] sm:$0xff]
      %v293 = vld [vmem:[#allocation2 + $0x30] sm:$0xff]
      %v294 = vld [vmem:[#allocation2 + $0x38] sm:$0xff]
      %v295 = vld [vmem:[#allocation2 + $0x40] sm:$0xff]
      %v296 = vld [vmem:[#allocation2 + $0x48] sm:$0xff]
      %v297 = vld [vmem:[#allocation2 + $0x50] sm:$0xff]
      %v298 = vld [vmem:[#allocation2 + $0x58] sm:$0xff]
      %v299 = vld [vmem:[#allocation2 + $0x60] sm:$0xff]
      %v300 = vld [vmem:[#allocation2 + $0x68] sm:$0xff]
      %v301 = vld [vmem:[#allocation2 + $0x70] sm:$0xff]
      %v302 = vld [vmem:[#allocation2 + $0x78] sm:$0xff]
      %v303 = vld [vmem:[#allocation2 + $0x80] sm:$0xff]
      %v304 = vld [vmem:[#allocation2 + $0x88] sm:$0xff]
      %v305 = vld [vmem:[#allocation2 + $0x90] sm:$0xff]
      %v306 = vld [vmem:[#allocation2 + $0x98] sm:$0xff]
      %v307 = vld [vmem:[#allocation2 + $0xa0] sm:$0xff]
      %v308 = vld [vmem:[#allocation2 + $0xa8] sm:$0xff]
      %v309 = vld [vmem:[#allocation2 + $0xb0] sm:$0xff]
      %v310 = vld [vmem:[#allocation2 + $0xb8] sm:$0xff]
      %v311 = vld [vmem:[#allocation2 + $0xc0] sm:$0xff]
      %v312 = vld [vmem:[#allocation2 + $0xc8] sm:$0xff]
      %v313 = vld [vmem:[#allocation2 + $0xd0] sm:$0xff]
      %v314 = vld [vmem:[#allocation2 + $0xd8] sm:$0xff]
      %v315 = vld [vmem:[#allocation2 + $0xe0] sm:$0xff]
      %v316 = vld [vmem:[#allocation2 + $0xe8] sm:$0xff]
      %v317 = vld [vmem:[#allocation2 + $0xf0] sm:$0xff]
      %v318 = vld [vmem:[#allocation2 + $0xf8] sm:$0xff]
      %v319 = vld [vmem:[%s225] sm:$0xf]
      %v320 = vld [vmem:[%s225 + $0x4] sm:$0xf]
      %v321 = vld [vmem:[%s225 + $0x8] sm:$0xf]
      %v322 = vld [vmem:[%s225 + $0xc] sm:$0xf]
      %v323 = vld [vmem:[%s225 + $0x10] sm:$0xf]
      %v324 = vld [vmem:[%s225 + $0x14] sm:$0xf]
      %v325 = vld [vmem:[%s225 + $0x18] sm:$0xf]
      %v326 = vld [vmem:[%s225 + $0x1c] sm:$0xf]
      %v327 = vld [vmem:[%s225 + $0x20] sm:$0xf]
      %v328 = vld [vmem:[%s225 + $0x24] sm:$0xf]
      %v329 = vld [vmem:[%s225 + $0x28] sm:$0xf]
      %v330 = vld [vmem:[%s225 + $0x2c] sm:$0xf]
      %v331 = vld [vmem:[%s225 + $0x30] sm:$0xf]
      %v332 = vld [vmem:[%s225 + $0x34] sm:$0xf]
      %v333 = vld [vmem:[%s225 + $0x38] sm:$0xf]
      %v334 = vld [vmem:[%s225 + $0x3c] sm:$0xf]
      %v335 = vld [vmem:[%s225 + $0x40] sm:$0xf]
      %v336 = vld [vmem:[%s225 + $0x44] sm:$0xf]
      %v337 = vld [vmem:[%s225 + $0x48] sm:$0xf]
      %v338 = vld [vmem:[%s225 + $0x4c] sm:$0xf]
      %v339 = vld [vmem:[%s225 + $0x50] sm:$0xf]
      %v340 = vld [vmem:[%s225 + $0x54] sm:$0xf]
      %v341 = vld [vmem:[%s225 + $0x58] sm:$0xf]
      %v342 = vld [vmem:[%s225 + $0x5c] sm:$0xf]
      %v343 = vld [vmem:[%s225 + $0x60] sm:$0xf]
      %v344 = vld [vmem:[%s225 + $0x64] sm:$0xf]
      %v345 = vld [vmem:[%s225 + $0x68] sm:$0xf]
      %v346 = vld [vmem:[%s225 + $0x6c] sm:$0xf]
      %v347 = vld [vmem:[%s225 + $0x70] sm:$0xf]
      %v348 = vld [vmem:[%s225 + $0x74] sm:$0xf]
      %v349 = vld [vmem:[%s225 + $0x78] sm:$0xf]
      %v350 = vld [vmem:[%s225 + $0x7c] sm:$0xf]
      %v351 = vld [vmem:[%s234] sm:$0xf]
      %v352 = vld [vmem:[%s234 + $0x4] sm:$0xf]
      %v353 = vld [vmem:[%s234 + $0x8] sm:$0xf]
      %v354 = vld [vmem:[%s234 + $0xc] sm:$0x3]
      %v387 = vunpack.c.l.b16 %v319
      %v388 = vunpack.c.l.b16 %v320
      %v389 = vunpack.c.l.b16 %v321
      %v390 = vunpack.c.l.b16 %v322
      %v391 = vunpack.c.l.b16 %v323
      %v392 = vunpack.c.l.b16 %v324
      %v393 = vunpack.c.l.b16 %v325
      %v394 = vunpack.c.l.b16 %v326
      %v395 = vunpack.c.l.b16 %v327
      %v396 = vunpack.c.l.b16 %v328
      %v397 = vunpack.c.l.b16 %v329
      %v398 = vunpack.c.l.b16 %v330
      %v399 = vunpack.c.l.b16 %v331
      %v400 = vunpack.c.l.b16 %v332
      %v401 = vunpack.c.l.b16 %v333
      %v402 = vunpack.c.l.b16 %v334
      %v403 = vunpack.c.l.b16 %v335
      %v404 = vunpack.c.l.b16 %v336
      %v405 = vunpack.c.l.b16 %v337
      %v406 = vunpack.c.l.b16 %v338
      %v407 = vunpack.c.l.b16 %v339
      %v408 = vunpack.c.l.b16 %v340
      %v409 = vunpack.c.l.b16 %v341
      %v410 = vunpack.c.l.b16 %v342
      %v411 = vunpack.c.l.b16 %v343
      %v412 = vunpack.c.l.b16 %v344
      %v413 = vunpack.c.l.b16 %v345
      %v414 = vunpack.c.l.b16 %v346
      %v415 = vunpack.c.l.b16 %v347
      %v416 = vunpack.c.l.b16 %v348
      %v417 = vunpack.c.l.b16 %v349
      %v418 = vunpack.c.l.b16 %v350
      %v419 = vpack.c.b16 %v388, %v387
      %v420 = vpack.c.b16 %v390, %v389
      %v421 = vpack.c.b16 %v392, %v391
      %v422 = vpack.c.b16 %v394, %v393
      %v423 = vpack.c.b16 %v396, %v395
      %v424 = vpack.c.b16 %v398, %v397
      %v425 = vpack.c.b16 %v400, %v399
      %v426 = vpack.c.b16 %v402, %v401
      %v427 = vpack.c.b16 %v404, %v403
      %v428 = vpack.c.b16 %v406, %v405
      %v429 = vpack.c.b16 %v408, %v407
      %v430 = vpack.c.b16 %v410, %v409
      %v431 = vpack.c.b16 %v412, %v411
      %v432 = vpack.c.b16 %v414, %v413
      %v433 = vpack.c.b16 %v416, %v415
      %v434 = vpack.c.b16 %v418, %v417
      %v439 = vunpack.c.l.b16 %v351
      %v440 = vunpack.c.l.b16 %v352
      %v441 = vunpack.c.l.b16 %v353
      %v442 = vunpack.c.l.b16 %v354
      %v443 = vpack.c.b16 %v440, %v439
      %v444 = vpack.c.b16 %v442, %v441
      %vm446 = vcmask 220160
      %v448 = vsel %vm446, %v419, 0
      %v451 = vsel %vm446, %v420, 0
      %v454 = vsel %vm446, %v421, 0
      %v457 = vsel %vm446, %v422, 0
      %v460 = vsel %vm446, %v423, 0
      %v463 = vsel %vm446, %v424, 0
      %v466 = vsel %vm446, %v425, 0
      %v469 = vsel %vm446, %v426, 0
      %v472 = vsel %vm446, %v427, 0
      %v475 = vsel %vm446, %v428, 0
      %v478 = vsel %vm446, %v429, 0
      %v481 = vsel %vm446, %v430, 0
      %v484 = vsel %vm446, %v431, 0
      %v487 = vsel %vm446, %v432, 0
      %v490 = vsel %vm446, %v433, 0
      %v493 = vsel %vm446, %v434, 0
      %vm495 = vcmask 1044480
      %vm496 = vcmask 1045504
      %v497 = vsel %vm495, 4294967295, 65535
      %v498 = vsel %vm496, %v497, 0
      %v500 = vand.u32 %v444, %v498
      %502 = vmatprep.subr.bf16.mxu0 0
      %503 = vmatpush1.bf16.msra.mxu0 0
      %504 = vmatprep.subr.bf16.mxu0 0
      %505 = vmatpush1.bf16.msra.mxu0 0
      %506 = vmatprep.subr.bf16.mxu0 0
      %507 = vmatpush1.bf16.msra.mxu0 0
      %508 = vmatprep.subr.bf16.mxu0 0
      %509 = vmatpush1.bf16.msra.mxu0 0
      %510 = vmatprep.subr.bf16.mxu0 0
      %511 = vmatpush1.bf16.msra.mxu0 0
      %512 = vmatprep.subr.bf16.mxu0 0
      %513 = vmatpush1.bf16.msra.mxu0 0
      %514 = vmatprep.subr.bf16.mxu0 0
      %515 = vmatpush1.bf16.msra.mxu0 %v500
      %516 = vmatprep.subr.bf16.mxu0 0
      %517 = vmatpush1.bf16.msra.mxu0 %v443
      %518 = vmatprep.subr.bf16.mxu0 0
      %519 = vmatpush2.bf16.msra.mxu0 0
      %520 = vmatprep.subr.bf16.mxu0 0
      %521 = vmatpush2.bf16.msra.mxu0 0
      %522 = vmatprep.subr.bf16.mxu0 0
      %523 = vmatpush2.bf16.msra.mxu0 0
      %524 = vmatprep.subr.bf16.mxu0 0
      %525 = vmatpush2.bf16.msra.mxu0 0
      %526 = vmatprep.subr.bf16.mxu0 0
      %527 = vmatpush2.bf16.msra.mxu0 0
      %528 = vmatprep.subr.bf16.mxu0 0
      %529 = vmatpush2.bf16.msra.mxu0 0
      %530 = vmatprep.subr.bf16.mxu0 0
      %531 = vmatpush2.bf16.msra.mxu0 0
      %532 = vmatprep.subr.bf16.mxu0 0
      %533 = vmatpush2.bf16.msra.mxu0 0
      %534 = vmatprep.mubr.bf16.mxu0 0
      %535 = vmatmul.mubr.bf16.gmra.mxu0 %v448
      %v536 = vpop.f32.mrf.mxu0
      %v537 = vadd.f32 0.0, %v536
      %v538 = vpop.f32.mrf.mxu0
      %v539 = vpop.f32.mrf.mxu0
      %v540 = vadd.f32 0.0, %v539
      %v541 = vpop.f32.mrf.mxu0
      %542 = vmatprep.mubr.bf16.mxu0 0
      %543 = vmatmul.mubr.bf16.gmra.mxu0 %v451
      %v544 = vpop.f32.mrf.mxu0
      %v545 = vadd.f32 0.0, %v544
      %v546 = vpop.f32.mrf.mxu0
      %v547 = vpop.f32.mrf.mxu0
      %v548 = vadd.f32 0.0, %v547
      %v549 = vpop.f32.mrf.mxu0
      %550 = vmatprep.mubr.bf16.mxu0 0
      %551 = vmatmul.mubr.bf16.gmra.mxu0 %v454
      %v552 = vpop.f32.mrf.mxu0
      %v553 = vadd.f32 0.0, %v552
      %v554 = vpop.f32.mrf.mxu0
      %v555 = vpop.f32.mrf.mxu0
      %v556 = vadd.f32 0.0, %v555
      %v557 = vpop.f32.mrf.mxu0
      %558 = vmatprep.mubr.bf16.mxu0 0
      %559 = vmatmul.mubr.bf16.gmra.mxu0 %v457
      %v560 = vpop.f32.mrf.mxu0
      %v561 = vadd.f32 0.0, %v560
      %v562 = vpop.f32.mrf.mxu0
      %v563 = vpop.f32.mrf.mxu0
      %v564 = vadd.f32 0.0, %v563
      %v565 = vpop.f32.mrf.mxu0
      %566 = vmatprep.mubr.bf16.mxu0 0
      %567 = vmatmul.mubr.bf16.gmra.mxu0 %v460
      %v568 = vpop.f32.mrf.mxu0
      %v569 = vadd.f32 0.0, %v568
      %v570 = vpop.f32.mrf.mxu0
      %v571 = vpop.f32.mrf.mxu0
      %v572 = vadd.f32 0.0, %v571
      %v573 = vpop.f32.mrf.mxu0
      %574 = vmatprep.mubr.bf16.mxu0 0
      %575 = vmatmul.mubr.bf16.gmra.mxu0 %v463
      %v576 = vpop.f32.mrf.mxu0
      %v577 = vadd.f32 0.0, %v576
      %v578 = vpop.f32.mrf.mxu0
      %v579 = vpop.f32.mrf.mxu0
      %v580 = vadd.f32 0.0, %v579
      %v581 = vpop.f32.mrf.mxu0
      %582 = vmatprep.mubr.bf16.mxu0 0
      %583 = vmatmul.mubr.bf16.gmra.mxu0 %v466
      %v584 = vpop.f32.mrf.mxu0
      %v585 = vadd.f32 0.0, %v584
      %v586 = vpop.f32.mrf.mxu0
      %v587 = vpop.f32.mrf.mxu0
      %v588 = vadd.f32 0.0, %v587
      %v589 = vpop.f32.mrf.mxu0
      %590 = vmatprep.mubr.bf16.mxu0 0
      %591 = vmatmul.mubr.bf16.gmra.mxu0 %v469
      %v592 = vpop.f32.mrf.mxu0
      %v593 = vadd.f32 0.0, %v592
      %v594 = vpop.f32.mrf.mxu0
      %v595 = vpop.f32.mrf.mxu0
      %v596 = vadd.f32 0.0, %v595
      %v597 = vpop.f32.mrf.mxu0
      %598 = vmatprep.mubr.bf16.mxu0 0
      %599 = vmatmul.mubr.bf16.gmra.mxu0 %v472
      %v600 = vpop.f32.mrf.mxu0
      %v601 = vadd.f32 0.0, %v600
      %v602 = vpop.f32.mrf.mxu0
      %v603 = vpop.f32.mrf.mxu0
      %v604 = vadd.f32 0.0, %v603
      %v605 = vpop.f32.mrf.mxu0
      %606 = vmatprep.mubr.bf16.mxu0 0
      %607 = vmatmul.mubr.bf16.gmra.mxu0 %v475
      %v608 = vpop.f32.mrf.mxu0
      %v609 = vadd.f32 0.0, %v608
      %v610 = vpop.f32.mrf.mxu0
      %v611 = vpop.f32.mrf.mxu0
      %v612 = vadd.f32 0.0, %v611
      %v613 = vpop.f32.mrf.mxu0
      %614 = vmatprep.mubr.bf16.mxu0 0
      %615 = vmatmul.mubr.bf16.gmra.mxu0 %v478
      %v616 = vpop.f32.mrf.mxu0
      %v617 = vadd.f32 0.0, %v616
      %v618 = vpop.f32.mrf.mxu0
      %v619 = vpop.f32.mrf.mxu0
      %v620 = vadd.f32 0.0, %v619
      %v621 = vpop.f32.mrf.mxu0
      %622 = vmatprep.mubr.bf16.mxu0 0
      %623 = vmatmul.mubr.bf16.gmra.mxu0 %v481
      %v624 = vpop.f32.mrf.mxu0
      %v625 = vadd.f32 0.0, %v624
      %v626 = vpop.f32.mrf.mxu0
      %v627 = vpop.f32.mrf.mxu0
      %v628 = vadd.f32 0.0, %v627
      %v629 = vpop.f32.mrf.mxu0
      %630 = vmatprep.mubr.bf16.mxu0 0
      %631 = vmatmul.mubr.bf16.gmra.mxu0 %v484
      %v632 = vpop.f32.mrf.mxu0
      %v633 = vadd.f32 0.0, %v632
      %v634 = vpop.f32.mrf.mxu0
      %v635 = vpop.f32.mrf.mxu0
      %v636 = vadd.f32 0.0, %v635
      %v637 = vpop.f32.mrf.mxu0
      %638 = vmatprep.mubr.bf16.mxu0 0
      %639 = vmatmul.mubr.bf16.gmra.mxu0 %v487
      %v640 = vpop.f32.mrf.mxu0
      %v641 = vadd.f32 0.0, %v640
      %v642 = vpop.f32.mrf.mxu0
      %v643 = vpop.f32.mrf.mxu0
      %v644 = vadd.f32 0.0, %v643
      %v645 = vpop.f32.mrf.mxu0
      %646 = vmatprep.mubr.bf16.mxu0 0
      %647 = vmatmul.mubr.bf16.gmra.mxu0 %v490
      %v648 = vpop.f32.mrf.mxu0
      %v649 = vadd.f32 0.0, %v648
      %v650 = vpop.f32.mrf.mxu0
      %v651 = vpop.f32.mrf.mxu0
      %v652 = vadd.f32 0.0, %v651
      %v653 = vpop.f32.mrf.mxu0
      %654 = vmatprep.mubr.bf16.mxu0 0
      %655 = vmatmul.mubr.bf16.gmra.mxu0 %v493
      %v656 = vpop.f32.mrf.mxu0
      %v657 = vadd.f32 0.0, %v656
      %v658 = vpop.f32.mrf.mxu0
      %v659 = vpop.f32.mrf.mxu0
      %v660 = vadd.f32 0.0, %v659
      %v661 = vpop.f32.mrf.mxu0
      %662 = vdwg.mxu0
      %v663 = vadd.f32 %v287, %v537
      %v664 = vadd.f32 %v288, %v540
      %v665 = vadd.f32 %v289, %v545
      %v666 = vadd.f32 %v290, %v548
      %v667 = vadd.f32 %v291, %v553
      %v668 = vadd.f32 %v292, %v556
      %v669 = vadd.f32 %v293, %v561
      %v670 = vadd.f32 %v294, %v564
      %v671 = vadd.f32 %v295, %v569
      %v672 = vadd.f32 %v296, %v572
      %v673 = vadd.f32 %v297, %v577
      %v674 = vadd.f32 %v298, %v580
      %v675 = vadd.f32 %v299, %v585
      %v676 = vadd.f32 %v300, %v588
      %v677 = vadd.f32 %v301, %v593
      %v678 = vadd.f32 %v302, %v596
      %v679 = vadd.f32 %v303, %v601
      %v680 = vadd.f32 %v304, %v604
      %v681 = vadd.f32 %v305, %v609
      %v682 = vadd.f32 %v306, %v612
      %v683 = vadd.f32 %v307, %v617
      %v684 = vadd.f32 %v308, %v620
      %v685 = vadd.f32 %v309, %v625
      %v686 = vadd.f32 %v310, %v628
      %v687 = vadd.f32 %v311, %v633
      %v688 = vadd.f32 %v312, %v636
      %v689 = vadd.f32 %v313, %v641
      %v690 = vadd.f32 %v314, %v644
      %v691 = vadd.f32 %v315, %v649
      %v692 = vadd.f32 %v316, %v652
      %v693 = vadd.f32 %v317, %v657
      %v694 = vadd.f32 %v318, %v660
      %vm695 = vcmask 64512
      %696 = vst.msk [vmem:[#allocation2] sm:$0xff] %vm695, %v663
      %697 = vst.msk [vmem:[#allocation2 + $0x8] sm:$0xff] %vm695, %v664
      %698 = vst.msk [vmem:[#allocation2 + $0x10] sm:$0xff] %vm695, %v665
      %699 = vst.msk [vmem:[#allocation2 + $0x18] sm:$0xff] %vm695, %v666
      %700 = vst.msk [vmem:[#allocation2 + $0x20] sm:$0xff] %vm695, %v667
      %701 = vst.msk [vmem:[#allocation2 + $0x28] sm:$0xff] %vm695, %v668
      %702 = vst.msk [vmem:[#allocation2 + $0x30] sm:$0xff] %vm695, %v669
      %703 = vst.msk [vmem:[#allocation2 + $0x38] sm:$0xff] %vm695, %v670
      %704 = vst.msk [vmem:[#allocation2 + $0x40] sm:$0xff] %vm695, %v671
      %705 = vst.msk [vmem:[#allocation2 + $0x48] sm:$0xff] %vm695, %v672
      %706 = vst.msk [vmem:[#allocation2 + $0x50] sm:$0xff] %vm695, %v673
      %707 = vst.msk [vmem:[#allocation2 + $0x58] sm:$0xff] %vm695, %v674
      %708 = vst.msk [vmem:[#allocation2 + $0x60] sm:$0xff] %vm695, %v675
      %709 = vst.msk [vmem:[#allocation2 + $0x68] sm:$0xff] %vm695, %v676
      %710 = vst.msk [vmem:[#allocation2 + $0x70] sm:$0xff] %vm695, %v677
      %711 = vst.msk [vmem:[#allocation2 + $0x78] sm:$0xff] %vm695, %v678
      %712 = vst.msk [vmem:[#allocation2 + $0x80] sm:$0xff] %vm695, %v679
      %713 = vst.msk [vmem:[#allocation2 + $0x88] sm:$0xff] %vm695, %v680
      %714 = vst.msk [vmem:[#allocation2 + $0x90] sm:$0xff] %vm695, %v681
      %715 = vst.msk [vmem:[#allocation2 + $0x98] sm:$0xff] %vm695, %v682
      %716 = vst.msk [vmem:[#allocation2 + $0xa0] sm:$0xff] %vm695, %v683
      %717 = vst.msk [vmem:[#allocation2 + $0xa8] sm:$0xff] %vm695, %v684
      %718 = vst.msk [vmem:[#allocation2 + $0xb0] sm:$0xff] %vm695, %v685
      %719 = vst.msk [vmem:[#allocation2 + $0xb8] sm:$0xff] %vm695, %v686
      %720 = vst.msk [vmem:[#allocation2 + $0xc0] sm:$0xff] %vm695, %v687
      %721 = vst.msk [vmem:[#allocation2 + $0xc8] sm:$0xff] %vm695, %v688
      %722 = vst.msk [vmem:[#allocation2 + $0xd0] sm:$0xff] %vm695, %v689
      %723 = vst.msk [vmem:[#allocation2 + $0xd8] sm:$0xff] %vm695, %v690
      %724 = vst.msk [vmem:[#allocation2 + $0xe0] sm:$0xff] %vm695, %v691
      %725 = vst.msk [vmem:[#allocation2 + $0xe8] sm:$0xff] %vm695, %v692
      %726 = vst.msk [vmem:[#allocation2 + $0xf0] sm:$0xff] %vm695, %v693
      %727 = vst.msk [vmem:[#allocation2 + $0xf8] sm:$0xff] %vm695, %v694
      // Predicated region
      $region33: #{dydensenet_forward.14} parent=27 // pred_check
        %p728 = pneg %p250
      $region34: #{dydensenet_forward.14} parent=27 // pred_check_branch
        %730 = sbr.rel (%p728) target = $region36
      $region35: #{dydensenet_forward.14} parent=27 // pred_region
        %v731 = vld [vmem:[#allocation2] sm:$0xff]
        %v732 = vld [vmem:[#allocation2 + $0x8] sm:$0xff]
        %v733 = vld [vmem:[#allocation2 + $0x10] sm:$0xff]
        %v734 = vld [vmem:[#allocation2 + $0x18] sm:$0xff]
        %v735 = vld [vmem:[#allocation2 + $0x20] sm:$0xff]
        %v736 = vld [vmem:[#allocation2 + $0x28] sm:$0xff]
        %v737 = vld [vmem:[#allocation2 + $0x30] sm:$0xff]
        %v738 = vld [vmem:[#allocation2 + $0x38] sm:$0xff]
        %v739 = vld [vmem:[#allocation2 + $0x40] sm:$0xff]
        %v740 = vld [vmem:[#allocation2 + $0x48] sm:$0xff]
        %v741 = vld [vmem:[#allocation2 + $0x50] sm:$0xff]
        %v742 = vld [vmem:[#allocation2 + $0x58] sm:$0xff]
        %v743 = vld [vmem:[#allocation2 + $0x60] sm:$0xff]
        %v744 = vld [vmem:[#allocation2 + $0x68] sm:$0xff]
        %v745 = vld [vmem:[#allocation2 + $0x70] sm:$0xff]
        %v746 = vld [vmem:[#allocation2 + $0x78] sm:$0xff]
        %v747 = vld [vmem:[#allocation2 + $0x80] sm:$0xff]
        %v748 = vld [vmem:[#allocation2 + $0x88] sm:$0xff]
        %v749 = vld [vmem:[#allocation2 + $0x90] sm:$0xff]
        %v750 = vld [vmem:[#allocation2 + $0x98] sm:$0xff]
        %v751 = vld [vmem:[#allocation2 + $0xa0] sm:$0xff]
        %v752 = vld [vmem:[#allocation2 + $0xa8] sm:$0xff]
        %v753 = vld [vmem:[#allocation2 + $0xb0] sm:$0xff]
        %v754 = vld [vmem:[#allocation2 + $0xb8] sm:$0xff]
        %v755 = vld [vmem:[#allocation2 + $0xc0] sm:$0xff]
        %v756 = vld [vmem:[#allocation2 + $0xc8] sm:$0xff]
        %v757 = vld [vmem:[#allocation2 + $0xd0] sm:$0xff]
        %v758 = vld [vmem:[#allocation2 + $0xd8] sm:$0xff]
        %v759 = vld [vmem:[#allocation2 + $0xe0] sm:$0xff]
        %v760 = vld [vmem:[#allocation2 + $0xe8] sm:$0xff]
        %v761 = vld [vmem:[#allocation2 + $0xf0] sm:$0xff]
        %v762 = vld [vmem:[#allocation2 + $0xf8] sm:$0xff]
        %v763 = vpack.c.bf16 %v732, %v731
        %v764 = vpack.c.bf16 %v734, %v733
        %v765 = vpack.c.bf16 %v736, %v735
        %v766 = vpack.c.bf16 %v738, %v737
        %v767 = vpack.c.bf16 %v740, %v739
        %v768 = vpack.c.bf16 %v742, %v741
        %v769 = vpack.c.bf16 %v744, %v743
        %v770 = vpack.c.bf16 %v746, %v745
        %v771 = vpack.c.bf16 %v748, %v747
        %v772 = vpack.c.bf16 %v750, %v749
        %v773 = vpack.c.bf16 %v752, %v751
        %v774 = vpack.c.bf16 %v754, %v753
        %v775 = vpack.c.bf16 %v756, %v755
        %v776 = vpack.c.bf16 %v758, %v757
        %v777 = vpack.c.bf16 %v760, %v759
        %v778 = vpack.c.bf16 %v762, %v761
        %v795 = vunpack.c.l.b16 %v763
        %v796 = vunpack.c.h.b16 %v763
        %v797 = vunpack.c.l.b16 %v764
        %v798 = vunpack.c.h.b16 %v764
        %v799 = vunpack.c.l.b16 %v765
        %v800 = vunpack.c.h.b16 %v765
        %v801 = vunpack.c.l.b16 %v766
        %v802 = vunpack.c.h.b16 %v766
        %v803 = vunpack.c.l.b16 %v767
        %v804 = vunpack.c.h.b16 %v767
        %v805 = vunpack.c.l.b16 %v768
        %v806 = vunpack.c.h.b16 %v768
        %v807 = vunpack.c.l.b16 %v769
        %v808 = vunpack.c.h.b16 %v769
        %v809 = vunpack.c.l.b16 %v770
        %v810 = vunpack.c.h.b16 %v770
        %v811 = vunpack.c.l.b16 %v771
        %v812 = vunpack.c.h.b16 %v771
        %v813 = vunpack.c.l.b16 %v772
        %v814 = vunpack.c.h.b16 %v772
        %v815 = vunpack.c.l.b16 %v773
        %v816 = vunpack.c.h.b16 %v773
        %v817 = vunpack.c.l.b16 %v774
        %v818 = vunpack.c.h.b16 %v774
        %v819 = vunpack.c.l.b16 %v775
        %v820 = vunpack.c.h.b16 %v775
        %v821 = vunpack.c.l.b16 %v776
        %v822 = vunpack.c.h.b16 %v776
        %v823 = vunpack.c.l.b16 %v777
        %v824 = vunpack.c.h.b16 %v777
        %v825 = vunpack.c.l.b16 %v778
        %v826 = vunpack.c.h.b16 %v778
        %v827 = vpack.c.b16 %v795, %v795
        %v828 = vpack.c.b16 %v796, %v796
        %v829 = vpack.c.b16 %v797, %v797
        %v830 = vpack.c.b16 %v798, %v798
        %v831 = vpack.c.b16 %v799, %v799
        %v832 = vpack.c.b16 %v800, %v800
        %v833 = vpack.c.b16 %v801, %v801
        %v834 = vpack.c.b16 %v802, %v802
        %v835 = vpack.c.b16 %v803, %v803
        %v836 = vpack.c.b16 %v804, %v804
        %v837 = vpack.c.b16 %v805, %v805
        %v838 = vpack.c.b16 %v806, %v806
        %v839 = vpack.c.b16 %v807, %v807
        %v840 = vpack.c.b16 %v808, %v808
        %v841 = vpack.c.b16 %v809, %v809
        %v842 = vpack.c.b16 %v810, %v810
        %v843 = vpack.c.b16 %v811, %v811
        %v844 = vpack.c.b16 %v812, %v812
        %v845 = vpack.c.b16 %v813, %v813
        %v846 = vpack.c.b16 %v814, %v814
        %v847 = vpack.c.b16 %v815, %v815
        %v848 = vpack.c.b16 %v816, %v816
        %v849 = vpack.c.b16 %v817, %v817
        %v850 = vpack.c.b16 %v818, %v818
        %v851 = vpack.c.b16 %v819, %v819
        %v852 = vpack.c.b16 %v820, %v820
        %v853 = vpack.c.b16 %v821, %v821
        %v854 = vpack.c.b16 %v822, %v822
        %v855 = vpack.c.b16 %v823, %v823
        %v856 = vpack.c.b16 %v824, %v824
        %v857 = vpack.c.b16 %v825, %v825
        %v858 = vpack.c.b16 %v826, %v826
        %vm891 = vcmask 60416
        %892 = vst.msk [vmem:[%s247] sm:$0xf] %vm891, %v827
        %893 = vst.msk [vmem:[%s247 + $0x4] sm:$0xf] %vm891, %v828
        %894 = vst.msk [vmem:[%s247 + $0x8] sm:$0xf] %vm891, %v829
        %895 = vst.msk [vmem:[%s247 + $0xc] sm:$0xf] %vm891, %v830
        %896 = vst.msk [vmem:[%s247 + $0x10] sm:$0xf] %vm891, %v831
        %897 = vst.msk [vmem:[%s247 + $0x14] sm:$0xf] %vm891, %v832
        %898 = vst.msk [vmem:[%s247 + $0x18] sm:$0xf] %vm891, %v833
        %899 = vst.msk [vmem:[%s247 + $0x1c] sm:$0xf] %vm891, %v834
        %900 = vst.msk [vmem:[%s247 + $0x20] sm:$0xf] %vm891, %v835
        %901 = vst.msk [vmem:[%s247 + $0x24] sm:$0xf] %vm891, %v836
        %902 = vst.msk [vmem:[%s247 + $0x28] sm:$0xf] %vm891, %v837
        %903 = vst.msk [vmem:[%s247 + $0x2c] sm:$0xf] %vm891, %v838
        %904 = vst.msk [vmem:[%s247 + $0x30] sm:$0xf] %vm891, %v839
        %905 = vst.msk [vmem:[%s247 + $0x34] sm:$0xf] %vm891, %v840
        %906 = vst.msk [vmem:[%s247 + $0x38] sm:$0xf] %vm891, %v841
        %907 = vst.msk [vmem:[%s247 + $0x3c] sm:$0xf] %vm891, %v842
        %908 = vst.msk [vmem:[%s247 + $0x40] sm:$0xf] %vm891, %v843
        %909 = vst.msk [vmem:[%s247 + $0x44] sm:$0xf] %vm891, %v844
        %910 = vst.msk [vmem:[%s247 + $0x48] sm:$0xf] %vm891, %v845
        %911 = vst.msk [vmem:[%s247 + $0x4c] sm:$0xf] %vm891, %v846
        %912 = vst.msk [vmem:[%s247 + $0x50] sm:$0xf] %vm891, %v847
        %913 = vst.msk [vmem:[%s247 + $0x54] sm:$0xf] %vm891, %v848
        %914 = vst.msk [vmem:[%s247 + $0x58] sm:$0xf] %vm891, %v849
        %915 = vst.msk [vmem:[%s247 + $0x5c] sm:$0xf] %vm891, %v850
        %916 = vst.msk [vmem:[%s247 + $0x60] sm:$0xf] %vm891, %v851
        %917 = vst.msk [vmem:[%s247 + $0x64] sm:$0xf] %vm891, %v852
        %918 = vst.msk [vmem:[%s247 + $0x68] sm:$0xf] %vm891, %v853
        %919 = vst.msk [vmem:[%s247 + $0x6c] sm:$0xf] %vm891, %v854
        %920 = vst.msk [vmem:[%s247 + $0x70] sm:$0xf] %vm891, %v855
        %921 = vst.msk [vmem:[%s247 + $0x74] sm:$0xf] %vm891, %v856
        %922 = vst.msk [vmem:[%s247 + $0x78] sm:$0xf] %vm891, %v857
        %923 = vst.msk [vmem:[%s247 + $0x7c] sm:$0xf] %vm891, %v858
      $region36: #{dydensenet_forward.14} parent=27 // pred_fallthru
        _
      %s924 = smul.u32 32, %s20
      %p925 = scmp.lt.s32.totalorder %s19, 1
      %s926 = scalar_select %p925, %s19, 1
      %p927 = scmp.lt.s32.totalorder %s924, 31
      %s928 = scalar_select %p927, %s924, 31
      %p929 = scmp.lt.s32.totalorder %s21, 0
      %s930 = scalar_select %p929, %s21, 0
      %s931 = sadd.s32 %s930, %s928
      %s932 = smul.addr %s926, 32
      %s933 = sadd.s32 %s931, %s932
      %s934 = smul.addr %s933, 4
      %s935 = scalar_lea.vmem %s2, %s934
      // Predicated region
      $region37: #{dydensenet_forward.14} parent=27 // pred_check
        %p936 = pneg %p119
      $region38: #{dydensenet_forward.14} parent=27 // pred_check_branch
        %938 = sbr.rel (%p936) target = $region40
      $region39: #{dydensenet_forward.14} parent=27 // pred_region
        %s939 = smul.u32 32, %s20
      $region40: #{dydensenet_forward.14} parent=27 // pred_fallthru
        _
    $region28: #{dydensenet_forward.14} parent=5 // pred_fallthru
      _
    %p940 = scmp.le.s32.totalorder 2, %s8
    // Predicated region
    $region41: #{dydensenet_forward.14} parent=5 // pred_check
      %p941 = pneg %p940
    $region42: #{dydensenet_forward.14} parent=5 // pred_check_branch
      %943 = sbr.rel (%p941) target = $region44
    $region43: #{dydensenet_forward.14} parent=5 // pred_region
      %s944 = ssub.s32 %s8, 2
      // Predicated region
      $region45: #{dydensenet_forward.14} parent=43 // pred_check
        %p945 = pneg %p125
      $region46: #{dydensenet_forward.14} parent=43 // pred_check_branch
        %947 = sbr.rel (%p945) target = $region48
      $region47: #{dydensenet_forward.14} parent=43 // pred_region
        %s948 = smul.u32 32, %s24
        %p949 = scmp.lt.s32.totalorder %s23, 1
        %s950 = scalar_select %p949, %s23, 1
        %p951 = scmp.lt.s32.totalorder %s948, 31
        %s952 = scalar_select %p951, %s948, 31
        %p953 = scmp.lt.s32.totalorder %s25, 0
        %s954 = scalar_select %p953, %s25, 0
        %s955 = sadd.s32 %s954, %s952
        %s956 = smul.addr %s950, 32
        %s957 = sadd.s32 %s955, %s956
        %s958 = smul.addr %s957, 4
        %s959 = scalar_lea.vmem %s2, %s958
      $region48: #{dydensenet_forward.14} parent=43 // pred_fallthru
        _
    $region44: #{dydensenet_forward.14} parent=5 // pred_fallthru
      _
  $region6: #{dydensenet_forward.14} parent=0 // loop_footer
    %s12 = sadd.s32 1, %s8
  $region7: #{dydensenet_forward.14} parent=0 // loop_footer_branch
    %7 = sbr.rel target = $region3
  $region8: #{dydensenet_forward.14} parent=0 // loop_exit
    _

// kernel: dydensenet_forward.16
$region0: #{dydensenet_forward.16}
  #allocation0 [shape = 'u32[]', space=smem, size = 0x4, offset = 0x4, fixed_abs, tag = 'smem constant byte address 0x4 - core index']
  #allocation1 [shape = 'u32[144,128]{1,0:T(1,128)}', space=vmem, size = 0x12000, scoped, tag = 'internal scratch']
  #allocation2 [shape = 'f32[256,16]{1,0:T(8,128)}', space=vmem, size = 0x20000, scoped, tag = 'scratch operand']
  %s0 = inlined_call_operand.vmem [shape: bf16[2,256,8], index: 0, kind: input, shape index: {}]
  %s1 = inlined_call_operand.vmem [shape: bf16[2,8,16], index: 1, kind: input, shape index: {}]
  %s2 = inlined_call_operand.vmem [shape: f32[1,1,16], index: 2, kind: input, shape index: {}]
  %s3 = inlined_call_operand.vmem [shape: f32[1,1,16], index: 3, kind: input, shape index: {}]
  %s4 = inlined_call_operand.vmem [shape: bf16[2,256,16], index: 4, kind: output, shape index: {}]
  %s5 = sld [smem:[#allocation0]]
  $region57: #{dydensenet_forward.16} parent=0
    _
  %s7 = ssub.s32 1, %s5
  %s8 = scalar_select 0, %s7, %s5
  loop: start=0, step=1, limit=4
  $region2: #{dydensenet_forward.16} parent=0 // loop_pre_header
    _
  $region3: #{dydensenet_forward.16} parent=0 // loop_header
    %s10 = sphi 0, %s14
    %p11 = scmp.ge.s32.totalorder %s10, 4
    %s17 = sphi 0, %s43
    %s18 = sphi 0, %s39
    %s19 = sphi 0, %s35
    %s20 = sphi 0, %s31
    %s21 = sphi 0, %s17
    %s22 = sphi 0, %s18
    %s23 = sphi 0, %s19
    %s24 = sphi 0, %s20
    %s25 = sphi 0, %s21
    %s26 = sphi 0, %s22
    %s27 = sphi 0, %s23
    %s28 = sphi 0, %s24
    %s50 = sphi 0, %s52
    %s53 = sphi 0, %s50
    %s54 = sphi 0, %s53
    %s70 = sphi 0, %s54
    %s80 = sphi 0, %s82
    %s83 = sphi 0, %s80
    %s84 = sphi 0, %s83
    %s100 = sphi 0, %s84
    %s106 = sphi 0, %s108
    %s109 = sphi 0, %s106
    %s110 = sphi 0, %s109
    %s126 = sphi 0, %s110
    %s132 = sphi 0, %s134
    %s135 = sphi 0, %s132
    %s136 = sphi 0, %s135
    %s152 = sphi 0, %s136
    %s162 = sphi 0, %s164
    %s165 = sphi 0, %s162
    %s166 = sphi 0, %s165
    %s182 = sphi 0, %s166
  $region4: #{dydensenet_forward.16} parent=0 // loop_header_branch
    %13 = sbr.rel (%p11) target = $region8
  $region5: #{dydensenet_forward.16} parent=0 // loop_body
    %s15 = ssub.s32 %s10, 1
    %s16 = ssub.s32 %s10, 2
    %s29 = sadd.s32 1, %s20
    %p30 = scmp.ge.s32.totalorder %s29, 1
    %s31 = scalar_select %p30, 0, %s29
    %s32 = sadd.s32 1, %s19
    %s33 = scalar_select %p30, %s32, %s19
    %p34 = scmp.ge.s32.totalorder %s33, 1
    %s35 = scalar_select %p34, 0, %s33
    %s36 = sadd.s32 1, %s18
    %s37 = scalar_select %p34, %s36, %s18
    %p38 = scmp.ge.s32.totalorder %s37, 1
    %s39 = scalar_select %p38, 0, %s37
    %s40 = sadd.s32 1, %s17
    %s41 = scalar_select %p38, %s40, %s17
    %p42 = scmp.ge.s32.totalorder %s41, 2
    %s43 = scalar_select %p42, 0, %s41
    %s44 = ssub.s32 %s17, %s43
    %s45 = ssub.s32 %s18, %s39
    %s46 = sor.u32 %s44, %s45
    %s47 = ssub.s32 %s20, %s31
    %s48 = sor.u32 %s46, %s47
    %p49 = scmp.eq.s32.totalorder %s48, 0
    %s51 = sadd.s32 %s50, 1
    %s52 = scalar_select %p49, %s50, %s51
    %p55 = pneg %p49
    %p56 = scmp.eq.s32.totalorder %s10, 1
    %p57 = por %p55, %p56
    %p58 = scmp.ne.s32.totalorder %s50, %s53
    %p59 = scmp.eq.s32.totalorder %s10, 0
    %p60 = por %p58, %p59
    %p61 = scmp.ne.s32.totalorder %s50, %s53
    %p62 = scmp.eq.s32.totalorder %s15, 1
    %p63 = por %p61, %p62
    %p64 = scmp.ne.s32.totalorder %s53, %s54
    %p65 = scmp.eq.s32.totalorder %s15, 0
    %p66 = por %p64, %p65
    %p67 = scmp.ne.s32.totalorder %s53, %s54
    %p68 = scmp.eq.s32.totalorder %s16, 1
    %p69 = por %p67, %p68
    %p71 = scmp.ne.s32.totalorder %s54, %s70
    %p72 = scmp.eq.s32.totalorder %s16, 0
    %p73 = por %p71, %p72
    %s74 = ssub.s32 %s17, %s43
    %s75 = ssub.s32 %s20, %s31
    %s76 = sor.u32 %s74, %s75
    %s77 = ssub.s32 %s19, %s35
    %s78 = sor.u32 %s76, %s77
    %p79 = scmp.eq.s32.totalorder %s78, 0
    %s81 = sadd.s32 %s80, 1
    %s82 = scalar_select %p79, %s80, %s81
    %p85 = pneg %p79
    %p86 = scmp.eq.s32.totalorder %s10, 1
    %p87 = por %p85, %p86
    %p88 = scmp.ne.s32.totalorder %s80, %s83
    %p89 = scmp.eq.s32.totalorder %s10, 0
    %p90 = por %p88, %p89
    %p91 = scmp.ne.s32.totalorder %s80, %s83
    %p92 = scmp.eq.s32.totalorder %s15, 1
    %p93 = por %p91, %p92
    %p94 = scmp.ne.s32.totalorder %s83, %s84
    %p95 = scmp.eq.s32.totalorder %s15, 0
    %p96 = por %p94, %p95
    %p97 = scmp.ne.s32.totalorder %s83, %s84
    %p98 = scmp.eq.s32.totalorder %s16, 1
    %p99 = por %p97, %p98
    %p101 = scmp.ne.s32.totalorder %s84, %s100
    %p102 = scmp.eq.s32.totalorder %s16, 0
    %p103 = por %p101, %p102
    %s104 = ssub.s32 %s19, %s35
    %p105 = scmp.eq.s32.totalorder %s104, 0
    %s107 = sadd.s32 %s106, 1
    %s108 = scalar_select %p105, %s106, %s107
    %p111 = pneg %p105
    %p112 = scmp.eq.s32.totalorder %s10, 1
    %p113 = por %p111, %p112
    %p114 = scmp.ne.s32.totalorder %s106, %s109
    %p115 = scmp.eq.s32.totalorder %s10, 0
    %p116 = por %p114, %p115
    %p117 = scmp.ne.s32.totalorder %s106, %s109
    %p118 = scmp.eq.s32.totalorder %s15, 1
    %p119 = por %p117, %p118
    %p120 = scmp.ne.s32.totalorder %s109, %s110
    %p121 = scmp.eq.s32.totalorder %s15, 0
    %p122 = por %p120, %p121
    %p123 = scmp.ne.s32.totalorder %s109, %s110
    %p124 = scmp.eq.s32.totalorder %s16, 1
    %p125 = por %p123, %p124
    %p127 = scmp.ne.s32.totalorder %s110, %s126
    %p128 = scmp.eq.s32.totalorder %s16, 0
    %p129 = por %p127, %p128
    %s130 = ssub.s32 %s19, %s35
    %p131 = scmp.eq.s32.totalorder %s130, 0
    %s133 = sadd.s32 %s132, 1
    %s134 = scalar_select %p131, %s132, %s133
    %p137 = pneg %p131
    %p138 = scmp.eq.s32.totalorder %s10, 1
    %p139 = por %p137, %p138
    %p140 = scmp.ne.s32.totalorder %s132, %s135
    %p141 = scmp.eq.s32.totalorder %s10, 0
    %p142 = por %p140, %p141
    %p143 = scmp.ne.s32.totalorder %s132, %s135
    %p144 = scmp.eq.s32.totalorder %s15, 1
    %p145 = por %p143, %p144
    %p146 = scmp.ne.s32.totalorder %s135, %s136
    %p147 = scmp.eq.s32.totalorder %s15, 0
    %p148 = por %p146, %p147
    %p149 = scmp.ne.s32.totalorder %s135, %s136
    %p150 = scmp.eq.s32.totalorder %s16, 1
    %p151 = por %p149, %p150
    %p153 = scmp.ne.s32.totalorder %s136, %s152
    %p154 = scmp.eq.s32.totalorder %s16, 0
    %p155 = por %p153, %p154
    %s156 = ssub.s32 %s17, %s43
    %s157 = ssub.s32 %s18, %s39
    %s158 = sor.u32 %s156, %s157
    %s159 = ssub.s32 %s19, %s35
    %s160 = sor.u32 %s158, %s159
    %p161 = scmp.eq.s32.totalorder %s160, 0
    %s163 = sadd.s32 %s162, 1
    %s164 = scalar_select %p161, %s162, %s163
    %p167 = pneg %p161
    %p168 = scmp.eq.s32.totalorder %s10, 1
    %p169 = por %p167, %p168
    %p170 = scmp.ne.s32.totalorder %s162, %s165
    %p171 = scmp.eq.s32.totalorder %s10, 0
    %p172 = por %p170, %p171
    %p173 = scmp.ne.s32.totalorder %s162, %s165
    %p174 = scmp.eq.s32.totalorder %s15, 1
    %p175 = por %p173, %p174
    %p176 = scmp.ne.s32.totalorder %s165, %s166
    %p177 = scmp.eq.s32.totalorder %s15, 0
    %p178 = por %p176, %p177
    %p179 = scmp.ne.s32.totalorder %s165, %s166
    %p180 = scmp.eq.s32.totalorder %s16, 1
    %p181 = por %p179, %p180
    %p183 = scmp.ne.s32.totalorder %s166, %s182
    %p184 = scmp.eq.s32.totalorder %s16, 0
    %p185 = por %p183, %p184
    %p186 = scmp.le.s32.totalorder 1, %s10
    %p187 = scmp.lt.s32.totalorder %s10, 3
    %p188 = pnand %p186, %p187
    %p189 = pneg %p188
    // Predicated region
    $region9: #{dydensenet_forward.16} parent=5 // pred_check
      _
    $region10: #{dydensenet_forward.16} parent=5 // pred_check_branch
      %191 = sbr.rel (%p188) target = $region12
    $region11: #{dydensenet_forward.16} parent=5 // pred_region
      %s192 = ssub.s32 %s10, 1
      // Predicated region
      $region13: #{dydensenet_forward.16} parent=11 // pred_check
        %p193 = pneg %p122
      $region14: #{dydensenet_forward.16} parent=11 // pred_check_branch
        %195 = sbr.rel (%p193) target = $region16
      $region15: #{dydensenet_forward.16} parent=11 // pred_region
        %p196 = scmp.lt.s32.totalorder %s23, 0
        %s197 = scalar_select %p196, %s23, 0
        %s198 = scalar_lea.vmem %s2, %s197
      $region16: #{dydensenet_forward.16} parent=11 // pred_fallthru
        _
      // Predicated region
      $region17: #{dydensenet_forward.16} parent=11 // pred_check
        %p199 = pneg %p148
      $region18: #{dydensenet_forward.16} parent=11 // pred_check_branch
        %201 = sbr.rel (%p199) target = $region20
      $region19: #{dydensenet_forward.16} parent=11 // pred_region
        %p202 = scmp.lt.s32.totalorder %s23, 0
        %s203 = scalar_select %p202, %s23, 0
        %s204 = scalar_lea.vmem %s3, %s203
      $region20: #{dydensenet_forward.16} parent=11 // pred_fallthru
        _
    $region12: #{dydensenet_forward.16} parent=5 // pred_fallthru
      _
    %p205 = scmp.lt.s32.totalorder %s10, 2
    // Predicated region
    $region21: #{dydensenet_forward.16} parent=5 // pred_check
      %p206 = pneg %p205
    $region22: #{dydensenet_forward.16} parent=5 // pred_check_branch
      %208 = sbr.rel (%p206) target = $region24
    $region23: #{dydensenet_forward.16} parent=5 // pred_region
      // Predicated region
      $region25: #{dydensenet_forward.16} parent=23 // pred_check
        %p209 = pneg %p60
      $region26: #{dydensenet_forward.16} parent=23 // pred_check_branch
        %211 = sbr.rel (%p209) target = $region28
      $region27: #{dydensenet_forward.16} parent=23 // pred_region
        %s212 = smul.u32 32, %s18
        %p213 = scmp.lt.s32.totalorder %s17, 1
        %s214 = scalar_select %p213, %s17, 1
        %p215 = scmp.lt.s32.totalorder %s212, 31
        %s216 = scalar_select %p215, %s212, 31
        %p217 = scmp.lt.s32.totalorder %s20, 0
        %s218 = scalar_select %p217, %s20, 0
        %s219 = sadd.s32 %s218, %s216
        %s220 = smul.addr %s214, 32
        %s221 = sadd.s32 %s219, %s220
        %s222 = smul.addr %s221, 4
        %s223 = scalar_lea.vmem %s0, %s222
        %s224 = smul.u32 32, %s18
      $region28: #{dydensenet_forward.16} parent=23 // pred_fallthru
        _
      // Predicated region
      $region29: #{dydensenet_forward.16} parent=23 // pred_check
        %p225 = pneg %p90
      $region30: #{dydensenet_forward.16} parent=23 // pred_check_branch
        %227 = sbr.rel (%p225) target = $region32
      $region31: #{dydensenet_forward.16} parent=23 // pred_region
        %p228 = scmp.lt.s32.totalorder %s17, 1
        %s229 = scalar_select %p228, %s17, 1
        %p230 = scmp.lt.s32.totalorder %s20, 0
        %s231 = scalar_select %p230, %s20, 0
        %p232 = scmp.lt.s32.totalorder %s19, 0
        %s233 = scalar_select %p232, %s19, 0
        %s234 = sadd.s32 %s233, %s231
        %s235 = sadd.s32 %s234, %s229
        %s236 = smul.addr %s235, 4
        %s237 = scalar_lea.vmem %s1, %s236
      $region32: #{dydensenet_forward.16} parent=23 // pred_fallthru
        _
    $region24: #{dydensenet_forward.16} parent=5 // pred_fallthru
      _
    %p238 = scmp.le.s32.totalorder 1, %s10
    %p239 = scmp.lt.s32.totalorder %s10, 3
    %p240 = pnand %p238, %p239
    %p241 = pneg %p240
    // Predicated region
    $region33: #{dydensenet_forward.16} parent=5 // pred_check
      _
    $region34: #{dydensenet_forward.16} parent=5 // pred_check_branch
      %243 = sbr.rel (%p240) target = $region36
    $region35: #{dydensenet_forward.16} parent=5 // pred_region
      %s244 = ssub.s32 %s10, 1
      %s245 = smul.u32 32, %s22
      %p246 = scmp.lt.s32.totalorder %s21, 1
      %s247 = scalar_select %p246, %s21, 1
      %p248 = scmp.lt.s32.totalorder %s245, 31
      %s249 = scalar_select %p248, %s245, 31
      %p250 = scmp.lt.s32.totalorder %s24, 0
      %s251 = scalar_select %p250, %s24, 0
      %s252 = sadd.s32 %s251, %s249
      %s253 = smul.addr %s247, 32
      %s254 = sadd.s32 %s252, %s253
      %s255 = smul.addr %s254, 4
      %s256 = scalar_lea.vmem %s0, %s255
      %p257 = pneg %p66
      %p258 = pneg %p63
      %p259 = scmp.lt.s32.totalorder %s21, 1
      %s260 = scalar_select %p259, %s21, 1
      %p261 = scmp.lt.s32.totalorder %s24, 0
      %s262 = scalar_select %p261, %s24, 0
      %p263 = scmp.lt.s32.totalorder %s23, 0
      %s264 = scalar_select %p263, %s23, 0
      %s265 = sadd.s32 %s264, %s262
      %s266 = sadd.s32 %s265, %s260
      %s267 = smul.addr %s266, 4
      %s268 = scalar_lea.vmem %s1, %s267
      %p269 = pneg %p96
      %p270 = pneg %p93
      %p271 = scmp.lt.s32.totalorder %s23, 0
      %s272 = scalar_select %p271, %s23, 0
      %s273 = scalar_lea.vmem %s2, %s272
      %p274 = pneg %p122
      %p275 = pneg %p119
      %p276 = scmp.lt.s32.totalorder %s23, 0
      %s277 = scalar_select %p276, %s23, 0
      %s278 = scalar_lea.vmem %s3, %s277
      %p279 = pneg %p148
      %p280 = pneg %p145
      %p281 = pneg %p178
      %p282 = pneg %p175
      %s283 = smul.u32 32, %s22
      %p284 = scmp.lt.s32.totalorder %s21, 1
      %s285 = scalar_select %p284, %s21, 1
      %p286 = scmp.lt.s32.totalorder %s283, 31
      %s287 = scalar_select %p286, %s283, 31
      %p288 = scmp.lt.s32.totalorder %s23, 0
      %s289 = scalar_select %p288, %s23, 0
      %s290 = sadd.s32 %s289, %s287
      %s291 = smul.addr %s285, 32
      %s292 = sadd.s32 %s290, %s291
      %s293 = smul.addr %s292, 4
      %s294 = scalar_lea.vmem %s4, %s293
      %s295 = smul.u32 32, %s22
      %p296 = scmp.lt.s32.totalorder %s21, 1
      %s297 = scalar_select %p296, %s21, 1
      %p298 = scmp.lt.s32.totalorder %s295, 31
      %s299 = scalar_select %p298, %s295, 31
      %p300 = scmp.lt.s32.totalorder %s24, 0
      %s301 = scalar_select %p300, %s24, 0
      %s302 = sadd.s32 %s301, %s299
      %s303 = smul.addr %s297, 32
      %s304 = sadd.s32 %s302, %s303
      %s305 = smul.addr %s304, 4
      %s306 = scalar_lea.vmem %s0, %s305
      %s307 = smul.u32 32, %s22
      %p308 = scmp.lt.s32.totalorder %s21, 1
      %s309 = scalar_select %p308, %s21, 1
      %p310 = scmp.lt.s32.totalorder %s24, 0
      %s311 = scalar_select %p310, %s24, 0
      %p312 = scmp.lt.s32.totalorder %s23, 0
      %s313 = scalar_select %p312, %s23, 0
      %s314 = sadd.s32 %s313, %s311
      %s315 = sadd.s32 %s314, %s309
      %s316 = smul.addr %s315, 4
      %s317 = scalar_lea.vmem %s1, %s316
      %p318 = scmp.lt.s32.totalorder %s23, 0
      %s319 = scalar_select %p318, %s23, 0
      %s320 = scalar_lea.vmem %s2, %s319
      %p321 = scmp.lt.s32.totalorder %s23, 0
      %s322 = scalar_select %p321, %s23, 0
      %s323 = scalar_lea.vmem %s3, %s322
      %s324 = smul.u32 32, %s22
      %p325 = scmp.lt.s32.totalorder %s21, 1
      %s326 = scalar_select %p325, %s21, 1
      %p327 = scmp.lt.s32.totalorder %s324, 31
      %s328 = scalar_select %p327, %s324, 31
      %p329 = scmp.lt.s32.totalorder %s23, 0
      %s330 = scalar_select %p329, %s23, 0
      %s331 = sadd.s32 %s330, %s328
      %s332 = smul.addr %s326, 32
      %s333 = sadd.s32 %s331, %s332
      %s334 = smul.addr %s333, 4
      %s335 = scalar_lea.vmem %s4, %s334
      %s336 = smul.u32 32, %s22
      %p338 = scmp.eq.s32.totalorder %s24, 0
      // Predicated region
      $region37: #{dydensenet_forward.16} parent=35 // pred_check
        %p339 = pneg %p338
      $region38: #{dydensenet_forward.16} parent=35 // pred_check_branch
        %341 = sbr.rel (%p339) target = $region40
      $region39: #{dydensenet_forward.16} parent=35 // pred_region
        %vm342 = vcmask 130048
        %343 = vst.msk [vmem:[#allocation2] sm:$0xff] %vm342, 0.0
        %344 = vst.msk [vmem:[#allocation2 + $0x8] sm:$0xff] %vm342, 0.0
        %345 = vst.msk [vmem:[#allocation2 + $0x10] sm:$0xff] %vm342, 0.0
        %346 = vst.msk [vmem:[#allocation2 + $0x18] sm:$0xff] %vm342, 0.0
        %347 = vst.msk [vmem:[#allocation2 + $0x20] sm:$0xff] %vm342, 0.0
        %348 = vst.msk [vmem:[#allocation2 + $0x28] sm:$0xff] %vm342, 0.0
        %349 = vst.msk [vmem:[#allocation2 + $0x30] sm:$0xff] %vm342, 0.0
        %350 = vst.msk [vmem:[#allocation2 + $0x38] sm:$0xff] %vm342, 0.0
        %351 = vst.msk [vmem:[#allocation2 + $0x40] sm:$0xff] %vm342, 0.0
        %352 = vst.msk [vmem:[#allocation2 + $0x48] sm:$0xff] %vm342, 0.0
        %353 = vst.msk [vmem:[#allocation2 + $0x50] sm:$0xff] %vm342, 0.0
        %354 = vst.msk [vmem:[#allocation2 + $0x58] sm:$0xff] %vm342, 0.0
        %355 = vst.msk [vmem:[#allocation2 + $0x60] sm:$0xff] %vm342, 0.0
        %356 = vst.msk [vmem:[#allocation2 + $0x68] sm:$0xff] %vm342, 0.0
        %357 = vst.msk [vmem:[#allocation2 + $0x70] sm:$0xff] %vm342, 0.0
        %358 = vst.msk [vmem:[#allocation2 + $0x78] sm:$0xff] %vm342, 0.0
        %359 = vst.msk [vmem:[#allocation2 + $0x80] sm:$0xff] %vm342, 0.0
        %360 = vst.msk [vmem:[#allocation2 + $0x88] sm:$0xff] %vm342, 0.0
        %361 = vst.msk [vmem:[#allocation2 + $0x90] sm:$0xff] %vm342, 0.0
        %362 = vst.msk [vmem:[#allocation2 + $0x98] sm:$0xff] %vm342, 0.0
        %363 = vst.msk [vmem:[#allocation2 + $0xa0] sm:$0xff] %vm342, 0.0
        %364 = vst.msk [vmem:[#allocation2 + $0xa8] sm:$0xff] %vm342, 0.0
        %365 = vst.msk [vmem:[#allocation2 + $0xb0] sm:$0xff] %vm342, 0.0
        %366 = vst.msk [vmem:[#allocation2 + $0xb8] sm:$0xff] %vm342, 0.0
        %367 = vst.msk [vmem:[#allocation2 + $0xc0] sm:$0xff] %vm342, 0.0
        %368 = vst.msk [vmem:[#allocation2 + $0xc8] sm:$0xff] %vm342, 0.0
        %369 = vst.msk [vmem:[#allocation2 + $0xd0] sm:$0xff] %vm342, 0.0
        %370 = vst.msk [vmem:[#allocation2 + $0xd8] sm:$0xff] %vm342, 0.0
        %371 = vst.msk [vmem:[#allocation2 + $0xe0] sm:$0xff] %vm342, 0.0
        %372 = vst.msk [vmem:[#allocation2 + $0xe8] sm:$0xff] %vm342, 0.0
        %373 = vst.msk [vmem:[#allocation2 + $0xf0] sm:$0xff] %vm342, 0.0
        %374 = vst.msk [vmem:[#allocation2 + $0xf8] sm:$0xff] %vm342, 0.0
      $region40: #{dydensenet_forward.16} parent=35 // pred_fallthru
        _
      %v375 = vld [vmem:[#allocation2] sm:$0xff]
      %v376 = vld [vmem:[#allocation2 + $0x8] sm:$0xff]
      %v377 = vld [vmem:[#allocation2 + $0x10] sm:$0xff]
      %v378 = vld [vmem:[#allocation2 + $0x18] sm:$0xff]
      %v379 = vld [vmem:[#allocation2 + $0x20] sm:$0xff]
      %v380 = vld [vmem:[#allocation2 + $0x28] sm:$0xff]
      %v381 = vld [vmem:[#allocation2 + $0x30] sm:$0xff]
      %v382 = vld [vmem:[#allocation2 + $0x38] sm:$0xff]
      %v383 = vld [vmem:[#allocation2 + $0x40] sm:$0xff]
      %v384 = vld [vmem:[#allocation2 + $0x48] sm:$0xff]
      %v385 = vld [vmem:[#allocation2 + $0x50] sm:$0xff]
      %v386 = vld [vmem:[#allocation2 + $0x58] sm:$0xff]
      %v387 = vld [vmem:[#allocation2 + $0x60] sm:$0xff]
      %v388 = vld [vmem:[#allocation2 + $0x68] sm:$0xff]
      %v389 = vld [vmem:[#allocation2 + $0x70] sm:$0xff]
      %v390 = vld [vmem:[#allocation2 + $0x78] sm:$0xff]
      %v391 = vld [vmem:[#allocation2 + $0x80] sm:$0xff]
      %v392 = vld [vmem:[#allocation2 + $0x88] sm:$0xff]
      %v393 = vld [vmem:[#allocation2 + $0x90] sm:$0xff]
      %v394 = vld [vmem:[#allocation2 + $0x98] sm:$0xff]
      %v395 = vld [vmem:[#allocation2 + $0xa0] sm:$0xff]
      %v396 = vld [vmem:[#allocation2 + $0xa8] sm:$0xff]
      %v397 = vld [vmem:[#allocation2 + $0xb0] sm:$0xff]
      %v398 = vld [vmem:[#allocation2 + $0xb8] sm:$0xff]
      %v399 = vld [vmem:[#allocation2 + $0xc0] sm:$0xff]
      %v400 = vld [vmem:[#allocation2 + $0xc8] sm:$0xff]
      %v401 = vld [vmem:[#allocation2 + $0xd0] sm:$0xff]
      %v402 = vld [vmem:[#allocation2 + $0xd8] sm:$0xff]
      %v403 = vld [vmem:[#allocation2 + $0xe0] sm:$0xff]
      %v404 = vld [vmem:[#allocation2 + $0xe8] sm:$0xff]
      %v405 = vld [vmem:[#allocation2 + $0xf0] sm:$0xff]
      %v406 = vld [vmem:[#allocation2 + $0xf8] sm:$0xff]
      %v407 = vld [vmem:[%s306] sm:$0xf]
      %v408 = vld [vmem:[%s306 + $0x4] sm:$0xf]
      %v409 = vld [vmem:[%s306 + $0x8] sm:$0xf]
      %v410 = vld [vmem:[%s306 + $0xc] sm:$0xf]
      %v411 = vld [vmem:[%s306 + $0x10] sm:$0xf]
      %v412 = vld [vmem:[%s306 + $0x14] sm:$0xf]
      %v413 = vld [vmem:[%s306 + $0x18] sm:$0xf]
      %v414 = vld [vmem:[%s306 + $0x1c] sm:$0xf]
      %v415 = vld [vmem:[%s306 + $0x20] sm:$0xf]
      %v416 = vld [vmem:[%s306 + $0x24] sm:$0xf]
      %v417 = vld [vmem:[%s306 + $0x28] sm:$0xf]
      %v418 = vld [vmem:[%s306 + $0x2c] sm:$0xf]
      %v419 = vld [vmem:[%s306 + $0x30] sm:$0xf]
      %v420 = vld [vmem:[%s306 + $0x34] sm:$0xf]
      %v421 = vld [vmem:[%s306 + $0x38] sm:$0xf]
      %v422 = vld [vmem:[%s306 + $0x3c] sm:$0xf]
      %v423 = vld [vmem:[%s306 + $0x40] sm:$0xf]
      %v424 = vld [vmem:[%s306 + $0x44] sm:$0xf]
      %v425 = vld [vmem:[%s306 + $0x48] sm:$0xf]
      %v426 = vld [vmem:[%s306 + $0x4c] sm:$0xf]
      %v427 = vld [vmem:[%s306 + $0x50] sm:$0xf]
      %v428 = vld [vmem:[%s306 + $0x54] sm:$0xf]
      %v429 = vld [vmem:[%s306 + $0x58] sm:$0xf]
      %v430 = vld [vmem:[%s306 + $0x5c] sm:$0xf]
      %v431 = vld [vmem:[%s306 + $0x60] sm:$0xf]
      %v432 = vld [vmem:[%s306 + $0x64] sm:$0xf]
      %v433 = vld [vmem:[%s306 + $0x68] sm:$0xf]
      %v434 = vld [vmem:[%s306 + $0x6c] sm:$0xf]
      %v435 = vld [vmem:[%s306 + $0x70] sm:$0xf]
      %v436 = vld [vmem:[%s306 + $0x74] sm:$0xf]
      %v437 = vld [vmem:[%s306 + $0x78] sm:$0xf]
      %v438 = vld [vmem:[%s306 + $0x7c] sm:$0xf]
      %v439 = vld [vmem:[%s317] sm:$0xf]
      %v472 = vunpack.c.l.b16 %v407
      %v473 = vunpack.c.l.b16 %v408
      %v474 = vunpack.c.l.b16 %v409
      %v475 = vunpack.c.l.b16 %v410
      %v476 = vunpack.c.l.b16 %v411
      %v477 = vunpack.c.l.b16 %v412
      %v478 = vunpack.c.l.b16 %v413
      %v479 = vunpack.c.l.b16 %v414
      %v480 = vunpack.c.l.b16 %v415
      %v481 = vunpack.c.l.b16 %v416
      %v482 = vunpack.c.l.b16 %v417
      %v483 = vunpack.c.l.b16 %v418
      %v484 = vunpack.c.l.b16 %v419
      %v485 = vunpack.c.l.b16 %v420
      %v486 = vunpack.c.l.b16 %v421
      %v487 = vunpack.c.l.b16 %v422
      %v488 = vunpack.c.l.b16 %v423
      %v489 = vunpack.c.l.b16 %v424
      %v490 = vunpack.c.l.b16 %v425
      %v491 = vunpack.c.l.b16 %v426
      %v492 = vunpack.c.l.b16 %v427
      %v493 = vunpack.c.l.b16 %v428
      %v494 = vunpack.c.l.b16 %v429
      %v495 = vunpack.c.l.b16 %v430
      %v496 = vunpack.c.l.b16 %v431
      %v497 = vunpack.c.l.b16 %v432
      %v498 = vunpack.c.l.b16 %v433
      %v499 = vunpack.c.l.b16 %v434
      %v500 = vunpack.c.l.b16 %v435
      %v501 = vunpack.c.l.b16 %v436
      %v502 = vunpack.c.l.b16 %v437
      %v503 = vunpack.c.l.b16 %v438
      %v504 = vpack.c.b16 %v473, %v472
      %v505 = vpack.c.b16 %v475, %v474
      %v506 = vpack.c.b16 %v477, %v476
      %v507 = vpack.c.b16 %v479, %v478
      %v508 = vpack.c.b16 %v481, %v480
      %v509 = vpack.c.b16 %v483, %v482
      %v510 = vpack.c.b16 %v485, %v484
      %v511 = vpack.c.b16 %v487, %v486
      %v512 = vpack.c.b16 %v489, %v488
      %v513 = vpack.c.b16 %v491, %v490
      %v514 = vpack.c.b16 %v493, %v492
      %v515 = vpack.c.b16 %v495, %v494
      %v516 = vpack.c.b16 %v497, %v496
      %v517 = vpack.c.b16 %v499, %v498
      %v518 = vpack.c.b16 %v501, %v500
      %v519 = vpack.c.b16 %v503, %v502
      %vm520 = vcmask 64512
      %v522 = vsel %vm520, %v504, 0
      %v525 = vsel %vm520, %v505, 0
      %v528 = vsel %vm520, %v506, 0
      %v531 = vsel %vm520, %v507, 0
      %v534 = vsel %vm520, %v508, 0
      %v537 = vsel %vm520, %v509, 0
      %v540 = vsel %vm520, %v510, 0
      %v543 = vsel %vm520, %v511, 0
      %v546 = vsel %vm520, %v512, 0
      %v549 = vsel %vm520, %v513, 0
      %v552 = vsel %vm520, %v514, 0
      %v555 = vsel %vm520, %v515, 0
      %v558 = vsel %vm520, %v516, 0
      %v561 = vsel %vm520, %v517, 0
      %v564 = vsel %vm520, %v518, 0
      %v567 = vsel %vm520, %v519, 0
      %vm569 = vcmask 1043456
      %v571 = vsel %vm569, %v439, 0
      %573 = vmatprep.subr.bf16.mxu0 0
      %574 = vmatpush1.bf16.msra.mxu0 0
      %575 = vmatprep.subr.bf16.mxu0 0
      %576 = vmatpush1.bf16.msra.mxu0 0
      %577 = vmatprep.subr.bf16.mxu0 0
      %578 = vmatpush1.bf16.msra.mxu0 0
      %579 = vmatprep.subr.bf16.mxu0 0
      %580 = vmatpush1.bf16.msra.mxu0 0
      %581 = vmatprep.subr.bf16.mxu0 0
      %582 = vmatpush1.bf16.msra.mxu0 0
      %583 = vmatprep.subr.bf16.mxu0 0
      %584 = vmatpush1.bf16.msra.mxu0 0
      %585 = vmatprep.subr.bf16.mxu0 0
      %586 = vmatpush1.bf16.msra.mxu0 0
      %587 = vmatprep.subr.bf16.mxu0 0
      %588 = vmatpush1.bf16.msra.mxu0 %v571
      %589 = vmatprep.subr.bf16.mxu0 0
      %590 = vmatpush2.bf16.msra.mxu0 0
      %591 = vmatprep.subr.bf16.mxu0 0
      %592 = vmatpush2.bf16.msra.mxu0 0
      %593 = vmatprep.subr.bf16.mxu0 0
      %594 = vmatpush2.bf16.msra.mxu0 0
      %595 = vmatprep.subr.bf16.mxu0 0
      %596 = vmatpush2.bf16.msra.mxu0 0
      %597 = vmatprep.subr.bf16.mxu0 0
      %598 = vmatpush2.bf16.msra.mxu0 0
      %599 = vmatprep.subr.bf16.mxu0 0
      %600 = vmatpush2.bf16.msra.mxu0 0
      %601 = vmatprep.subr.bf16.mxu0 0
      %602 = vmatpush2.bf16.msra.mxu0 0
      %603 = vmatprep.subr.bf16.mxu0 0
      %604 = vmatpush2.bf16.msra.mxu0 0
      %605 = vmatprep.mubr.bf16.mxu0 0
      %606 = vmatmul.mubr.bf16.gmra.mxu0 %v522
      %v607 = vpop.f32.mrf.mxu0
      %v608 = vadd.f32 0.0, %v607
      %v609 = vpop.f32.mrf.mxu0
      %v610 = vpop.f32.mrf.mxu0
      %v611 = vadd.f32 0.0, %v610
      %v612 = vpop.f32.mrf.mxu0
      %613 = vmatprep.mubr.bf16.mxu0 0
      %614 = vmatmul.mubr.bf16.gmra.mxu0 %v525
      %v615 = vpop.f32.mrf.mxu0
      %v616 = vadd.f32 0.0, %v615
      %v617 = vpop.f32.mrf.mxu0
      %v618 = vpop.f32.mrf.mxu0
      %v619 = vadd.f32 0.0, %v618
      %v620 = vpop.f32.mrf.mxu0
      %621 = vmatprep.mubr.bf16.mxu0 0
      %622 = vmatmul.mubr.bf16.gmra.mxu0 %v528
      %v623 = vpop.f32.mrf.mxu0
      %v624 = vadd.f32 0.0, %v623
      %v625 = vpop.f32.mrf.mxu0
      %v626 = vpop.f32.mrf.mxu0
      %v627 = vadd.f32 0.0, %v626
      %v628 = vpop.f32.mrf.mxu0
      %629 = vmatprep.mubr.bf16.mxu0 0
      %630 = vmatmul.mubr.bf16.gmra.mxu0 %v531
      %v631 = vpop.f32.mrf.mxu0
      %v632 = vadd.f32 0.0, %v631
      %v633 = vpop.f32.mrf.mxu0
      %v634 = vpop.f32.mrf.mxu0
      %v635 = vadd.f32 0.0, %v634
      %v636 = vpop.f32.mrf.mxu0
      %637 = vmatprep.mubr.bf16.mxu0 0
      %638 = vmatmul.mubr.bf16.gmra.mxu0 %v534
      %v639 = vpop.f32.mrf.mxu0
      %v640 = vadd.f32 0.0, %v639
      %v641 = vpop.f32.mrf.mxu0
      %v642 = vpop.f32.mrf.mxu0
      %v643 = vadd.f32 0.0, %v642
      %v644 = vpop.f32.mrf.mxu0
      %645 = vmatprep.mubr.bf16.mxu0 0
      %646 = vmatmul.mubr.bf16.gmra.mxu0 %v537
      %v647 = vpop.f32.mrf.mxu0
      %v648 = vadd.f32 0.0, %v647
      %v649 = vpop.f32.mrf.mxu0
      %v650 = vpop.f32.mrf.mxu0
      %v651 = vadd.f32 0.0, %v650
      %v652 = vpop.f32.mrf.mxu0
      %653 = vmatprep.mubr.bf16.mxu0 0
      %654 = vmatmul.mubr.bf16.gmra.mxu0 %v540
      %v655 = vpop.f32.mrf.mxu0
      %v656 = vadd.f32 0.0, %v655
      %v657 = vpop.f32.mrf.mxu0
      %v658 = vpop.f32.mrf.mxu0
      %v659 = vadd.f32 0.0, %v658
      %v660 = vpop.f32.mrf.mxu0
      %661 = vmatprep.mubr.bf16.mxu0 0
      %662 = vmatmul.mubr.bf16.gmra.mxu0 %v543
      %v663 = vpop.f32.mrf.mxu0
      %v664 = vadd.f32 0.0, %v663
      %v665 = vpop.f32.mrf.mxu0
      %v666 = vpop.f32.mrf.mxu0
      %v667 = vadd.f32 0.0, %v666
      %v668 = vpop.f32.mrf.mxu0
      %669 = vmatprep.mubr.bf16.mxu0 0
      %670 = vmatmul.mubr.bf16.gmra.mxu0 %v546
      %v671 = vpop.f32.mrf.mxu0
      %v672 = vadd.f32 0.0, %v671
      %v673 = vpop.f32.mrf.mxu0
      %v674 = vpop.f32.mrf.mxu0
      %v675 = vadd.f32 0.0, %v674
      %v676 = vpop.f32.mrf.mxu0
      %677 = vmatprep.mubr.bf16.mxu0 0
      %678 = vmatmul.mubr.bf16.gmra.mxu0 %v549
      %v679 = vpop.f32.mrf.mxu0
      %v680 = vadd.f32 0.0, %v679
      %v681 = vpop.f32.mrf.mxu0
      %v682 = vpop.f32.mrf.mxu0
      %v683 = vadd.f32 0.0, %v682
      %v684 = vpop.f32.mrf.mxu0
      %685 = vmatprep.mubr.bf16.mxu0 0
      %686 = vmatmul.mubr.bf16.gmra.mxu0 %v552
      %v687 = vpop.f32.mrf.mxu0
      %v688 = vadd.f32 0.0, %v687
      %v689 = vpop.f32.mrf.mxu0
      %v690 = vpop.f32.mrf.mxu0
      %v691 = vadd.f32 0.0, %v690
      %v692 = vpop.f32.mrf.mxu0
      %693 = vmatprep.mubr.bf16.mxu0 0
      %694 = vmatmul.mubr.bf16.gmra.mxu0 %v555
      %v695 = vpop.f32.mrf.mxu0
      %v696 = vadd.f32 0.0, %v695
      %v697 = vpop.f32.mrf.mxu0
      %v698 = vpop.f32.mrf.mxu0
      %v699 = vadd.f32 0.0, %v698
      %v700 = vpop.f32.mrf.mxu0
      %701 = vmatprep.mubr.bf16.mxu0 0
      %702 = vmatmul.mubr.bf16.gmra.mxu0 %v558
      %v703 = vpop.f32.mrf.mxu0
      %v704 = vadd.f32 0.0, %v703
      %v705 = vpop.f32.mrf.mxu0
      %v706 = vpop.f32.mrf.mxu0
      %v707 = vadd.f32 0.0, %v706
      %v708 = vpop.f32.mrf.mxu0
      %709 = vmatprep.mubr.bf16.mxu0 0
      %710 = vmatmul.mubr.bf16.gmra.mxu0 %v561
      %v711 = vpop.f32.mrf.mxu0
      %v712 = vadd.f32 0.0, %v711
      %v713 = vpop.f32.mrf.mxu0
      %v714 = vpop.f32.mrf.mxu0
      %v715 = vadd.f32 0.0, %v714
      %v716 = vpop.f32.mrf.mxu0
      %717 = vmatprep.mubr.bf16.mxu0 0
      %718 = vmatmul.mubr.bf16.gmra.mxu0 %v564
      %v719 = vpop.f32.mrf.mxu0
      %v720 = vadd.f32 0.0, %v719
      %v721 = vpop.f32.mrf.mxu0
      %v722 = vpop.f32.mrf.mxu0
      %v723 = vadd.f32 0.0, %v722
      %v724 = vpop.f32.mrf.mxu0
      %725 = vmatprep.mubr.bf16.mxu0 0
      %726 = vmatmul.mubr.bf16.gmra.mxu0 %v567
      %v727 = vpop.f32.mrf.mxu0
      %v728 = vadd.f32 0.0, %v727
      %v729 = vpop.f32.mrf.mxu0
      %v730 = vpop.f32.mrf.mxu0
      %v731 = vadd.f32 0.0, %v730
      %v732 = vpop.f32.mrf.mxu0
      %733 = vdwg.mxu0
      %v734 = vadd.f32 %v375, %v608
      %v735 = vadd.f32 %v376, %v611
      %v736 = vadd.f32 %v377, %v616
      %v737 = vadd.f32 %v378, %v619
      %v738 = vadd.f32 %v379, %v624
      %v739 = vadd.f32 %v380, %v627
      %v740 = vadd.f32 %v381, %v632
      %v741 = vadd.f32 %v382, %v635
      %v742 = vadd.f32 %v383, %v640
      %v743 = vadd.f32 %v384, %v643
      %v744 = vadd.f32 %v385, %v648
      %v745 = vadd.f32 %v386, %v651
      %v746 = vadd.f32 %v387, %v656
      %v747 = vadd.f32 %v388, %v659
      %v748 = vadd.f32 %v389, %v664
      %v749 = vadd.f32 %v390, %v667
      %v750 = vadd.f32 %v391, %v672
      %v751 = vadd.f32 %v392, %v675
      %v752 = vadd.f32 %v393, %v680
      %v753 = vadd.f32 %v394, %v683
      %v754 = vadd.f32 %v395, %v688
      %v755 = vadd.f32 %v396, %v691
      %v756 = vadd.f32 %v397, %v696
      %v757 = vadd.f32 %v398, %v699
      %v758 = vadd.f32 %v399, %v704
      %v759 = vadd.f32 %v400, %v707
      %v760 = vadd.f32 %v401, %v712
      %v761 = vadd.f32 %v402, %v715
      %v762 = vadd.f32 %v403, %v720
      %v763 = vadd.f32 %v404, %v723
      %v764 = vadd.f32 %v405, %v728
      %v765 = vadd.f32 %v406, %v731
      %vm766 = vcmask 130048
      %767 = vst.msk [vmem:[#allocation2] sm:$0xff] %vm766, %v734
      %768 = vst.msk [vmem:[#allocation2 + $0x8] sm:$0xff] %vm766, %v735
      %769 = vst.msk [vmem:[#allocation2 + $0x10] sm:$0xff] %vm766, %v736
      %770 = vst.msk [vmem:[#allocation2 + $0x18] sm:$0xff] %vm766, %v737
      %771 = vst.msk [vmem:[#allocation2 + $0x20] sm:$0xff] %vm766, %v738
      %772 = vst.msk [vmem:[#allocation2 + $0x28] sm:$0xff] %vm766, %v739
      %773 = vst.msk [vmem:[#allocation2 + $0x30] sm:$0xff] %vm766, %v740
      %774 = vst.msk [vmem:[#allocation2 + $0x38] sm:$0xff] %vm766, %v741
      %775 = vst.msk [vmem:[#allocation2 + $0x40] sm:$0xff] %vm766, %v742
      %776 = vst.msk [vmem:[#allocation2 + $0x48] sm:$0xff] %vm766, %v743
      %777 = vst.msk [vmem:[#allocation2 + $0x50] sm:$0xff] %vm766, %v744
      %778 = vst.msk [vmem:[#allocation2 + $0x58] sm:$0xff] %vm766, %v745
      %779 = vst.msk [vmem:[#allocation2 + $0x60] sm:$0xff] %vm766, %v746
      %780 = vst.msk [vmem:[#allocation2 + $0x68] sm:$0xff] %vm766, %v747
      %781 = vst.msk [vmem:[#allocation2 + $0x70] sm:$0xff] %vm766, %v748
      %782 = vst.msk [vmem:[#allocation2 + $0x78] sm:$0xff] %vm766, %v749
      %783 = vst.msk [vmem:[#allocation2 + $0x80] sm:$0xff] %vm766, %v750
      %784 = vst.msk [vmem:[#allocation2 + $0x88] sm:$0xff] %vm766, %v751
      %785 = vst.msk [vmem:[#allocation2 + $0x90] sm:$0xff] %vm766, %v752
      %786 = vst.msk [vmem:[#allocation2 + $0x98] sm:$0xff] %vm766, %v753
      %787 = vst.msk [vmem:[#allocation2 + $0xa0] sm:$0xff] %vm766, %v754
      %788 = vst.msk [vmem:[#allocation2 + $0xa8] sm:$0xff] %vm766, %v755
      %789 = vst.msk [vmem:[#allocation2 + $0xb0] sm:$0xff] %vm766, %v756
      %790 = vst.msk [vmem:[#allocation2 + $0xb8] sm:$0xff] %vm766, %v757
      %791 = vst.msk [vmem:[#allocation2 + $0xc0] sm:$0xff] %vm766, %v758
      %792 = vst.msk [vmem:[#allocation2 + $0xc8] sm:$0xff] %vm766, %v759
      %793 = vst.msk [vmem:[#allocation2 + $0xd0] sm:$0xff] %vm766, %v760
      %794 = vst.msk [vmem:[#allocation2 + $0xd8] sm:$0xff] %vm766, %v761
      %795 = vst.msk [vmem:[#allocation2 + $0xe0] sm:$0xff] %vm766, %v762
      %796 = vst.msk [vmem:[#allocation2 + $0xe8] sm:$0xff] %vm766, %v763
      %797 = vst.msk [vmem:[#allocation2 + $0xf0] sm:$0xff] %vm766, %v764
      %798 = vst.msk [vmem:[#allocation2 + $0xf8] sm:$0xff] %vm766, %v765
      // Predicated region
      $region41: #{dydensenet_forward.16} parent=35 // pred_check
        %p799 = pneg %p338
      $region42: #{dydensenet_forward.16} parent=35 // pred_check_branch
        %801 = sbr.rel (%p799) target = $region44
      $region43: #{dydensenet_forward.16} parent=35 // pred_region
        %v802 = vld [vmem:[#allocation2] sm:$0xff]
        %v803 = vld [vmem:[#allocation2 + $0x8] sm:$0xff]
        %v804 = vld [vmem:[#allocation2 + $0x10] sm:$0xff]
        %v805 = vld [vmem:[#allocation2 + $0x18] sm:$0xff]
        %v806 = vld [vmem:[#allocation2 + $0x20] sm:$0xff]
        %v807 = vld [vmem:[#allocation2 + $0x28] sm:$0xff]
        %v808 = vld [vmem:[#allocation2 + $0x30] sm:$0xff]
        %v809 = vld [vmem:[#allocation2 + $0x38] sm:$0xff]
        %v810 = vld [vmem:[#allocation2 + $0x40] sm:$0xff]
        %v811 = vld [vmem:[#allocation2 + $0x48] sm:$0xff]
        %v812 = vld [vmem:[#allocation2 + $0x50] sm:$0xff]
        %v813 = vld [vmem:[#allocation2 + $0x58] sm:$0xff]
        %v814 = vld [vmem:[#allocation2 + $0x60] sm:$0xff]
        %v815 = vld [vmem:[#allocation2 + $0x68] sm:$0xff]
        %v816 = vld [vmem:[#allocation2 + $0x70] sm:$0xff]
        %v817 = vld [vmem:[#allocation2 + $0x78] sm:$0xff]
        %v818 = vld [vmem:[#allocation2 + $0x80] sm:$0xff]
        %v819 = vld [vmem:[#allocation2 + $0x88] sm:$0xff]
        %v820 = vld [vmem:[#allocation2 + $0x90] sm:$0xff]
        %v821 = vld [vmem:[#allocation2 + $0x98] sm:$0xff]
        %v822 = vld [vmem:[#allocation2 + $0xa0] sm:$0xff]
        %v823 = vld [vmem:[#allocation2 + $0xa8] sm:$0xff]
        %v824 = vld [vmem:[#allocation2 + $0xb0] sm:$0xff]
        %v825 = vld [vmem:[#allocation2 + $0xb8] sm:$0xff]
        %v826 = vld [vmem:[#allocation2 + $0xc0] sm:$0xff]
        %v827 = vld [vmem:[#allocation2 + $0xc8] sm:$0xff]
        %v828 = vld [vmem:[#allocation2 + $0xd0] sm:$0xff]
        %v829 = vld [vmem:[#allocation2 + $0xd8] sm:$0xff]
        %v830 = vld [vmem:[#allocation2 + $0xe0] sm:$0xff]
        %v831 = vld [vmem:[#allocation2 + $0xe8] sm:$0xff]
        %v832 = vld [vmem:[#allocation2 + $0xf0] sm:$0xff]
        %v833 = vld [vmem:[#allocation2 + $0xf8] sm:$0xff]
        %v834 = vld [vmem:[%s320] sm:$0x1]
        %v836 = vlaneseq
        %v837 = vshrl.u32 %v836, 7
        %v838 = vsub.s32 0, %v837
        %v839 = vrot.slane %v834, %v838
        %v841 = vmul.f32 %v802, %v839
        %v842 = vmul.f32 %v803, %v839
        %v843 = vmul.f32 %v804, %v839
        %v844 = vmul.f32 %v805, %v839
        %v845 = vmul.f32 %v806, %v839
        %v846 = vmul.f32 %v807, %v839
        %v847 = vmul.f32 %v808, %v839
        %v848 = vmul.f32 %v809, %v839
        %v849 = vmul.f32 %v810, %v839
        %v850 = vmul.f32 %v811, %v839
        %v851 = vmul.f32 %v812, %v839
        %v852 = vmul.f32 %v813, %v839
        %v853 = vmul.f32 %v814, %v839
        %v854 = vmul.f32 %v815, %v839
        %v855 = vmul.f32 %v816, %v839
        %v856 = vmul.f32 %v817, %v839
        %v857 = vmul.f32 %v818, %v839
        %v858 = vmul.f32 %v819, %v839
        %v859 = vmul.f32 %v820, %v839
        %v860 = vmul.f32 %v821, %v839
        %v861 = vmul.f32 %v822, %v839
        %v862 = vmul.f32 %v823, %v839
        %v863 = vmul.f32 %v824, %v839
        %v864 = vmul.f32 %v825, %v839
        %v865 = vmul.f32 %v826, %v839
        %v866 = vmul.f32 %v827, %v839
        %v867 = vmul.f32 %v828, %v839
        %v868 = vmul.f32 %v829, %v839
        %v869 = vmul.f32 %v830, %v839
        %v870 = vmul.f32 %v831, %v839
        %v871 = vmul.f32 %v832, %v839
        %v872 = vmul.f32 %v833, %v839
        %v873 = vld [vmem:[%s323] sm:$0x1]
        %v875 = vlaneseq
        %v876 = vshrl.u32 %v875, 7
        %v877 = vsub.s32 0, %v876
        %v878 = vrot.slane %v873, %v877
        %v880 = vadd.f32 %v841, %v878
        %v881 = vadd.f32 %v842, %v878
        %v882 = vadd.f32 %v843, %v878
        %v883 = vadd.f32 %v844, %v878
        %v884 = vadd.f32 %v845, %v878
        %v885 = vadd.f32 %v846, %v878
        %v886 = vadd.f32 %v847, %v878
        %v887 = vadd.f32 %v848, %v878
        %v888 = vadd.f32 %v849, %v878
        %v889 = vadd.f32 %v850, %v878
        %v890 = vadd.f32 %v851, %v878
        %v891 = vadd.f32 %v852, %v878
        %v892 = vadd.f32 %v853, %v878
        %v893 = vadd.f32 %v854, %v878
        %v894 = vadd.f32 %v855, %v878
        %v895 = vadd.f32 %v856, %v878
        %v896 = vadd.f32 %v857, %v878
        %v897 = vadd.f32 %v858, %v878
        %v898 = vadd.f32 %v859, %v878
        %v899 = vadd.f32 %v860, %v878
        %v900 = vadd.f32 %v861, %v878
        %v901 = vadd.f32 %v862, %v878
        %v902 = vadd.f32 %v863, %v878
        %v903 = vadd.f32 %v864, %v878
        %v904 = vadd.f32 %v865, %v878
        %v905 = vadd.f32 %v866, %v878
        %v906 = vadd.f32 %v867, %v878
        %v907 = vadd.f32 %v868, %v878
        %v908 = vadd.f32 %v869, %v878
        %v909 = vadd.f32 %v870, %v878
        %v910 = vadd.f32 %v871, %v878
        %v911 = vadd.f32 %v872, %v878
        %v912 = vmax.f32 %v880, 0.0
        %v913 = vmax.f32 %v881, 0.0
        %v914 = vmax.f32 %v882, 0.0
        %v915 = vmax.f32 %v883, 0.0
        %v916 = vmax.f32 %v884, 0.0
        %v917 = vmax.f32 %v885, 0.0
        %v918 = vmax.f32 %v886, 0.0
        %v919 = vmax.f32 %v887, 0.0
        %v920 = vmax.f32 %v888, 0.0
        %v921 = vmax.f32 %v889, 0.0
        %v922 = vmax.f32 %v890, 0.0
        %v923 = vmax.f32 %v891, 0.0
        %v924 = vmax.f32 %v892, 0.0
        %v925 = vmax.f32 %v893, 0.0
        %v926 = vmax.f32 %v894, 0.0
        %v927 = vmax.f32 %v895, 0.0
        %v928 = vmax.f32 %v896, 0.0
        %v929 = vmax.f32 %v897, 0.0
        %v930 = vmax.f32 %v898, 0.0
        %v931 = vmax.f32 %v899, 0.0
        %v932 = vmax.f32 %v900, 0.0
        %v933 = vmax.f32 %v901, 0.0
        %v934 = vmax.f32 %v902, 0.0
        %v935 = vmax.f32 %v903, 0.0
        %v936 = vmax.f32 %v904, 0.0
        %v937 = vmax.f32 %v905, 0.0
        %v938 = vmax.f32 %v906, 0.0
        %v939 = vmax.f32 %v907, 0.0
        %v940 = vmax.f32 %v908, 0.0
        %v941 = vmax.f32 %v909, 0.0
        %v942 = vmax.f32 %v910, 0.0
        %v943 = vmax.f32 %v911, 0.0
        %v944 = vpack.c.bf16 %v913, %v912
        %v945 = vpack.c.bf16 %v915, %v914
        %v946 = vpack.c.bf16 %v917, %v916
        %v947 = vpack.c.bf16 %v919, %v918
        %v948 = vpack.c.bf16 %v921, %v920
        %v949 = vpack.c.bf16 %v923, %v922
        %v950 = vpack.c.bf16 %v925, %v924
        %v951 = vpack.c.bf16 %v927, %v926
        %v952 = vpack.c.bf16 %v929, %v928
        %v953 = vpack.c.bf16 %v931, %v930
        %v954 = vpack.c.bf16 %v933, %v932
        %v955 = vpack.c.bf16 %v935, %v934
        %v956 = vpack.c.bf16 %v937, %v936
        %v957 = vpack.c.bf16 %v939, %v938
        %v958 = vpack.c.bf16 %v941, %v940
        %v959 = vpack.c.bf16 %v943, %v942
        %v976 = vunpack.c.l.b16 %v944
        %v977 = vunpack.c.h.b16 %v944
        %v978 = vunpack.c.l.b16 %v945
        %v979 = vunpack.c.h.b16 %v945
        %v980 = vunpack.c.l.b16 %v946
        %v981 = vunpack.c.h.b16 %v946
        %v982 = vunpack.c.l.b16 %v947
        %v983 = vunpack.c.h.b16 %v947
        %v984 = vunpack.c.l.b16 %v948
        %v985 = vunpack.c.h.b16 %v948
        %v986 = vunpack.c.l.b16 %v949
        %v987 = vunpack.c.h.b16 %v949
        %v988 = vunpack.c.l.b16 %v950
        %v989 = vunpack.c.h.b16 %v950
        %v990 = vunpack.c.l.b16 %v951
        %v991 = vunpack.c.h.b16 %v951
        %v992 = vunpack.c.l.b16 %v952
        %v993 = vunpack.c.h.b16 %v952
        %v994 = vunpack.c.l.b16 %v953
        %v995 = vunpack.c.h.b16 %v953
        %v996 = vunpack.c.l.b16 %v954
        %v997 = vunpack.c.h.b16 %v954
        %v998 = vunpack.c.l.b16 %v955
        %v999 = vunpack.c.h.b16 %v955
        %v1000 = vunpack.c.l.b16 %v956
        %v1001 = vunpack.c.h.b16 %v956
        %v1002 = vunpack.c.l.b16 %v957
        %v1003 = vunpack.c.h.b16 %v957
        %v1004 = vunpack.c.l.b16 %v958
        %v1005 = vunpack.c.h.b16 %v958
        %v1006 = vunpack.c.l.b16 %v959
        %v1007 = vunpack.c.h.b16 %v959
        %v1008 = vpack.c.b16 %v976, %v976
        %v1009 = vpack.c.b16 %v977, %v977
        %v1010 = vpack.c.b16 %v978, %v978
        %v1011 = vpack.c.b16 %v979, %v979
        %v1012 = vpack.c.b16 %v980, %v980
        %v1013 = vpack.c.b16 %v981, %v981
        %v1014 = vpack.c.b16 %v982, %v982
        %v1015 = vpack.c.b16 %v983, %v983
        %v1016 = vpack.c.b16 %v984, %v984
        %v1017 = vpack.c.b16 %v985, %v985
        %v1018 = vpack.c.b16 %v986, %v986
        %v1019 = vpack.c.b16 %v987, %v987
        %v1020 = vpack.c.b16 %v988, %v988
        %v1021 = vpack.c.b16 %v989, %v989
        %v1022 = vpack.c.b16 %v990, %v990
        %v1023 = vpack.c.b16 %v991, %v991
        %v1024 = vpack.c.b16 %v992, %v992
        %v1025 = vpack.c.b16 %v993, %v993
        %v1026 = vpack.c.b16 %v994, %v994
        %v1027 = vpack.c.b16 %v995, %v995
        %v1028 = vpack.c.b16 %v996, %v996
        %v1029 = vpack.c.b16 %v997, %v997
        %v1030 = vpack.c.b16 %v998, %v998
        %v1031 = vpack.c.b16 %v999, %v999
        %v1032 = vpack.c.b16 %v1000, %v1000
        %v1033 = vpack.c.b16 %v1001, %v1001
        %v1034 = vpack.c.b16 %v1002, %v1002
        %v1035 = vpack.c.b16 %v1003, %v1003
        %v1036 = vpack.c.b16 %v1004, %v1004
        %v1037 = vpack.c.b16 %v1005, %v1005
        %v1038 = vpack.c.b16 %v1006, %v1006
        %v1039 = vpack.c.b16 %v1007, %v1007
        %vm1072 = vcmask 125952
        %1073 = vst.msk [vmem:[%s335] sm:$0xf] %vm1072, %v1008
        %1074 = vst.msk [vmem:[%s335 + $0x4] sm:$0xf] %vm1072, %v1009
        %1075 = vst.msk [vmem:[%s335 + $0x8] sm:$0xf] %vm1072, %v1010
        %1076 = vst.msk [vmem:[%s335 + $0xc] sm:$0xf] %vm1072, %v1011
        %1077 = vst.msk [vmem:[%s335 + $0x10] sm:$0xf] %vm1072, %v1012
        %1078 = vst.msk [vmem:[%s335 + $0x14] sm:$0xf] %vm1072, %v1013
        %1079 = vst.msk [vmem:[%s335 + $0x18] sm:$0xf] %vm1072, %v1014
        %1080 = vst.msk [vmem:[%s335 + $0x1c] sm:$0xf] %vm1072, %v1015
        %1081 = vst.msk [vmem:[%s335 + $0x20] sm:$0xf] %vm1072, %v1016
        %1082 = vst.msk [vmem:[%s335 + $0x24] sm:$0xf] %vm1072, %v1017
        %1083 = vst.msk [vmem:[%s335 + $0x28] sm:$0xf] %vm1072, %v1018
        %1084 = vst.msk [vmem:[%s335 + $0x2c] sm:$0xf] %vm1072, %v1019
        %1085 = vst.msk [vmem:[%s335 + $0x30] sm:$0xf] %vm1072, %v1020
        %1086 = vst.msk [vmem:[%s335 + $0x34] sm:$0xf] %vm1072, %v1021
        %1087 = vst.msk [vmem:[%s335 + $0x38] sm:$0xf] %vm1072, %v1022
        %1088 = vst.msk [vmem:[%s335 + $0x3c] sm:$0xf] %vm1072, %v1023
        %1089 = vst.msk [vmem:[%s335 + $0x40] sm:$0xf] %vm1072, %v1024
        %1090 = vst.msk [vmem:[%s335 + $0x44] sm:$0xf] %vm1072, %v1025
        %1091 = vst.msk [vmem:[%s335 + $0x48] sm:$0xf] %vm1072, %v1026
        %1092 = vst.msk [vmem:[%s335 + $0x4c] sm:$0xf] %vm1072, %v1027
        %1093 = vst.msk [vmem:[%s335 + $0x50] sm:$0xf] %vm1072, %v1028
        %1094 = vst.msk [vmem:[%s335 + $0x54] sm:$0xf] %vm1072, %v1029
        %1095 = vst.msk [vmem:[%s335 + $0x58] sm:$0xf] %vm1072, %v1030
        %1096 = vst.msk [vmem:[%s335 + $0x5c] sm:$0xf] %vm1072, %v1031
        %1097 = vst.msk [vmem:[%s335 + $0x60] sm:$0xf] %vm1072, %v1032
        %1098 = vst.msk [vmem:[%s335 + $0x64] sm:$0xf] %vm1072, %v1033
        %1099 = vst.msk [vmem:[%s335 + $0x68] sm:$0xf] %vm1072, %v1034
        %1100 = vst.msk [vmem:[%s335 + $0x6c] sm:$0xf] %vm1072, %v1035
        %1101 = vst.msk [vmem:[%s335 + $0x70] sm:$0xf] %vm1072, %v1036
        %1102 = vst.msk [vmem:[%s335 + $0x74] sm:$0xf] %vm1072, %v1037
        %1103 = vst.msk [vmem:[%s335 + $0x78] sm:$0xf] %vm1072, %v1038
        %1104 = vst.msk [vmem:[%s335 + $0x7c] sm:$0xf] %vm1072, %v1039
      $region44: #{dydensenet_forward.16} parent=35 // pred_fallthru
        _
      %s1105 = smul.u32 32, %s22
      %p1106 = scmp.lt.s32.totalorder %s21, 1
      %s1107 = scalar_select %p1106, %s21, 1
      %p1108 = scmp.lt.s32.totalorder %s1105, 31
      %s1109 = scalar_select %p1108, %s1105, 31
      %p1110 = scmp.lt.s32.totalorder %s23, 0
      %s1111 = scalar_select %p1110, %s23, 0
      %s1112 = sadd.s32 %s1111, %s1109
      %s1113 = smul.addr %s1107, 32
      %s1114 = sadd.s32 %s1112, %s1113
      %s1115 = smul.addr %s1114, 4
      %s1116 = scalar_lea.vmem %s4, %s1115
      // Predicated region
      $region45: #{dydensenet_forward.16} parent=35 // pred_check
        %p1117 = pneg %p175
      $region46: #{dydensenet_forward.16} parent=35 // pred_check_branch
        %1119 = sbr.rel (%p1117) target = $region48
      $region47: #{dydensenet_forward.16} parent=35 // pred_region
        %s1120 = smul.u32 32, %s22
      $region48: #{dydensenet_forward.16} parent=35 // pred_fallthru
        _
    $region36: #{dydensenet_forward.16} parent=5 // pred_fallthru
      _
    %p1121 = scmp.le.s32.totalorder 2, %s10
    // Predicated region
    $region49: #{dydensenet_forward.16} parent=5 // pred_check
      %p1122 = pneg %p1121
    $region50: #{dydensenet_forward.16} parent=5 // pred_check_branch
      %1124 = sbr.rel (%p1122) target = $region52
    $region51: #{dydensenet_forward.16} parent=5 // pred_region
      %s1125 = ssub.s32 %s10, 2
      // Predicated region
      $region53: #{dydensenet_forward.16} parent=51 // pred_check
        %p1126 = pneg %p181
      $region54: #{dydensenet_forward.16} parent=51 // pred_check_branch
        %1128 = sbr.rel (%p1126) target = $region56
      $region55: #{dydensenet_forward.16} parent=51 // pred_region
        %s1129 = smul.u32 32, %s26
        %p1130 = scmp.lt.s32.totalorder %s25, 1
        %s1131 = scalar_select %p1130, %s25, 1
        %p1132 = scmp.lt.s32.totalorder %s1129, 31
        %s1133 = scalar_select %p1132, %s1129, 31
        %p1134 = scmp.lt.s32.totalorder %s27, 0
        %s1135 = scalar_select %p1134, %s27, 0
        %s1136 = sadd.s32 %s1135, %s1133
        %s1137 = smul.addr %s1131, 32
        %s1138 = sadd.s32 %s1136, %s1137
        %s1139 = smul.addr %s1138, 4
        %s1140 = scalar_lea.vmem %s4, %s1139
      $region56: #{dydensenet_forward.16} parent=51 // pred_fallthru
        _
    $region52: #{dydensenet_forward.16} parent=5 // pred_fallthru
      _
  $region6: #{dydensenet_forward.16} parent=0 // loop_footer
    %s14 = sadd.s32 1, %s10
  $region7: #{dydensenet_forward.16} parent=0 // loop_footer_branch
    %9 = sbr.rel target = $region3
  $region8: #{dydensenet_forward.16} parent=0 // loop_exit
    _

// kernel: dydensenet_forward.17
$region0: #{dydensenet_forward.17}
  #allocation0 [shape = 'u32[]', space=smem, size = 0x4, offset = 0x4, fixed_abs, tag = 'smem constant byte address 0x4 - core index']
  #allocation1 [shape = 'u32[144,128]{1,0:T(1,128)}', space=vmem, size = 0x12000, scoped, tag = 'internal scratch']
  #allocation2 [shape = 'f32[256,4]{1,0:T(8,128)}', space=vmem, size = 0x20000, scoped, tag = 'scratch operand']
  %s0 = inlined_call_operand.vmem [shape: bf16[2,256,144], index: 0, kind: input, shape index: {}]
  %s1 = inlined_call_operand.vmem [shape: bf16[2,144,4], index: 1, kind: input, shape index: {}]
  %s2 = inlined_call_operand.vmem [shape: bf16[2,256,4], index: 2, kind: output, shape index: {}]
  %s3 = sld [smem:[#allocation0]]
  $region49: #{dydensenet_forward.17} parent=0
    _
  %s5 = ssub.s32 1, %s3
  %s6 = scalar_select 0, %s5, %s3
  loop: start=0, step=1, limit=4
  $region2: #{dydensenet_forward.17} parent=0 // loop_pre_header
    _
  $region3: #{dydensenet_forward.17} parent=0 // loop_header
    %s8 = sphi 0, %s12
    %p9 = scmp.ge.s32.totalorder %s8, 4
    %s15 = sphi 0, %s41
    %s16 = sphi 0, %s37
    %s17 = sphi 0, %s33
    %s18 = sphi 0, %s29
    %s19 = sphi 0, %s15
    %s20 = sphi 0, %s16
    %s21 = sphi 0, %s17
    %s22 = sphi 0, %s18
    %s23 = sphi 0, %s19
    %s24 = sphi 0, %s20
    %s25 = sphi 0, %s21
    %s26 = sphi 0, %s22
    %s48 = sphi 0, %s50
    %s51 = sphi 0, %s48
    %s52 = sphi 0, %s51
    %s68 = sphi 0, %s52
    %s78 = sphi 0, %s80
    %s81 = sphi 0, %s78
    %s82 = sphi 0, %s81
    %s98 = sphi 0, %s82
    %s108 = sphi 0, %s110
    %s111 = sphi 0, %s108
    %s112 = sphi 0, %s111
    %s128 = sphi 0, %s112
  $region4: #{dydensenet_forward.17} parent=0 // loop_header_branch
    %11 = sbr.rel (%p9) target = $region8
  $region5: #{dydensenet_forward.17} parent=0 // loop_body
    %s13 = ssub.s32 %s8, 1
    %s14 = ssub.s32 %s8, 2
    %s27 = sadd.s32 1, %s18
    %p28 = scmp.ge.s32.totalorder %s27, 1
    %s29 = scalar_select %p28, 0, %s27
    %s30 = sadd.s32 1, %s17
    %s31 = scalar_select %p28, %s30, %s17
    %p32 = scmp.ge.s32.totalorder %s31, 1
    %s33 = scalar_select %p32, 0, %s31
    %s34 = sadd.s32 1, %s16
    %s35 = scalar_select %p32, %s34, %s16
    %p36 = scmp.ge.s32.totalorder %s35, 1
    %s37 = scalar_select %p36, 0, %s35
    %s38 = sadd.s32 1, %s15
    %s39 = scalar_select %p36, %s38, %s15
    %p40 = scmp.ge.s32.totalorder %s39, 2
    %s41 = scalar_select %p40, 0, %s39
    %s42 = ssub.s32 %s15, %s41
    %s43 = ssub.s32 %s16, %s37
    %s44 = sor.u32 %s42, %s43
    %s45 = ssub.s32 %s18, %s29
    %s46 = sor.u32 %s44, %s45
    %p47 = scmp.eq.s32.totalorder %s46, 0
    %s49 = sadd.s32 %s48, 1
    %s50 = scalar_select %p47, %s48, %s49
    %p53 = pneg %p47
    %p54 = scmp.eq.s32.totalorder %s8, 1
    %p55 = por %p53, %p54
    %p56 = scmp.ne.s32.totalorder %s48, %s51
    %p57 = scmp.eq.s32.totalorder %s8, 0
    %p58 = por %p56, %p57
    %p59 = scmp.ne.s32.totalorder %s48, %s51
    %p60 = scmp.eq.s32.totalorder %s13, 1
    %p61 = por %p59, %p60
    %p62 = scmp.ne.s32.totalorder %s51, %s52
    %p63 = scmp.eq.s32.totalorder %s13, 0
    %p64 = por %p62, %p63
    %p65 = scmp.ne.s32.totalorder %s51, %s52
    %p66 = scmp.eq.s32.totalorder %s14, 1
    %p67 = por %p65, %p66
    %p69 = scmp.ne.s32.totalorder %s52, %s68
    %p70 = scmp.eq.s32.totalorder %s14, 0
    %p71 = por %p69, %p70
    %s72 = ssub.s32 %s15, %s41
    %s73 = ssub.s32 %s18, %s29
    %s74 = sor.u32 %s72, %s73
    %s75 = ssub.s32 %s17, %s33
    %s76 = sor.u32 %s74, %s75
    %p77 = scmp.eq.s32.totalorder %s76, 0
    %s79 = sadd.s32 %s78, 1
    %s80 = scalar_select %p77, %s78, %s79
    %p83 = pneg %p77
    %p84 = scmp.eq.s32.totalorder %s8, 1
    %p85 = por %p83, %p84
    %p86 = scmp.ne.s32.totalorder %s78, %s81
    %p87 = scmp.eq.s32.totalorder %s8, 0
    %p88 = por %p86, %p87
    %p89 = scmp.ne.s32.totalorder %s78, %s81
    %p90 = scmp.eq.s32.totalorder %s13, 1
    %p91 = por %p89, %p90
    %p92 = scmp.ne.s32.totalorder %s81, %s82
    %p93 = scmp.eq.s32.totalorder %s13, 0
    %p94 = por %p92, %p93
    %p95 = scmp.ne.s32.totalorder %s81, %s82
    %p96 = scmp.eq.s32.totalorder %s14, 1
    %p97 = por %p95, %p96
    %p99 = scmp.ne.s32.totalorder %s82, %s98
    %p100 = scmp.eq.s32.totalorder %s14, 0
    %p101 = por %p99, %p100
    %s102 = ssub.s32 %s15, %s41
    %s103 = ssub.s32 %s16, %s37
    %s104 = sor.u32 %s102, %s103
    %s105 = ssub.s32 %s17, %s33
    %s106 = sor.u32 %s104, %s105
    %p107 = scmp.eq.s32.totalorder %s106, 0
    %s109 = sadd.s32 %s108, 1
    %s110 = scalar_select %p107, %s108, %s109
    %p113 = pneg %p107
    %p114 = scmp.eq.s32.totalorder %s8, 1
    %p115 = por %p113, %p114
    %p116 = scmp.ne.s32.totalorder %s108, %s111
    %p117 = scmp.eq.s32.totalorder %s8, 0
    %p118 = por %p116, %p117
    %p119 = scmp.ne.s32.totalorder %s108, %s111
    %p120 = scmp.eq.s32.totalorder %s13, 1
    %p121 = por %p119, %p120
    %p122 = scmp.ne.s32.totalorder %s111, %s112
    %p123 = scmp.eq.s32.totalorder %s13, 0
    %p124 = por %p122, %p123
    %p125 = scmp.ne.s32.totalorder %s111, %s112
    %p126 = scmp.eq.s32.totalorder %s14, 1
    %p127 = por %p125, %p126
    %p129 = scmp.ne.s32.totalorder %s112, %s128
    %p130 = scmp.eq.s32.totalorder %s14, 0
    %p131 = por %p129, %p130
    %p132 = scmp.le.s32.totalorder 1, %s8
    %p133 = scmp.lt.s32.totalorder %s8, 3
    %p134 = pnand %p132, %p133
    %p135 = pneg %p134
    // Predicated region
    $region9: #{dydensenet_forward.17} parent=5 // pred_check
      _
    $region10: #{dydensenet_forward.17} parent=5 // pred_check_branch
      %137 = sbr.rel (%p134) target = $region12
    $region11: #{dydensenet_forward.17} parent=5 // pred_region
      %s138 = ssub.s32 %s8, 1
    $region12: #{dydensenet_forward.17} parent=5 // pred_fallthru
      _
    %p139 = scmp.lt.s32.totalorder %s8, 2
    // Predicated region
    $region13: #{dydensenet_forward.17} parent=5 // pred_check
      %p140 = pneg %p139
    $region14: #{dydensenet_forward.17} parent=5 // pred_check_branch
      %142 = sbr.rel (%p140) target = $region16
    $region15: #{dydensenet_forward.17} parent=5 // pred_region
      // Predicated region
      $region17: #{dydensenet_forward.17} parent=15 // pred_check
        %p143 = pneg %p58
      $region18: #{dydensenet_forward.17} parent=15 // pred_check_branch
        %145 = sbr.rel (%p143) target = $region20
      $region19: #{dydensenet_forward.17} parent=15 // pred_region
        %s146 = smul.u32 32, %s16
        %s147 = smul.u32 2, %s18
        %p148 = scmp.lt.s32.totalorder %s15, 1
        %s149 = scalar_select %p148, %s15, 1
        %p150 = scmp.lt.s32.totalorder %s146, 31
        %s151 = scalar_select %p150, %s146, 31
        %p152 = scmp.lt.s32.totalorder %s147, 1
        %s153 = scalar_select %p152, %s147, 1
        %s154 = smul.addr %s151, 2
        %s155 = sadd.s32 %s153, %s154
        %s156 = smul.addr %s149, 64
        %s157 = sadd.s32 %s155, %s156
        %s158 = smul.addr %s157, 4
        %s159 = scalar_lea.vmem %s0, %s158
        %s160 = smul.u32 32, %s16
        %s161 = smul.u32 2, %s18
      $region20: #{dydensenet_forward.17} parent=15 // pred_fallthru
        _
      // Predicated region
      $region21: #{dydensenet_forward.17} parent=15 // pred_check
        %p162 = pneg %p88
      $region22: #{dydensenet_forward.17} parent=15 // pred_check_branch
        %164 = sbr.rel (%p162) target = $region24
      $region23: #{dydensenet_forward.17} parent=15 // pred_region
        %s165 = smul.u32 18, %s18
        %p166 = scmp.lt.s32.totalorder %s15, 1
        %s167 = scalar_select %p166, %s15, 1
        %p168 = scmp.lt.s32.totalorder %s165, 17
        %s169 = scalar_select %p168, %s165, 17
        %p170 = scmp.lt.s32.totalorder %s17, 0
        %s171 = scalar_select %p170, %s17, 0
        %s172 = sadd.s32 %s171, %s169
        %s173 = smul.addr %s167, 18
        %s174 = sadd.s32 %s172, %s173
        %s175 = smul.addr %s174, 4
        %s176 = scalar_lea.vmem %s1, %s175
        %s177 = smul.u32 18, %s18
      $region24: #{dydensenet_forward.17} parent=15 // pred_fallthru
        _
    $region16: #{dydensenet_forward.17} parent=5 // pred_fallthru
      _
    %p178 = scmp.le.s32.totalorder 1, %s8
    %p179 = scmp.lt.s32.totalorder %s8, 3
    %p180 = pnand %p178, %p179
    %p181 = pneg %p180
    // Predicated region
    $region25: #{dydensenet_forward.17} parent=5 // pred_check
      _
    $region26: #{dydensenet_forward.17} parent=5 // pred_check_branch
      %183 = sbr.rel (%p180) target = $region28
    $region27: #{dydensenet_forward.17} parent=5 // pred_region
      %s184 = ssub.s32 %s8, 1
      %s185 = smul.u32 32, %s20
      %s186 = smul.u32 2, %s22
      %p187 = scmp.lt.s32.totalorder %s19, 1
      %s188 = scalar_select %p187, %s19, 1
      %p189 = scmp.lt.s32.totalorder %s185, 31
      %s190 = scalar_select %p189, %s185, 31
      %p191 = scmp.lt.s32.totalorder %s186, 1
      %s192 = scalar_select %p191, %s186, 1
      %s193 = smul.addr %s190, 2
      %s194 = sadd.s32 %s192, %s193
      %s195 = smul.addr %s188, 64
      %s196 = sadd.s32 %s194, %s195
      %s197 = smul.addr %s196, 4
      %s198 = scalar_lea.vmem %s0, %s197
      %p199 = pneg %p64
      %p200 = pneg %p61
      %s201 = smul.u32 18, %s22
      %p202 = scmp.lt.s32.totalorder %s19, 1
      %s203 = scalar_select %p202, %s19, 1
      %p204 = scmp.lt.s32.totalorder %s201, 17
      %s205 = scalar_select %p204, %s201, 17
      %p206 = scmp.lt.s32.totalorder %s21, 0
      %s207 = scalar_select %p206, %s21, 0
      %s208 = sadd.s32 %s207, %s205
      %s209 = smul.addr %s203, 18
      %s210 = sadd.s32 %s208, %s209
      %s211 = smul.addr %s210, 4
      %s212 = scalar_lea.vmem %s1, %s211
      %p213 = pneg %p94
      %p214 = pneg %p91
      %p215 = pneg %p124
      %p216 = pneg %p121
      %s217 = smul.u32 32, %s20
      %p218 = scmp.lt.s32.totalorder %s19, 1
      %s219 = scalar_select %p218, %s19, 1
      %p220 = scmp.lt.s32.totalorder %s217, 31
      %s221 = scalar_select %p220, %s217, 31
      %p222 = scmp.lt.s32.totalorder %s21, 0
      %s223 = scalar_select %p222, %s21, 0
      %s224 = sadd.s32 %s223, %s221
      %s225 = smul.addr %s219, 32
      %s226 = sadd.s32 %s224, %s225
      %s227 = smul.addr %s226, 4
      %s228 = scalar_lea.vmem %s2, %s227
      %s229 = smul.u32 32, %s20
      %s230 = smul.u32 2, %s22
      %p231 = scmp.lt.s32.totalorder %s19, 1
      %s232 = scalar_select %p231, %s19, 1
      %p233 = scmp.lt.s32.totalorder %s229, 31
      %s234 = scalar_select %p233, %s229, 31
      %p235 = scmp.lt.s32.totalorder %s230, 1
      %s236 = scalar_select %p235, %s230, 1
      %s237 = smul.addr %s234, 2
      %s238 = sadd.s32 %s236, %s237
      %s239 = smul.addr %s232, 64
      %s240 = sadd.s32 %s238, %s239
      %s241 = smul.addr %s240, 4
      %s242 = scalar_lea.vmem %s0, %s241
      %s243 = smul.u32 32, %s20
      %s244 = smul.u32 2, %s22
      %s245 = smul.u32 18, %s22
      %p246 = scmp.lt.s32.totalorder %s19, 1
      %s247 = scalar_select %p246, %s19, 1
      %p248 = scmp.lt.s32.totalorder %s245, 17
      %s249 = scalar_select %p248, %s245, 17
      %p250 = scmp.lt.s32.totalorder %s21, 0
      %s251 = scalar_select %p250, %s21, 0
      %s252 = sadd.s32 %s251, %s249
      %s253 = smul.addr %s247, 18
      %s254 = sadd.s32 %s252, %s253
      %s255 = smul.addr %s254, 4
      %s256 = scalar_lea.vmem %s1, %s255
      %s257 = smul.u32 18, %s22
      %s258 = smul.u32 32, %s20
      %p259 = scmp.lt.s32.totalorder %s19, 1
      %s260 = scalar_select %p259, %s19, 1
      %p261 = scmp.lt.s32.totalorder %s258, 31
      %s262 = scalar_select %p261, %s258, 31
      %p263 = scmp.lt.s32.totalorder %s21, 0
      %s264 = scalar_select %p263, %s21, 0
      %s265 = sadd.s32 %s264, %s262
      %s266 = smul.addr %s260, 32
      %s267 = sadd.s32 %s265, %s266
      %s268 = smul.addr %s267, 4
      %s269 = scalar_lea.vmem %s2, %s268
      %s270 = smul.u32 32, %s20
      %p272 = scmp.eq.s32.totalorder %s22, 0
      // Predicated region
      $region29: #{dydensenet_forward.17} parent=27 // pred_check
        %p273 = pneg %p272
      $region30: #{dydensenet_forward.17} parent=27 // pred_check_branch
        %275 = sbr.rel (%p273) target = $region32
      $region31: #{dydensenet_forward.17} parent=27 // pred_region
        %vm276 = vcmask 31744
        %277 = vst.msk [vmem:[#allocation2] sm:$0xff] %vm276, 0.0
        %278 = vst.msk [vmem:[#allocation2 + $0x8] sm:$0xff] %vm276, 0.0
        %279 = vst.msk [vmem:[#allocation2 + $0x10] sm:$0xff] %vm276, 0.0
        %280 = vst.msk [vmem:[#allocation2 + $0x18] sm:$0xff] %vm276, 0.0
        %281 = vst.msk [vmem:[#allocation2 + $0x20] sm:$0xff] %vm276, 0.0
        %282 = vst.msk [vmem:[#allocation2 + $0x28] sm:$0xff] %vm276, 0.0
        %283 = vst.msk [vmem:[#allocation2 + $0x30] sm:$0xff] %vm276, 0.0
        %284 = vst.msk [vmem:[#allocation2 + $0x38] sm:$0xff] %vm276, 0.0
        %285 = vst.msk [vmem:[#allocation2 + $0x40] sm:$0xff] %vm276, 0.0
        %286 = vst.msk [vmem:[#allocation2 + $0x48] sm:$0xff] %vm276, 0.0
        %287 = vst.msk [vmem:[#allocation2 + $0x50] sm:$0xff] %vm276, 0.0
        %288 = vst.msk [vmem:[#allocation2 + $0x58] sm:$0xff] %vm276, 0.0
        %289 = vst.msk [vmem:[#allocation2 + $0x60] sm:$0xff] %vm276, 0.0
        %290 = vst.msk [vmem:[#allocation2 + $0x68] sm:$0xff] %vm276, 0.0
        %291 = vst.msk [vmem:[#allocation2 + $0x70] sm:$0xff] %vm276, 0.0
        %292 = vst.msk [vmem:[#allocation2 + $0x78] sm:$0xff] %vm276, 0.0
        %293 = vst.msk [vmem:[#allocation2 + $0x80] sm:$0xff] %vm276, 0.0
        %294 = vst.msk [vmem:[#allocation2 + $0x88] sm:$0xff] %vm276, 0.0
        %295 = vst.msk [vmem:[#allocation2 + $0x90] sm:$0xff] %vm276, 0.0
        %296 = vst.msk [vmem:[#allocation2 + $0x98] sm:$0xff] %vm276, 0.0
        %297 = vst.msk [vmem:[#allocation2 + $0xa0] sm:$0xff] %vm276, 0.0
        %298 = vst.msk [vmem:[#allocation2 + $0xa8] sm:$0xff] %vm276, 0.0
        %299 = vst.msk [vmem:[#allocation2 + $0xb0] sm:$0xff] %vm276, 0.0
        %300 = vst.msk [vmem:[#allocation2 + $0xb8] sm:$0xff] %vm276, 0.0
        %301 = vst.msk [vmem:[#allocation2 + $0xc0] sm:$0xff] %vm276, 0.0
        %302 = vst.msk [vmem:[#allocation2 + $0xc8] sm:$0xff] %vm276, 0.0
        %303 = vst.msk [vmem:[#allocation2 + $0xd0] sm:$0xff] %vm276, 0.0
        %304 = vst.msk [vmem:[#allocation2 + $0xd8] sm:$0xff] %vm276, 0.0
        %305 = vst.msk [vmem:[#allocation2 + $0xe0] sm:$0xff] %vm276, 0.0
        %306 = vst.msk [vmem:[#allocation2 + $0xe8] sm:$0xff] %vm276, 0.0
        %307 = vst.msk [vmem:[#allocation2 + $0xf0] sm:$0xff] %vm276, 0.0
        %308 = vst.msk [vmem:[#allocation2 + $0xf8] sm:$0xff] %vm276, 0.0
      $region32: #{dydensenet_forward.17} parent=27 // pred_fallthru
        _
      %v309 = vld [vmem:[#allocation2] sm:$0xff]
      %v310 = vld [vmem:[#allocation2 + $0x8] sm:$0xff]
      %v311 = vld [vmem:[#allocation2 + $0x10] sm:$0xff]
      %v312 = vld [vmem:[#allocation2 + $0x18] sm:$0xff]
      %v313 = vld [vmem:[#allocation2 + $0x20] sm:$0xff]
      %v314 = vld [vmem:[#allocation2 + $0x28] sm:$0xff]
      %v315 = vld [vmem:[#allocation2 + $0x30] sm:$0xff]
      %v316 = vld [vmem:[#allocation2 + $0x38] sm:$0xff]
      %v317 = vld [vmem:[#allocation2 + $0x40] sm:$0xff]
      %v318 = vld [vmem:[#allocation2 + $0x48] sm:$0xff]
      %v319 = vld [vmem:[#allocation2 + $0x50] sm:$0xff]
      %v320 = vld [vmem:[#allocation2 + $0x58] sm:$0xff]
      %v321 = vld [vmem:[#allocation2 + $0x60] sm:$0xff]
      %v322 = vld [vmem:[#allocation2 + $0x68] sm:$0xff]
      %v323 = vld [vmem:[#allocation2 + $0x70] sm:$0xff]
      %v324 = vld [vmem:[#allocation2 + $0x78] sm:$0xff]
      %v325 = vld [vmem:[#allocation2 + $0x80] sm:$0xff]
      %v326 = vld [vmem:[#allocation2 + $0x88] sm:$0xff]
      %v327 = vld [vmem:[#allocation2 + $0x90] sm:$0xff]
      %v328 = vld [vmem:[#allocation2 + $0x98] sm:$0xff]
      %v329 = vld [vmem:[#allocation2 + $0xa0] sm:$0xff]
      %v330 = vld [vmem:[#allocation2 + $0xa8] sm:$0xff]
      %v331 = vld [vmem:[#allocation2 + $0xb0] sm:$0xff]
      %v332 = vld [vmem:[#allocation2 + $0xb8] sm:$0xff]
      %v333 = vld [vmem:[#allocation2 + $0xc0] sm:$0xff]
      %v334 = vld [vmem:[#allocation2 + $0xc8] sm:$0xff]
      %v335 = vld [vmem:[#allocation2 + $0xd0] sm:$0xff]
      %v336 = vld [vmem:[#allocation2 + $0xd8] sm:$0xff]
      %v337 = vld [vmem:[#allocation2 + $0xe0] sm:$0xff]
      %v338 = vld [vmem:[#allocation2 + $0xe8] sm:$0xff]
      %v339 = vld [vmem:[#allocation2 + $0xf0] sm:$0xff]
      %v340 = vld [vmem:[#allocation2 + $0xf8] sm:$0xff]
      %v341 = vld [vmem:[%s242] sm:$0xff]
      %v342 = vld [vmem:[%s242 + $0x8] sm:$0xff]
      %v343 = vld [vmem:[%s242 + $0x10] sm:$0xff]
      %v344 = vld [vmem:[%s242 + $0x18] sm:$0xff]
      %v345 = vld [vmem:[%s242 + $0x20] sm:$0xff]
      %v346 = vld [vmem:[%s242 + $0x28] sm:$0xff]
      %v347 = vld [vmem:[%s242 + $0x30] sm:$0xff]
      %v348 = vld [vmem:[%s242 + $0x38] sm:$0xff]
      %v349 = vld [vmem:[%s242 + $0x40] sm:$0xff]
      %v350 = vld [vmem:[%s242 + $0x48] sm:$0xff]
      %v351 = vld [vmem:[%s242 + $0x50] sm:$0xff]
      %v352 = vld [vmem:[%s242 + $0x58] sm:$0xff]
      %v353 = vld [vmem:[%s242 + $0x60] sm:$0xff]
      %v354 = vld [vmem:[%s242 + $0x68] sm:$0xff]
      %v355 = vld [vmem:[%s242 + $0x70] sm:$0xff]
      %v356 = vld [vmem:[%s242 + $0x78] sm:$0xff]
      %v357 = vld [vmem:[%s242 + $0x80] sm:$0xff]
      %v358 = vld [vmem:[%s242 + $0x88] sm:$0xff]
      %v359 = vld [vmem:[%s242 + $0x90] sm:$0xff]
      %v360 = vld [vmem:[%s242 + $0x98] sm:$0xff]
      %v361 = vld [vmem:[%s242 + $0xa0] sm:$0xff]
      %v362 = vld [vmem:[%s242 + $0xa8] sm:$0xff]
      %v363 = vld [vmem:[%s242 + $0xb0] sm:$0xff]
      %v364 = vld [vmem:[%s242 + $0xb8] sm:$0xff]
      %v365 = vld [vmem:[%s242 + $0xc0] sm:$0xff]
      %v366 = vld [vmem:[%s242 + $0xc8] sm:$0xff]
      %v367 = vld [vmem:[%s242 + $0xd0] sm:$0xff]
      %v368 = vld [vmem:[%s242 + $0xd8] sm:$0xff]
      %v369 = vld [vmem:[%s242 + $0xe0] sm:$0xff]
      %v370 = vld [vmem:[%s242 + $0xe8] sm:$0xff]
      %v371 = vld [vmem:[%s242 + $0xf0] sm:$0xff]
      %v372 = vld [vmem:[%s242 + $0xf8] sm:$0xff]
      %v373 = vld [vmem:[%s256] sm:$0xf]
      %v374 = vld [vmem:[%s256 + $0x4] sm:$0xf]
      %v375 = vld [vmem:[%s256 + $0x8] sm:$0xf]
      %v376 = vld [vmem:[%s256 + $0xc] sm:$0xf]
      %v377 = vld [vmem:[%s256 + $0x10] sm:$0xf]
      %v378 = vld [vmem:[%s256 + $0x14] sm:$0xf]
      %v379 = vld [vmem:[%s256 + $0x18] sm:$0xf]
      %v380 = vld [vmem:[%s256 + $0x1c] sm:$0xf]
      %v381 = vld [vmem:[%s256 + $0x20] sm:$0xf]
      %v382 = vld [vmem:[%s256 + $0x24] sm:$0xf]
      %v383 = vld [vmem:[%s256 + $0x28] sm:$0xf]
      %v384 = vld [vmem:[%s256 + $0x2c] sm:$0xf]
      %v385 = vld [vmem:[%s256 + $0x30] sm:$0xf]
      %v386 = vld [vmem:[%s256 + $0x34] sm:$0xf]
      %v387 = vld [vmem:[%s256 + $0x38] sm:$0xf]
      %v388 = vld [vmem:[%s256 + $0x3c] sm:$0xf]
      %v389 = vld [vmem:[%s256 + $0x40] sm:$0xf]
      %v390 = vld [vmem:[%s256 + $0x44] sm:$0xf]
      %v423 = vunpack.c.l.b16 %v341
      %v424 = vunpack.c.h.b16 %v341
      %v425 = vunpack.c.l.b16 %v342
      %v426 = vunpack.c.h.b16 %v342
      %v427 = vunpack.c.l.b16 %v343
      %v428 = vunpack.c.h.b16 %v343
      %v429 = vunpack.c.l.b16 %v344
      %v430 = vunpack.c.h.b16 %v344
      %v431 = vunpack.c.l.b16 %v345
      %v432 = vunpack.c.h.b16 %v345
      %v433 = vunpack.c.l.b16 %v346
      %v434 = vunpack.c.h.b16 %v346
      %v435 = vunpack.c.l.b16 %v347
      %v436 = vunpack.c.h.b16 %v347
      %v437 = vunpack.c.l.b16 %v348
      %v438 = vunpack.c.h.b16 %v348
      %v439 = vunpack.c.l.b16 %v349
      %v440 = vunpack.c.h.b16 %v349
      %v441 = vunpack.c.l.b16 %v350
      %v442 = vunpack.c.h.b16 %v350
      %v443 = vunpack.c.l.b16 %v351
      %v444 = vunpack.c.h.b16 %v351
      %v445 = vunpack.c.l.b16 %v352
      %v446 = vunpack.c.h.b16 %v352
      %v447 = vunpack.c.l.b16 %v353
      %v448 = vunpack.c.h.b16 %v353
      %v449 = vunpack.c.l.b16 %v354
      %v450 = vunpack.c.h.b16 %v354
      %v451 = vunpack.c.l.b16 %v355
      %v452 = vunpack.c.h.b16 %v355
      %v453 = vunpack.c.l.b16 %v356
      %v454 = vunpack.c.h.b16 %v356
      %v455 = vunpack.c.l.b16 %v357
      %v456 = vunpack.c.h.b16 %v357
      %v457 = vunpack.c.l.b16 %v358
      %v458 = vunpack.c.h.b16 %v358
      %v459 = vunpack.c.l.b16 %v359
      %v460 = vunpack.c.h.b16 %v359
      %v461 = vunpack.c.l.b16 %v360
      %v462 = vunpack.c.h.b16 %v360
      %v463 = vunpack.c.l.b16 %v361
      %v464 = vunpack.c.h.b16 %v361
      %v465 = vunpack.c.l.b16 %v362
      %v466 = vunpack.c.h.b16 %v362
      %v467 = vunpack.c.l.b16 %v363
      %v468 = vunpack.c.h.b16 %v363
      %v469 = vunpack.c.l.b16 %v364
      %v470 = vunpack.c.h.b16 %v364
      %v471 = vunpack.c.l.b16 %v365
      %v472 = vunpack.c.h.b16 %v365
      %v473 = vunpack.c.l.b16 %v366
      %v474 = vunpack.c.h.b16 %v366
      %v475 = vunpack.c.l.b16 %v367
      %v476 = vunpack.c.h.b16 %v367
      %v477 = vunpack.c.l.b16 %v368
      %v478 = vunpack.c.h.b16 %v368
      %v479 = vunpack.c.l.b16 %v369
      %v480 = vunpack.c.h.b16 %v369
      %v481 = vunpack.c.l.b16 %v370
      %v482 = vunpack.c.h.b16 %v370
      %v483 = vunpack.c.l.b16 %v371
      %v484 = vunpack.c.h.b16 %v371
      %v485 = vunpack.c.l.b16 %v372
      %v486 = vunpack.c.h.b16 %v372
      %v487 = vpack.c.b16 %v425, %v423
      %v488 = vpack.c.b16 %v426, %v424
      %v489 = vpack.c.b16 %v429, %v427
      %v490 = vpack.c.b16 %v430, %v428
      %v491 = vpack.c.b16 %v433, %v431
      %v492 = vpack.c.b16 %v434, %v432
      %v493 = vpack.c.b16 %v437, %v435
      %v494 = vpack.c.b16 %v438, %v436
      %v495 = vpack.c.b16 %v441, %v439
      %v496 = vpack.c.b16 %v442, %v440
      %v497 = vpack.c.b16 %v445, %v443
      %v498 = vpack.c.b16 %v446, %v444
      %v499 = vpack.c.b16 %v449, %v447
      %v500 = vpack.c.b16 %v450, %v448
      %v501 = vpack.c.b16 %v453, %v451
      %v502 = vpack.c.b16 %v454, %v452
      %v503 = vpack.c.b16 %v457, %v455
      %v504 = vpack.c.b16 %v458, %v456
      %v505 = vpack.c.b16 %v461, %v459
      %v506 = vpack.c.b16 %v462, %v460
      %v507 = vpack.c.b16 %v465, %v463
      %v508 = vpack.c.b16 %v466, %v464
      %v509 = vpack.c.b16 %v469, %v467
      %v510 = vpack.c.b16 %v470, %v468
      %v511 = vpack.c.b16 %v473, %v471
      %v512 = vpack.c.b16 %v474, %v472
      %v513 = vpack.c.b16 %v477, %v475
      %v514 = vpack.c.b16 %v478, %v476
      %v515 = vpack.c.b16 %v481, %v479
      %v516 = vpack.c.b16 %v482, %v480
      %v517 = vpack.c.b16 %v485, %v483
      %v518 = vpack.c.b16 %v486, %v484
      %v553 = vunpack.c.l.b16 %v373
      %v554 = vunpack.c.l.b16 %v374
      %v555 = vunpack.c.l.b16 %v375
      %v556 = vunpack.c.l.b16 %v376
      %v557 = vunpack.c.l.b16 %v377
      %v558 = vunpack.c.l.b16 %v378
      %v559 = vunpack.c.l.b16 %v379
      %v560 = vunpack.c.l.b16 %v380
      %v561 = vunpack.c.l.b16 %v381
      %v562 = vunpack.c.l.b16 %v382
      %v563 = vunpack.c.l.b16 %v383
      %v564 = vunpack.c.l.b16 %v384
      %v565 = vunpack.c.l.b16 %v385
      %v566 = vunpack.c.l.b16 %v386
      %v567 = vunpack.c.l.b16 %v387
      %v568 = vunpack.c.l.b16 %v388
      %v569 = vunpack.c.l.b16 %v389
      %v570 = vunpack.c.l.b16 %v390
      %v571 = vpack.c.b16 %v554, %v553
      %v572 = vpack.c.b16 %v556, %v555
      %v573 = vpack.c.b16 %v558, %v557
      %v574 = vpack.c.b16 %v560, %v559
      %v575 = vpack.c.b16 %v562, %v561
      %v576 = vpack.c.b16 %v564, %v563
      %v577 = vpack.c.b16 %v566, %v565
      %v578 = vpack.c.b16 %v568, %v567
      %v579 = vpack.c.b16 %v570, %v569
      %vm589 = vcmask 130048
      %v591 = vsel %vm589, %v488, 0
      %v594 = vsel %vm589, %v490, 0
      %v597 = vsel %vm589, %v492, 0
      %v600 = vsel %vm589, %v494, 0
      %v603 = vsel %vm589, %v496, 0
      %v606 = vsel %vm589, %v498, 0
      %v609 = vsel %vm589, %v500, 0
      %v612 = vsel %vm589, %v502, 0
      %v615 = vsel %vm589, %v504, 0
      %v618 = vsel %vm589, %v506, 0
      %v621 = vsel %vm589, %v508, 0
      %v624 = vsel %vm589, %v510, 0
      %v627 = vsel %vm589, %v512, 0
      %v630 = vsel %vm589, %v514, 0
      %v633 = vsel %vm589, %v516, 0
      %v636 = vsel %vm589, %v518, 0
      %638 = vmatprep.subr.bf16.mxu0 0
      %639 = vmatpush1.bf16.msra.mxu0 %v578
      %640 = vmatprep.subr.bf16.mxu0 0
      %641 = vmatpush1.bf16.msra.mxu0 %v577
      %642 = vmatprep.subr.bf16.mxu0 0
      %643 = vmatpush1.bf16.msra.mxu0 %v576
      %644 = vmatprep.subr.bf16.mxu0 0
      %645 = vmatpush1.bf16.msra.mxu0 %v575
      %646 = vmatprep.subr.bf16.mxu0 0
      %647 = vmatpush1.bf16.msra.mxu0 %v574
      %648 = vmatprep.subr.bf16.mxu0 0
      %649 = vmatpush1.bf16.msra.mxu0 %v573
      %650 = vmatprep.subr.bf16.mxu0 0
      %651 = vmatpush1.bf16.msra.mxu0 %v572
      %652 = vmatprep.subr.bf16.mxu0 0
      %653 = vmatpush1.bf16.msra.mxu0 %v571
      %654 = vmatprep.subr.bf16.mxu0 0
      %655 = vmatpush2.bf16.msra.mxu0 0
      %656 = vmatprep.subr.bf16.mxu0 0
      %657 = vmatpush2.bf16.msra.mxu0 0
      %658 = vmatprep.subr.bf16.mxu0 0
      %659 = vmatpush2.bf16.msra.mxu0 0
      %660 = vmatprep.subr.bf16.mxu0 0
      %661 = vmatpush2.bf16.msra.mxu0 0
      %662 = vmatprep.subr.bf16.mxu0 0
      %663 = vmatpush2.bf16.msra.mxu0 0
      %664 = vmatprep.subr.bf16.mxu0 0
      %665 = vmatpush2.bf16.msra.mxu0 0
      %666 = vmatprep.subr.bf16.mxu0 0
      %667 = vmatpush2.bf16.msra.mxu0 0
      %668 = vmatprep.subr.bf16.mxu0 0
      %669 = vmatpush2.bf16.msra.mxu0 %v579
      %670 = vmatprep.mubr.bf16.mxu0 %v591
      %671 = vmatmul.mubr.bf16.gmra.mxu0 %v487
      %v672 = vpop.f32.mrf.mxu0
      %v673 = vadd.f32 0.0, %v672
      %v674 = vpop.f32.mrf.mxu0
      %v675 = vpop.f32.mrf.mxu0
      %v676 = vadd.f32 0.0, %v675
      %v677 = vpop.f32.mrf.mxu0
      %678 = vmatprep.mubr.bf16.mxu0 %v594
      %679 = vmatmul.mubr.bf16.gmra.mxu0 %v489
      %v680 = vpop.f32.mrf.mxu0
      %v681 = vadd.f32 0.0, %v680
      %v682 = vpop.f32.mrf.mxu0
      %v683 = vpop.f32.mrf.mxu0
      %v684 = vadd.f32 0.0, %v683
      %v685 = vpop.f32.mrf.mxu0
      %686 = vmatprep.mubr.bf16.mxu0 %v597
      %687 = vmatmul.mubr.bf16.gmra.mxu0 %v491
      %v688 = vpop.f32.mrf.mxu0
      %v689 = vadd.f32 0.0, %v688
      %v690 = vpop.f32.mrf.mxu0
      %v691 = vpop.f32.mrf.mxu0
      %v692 = vadd.f32 0.0, %v691
      %v693 = vpop.f32.mrf.mxu0
      %694 = vmatprep.mubr.bf16.mxu0 %v600
      %695 = vmatmul.mubr.bf16.gmra.mxu0 %v493
      %v696 = vpop.f32.mrf.mxu0
      %v697 = vadd.f32 0.0, %v696
      %v698 = vpop.f32.mrf.mxu0
      %v699 = vpop.f32.mrf.mxu0
      %v700 = vadd.f32 0.0, %v699
      %v701 = vpop.f32.mrf.mxu0
      %702 = vmatprep.mubr.bf16.mxu0 %v603
      %703 = vmatmul.mubr.bf16.gmra.mxu0 %v495
      %v704 = vpop.f32.mrf.mxu0
      %v705 = vadd.f32 0.0, %v704
      %v706 = vpop.f32.mrf.mxu0
      %v707 = vpop.f32.mrf.mxu0
      %v708 = vadd.f32 0.0, %v707
      %v709 = vpop.f32.mrf.mxu0
      %710 = vmatprep.mubr.bf16.mxu0 %v606
      %711 = vmatmul.mubr.bf16.gmra.mxu0 %v497
      %v712 = vpop.f32.mrf.mxu0
      %v713 = vadd.f32 0.0, %v712
      %v714 = vpop.f32.mrf.mxu0
      %v715 = vpop.f32.mrf.mxu0
      %v716 = vadd.f32 0.0, %v715
      %v717 = vpop.f32.mrf.mxu0
      %718 = vmatprep.mubr.bf16.mxu0 %v609
      %719 = vmatmul.mubr.bf16.gmra.mxu0 %v499
      %v720 = vpop.f32.mrf.mxu0
      %v721 = vadd.f32 0.0, %v720
      %v722 = vpop.f32.mrf.mxu0
      %v723 = vpop.f32.mrf.mxu0
      %v724 = vadd.f32 0.0, %v723
      %v725 = vpop.f32.mrf.mxu0
      %726 = vmatprep.mubr.bf16.mxu0 %v612
      %727 = vmatmul.mubr.bf16.gmra.mxu0 %v501
      %v728 = vpop.f32.mrf.mxu0
      %v729 = vadd.f32 0.0, %v728
      %v730 = vpop.f32.mrf.mxu0
      %v731 = vpop.f32.mrf.mxu0
      %v732 = vadd.f32 0.0, %v731
      %v733 = vpop.f32.mrf.mxu0
      %734 = vmatprep.mubr.bf16.mxu0 %v615
      %735 = vmatmul.mubr.bf16.gmra.mxu0 %v503
      %v736 = vpop.f32.mrf.mxu0
      %v737 = vadd.f32 0.0, %v736
      %v738 = vpop.f32.mrf.mxu0
      %v739 = vpop.f32.mrf.mxu0
      %v740 = vadd.f32 0.0, %v739
      %v741 = vpop.f32.mrf.mxu0
      %742 = vmatprep.mubr.bf16.mxu0 %v618
      %743 = vmatmul.mubr.bf16.gmra.mxu0 %v505
      %v744 = vpop.f32.mrf.mxu0
      %v745 = vadd.f32 0.0, %v744
      %v746 = vpop.f32.mrf.mxu0
      %v747 = vpop.f32.mrf.mxu0
      %v748 = vadd.f32 0.0, %v747
      %v749 = vpop.f32.mrf.mxu0
      %750 = vmatprep.mubr.bf16.mxu0 %v621
      %751 = vmatmul.mubr.bf16.gmra.mxu0 %v507
      %v752 = vpop.f32.mrf.mxu0
      %v753 = vadd.f32 0.0, %v752
      %v754 = vpop.f32.mrf.mxu0
      %v755 = vpop.f32.mrf.mxu0
      %v756 = vadd.f32 0.0, %v755
      %v757 = vpop.f32.mrf.mxu0
      %758 = vmatprep.mubr.bf16.mxu0 %v624
      %759 = vmatmul.mubr.bf16.gmra.mxu0 %v509
      %v760 = vpop.f32.mrf.mxu0
      %v761 = vadd.f32 0.0, %v760
      %v762 = vpop.f32.mrf.mxu0
      %v763 = vpop.f32.mrf.mxu0
      %v764 = vadd.f32 0.0, %v763
      %v765 = vpop.f32.mrf.mxu0
      %766 = vmatprep.mubr.bf16.mxu0 %v627
      %767 = vmatmul.mubr.bf16.gmra.mxu0 %v511
      %v768 = vpop.f32.mrf.mxu0
      %v769 = vadd.f32 0.0, %v768
      %v770 = vpop.f32.mrf.mxu0
      %v771 = vpop.f32.mrf.mxu0
      %v772 = vadd.f32 0.0, %v771
      %v773 = vpop.f32.mrf.mxu0
      %774 = vmatprep.mubr.bf16.mxu0 %v630
      %775 = vmatmul.mubr.bf16.gmra.mxu0 %v513
      %v776 = vpop.f32.mrf.mxu0
      %v777 = vadd.f32 0.0, %v776
      %v778 = vpop.f32.mrf.mxu0
      %v779 = vpop.f32.mrf.mxu0
      %v780 = vadd.f32 0.0, %v779
      %v781 = vpop.f32.mrf.mxu0
      %782 = vmatprep.mubr.bf16.mxu0 %v633
      %783 = vmatmul.mubr.bf16.gmra.mxu0 %v515
      %v784 = vpop.f32.mrf.mxu0
      %v785 = vadd.f32 0.0, %v784
      %v786 = vpop.f32.mrf.mxu0
      %v787 = vpop.f32.mrf.mxu0
      %v788 = vadd.f32 0.0, %v787
      %v789 = vpop.f32.mrf.mxu0
      %790 = vmatprep.mubr.bf16.mxu0 %v636
      %791 = vmatmul.mubr.bf16.gmra.mxu0 %v517
      %v792 = vpop.f32.mrf.mxu0
      %v793 = vadd.f32 0.0, %v792
      %v794 = vpop.f32.mrf.mxu0
      %v795 = vpop.f32.mrf.mxu0
      %v796 = vadd.f32 0.0, %v795
      %v797 = vpop.f32.mrf.mxu0
      %798 = vdwg.mxu0
      %v799 = vadd.f32 %v309, %v673
      %v800 = vadd.f32 %v310, %v676
      %v801 = vadd.f32 %v311, %v681
      %v802 = vadd.f32 %v312, %v684
      %v803 = vadd.f32 %v313, %v689
      %v804 = vadd.f32 %v314, %v692
      %v805 = vadd.f32 %v315, %v697
      %v806 = vadd.f32 %v316, %v700
      %v807 = vadd.f32 %v317, %v705
      %v808 = vadd.f32 %v318, %v708
      %v809 = vadd.f32 %v319, %v713
      %v810 = vadd.f32 %v320, %v716
      %v811 = vadd.f32 %v321, %v721
      %v812 = vadd.f32 %v322, %v724
      %v813 = vadd.f32 %v323, %v729
      %v814 = vadd.f32 %v324, %v732
      %v815 = vadd.f32 %v325, %v737
      %v816 = vadd.f32 %v326, %v740
      %v817 = vadd.f32 %v327, %v745
      %v818 = vadd.f32 %v328, %v748
      %v819 = vadd.f32 %v329, %v753
      %v820 = vadd.f32 %v330, %v756
      %v821 = vadd.f32 %v331, %v761
      %v822 = vadd.f32 %v332, %v764
      %v823 = vadd.f32 %v333, %v769
      %v824 = vadd.f32 %v334, %v772
      %v825 = vadd.f32 %v335, %v777
      %v826 = vadd.f32 %v336, %v780
      %v827 = vadd.f32 %v337, %v785
      %v828 = vadd.f32 %v338, %v788
      %v829 = vadd.f32 %v339, %v793
      %v830 = vadd.f32 %v340, %v796
      %vm831 = vcmask 31744
      %832 = vst.msk [vmem:[#allocation2] sm:$0xff] %vm831, %v799
      %833 = vst.msk [vmem:[#allocation2 + $0x8] sm:$0xff] %vm831, %v800
      %834 = vst.msk [vmem:[#allocation2 + $0x10] sm:$0xff] %vm831, %v801
      %835 = vst.msk [vmem:[#allocation2 + $0x18] sm:$0xff] %vm831, %v802
      %836 = vst.msk [vmem:[#allocation2 + $0x20] sm:$0xff] %vm831, %v803
      %837 = vst.msk [vmem:[#allocation2 + $0x28] sm:$0xff] %vm831, %v804
      %838 = vst.msk [vmem:[#allocation2 + $0x30] sm:$0xff] %vm831, %v805
      %839 = vst.msk [vmem:[#allocation2 + $0x38] sm:$0xff] %vm831, %v806
      %840 = vst.msk [vmem:[#allocation2 + $0x40] sm:$0xff] %vm831, %v807
      %841 = vst.msk [vmem:[#allocation2 + $0x48] sm:$0xff] %vm831, %v808
      %842 = vst.msk [vmem:[#allocation2 + $0x50] sm:$0xff] %vm831, %v809
      %843 = vst.msk [vmem:[#allocation2 + $0x58] sm:$0xff] %vm831, %v810
      %844 = vst.msk [vmem:[#allocation2 + $0x60] sm:$0xff] %vm831, %v811
      %845 = vst.msk [vmem:[#allocation2 + $0x68] sm:$0xff] %vm831, %v812
      %846 = vst.msk [vmem:[#allocation2 + $0x70] sm:$0xff] %vm831, %v813
      %847 = vst.msk [vmem:[#allocation2 + $0x78] sm:$0xff] %vm831, %v814
      %848 = vst.msk [vmem:[#allocation2 + $0x80] sm:$0xff] %vm831, %v815
      %849 = vst.msk [vmem:[#allocation2 + $0x88] sm:$0xff] %vm831, %v816
      %850 = vst.msk [vmem:[#allocation2 + $0x90] sm:$0xff] %vm831, %v817
      %851 = vst.msk [vmem:[#allocation2 + $0x98] sm:$0xff] %vm831, %v818
      %852 = vst.msk [vmem:[#allocation2 + $0xa0] sm:$0xff] %vm831, %v819
      %853 = vst.msk [vmem:[#allocation2 + $0xa8] sm:$0xff] %vm831, %v820
      %854 = vst.msk [vmem:[#allocation2 + $0xb0] sm:$0xff] %vm831, %v821
      %855 = vst.msk [vmem:[#allocation2 + $0xb8] sm:$0xff] %vm831, %v822
      %856 = vst.msk [vmem:[#allocation2 + $0xc0] sm:$0xff] %vm831, %v823
      %857 = vst.msk [vmem:[#allocation2 + $0xc8] sm:$0xff] %vm831, %v824
      %858 = vst.msk [vmem:[#allocation2 + $0xd0] sm:$0xff] %vm831, %v825
      %859 = vst.msk [vmem:[#allocation2 + $0xd8] sm:$0xff] %vm831, %v826
      %860 = vst.msk [vmem:[#allocation2 + $0xe0] sm:$0xff] %vm831, %v827
      %861 = vst.msk [vmem:[#allocation2 + $0xe8] sm:$0xff] %vm831, %v828
      %862 = vst.msk [vmem:[#allocation2 + $0xf0] sm:$0xff] %vm831, %v829
      %863 = vst.msk [vmem:[#allocation2 + $0xf8] sm:$0xff] %vm831, %v830
      // Predicated region
      $region33: #{dydensenet_forward.17} parent=27 // pred_check
        %p864 = pneg %p272
      $region34: #{dydensenet_forward.17} parent=27 // pred_check_branch
        %866 = sbr.rel (%p864) target = $region36
      $region35: #{dydensenet_forward.17} parent=27 // pred_region
        %v867 = vld [vmem:[#allocation2] sm:$0xff]
        %v868 = vld [vmem:[#allocation2 + $0x8] sm:$0xff]
        %v869 = vld [vmem:[#allocation2 + $0x10] sm:$0xff]
        %v870 = vld [vmem:[#allocation2 + $0x18] sm:$0xff]
        %v871 = vld [vmem:[#allocation2 + $0x20] sm:$0xff]
        %v872 = vld [vmem:[#allocation2 + $0x28] sm:$0xff]
        %v873 = vld [vmem:[#allocation2 + $0x30] sm:$0xff]
        %v874 = vld [vmem:[#allocation2 + $0x38] sm:$0xff]
        %v875 = vld [vmem:[#allocation2 + $0x40] sm:$0xff]
        %v876 = vld [vmem:[#allocation2 + $0x48] sm:$0xff]
        %v877 = vld [vmem:[#allocation2 + $0x50] sm:$0xff]
        %v878 = vld [vmem:[#allocation2 + $0x58] sm:$0xff]
        %v879 = vld [vmem:[#allocation2 + $0x60] sm:$0xff]
        %v880 = vld [vmem:[#allocation2 + $0x68] sm:$0xff]
        %v881 = vld [vmem:[#allocation2 + $0x70] sm:$0xff]
        %v882 = vld [vmem:[#allocation2 + $0x78] sm:$0xff]
        %v883 = vld [vmem:[#allocation2 + $0x80] sm:$0xff]
        %v884 = vld [vmem:[#allocation2 + $0x88] sm:$0xff]
        %v885 = vld [vmem:[#allocation2 + $0x90] sm:$0xff]
        %v886 = vld [vmem:[#allocation2 + $0x98] sm:$0xff]
        %v887 = vld [vmem:[#allocation2 + $0xa0] sm:$0xff]
        %v888 = vld [vmem:[#allocation2 + $0xa8] sm:$0xff]
        %v889 = vld [vmem:[#allocation2 + $0xb0] sm:$0xff]
        %v890 = vld [vmem:[#allocation2 + $0xb8] sm:$0xff]
        %v891 = vld [vmem:[#allocation2 + $0xc0] sm:$0xff]
        %v892 = vld [vmem:[#allocation2 + $0xc8] sm:$0xff]
        %v893 = vld [vmem:[#allocation2 + $0xd0] sm:$0xff]
        %v894 = vld [vmem:[#allocation2 + $0xd8] sm:$0xff]
        %v895 = vld [vmem:[#allocation2 + $0xe0] sm:$0xff]
        %v896 = vld [vmem:[#allocation2 + $0xe8] sm:$0xff]
        %v897 = vld [vmem:[#allocation2 + $0xf0] sm:$0xff]
        %v898 = vld [vmem:[#allocation2 + $0xf8] sm:$0xff]
        %v899 = vpack.c.bf16 %v868, %v867
        %v900 = vpack.c.bf16 %v870, %v869
        %v901 = vpack.c.bf16 %v872, %v871
        %v902 = vpack.c.bf16 %v874, %v873
        %v903 = vpack.c.bf16 %v876, %v875
        %v904 = vpack.c.bf16 %v878, %v877
        %v905 = vpack.c.bf16 %v880, %v879
        %v906 = vpack.c.bf16 %v882, %v881
        %v907 = vpack.c.bf16 %v884, %v883
        %v908 = vpack.c.bf16 %v886, %v885
        %v909 = vpack.c.bf16 %v888, %v887
        %v910 = vpack.c.bf16 %v890, %v889
        %v911 = vpack.c.bf16 %v892, %v891
        %v912 = vpack.c.bf16 %v894, %v893
        %v913 = vpack.c.bf16 %v896, %v895
        %v914 = vpack.c.bf16 %v898, %v897
        %v931 = vunpack.c.l.b16 %v899
        %v932 = vunpack.c.h.b16 %v899
        %v933 = vunpack.c.l.b16 %v900
        %v934 = vunpack.c.h.b16 %v900
        %v935 = vunpack.c.l.b16 %v901
        %v936 = vunpack.c.h.b16 %v901
        %v937 = vunpack.c.l.b16 %v902
        %v938 = vunpack.c.h.b16 %v902
        %v939 = vunpack.c.l.b16 %v903
        %v940 = vunpack.c.h.b16 %v903
        %v941 = vunpack.c.l.b16 %v904
        %v942 = vunpack.c.h.b16 %v904
        %v943 = vunpack.c.l.b16 %v905
        %v944 = vunpack.c.h.b16 %v905
        %v945 = vunpack.c.l.b16 %v906
        %v946 = vunpack.c.h.b16 %v906
        %v947 = vunpack.c.l.b16 %v907
        %v948 = vunpack.c.h.b16 %v907
        %v949 = vunpack.c.l.b16 %v908
        %v950 = vunpack.c.h.b16 %v908
        %v951 = vunpack.c.l.b16 %v909
        %v952 = vunpack.c.h.b16 %v909
        %v953 = vunpack.c.l.b16 %v910
        %v954 = vunpack.c.h.b16 %v910
        %v955 = vunpack.c.l.b16 %v911
        %v956 = vunpack.c.h.b16 %v911
        %v957 = vunpack.c.l.b16 %v912
        %v958 = vunpack.c.h.b16 %v912
        %v959 = vunpack.c.l.b16 %v913
        %v960 = vunpack.c.h.b16 %v913
        %v961 = vunpack.c.l.b16 %v914
        %v962 = vunpack.c.h.b16 %v914
        %v963 = vpack.c.b16 %v931, %v931
        %v964 = vpack.c.b16 %v932, %v932
        %v965 = vpack.c.b16 %v933, %v933
        %v966 = vpack.c.b16 %v934, %v934
        %v967 = vpack.c.b16 %v935, %v935
        %v968 = vpack.c.b16 %v936, %v936
        %v969 = vpack.c.b16 %v937, %v937
        %v970 = vpack.c.b16 %v938, %v938
        %v971 = vpack.c.b16 %v939, %v939
        %v972 = vpack.c.b16 %v940, %v940
        %v973 = vpack.c.b16 %v941, %v941
        %v974 = vpack.c.b16 %v942, %v942
        %v975 = vpack.c.b16 %v943, %v943
        %v976 = vpack.c.b16 %v944, %v944
        %v977 = vpack.c.b16 %v945, %v945
        %v978 = vpack.c.b16 %v946, %v946
        %v979 = vpack.c.b16 %v947, %v947
        %v980 = vpack.c.b16 %v948, %v948
        %v981 = vpack.c.b16 %v949, %v949
        %v982 = vpack.c.b16 %v950, %v950
        %v983 = vpack.c.b16 %v951, %v951
        %v984 = vpack.c.b16 %v952, %v952
        %v985 = vpack.c.b16 %v953, %v953
        %v986 = vpack.c.b16 %v954, %v954
        %v987 = vpack.c.b16 %v955, %v955
        %v988 = vpack.c.b16 %v956, %v956
        %v989 = vpack.c.b16 %v957, %v957
        %v990 = vpack.c.b16 %v958, %v958
        %v991 = vpack.c.b16 %v959, %v959
        %v992 = vpack.c.b16 %v960, %v960
        %v993 = vpack.c.b16 %v961, %v961
        %v994 = vpack.c.b16 %v962, %v962
        %vm1027 = vcmask 27648
        %1028 = vst.msk [vmem:[%s269] sm:$0xf] %vm1027, %v963
        %1029 = vst.msk [vmem:[%s269 + $0x4] sm:$0xf] %vm1027, %v964
        %1030 = vst.msk [vmem:[%s269 + $0x8] sm:$0xf] %vm1027, %v965
        %1031 = vst.msk [vmem:[%s269 + $0xc] sm:$0xf] %vm1027, %v966
        %1032 = vst.msk [vmem:[%s269 + $0x10] sm:$0xf] %vm1027, %v967
        %1033 = vst.msk [vmem:[%s269 + $0x14] sm:$0xf] %vm1027, %v968
        %1034 = vst.msk [vmem:[%s269 + $0x18] sm:$0xf] %vm1027, %v969
        %1035 = vst.msk [vmem:[%s269 + $0x1c] sm:$0xf] %vm1027, %v970
        %1036 = vst.msk [vmem:[%s269 + $0x20] sm:$0xf] %vm1027, %v971
        %1037 = vst.msk [vmem:[%s269 + $0x24] sm:$0xf] %vm1027, %v972
        %1038 = vst.msk [vmem:[%s269 + $0x28] sm:$0xf] %vm1027, %v973
        %1039 = vst.msk [vmem:[%s269 + $0x2c] sm:$0xf] %vm1027, %v974
        %1040 = vst.msk [vmem:[%s269 + $0x30] sm:$0xf] %vm1027, %v975
        %1041 = vst.msk [vmem:[%s269 + $0x34] sm:$0xf] %vm1027, %v976
        %1042 = vst.msk [vmem:[%s269 + $0x38] sm:$0xf] %vm1027, %v977
        %1043 = vst.msk [vmem:[%s269 + $0x3c] sm:$0xf] %vm1027, %v978
        %1044 = vst.msk [vmem:[%s269 + $0x40] sm:$0xf] %vm1027, %v979
        %1045 = vst.msk [vmem:[%s269 + $0x44] sm:$0xf] %vm1027, %v980
        %1046 = vst.msk [vmem:[%s269 + $0x48] sm:$0xf] %vm1027, %v981
        %1047 = vst.msk [vmem:[%s269 + $0x4c] sm:$0xf] %vm1027, %v982
        %1048 = vst.msk [vmem:[%s269 + $0x50] sm:$0xf] %vm1027, %v983
        %1049 = vst.msk [vmem:[%s269 + $0x54] sm:$0xf] %vm1027, %v984
        %1050 = vst.msk [vmem:[%s269 + $0x58] sm:$0xf] %vm1027, %v985
        %1051 = vst.msk [vmem:[%s269 + $0x5c] sm:$0xf] %vm1027, %v986
        %1052 = vst.msk [vmem:[%s269 + $0x60] sm:$0xf] %vm1027, %v987
        %1053 = vst.msk [vmem:[%s269 + $0x64] sm:$0xf] %vm1027, %v988
        %1054 = vst.msk [vmem:[%s269 + $0x68] sm:$0xf] %vm1027, %v989
        %1055 = vst.msk [vmem:[%s269 + $0x6c] sm:$0xf] %vm1027, %v990
        %1056 = vst.msk [vmem:[%s269 + $0x70] sm:$0xf] %vm1027, %v991
        %1057 = vst.msk [vmem:[%s269 + $0x74] sm:$0xf] %vm1027, %v992
        %1058 = vst.msk [vmem:[%s269 + $0x78] sm:$0xf] %vm1027, %v993
        %1059 = vst.msk [vmem:[%s269 + $0x7c] sm:$0xf] %vm1027, %v994
      $region36: #{dydensenet_forward.17} parent=27 // pred_fallthru
        _
      %s1060 = smul.u32 32, %s20
      %p1061 = scmp.lt.s32.totalorder %s19, 1
      %s1062 = scalar_select %p1061, %s19, 1
      %p1063 = scmp.lt.s32.totalorder %s1060, 31
      %s1064 = scalar_select %p1063, %s1060, 31
      %p1065 = scmp.lt.s32.totalorder %s21, 0
      %s1066 = scalar_select %p1065, %s21, 0
      %s1067 = sadd.s32 %s1066, %s1064
      %s1068 = smul.addr %s1062, 32
      %s1069 = sadd.s32 %s1067, %s1068
      %s1070 = smul.addr %s1069, 4
      %s1071 = scalar_lea.vmem %s2, %s1070
      // Predicated region
      $region37: #{dydensenet_forward.17} parent=27 // pred_check
        %p1072 = pneg %p121
      $region38: #{dydensenet_forward.17} parent=27 // pred_check_branch
        %1074 = sbr.rel (%p1072) target = $region40
      $region39: #{dydensenet_forward.17} parent=27 // pred_region
        %s1075 = smul.u32 32, %s20
      $region40: #{dydensenet_forward.17} parent=27 // pred_fallthru
        _
    $region28: #{dydensenet_forward.17} parent=5 // pred_fallthru
      _
    %p1076 = scmp.le.s32.totalorder 2, %s8
    // Predicated region
    $region41: #{dydensenet_forward.17} parent=5 // pred_check
      %p1077 = pneg %p1076
    $region42: #{dydensenet_forward.17} parent=5 // pred_check_branch
      %1079 = sbr.rel (%p1077) target = $region44
    $region43: #{dydensenet_forward.17} parent=5 // pred_region
      %s1080 = ssub.s32 %s8, 2
      // Predicated region
      $region45: #{dydensenet_forward.17} parent=43 // pred_check
        %p1081 = pneg %p127
      $region46: #{dydensenet_forward.17} parent=43 // pred_check_branch
        %1083 = sbr.rel (%p1081) target = $region48
      $region47: #{dydensenet_forward.17} parent=43 // pred_region
        %s1084 = smul.u32 32, %s24
        %p1085 = scmp.lt.s32.totalorder %s23, 1
        %s1086 = scalar_select %p1085, %s23, 1
        %p1087 = scmp.lt.s32.totalorder %s1084, 31
        %s1088 = scalar_select %p1087, %s1084, 31
        %p1089 = scmp.lt.s32.totalorder %s25, 0
        %s1090 = scalar_select %p1089, %s25, 0
        %s1091 = sadd.s32 %s1090, %s1088
        %s1092 = smul.addr %s1086, 32
        %s1093 = sadd.s32 %s1091, %s1092
        %s1094 = smul.addr %s1093, 4
        %s1095 = scalar_lea.vmem %s2, %s1094
      $region48: #{dydensenet_forward.17} parent=43 // pred_fallthru
        _
    $region44: #{dydensenet_forward.17} parent=5 // pred_fallthru
      _
  $region6: #{dydensenet_forward.17} parent=0 // loop_footer
    %s12 = sadd.s32 1, %s8
  $region7: #{dydensenet_forward.17} parent=0 // loop_footer_branch
    %7 = sbr.rel target = $region3
  $region8: #{dydensenet_forward.17} parent=0 // loop_exit
    _

// kernel: dydensenet_forward.18
$region0: #{dydensenet_forward.18}
  #allocation0 [shape = 'u32[]', space=smem, size = 0x4, offset = 0x4, fixed_abs, tag = 'smem constant byte address 0x4 - core index']
  #allocation1 [shape = 'u32[144,128]{1,0:T(1,128)}', space=vmem, size = 0x12000, scoped, tag = 'internal scratch']
  #allocation2 [shape = 'f32[1,12]{1,0:T(1,128)}', space=vmem, size = 0x200, scoped, tag = 'scratch operand']
  %s0 = inlined_call_operand.vmem [shape: bf16[2,256,12], index: 0, kind: input, shape index: {}]
  %s1 = inlined_call_operand.vmem [shape: f32[1,1,12], index: 1, kind: input, shape index: {}]
  %s2 = inlined_call_operand.vmem [shape: f32[1,1,12], index: 2, kind: input, shape index: {}]
  %s3 = inlined_call_operand.vmem [shape: bf16[2,256,12], index: 3, kind: output, shape index: {0}]
  %s4 = inlined_call_operand.vmem [shape: f32[2,1,12], index: 4, kind: output, shape index: {1}]
  %5 = xla_tuple %s3, %s4
  %s6 = sld [smem:[#allocation0]]
  $region61: #{dydensenet_forward.18} parent=0
    _
  %s8 = ssub.s32 1, %s6
  %s9 = scalar_select 0, %s8, %s6
  loop: start=0, step=1, limit=4
  $region2: #{dydensenet_forward.18} parent=0 // loop_pre_header
    _
  $region3: #{dydensenet_forward.18} parent=0 // loop_header
    %s11 = sphi 0, %s15
    %p12 = scmp.ge.s32.totalorder %s11, 4
    %s18 = sphi 0, %s30
    %s19 = sphi 0, %s26
    %s20 = sphi 0, %s18
    %s21 = sphi 0, %s19
    %s22 = sphi 0, %s20
    %s23 = sphi 0, %s21
    %s35 = sphi 0, %s37
    %s38 = sphi 0, %s35
    %s39 = sphi 0, %s38
    %s55 = sphi 0, %s39
    %s59 = sphi 0, %s59
    %s61 = sphi 0, %s59
    %s62 = sphi 0, %s61
    %s76 = sphi 0, %s62
    %s80 = sphi 0, %s80
    %s82 = sphi 0, %s80
    %s83 = sphi 0, %s82
    %s97 = sphi 0, %s83
    %s105 = sphi 0, %s107
    %s108 = sphi 0, %s105
    %s109 = sphi 0, %s108
    %s125 = sphi 0, %s109
    %s131 = sphi 0, %s133
    %s134 = sphi 0, %s131
    %s135 = sphi 0, %s134
    %s151 = sphi 0, %s135
  $region4: #{dydensenet_forward.18} parent=0 // loop_header_branch
    %14 = sbr.rel (%p12) target = $region8
  $region5: #{dydensenet_forward.18} parent=0 // loop_body
    %s16 = ssub.s32 %s11, 1
    %s17 = ssub.s32 %s11, 2
    %s24 = sadd.s32 1, %s19
    %p25 = scmp.ge.s32.totalorder %s24, 1
    %s26 = scalar_select %p25, 0, %s24
    %s27 = sadd.s32 1, %s18
    %s28 = scalar_select %p25, %s27, %s18
    %p29 = scmp.ge.s32.totalorder %s28, 2
    %s30 = scalar_select %p29, 0, %s28
    %s31 = ssub.s32 %s18, %s30
    %s32 = ssub.s32 %s19, %s26
    %s33 = sor.u32 %s31, %s32
    %p34 = scmp.eq.s32.totalorder %s33, 0
    %s36 = sadd.s32 %s35, 1
    %s37 = scalar_select %p34, %s35, %s36
    %p40 = pneg %p34
    %p41 = scmp.eq.s32.totalorder %s11, 1
    %p42 = por %p40, %p41
    %p43 = scmp.ne.s32.totalorder %s35, %s38
    %p44 = scmp.eq.s32.totalorder %s11, 0
    %p45 = por %p43, %p44
    %p46 = scmp.ne.s32.totalorder %s35, %s38
    %p47 = scmp.eq.s32.totalorder %s16, 1
    %p48 = por %p46, %p47
    %p49 = scmp.ne.s32.totalorder %s38, %s39
    %p50 = scmp.eq.s32.totalorder %s16, 0
    %p51 = por %p49, %p50
    %p52 = scmp.ne.s32.totalorder %s38, %s39
    %p53 = scmp.eq.s32.totalorder %s17, 1
    %p54 = por %p52, %p53
    %p56 = scmp.ne.s32.totalorder %s39, %s55
    %p57 = scmp.eq.s32.totalorder %s17, 0
    %p58 = por %p56, %p57
    %s60 = sadd.s32 %s59, 1
    %p63 = scmp.eq.s32.totalorder %s11, 1
    %p64 = scmp.ne.s32.totalorder %s59, %s61
    %p65 = scmp.eq.s32.totalorder %s11, 0
    %p66 = por %p64, %p65
    %p67 = scmp.ne.s32.totalorder %s59, %s61
    %p68 = scmp.eq.s32.totalorder %s16, 1
    %p69 = por %p67, %p68
    %p70 = scmp.ne.s32.totalorder %s61, %s62
    %p71 = scmp.eq.s32.totalorder %s16, 0
    %p72 = por %p70, %p71
    %p73 = scmp.ne.s32.totalorder %s61, %s62
    %p74 = scmp.eq.s32.totalorder %s17, 1
    %p75 = por %p73, %p74
    %p77 = scmp.ne.s32.totalorder %s62, %s76
    %p78 = scmp.eq.s32.totalorder %s17, 0
    %p79 = por %p77, %p78
    %s81 = sadd.s32 %s80, 1
    %p84 = scmp.eq.s32.totalorder %s11, 1
    %p85 = scmp.ne.s32.totalorder %s80, %s82
    %p86 = scmp.eq.s32.totalorder %s11, 0
    %p87 = por %p85, %p86
    %p88 = scmp.ne.s32.totalorder %s80, %s82
    %p89 = scmp.eq.s32.totalorder %s16, 1
    %p90 = por %p88, %p89
    %p91 = scmp.ne.s32.totalorder %s82, %s83
    %p92 = scmp.eq.s32.totalorder %s16, 0
    %p93 = por %p91, %p92
    %p94 = scmp.ne.s32.totalorder %s82, %s83
    %p95 = scmp.eq.s32.totalorder %s17, 1
    %p96 = por %p94, %p95
    %p98 = scmp.ne.s32.totalorder %s83, %s97
    %p99 = scmp.eq.s32.totalorder %s17, 0
    %p100 = por %p98, %p99
    %s101 = ssub.s32 %s18, %s30
    %s102 = ssub.s32 %s19, %s26
    %s103 = sor.u32 %s101, %s102
    %p104 = scmp.eq.s32.totalorder %s103, 0
    %s106 = sadd.s32 %s105, 1
    %s107 = scalar_select %p104, %s105, %s106
    %p110 = pneg %p104
    %p111 = scmp.eq.s32.totalorder %s11, 1
    %p112 = por %p110, %p111
    %p113 = scmp.ne.s32.totalorder %s105, %s108
    %p114 = scmp.eq.s32.totalorder %s11, 0
    %p115 = por %p113, %p114
    %p116 = scmp.ne.s32.totalorder %s105, %s108
    %p117 = scmp.eq.s32.totalorder %s16, 1
    %p118 = por %p116, %p117
    %p119 = scmp.ne.s32.totalorder %s108, %s109
    %p120 = scmp.eq.s32.totalorder %s16, 0
    %p121 = por %p119, %p120
    %p122 = scmp.ne.s32.totalorder %s108, %s109
    %p123 = scmp.eq.s32.totalorder %s17, 1
    %p124 = por %p122, %p123
    %p126 = scmp.ne.s32.totalorder %s109, %s125
    %p127 = scmp.eq.s32.totalorder %s17, 0
    %p128 = por %p126, %p127
    %s129 = ssub.s32 %s18, %s30
    %p130 = scmp.eq.s32.totalorder %s129, 0
    %s132 = sadd.s32 %s131, 1
    %s133 = scalar_select %p130, %s131, %s132
    %p136 = pneg %p130
    %p137 = scmp.eq.s32.totalorder %s11, 1
    %p138 = por %p136, %p137
    %p139 = scmp.ne.s32.totalorder %s131, %s134
    %p140 = scmp.eq.s32.totalorder %s11, 0
    %p141 = por %p139, %p140
    %p142 = scmp.ne.s32.totalorder %s131, %s134
    %p143 = scmp.eq.s32.totalorder %s16, 1
    %p144 = por %p142, %p143
    %p145 = scmp.ne.s32.totalorder %s134, %s135
    %p146 = scmp.eq.s32.totalorder %s16, 0
    %p147 = por %p145, %p146
    %p148 = scmp.ne.s32.totalorder %s134, %s135
    %p149 = scmp.eq.s32.totalorder %s17, 1
    %p150 = por %p148, %p149
    %p152 = scmp.ne.s32.totalorder %s135, %s151
    %p153 = scmp.eq.s32.totalorder %s17, 0
    %p154 = por %p152, %p153
    %p155 = scmp.le.s32.totalorder 1, %s11
    %p156 = scmp.lt.s32.totalorder %s11, 3
    %p157 = pnand %p155, %p156
    %p158 = pneg %p157
    // Predicated region
    $region9: #{dydensenet_forward.18} parent=5 // pred_check
      _
    $region10: #{dydensenet_forward.18} parent=5 // pred_check_branch
      %160 = sbr.rel (%p157) target = $region12
    $region11: #{dydensenet_forward.18} parent=5 // pred_region
      %s161 = ssub.s32 %s11, 1
      // Predicated region
      $region13: #{dydensenet_forward.18} parent=11 // pred_check
        %p162 = pneg %p72
      $region14: #{dydensenet_forward.18} parent=11 // pred_check_branch
        %164 = sbr.rel (%p162) target = $region16
      $region15: #{dydensenet_forward.18} parent=11 // pred_region
        _
      $region16: #{dydensenet_forward.18} parent=11 // pred_fallthru
        _
      // Predicated region
      $region17: #{dydensenet_forward.18} parent=11 // pred_check
        %p165 = pneg %p93
      $region18: #{dydensenet_forward.18} parent=11 // pred_check_branch
        %167 = sbr.rel (%p165) target = $region20
      $region19: #{dydensenet_forward.18} parent=11 // pred_region
        _
      $region20: #{dydensenet_forward.18} parent=11 // pred_fallthru
        _
    $region12: #{dydensenet_forward.18} parent=5 // pred_fallthru
      _
    %p168 = scmp.lt.s32.totalorder %s11, 2
    // Predicated region
    $region21: #{dydensenet_forward.18} parent=5 // pred_check
      %p169 = pneg %p168
    $region22: #{dydensenet_forward.18} parent=5 // pred_check_branch
      %171 = sbr.rel (%p169) target = $region24
    $region23: #{dydensenet_forward.18} parent=5 // pred_region
      // Predicated region
      $region25: #{dydensenet_forward.18} parent=23 // pred_check
        %p172 = pneg %p45
      $region26: #{dydensenet_forward.18} parent=23 // pred_check_branch
        %174 = sbr.rel (%p172) target = $region28
      $region27: #{dydensenet_forward.18} parent=23 // pred_region
        %s175 = smul.u32 32, %s19
        %p176 = scmp.lt.s32.totalorder %s18, 1
        %s177 = scalar_select %p176, %s18, 1
        %p178 = scmp.lt.s32.totalorder %s175, 31
        %s179 = scalar_select %p178, %s175, 31
        %s180 = smul.addr %s177, 32
        %s181 = sadd.s32 %s179, %s180
        %s182 = smul.addr %s181, 4
        %s183 = scalar_lea.vmem %s0, %s182
        %s184 = smul.u32 32, %s19
      $region28: #{dydensenet_forward.18} parent=23 // pred_fallthru
        _
    $region24: #{dydensenet_forward.18} parent=5 // pred_fallthru
      _
    %p185 = scmp.le.s32.totalorder 1, %s11
    %p186 = scmp.lt.s32.totalorder %s11, 3
    %p187 = pnand %p185, %p186
    %p188 = pneg %p187
    // Predicated region
    $region29: #{dydensenet_forward.18} parent=5 // pred_check
      _
    $region30: #{dydensenet_forward.18} parent=5 // pred_check_branch
      %190 = sbr.rel (%p187) target = $region32
    $region31: #{dydensenet_forward.18} parent=5 // pred_region
      %s191 = ssub.s32 %s11, 1
      %s192 = smul.u32 32, %s21
      %p193 = scmp.lt.s32.totalorder %s20, 1
      %s194 = scalar_select %p193, %s20, 1
      %p195 = scmp.lt.s32.totalorder %s192, 31
      %s196 = scalar_select %p195, %s192, 31
      %s197 = smul.addr %s194, 32
      %s198 = sadd.s32 %s196, %s197
      %s199 = smul.addr %s198, 4
      %s200 = scalar_lea.vmem %s0, %s199
      %p201 = pneg %p51
      %p202 = pneg %p48
      %p203 = pneg %p72
      %p204 = pneg %p69
      %p205 = pneg %p93
      %p206 = pneg %p90
      %p207 = pneg %p121
      %p208 = pneg %p118
      %s209 = smul.u32 32, %s21
      %p210 = scmp.lt.s32.totalorder %s20, 1
      %s211 = scalar_select %p210, %s20, 1
      %p212 = scmp.lt.s32.totalorder %s209, 31
      %s213 = scalar_select %p212, %s209, 31
      %s214 = smul.addr %s211, 32
      %s215 = sadd.s32 %s213, %s214
      %s216 = smul.addr %s215, 4
      %s217 = scalar_lea.vmem %s3, %s216
      %p218 = pneg %p147
      %p219 = pneg %p144
      %p220 = scmp.lt.s32.totalorder %s20, 1
      %s221 = scalar_select %p220, %s20, 1
      %s222 = scalar_lea.vmem %s4, %s221
      %s223 = smul.u32 32, %s21
      %p224 = scmp.lt.s32.totalorder %s20, 1
      %s225 = scalar_select %p224, %s20, 1
      %p226 = scmp.lt.s32.totalorder %s223, 31
      %s227 = scalar_select %p226, %s223, 31
      %s228 = smul.addr %s225, 32
      %s229 = sadd.s32 %s227, %s228
      %s230 = smul.addr %s229, 4
      %s231 = scalar_lea.vmem %s0, %s230
      %s232 = smul.u32 32, %s21
      %s233 = smul.u32 32, %s21
      %p234 = scmp.lt.s32.totalorder %s20, 1
      %s235 = scalar_select %p234, %s20, 1
      %p236 = scmp.lt.s32.totalorder %s233, 31
      %s237 = scalar_select %p236, %s233, 31
      %s238 = smul.addr %s235, 32
      %s239 = sadd.s32 %s237, %s238
      %s240 = smul.addr %s239, 4
      %s241 = scalar_lea.vmem %s3, %s240
      %s242 = smul.u32 32, %s21
      %p243 = scmp.lt.s32.totalorder %s20, 1
      %s244 = scalar_select %p243, %s20, 1
      %s245 = scalar_lea.vmem %s4, %s244
      %p246 = scmp.eq.s32.totalorder %s21, 0
      // Predicated region
      $region33: #{dydensenet_forward.18} parent=31 // pred_check
        %p247 = pneg %p246
      $region34: #{dydensenet_forward.18} parent=31 // pred_check_branch
        %249 = sbr.rel (%p247) target = $region36
      $region35: #{dydensenet_forward.18} parent=31 // pred_region
        %vm250 = vcmask 90112
        %251 = vst.msk [vmem:[#allocation2] sm:$0x1] %vm250, 0.0
      $region36: #{dydensenet_forward.18} parent=31 // pred_fallthru
        _
      %v252 = vld [vmem:[%s231] sm:$0xf]
      %v253 = vld [vmem:[%s231 + $0x4] sm:$0xf]
      %v254 = vld [vmem:[%s231 + $0x8] sm:$0xf]
      %v255 = vld [vmem:[%s231 + $0xc] sm:$0xf]
      %v256 = vld [vmem:[%s231 + $0x10] sm:$0xf]
      %v257 = vld [vmem:[%s231 + $0x14] sm:$0xf]
      %v258 = vld [vmem:[%s231 + $0x18] sm:$0xf]
      %v259 = vld [vmem:[%s231 + $0x1c] sm:$0xf]
      %v260 = vld [vmem:[%s231 + $0x20] sm:$0xf]
      %v261 = vld [vmem:[%s231 + $0x24] sm:$0xf]
      %v262 = vld [vmem:[%s231 + $0x28] sm:$0xf]
      %v263 = vld [vmem:[%s231 + $0x2c] sm:$0xf]
      %v264 = vld [vmem:[%s231 + $0x30] sm:$0xf]
      %v265 = vld [vmem:[%s231 + $0x34] sm:$0xf]
      %v266 = vld [vmem:[%s231 + $0x38] sm:$0xf]
      %v267 = vld [vmem:[%s231 + $0x3c] sm:$0xf]
      %v268 = vld [vmem:[%s231 + $0x40] sm:$0xf]
      %v269 = vld [vmem:[%s231 + $0x44] sm:$0xf]
      %v270 = vld [vmem:[%s231 + $0x48] sm:$0xf]
      %v271 = vld [vmem:[%s231 + $0x4c] sm:$0xf]
      %v272 = vld [vmem:[%s231 + $0x50] sm:$0xf]
      %v273 = vld [vmem:[%s231 + $0x54] sm:$0xf]
      %v274 = vld [vmem:[%s231 + $0x58] sm:$0xf]
      %v275 = vld [vmem:[%s231 + $0x5c] sm:$0xf]
      %v276 = vld [vmem:[%s231 + $0x60] sm:$0xf]
      %v277 = vld [vmem:[%s231 + $0x64] sm:$0xf]
      %v278 = vld [vmem:[%s231 + $0x68] sm:$0xf]
      %v279 = vld [vmem:[%s231 + $0x6c] sm:$0xf]
      %v280 = vld [vmem:[%s231 + $0x70] sm:$0xf]
      %v281 = vld [vmem:[%s231 + $0x74] sm:$0xf]
      %v282 = vld [vmem:[%s231 + $0x78] sm:$0xf]
      %v283 = vld [vmem:[%s231 + $0x7c] sm:$0xf]
      %v284 = vunpack.c.l.bf16 %v252
      %v285 = vunpack.c.l.bf16 %v253
      %v286 = vunpack.c.l.bf16 %v254
      %v287 = vunpack.c.l.bf16 %v255
      %v288 = vunpack.c.l.bf16 %v256
      %v289 = vunpack.c.l.bf16 %v257
      %v290 = vunpack.c.l.bf16 %v258
      %v291 = vunpack.c.l.bf16 %v259
      %v292 = vunpack.c.l.bf16 %v260
      %v293 = vunpack.c.l.bf16 %v261
      %v294 = vunpack.c.l.bf16 %v262
      %v295 = vunpack.c.l.bf16 %v263
      %v296 = vunpack.c.l.bf16 %v264
      %v297 = vunpack.c.l.bf16 %v265
      %v298 = vunpack.c.l.bf16 %v266
      %v299 = vunpack.c.l.bf16 %v267
      %v300 = vunpack.c.l.bf16 %v268
      %v301 = vunpack.c.l.bf16 %v269
      %v302 = vunpack.c.l.bf16 %v270
      %v303 = vunpack.c.l.bf16 %v271
      %v304 = vunpack.c.l.bf16 %v272
      %v305 = vunpack.c.l.bf16 %v273
      %v306 = vunpack.c.l.bf16 %v274
      %v307 = vunpack.c.l.bf16 %v275
      %v308 = vunpack.c.l.bf16 %v276
      %v309 = vunpack.c.l.bf16 %v277
      %v310 = vunpack.c.l.bf16 %v278
      %v311 = vunpack.c.l.bf16 %v279
      %v312 = vunpack.c.l.bf16 %v280
      %v313 = vunpack.c.l.bf16 %v281
      %v314 = vunpack.c.l.bf16 %v282
      %v315 = vunpack.c.l.bf16 %v283
      %v316 = vld [vmem:[%s1] sm:$0x1]
      %v318 = vlaneseq
      %v319 = vshrl.u32 %v318, 7
      %v320 = vsub.s32 0, %v319
      %v321 = vrot.slane %v316, %v320
      %v323 = vmul.f32 %v284, %v321
      %v324 = vmul.f32 %v285, %v321
      %v325 = vmul.f32 %v286, %v321
      %v326 = vmul.f32 %v287, %v321
      %v327 = vmul.f32 %v288, %v321
      %v328 = vmul.f32 %v289, %v321
      %v329 = vmul.f32 %v290, %v321
      %v330 = vmul.f32 %v291, %v321
      %v331 = vmul.f32 %v292, %v321
      %v332 = vmul.f32 %v293, %v321
      %v333 = vmul.f32 %v294, %v321
      %v334 = vmul.f32 %v295, %v321
      %v335 = vmul.f32 %v296, %v321
      %v336 = vmul.f32 %v297, %v321
      %v337 = vmul.f32 %v298, %v321
      %v338 = vmul.f32 %v299, %v321
      %v339 = vmul.f32 %v300, %v321
      %v340 = vmul.f32 %v301, %v321
      %v341 = vmul.f32 %v302, %v321
      %v342 = vmul.f32 %v303, %v321
      %v343 = vmul.f32 %v304, %v321
      %v344 = vmul.f32 %v305, %v321
      %v345 = vmul.f32 %v306, %v321
      %v346 = vmul.f32 %v307, %v321
      %v347 = vmul.f32 %v308, %v321
      %v348 = vmul.f32 %v309, %v321
      %v349 = vmul.f32 %v310, %v321
      %v350 = vmul.f32 %v311, %v321
      %v351 = vmul.f32 %v312, %v321
      %v352 = vmul.f32 %v313, %v321
      %v353 = vmul.f32 %v314, %v321
      %v354 = vmul.f32 %v315, %v321
      %v355 = vld [vmem:[%s2] sm:$0x1]
      %v357 = vlaneseq
      %v358 = vshrl.u32 %v357, 7
      %v359 = vsub.s32 0, %v358
      %v360 = vrot.slane %v355, %v359
      %v362 = vadd.f32 %v323, %v360
      %v363 = vadd.f32 %v324, %v360
      %v364 = vadd.f32 %v325, %v360
      %v365 = vadd.f32 %v326, %v360
      %v366 = vadd.f32 %v327, %v360
      %v367 = vadd.f32 %v328, %v360
      %v368 = vadd.f32 %v329, %v360
      %v369 = vadd.f32 %v330, %v360
      %v370 = vadd.f32 %v331, %v360
      %v371 = vadd.f32 %v332, %v360
      %v372 = vadd.f32 %v333, %v360
      %v373 = vadd.f32 %v334, %v360
      %v374 = vadd.f32 %v335, %v360
      %v375 = vadd.f32 %v336, %v360
      %v376 = vadd.f32 %v337, %v360
      %v377 = vadd.f32 %v338, %v360
      %v378 = vadd.f32 %v339, %v360
      %v379 = vadd.f32 %v340, %v360
      %v380 = vadd.f32 %v341, %v360
      %v381 = vadd.f32 %v342, %v360
      %v382 = vadd.f32 %v343, %v360
      %v383 = vadd.f32 %v344, %v360
      %v384 = vadd.f32 %v345, %v360
      %v385 = vadd.f32 %v346, %v360
      %v386 = vadd.f32 %v347, %v360
      %v387 = vadd.f32 %v348, %v360
      %v388 = vadd.f32 %v349, %v360
      %v389 = vadd.f32 %v350, %v360
      %v390 = vadd.f32 %v351, %v360
      %v391 = vadd.f32 %v352, %v360
      %v392 = vadd.f32 %v353, %v360
      %v393 = vadd.f32 %v354, %v360
      %v394 = vmax.f32 %v362, 0.0
      %v395 = vmax.f32 %v363, 0.0
      %v396 = vmax.f32 %v364, 0.0
      %v397 = vmax.f32 %v365, 0.0
      %v398 = vmax.f32 %v366, 0.0
      %v399 = vmax.f32 %v367, 0.0
      %v400 = vmax.f32 %v368, 0.0
      %v401 = vmax.f32 %v369, 0.0
      %v402 = vmax.f32 %v370, 0.0
      %v403 = vmax.f32 %v371, 0.0
      %v404 = vmax.f32 %v372, 0.0
      %v405 = vmax.f32 %v373, 0.0
      %v406 = vmax.f32 %v374, 0.0
      %v407 = vmax.f32 %v375, 0.0
      %v408 = vmax.f32 %v376, 0.0
      %v409 = vmax.f32 %v377, 0.0
      %v410 = vmax.f32 %v378, 0.0
      %v411 = vmax.f32 %v379, 0.0
      %v412 = vmax.f32 %v380, 0.0
      %v413 = vmax.f32 %v381, 0.0
      %v414 = vmax.f32 %v382, 0.0
      %v415 = vmax.f32 %v383, 0.0
      %v416 = vmax.f32 %v384, 0.0
      %v417 = vmax.f32 %v385, 0.0
      %v418 = vmax.f32 %v386, 0.0
      %v419 = vmax.f32 %v387, 0.0
      %v420 = vmax.f32 %v388, 0.0
      %v421 = vmax.f32 %v389, 0.0
      %v422 = vmax.f32 %v390, 0.0
      %v423 = vmax.f32 %v391, 0.0
      %v424 = vmax.f32 %v392, 0.0
      %v425 = vmax.f32 %v393, 0.0
      %v426 = vpack.c.bf16 %v395, %v394
      %v427 = vpack.c.bf16 %v397, %v396
      %v428 = vpack.c.bf16 %v399, %v398
      %v429 = vpack.c.bf16 %v401, %v400
      %v430 = vpack.c.bf16 %v403, %v402
      %v431 = vpack.c.bf16 %v405, %v404
      %v432 = vpack.c.bf16 %v407, %v406
      %v433 = vpack.c.bf16 %v409, %v408
      %v434 = vpack.c.bf16 %v411, %v410
      %v435 = vpack.c.bf16 %v413, %v412
      %v436 = vpack.c.bf16 %v415, %v414
      %v437 = vpack.c.bf16 %v417, %v416
      %v438 = vpack.c.bf16 %v419, %v418
      %v439 = vpack.c.bf16 %v421, %v420
      %v440 = vpack.c.bf16 %v423, %v422
      %v441 = vpack.c.bf16 %v425, %v424
      %v458 = vunpack.c.l.b16 %v426
      %v459 = vunpack.c.h.b16 %v426
      %v460 = vunpack.c.l.b16 %v427
      %v461 = vunpack.c.h.b16 %v427
      %v462 = vunpack.c.l.b16 %v428
      %v463 = vunpack.c.h.b16 %v428
      %v464 = vunpack.c.l.b16 %v429
      %v465 = vunpack.c.h.b16 %v429
      %v466 = vunpack.c.l.b16 %v430
      %v467 = vunpack.c.h.b16 %v430
      %v468 = vunpack.c.l.b16 %v431
      %v469 = vunpack.c.h.b16 %v431
      %v470 = vunpack.c.l.b16 %v432
      %v471 = vunpack.c.h.b16 %v432
      %v472 = vunpack.c.l.b16 %v433
      %v473 = vunpack.c.h.b16 %v433
      %v474 = vunpack.c.l.b16 %v434
      %v475 = vunpack.c.h.b16 %v434
      %v476 = vunpack.c.l.b16 %v435
      %v477 = vunpack.c.h.b16 %v435
      %v478 = vunpack.c.l.b16 %v436
      %v479 = vunpack.c.h.b16 %v436
      %v480 = vunpack.c.l.b16 %v437
      %v481 = vunpack.c.h.b16 %v437
      %v482 = vunpack.c.l.b16 %v438
      %v483 = vunpack.c.h.b16 %v438
      %v484 = vunpack.c.l.b16 %v439
      %v485 = vunpack.c.h.b16 %v439
      %v486 = vunpack.c.l.b16 %v440
      %v487 = vunpack.c.h.b16 %v440
      %v488 = vunpack.c.l.b16 %v441
      %v489 = vunpack.c.h.b16 %v441
      %v490 = vpack.c.b16 %v458, %v458
      %v491 = vpack.c.b16 %v459, %v459
      %v492 = vpack.c.b16 %v460, %v460
      %v493 = vpack.c.b16 %v461, %v461
      %v494 = vpack.c.b16 %v462, %v462
      %v495 = vpack.c.b16 %v463, %v463
      %v496 = vpack.c.b16 %v464, %v464
      %v497 = vpack.c.b16 %v465, %v465
      %v498 = vpack.c.b16 %v466, %v466
      %v499 = vpack.c.b16 %v467, %v467
      %v500 = vpack.c.b16 %v468, %v468
      %v501 = vpack.c.b16 %v469, %v469
      %v502 = vpack.c.b16 %v470, %v470
      %v503 = vpack.c.b16 %v471, %v471
      %v504 = vpack.c.b16 %v472, %v472
      %v505 = vpack.c.b16 %v473, %v473
      %v506 = vpack.c.b16 %v474, %v474
      %v507 = vpack.c.b16 %v475, %v475
      %v508 = vpack.c.b16 %v476, %v476
      %v509 = vpack.c.b16 %v477, %v477
      %v510 = vpack.c.b16 %v478, %v478
      %v511 = vpack.c.b16 %v479, %v479
      %v512 = vpack.c.b16 %v480, %v480
      %v513 = vpack.c.b16 %v481, %v481
      %v514 = vpack.c.b16 %v482, %v482
      %v515 = vpack.c.b16 %v483, %v483
      %v516 = vpack.c.b16 %v484, %v484
      %v517 = vpack.c.b16 %v485, %v485
      %v518 = vpack.c.b16 %v486, %v486
      %v519 = vpack.c.b16 %v487, %v487
      %v520 = vpack.c.b16 %v488, %v488
      %v521 = vpack.c.b16 %v489, %v489
      %vm554 = vcmask 93184
      %555 = vst.msk [vmem:[%s241] sm:$0xf] %vm554, %v490
      %556 = vst.msk [vmem:[%s241 + $0x4] sm:$0xf] %vm554, %v491
      %557 = vst.msk [vmem:[%s241 + $0x8] sm:$0xf] %vm554, %v492
      %558 = vst.msk [vmem:[%s241 + $0xc] sm:$0xf] %vm554, %v493
      %559 = vst.msk [vmem:[%s241 + $0x10] sm:$0xf] %vm554, %v494
      %560 = vst.msk [vmem:[%s241 + $0x14] sm:$0xf] %vm554, %v495
      %561 = vst.msk [vmem:[%s241 + $0x18] sm:$0xf] %vm554, %v496
      %562 = vst.msk [vmem:[%s241 + $0x1c] sm:$0xf] %vm554, %v497
      %563 = vst.msk [vmem:[%s241 + $0x20] sm:$0xf] %vm554, %v498
      %564 = vst.msk [vmem:[%s241 + $0x24] sm:$0xf] %vm554, %v499
      %565 = vst.msk [vmem:[%s241 + $0x28] sm:$0xf] %vm554, %v500
      %566 = vst.msk [vmem:[%s241 + $0x2c] sm:$0xf] %vm554, %v501
      %567 = vst.msk [vmem:[%s241 + $0x30] sm:$0xf] %vm554, %v502
      %568 = vst.msk [vmem:[%s241 + $0x34] sm:$0xf] %vm554, %v503
      %569 = vst.msk [vmem:[%s241 + $0x38] sm:$0xf] %vm554, %v504
      %570 = vst.msk [vmem:[%s241 + $0x3c] sm:$0xf] %vm554, %v505
      %571 = vst.msk [vmem:[%s241 + $0x40] sm:$0xf] %vm554, %v506
      %572 = vst.msk [vmem:[%s241 + $0x44] sm:$0xf] %vm554, %v507
      %573 = vst.msk [vmem:[%s241 + $0x48] sm:$0xf] %vm554, %v508
      %574 = vst.msk [vmem:[%s241 + $0x4c] sm:$0xf] %vm554, %v509
      %575 = vst.msk [vmem:[%s241 + $0x50] sm:$0xf] %vm554, %v510
      %576 = vst.msk [vmem:[%s241 + $0x54] sm:$0xf] %vm554, %v511
      %577 = vst.msk [vmem:[%s241 + $0x58] sm:$0xf] %vm554, %v512
      %578 = vst.msk [vmem:[%s241 + $0x5c] sm:$0xf] %vm554, %v513
      %579 = vst.msk [vmem:[%s241 + $0x60] sm:$0xf] %vm554, %v514
      %580 = vst.msk [vmem:[%s241 + $0x64] sm:$0xf] %vm554, %v515
      %581 = vst.msk [vmem:[%s241 + $0x68] sm:$0xf] %vm554, %v516
      %582 = vst.msk [vmem:[%s241 + $0x6c] sm:$0xf] %vm554, %v517
      %583 = vst.msk [vmem:[%s241 + $0x70] sm:$0xf] %vm554, %v518
      %584 = vst.msk [vmem:[%s241 + $0x74] sm:$0xf] %vm554, %v519
      %585 = vst.msk [vmem:[%s241 + $0x78] sm:$0xf] %vm554, %v520
      %586 = vst.msk [vmem:[%s241 + $0x7c] sm:$0xf] %vm554, %v521
      %v587 = vld [vmem:[#allocation2] sm:$0x1]
      %vm588 = vcmask 97280
      %v589 = vsel %vm588, %v394, 0.0
      %v590 = vsel %vm588, %v395, 0.0
      %v591 = vadd.f32 %v589, %v590
      %v592 = vsel %vm588, %v396, 0.0
      %v593 = vadd.f32 %v591, %v592
      %v594 = vsel %vm588, %v397, 0.0
      %v595 = vadd.f32 %v593, %v594
      %v596 = vsel %vm588, %v398, 0.0
      %v597 = vadd.f32 %v595, %v596
      %v598 = vsel %vm588, %v399, 0.0
      %v599 = vadd.f32 %v597, %v598
      %v600 = vsel %vm588, %v400, 0.0
      %v601 = vadd.f32 %v599, %v600
      %v602 = vsel %vm588, %v401, 0.0
      %v603 = vadd.f32 %v601, %v602
      %v604 = vsel %vm588, %v402, 0.0
      %v605 = vadd.f32 %v603, %v604
      %v606 = vsel %vm588, %v403, 0.0
      %v607 = vadd.f32 %v605, %v606
      %v608 = vsel %vm588, %v404, 0.0
      %v609 = vadd.f32 %v607, %v608
      %v610 = vsel %vm588, %v405, 0.0
      %v611 = vadd.f32 %v609, %v610
      %v612 = vsel %vm588, %v406, 0.0
      %v613 = vadd.f32 %v611, %v612
      %v614 = vsel %vm588, %v407, 0.0
      %v615 = vadd.f32 %v613, %v614
      %v616 = vsel %vm588, %v408, 0.0
      %v617 = vadd.f32 %v615, %v616
      %v618 = vsel %vm588, %v409, 0.0
      %v619 = vadd.f32 %v617, %v618
      %v620 = vsel %vm588, %v410, 0.0
      %v621 = vadd.f32 %v619, %v620
      %v622 = vsel %vm588, %v411, 0.0
      %v623 = vadd.f32 %v621, %v622
      %v624 = vsel %vm588, %v412, 0.0
      %v625 = vadd.f32 %v623, %v624
      %v626 = vsel %vm588, %v413, 0.0
      %v627 = vadd.f32 %v625, %v626
      %v628 = vsel %vm588, %v414, 0.0
      %v629 = vadd.f32 %v627, %v628
      %v630 = vsel %vm588, %v415, 0.0
      %v631 = vadd.f32 %v629, %v630
      %v632 = vsel %vm588, %v416, 0.0
      %v633 = vadd.f32 %v631, %v632
      %v634 = vsel %vm588, %v417, 0.0
      %v635 = vadd.f32 %v633, %v634
      %v636 = vsel %vm588, %v418, 0.0
      %v637 = vadd.f32 %v635, %v636
      %v638 = vsel %vm588, %v419, 0.0
      %v639 = vadd.f32 %v637, %v638
      %v640 = vsel %vm588, %v420, 0.0
      %v641 = vadd.f32 %v639, %v640
      %v642 = vsel %vm588, %v421, 0.0
      %v643 = vadd.f32 %v641, %v642
      %v644 = vsel %vm588, %v422, 0.0
      %v645 = vadd.f32 %v643, %v644
      %v646 = vsel %vm588, %v423, 0.0
      %v647 = vadd.f32 %v645, %v646
      %v648 = vsel %vm588, %v424, 0.0
      %v649 = vadd.f32 %v647, %v648
      %v650 = vsel %vm588, %v425, 0.0
      %v651 = vadd.f32 %v649, %v650
      %v652 = vrot.slane %v651, 4
      %v653 = vadd.f32 %v651, %v652
      %v654 = vrot.slane %v653, 2
      %v655 = vadd.f32 %v653, %v654
      %v656 = vrot.slane %v655, 1
      %v657 = vadd.f32 %v655, %v656
      %v658 = vadd.f32 %v587, %v657
      %vm659 = vcmask 90112
      %660 = vst.msk [vmem:[#allocation2] sm:$0x1] %vm659, %v658
      // Predicated region
      $region37: #{dydensenet_forward.18} parent=31 // pred_check
        %p661 = pneg %p246
      $region38: #{dydensenet_forward.18} parent=31 // pred_check_branch
        %663 = sbr.rel (%p661) target = $region40
      $region39: #{dydensenet_forward.18} parent=31 // pred_region
        %v664 = vld [vmem:[#allocation2] sm:$0x1]
        %v665 = vmul.f32 %v664, 0.00390625
        %666 = vst.msk [vmem:[%s245] sm:$0x1] %vm659, %v665
      $region40: #{dydensenet_forward.18} parent=31 // pred_fallthru
        _
      %s667 = smul.u32 32, %s21
      %p668 = scmp.lt.s32.totalorder %s20, 1
      %s669 = scalar_select %p668, %s20, 1
      %p670 = scmp.lt.s32.totalorder %s667, 31
      %s671 = scalar_select %p670, %s667, 31
      %s672 = smul.addr %s669, 32
      %s673 = sadd.s32 %s671, %s672
      %s674 = smul.addr %s673, 4
      %s675 = scalar_lea.vmem %s3, %s674
      %p676 = scmp.lt.s32.totalorder %s20, 1
      %s677 = scalar_select %p676, %s20, 1
      %s678 = scalar_lea.vmem %s4, %s677
      // Predicated region
      $region41: #{dydensenet_forward.18} parent=31 // pred_check
        %p679 = pneg %p118
      $region42: #{dydensenet_forward.18} parent=31 // pred_check_branch
        %681 = sbr.rel (%p679) target = $region44
      $region43: #{dydensenet_forward.18} parent=31 // pred_region
        %s682 = smul.u32 32, %s21
      $region44: #{dydensenet_forward.18} parent=31 // pred_fallthru
        _
      // Predicated region
      $region45: #{dydensenet_forward.18} parent=31 // pred_check
        %p683 = pneg %p144
      $region46: #{dydensenet_forward.18} parent=31 // pred_check_branch
        %685 = sbr.rel (%p683) target = $region48
      $region47: #{dydensenet_forward.18} parent=31 // pred_region
        _
      $region48: #{dydensenet_forward.18} parent=31 // pred_fallthru
        _
    $region32: #{dydensenet_forward.18} parent=5 // pred_fallthru
      _
    %p686 = scmp.le.s32.totalorder 2, %s11
    // Predicated region
    $region49: #{dydensenet_forward.18} parent=5 // pred_check
      %p687 = pneg %p686
    $region50: #{dydensenet_forward.18} parent=5 // pred_check_branch
      %689 = sbr.rel (%p687) target = $region52
    $region51: #{dydensenet_forward.18} parent=5 // pred_region
      %s690 = ssub.s32 %s11, 2
      // Predicated region
      $region53: #{dydensenet_forward.18} parent=51 // pred_check
        %p691 = pneg %p124
      $region54: #{dydensenet_forward.18} parent=51 // pred_check_branch
        %693 = sbr.rel (%p691) target = $region56
      $region55: #{dydensenet_forward.18} parent=51 // pred_region
        %s694 = smul.u32 32, %s23
        %p695 = scmp.lt.s32.totalorder %s22, 1
        %s696 = scalar_select %p695, %s22, 1
        %p697 = scmp.lt.s32.totalorder %s694, 31
        %s698 = scalar_select %p697, %s694, 31
        %s699 = smul.addr %s696, 32
        %s700 = sadd.s32 %s698, %s699
        %s701 = smul.addr %s700, 4
        %s702 = scalar_lea.vmem %s3, %s701
      $region56: #{dydensenet_forward.18} parent=51 // pred_fallthru
        _
      // Predicated region
      $region57: #{dydensenet_forward.18} parent=51 // pred_check
        %p703 = pneg %p150
      $region58: #{dydensenet_forward.18} parent=51 // pred_check_branch
        %705 = sbr.rel (%p703) target = $region60
      $region59: #{dydensenet_forward.18} parent=51 // pred_region
        %p706 = scmp.lt.s32.totalorder %s22, 1
        %s707 = scalar_select %p706, %s22, 1
        %s708 = scalar_lea.vmem %s4, %s707
      $region60: #{dydensenet_forward.18} parent=51 // pred_fallthru
        _
    $region52: #{dydensenet_forward.18} parent=5 // pred_fallthru
      _
  $region6: #{dydensenet_forward.18} parent=0 // loop_footer
    %s15 = sadd.s32 1, %s11
  $region7: #{dydensenet_forward.18} parent=0 // loop_footer_branch
    %10 = sbr.rel target = $region3
  $region8: #{dydensenet_forward.18} parent=0 // loop_exit
    _

// kernel: dydensenet_forward.21
$region0: #{dydensenet_forward.21}
  #allocation0 [shape = 'u32[]', space=smem, size = 0x4, offset = 0x4, fixed_abs, tag = 'smem constant byte address 0x4 - core index']
  #allocation1 [shape = 'u32[144,128]{1,0:T(1,128)}', space=vmem, size = 0x12000, scoped, tag = 'internal scratch']
  #allocation2 [shape = 'f32[1,16]{1,0:T(1,128)}', space=vmem, size = 0x200, scoped, tag = 'scratch operand']
  %s0 = inlined_call_operand.vmem [shape: bf16[2,64,16], index: 0, kind: input, shape index: {}]
  %s1 = inlined_call_operand.vmem [shape: f32[1,1,16], index: 1, kind: input, shape index: {}]
  %s2 = inlined_call_operand.vmem [shape: f32[1,1,16], index: 2, kind: input, shape index: {}]
  %s3 = inlined_call_operand.vmem [shape: bf16[2,64,16], index: 3, kind: output, shape index: {0}]
  %s4 = inlined_call_operand.vmem [shape: f32[2,1,16], index: 4, kind: output, shape index: {1}]
  %5 = xla_tuple %s3, %s4
  %s6 = sld [smem:[#allocation0]]
  $region61: #{dydensenet_forward.21} parent=0
    _
  %s8 = ssub.s32 1, %s6
  %s9 = scalar_select 0, %s8, %s6
  loop: start=0, step=1, limit=4
  $region2: #{dydensenet_forward.21} parent=0 // loop_pre_header
    _
  $region3: #{dydensenet_forward.21} parent=0 // loop_header
    %s11 = sphi 0, %s15
    %p12 = scmp.ge.s32.totalorder %s11, 4
    %s18 = sphi 0, %s30
    %s19 = sphi 0, %s26
    %s20 = sphi 0, %s18
    %s21 = sphi 0, %s19
    %s22 = sphi 0, %s20
    %s23 = sphi 0, %s21
    %s35 = sphi 0, %s37
    %s38 = sphi 0, %s35
    %s39 = sphi 0, %s38
    %s55 = sphi 0, %s39
    %s59 = sphi 0, %s59
    %s61 = sphi 0, %s59
    %s62 = sphi 0, %s61
    %s76 = sphi 0, %s62
    %s80 = sphi 0, %s80
    %s82 = sphi 0, %s80
    %s83 = sphi 0, %s82
    %s97 = sphi 0, %s83
    %s105 = sphi 0, %s107
    %s108 = sphi 0, %s105
    %s109 = sphi 0, %s108
    %s125 = sphi 0, %s109
    %s131 = sphi 0, %s133
    %s134 = sphi 0, %s131
    %s135 = sphi 0, %s134
    %s151 = sphi 0, %s135
  $region4: #{dydensenet_forward.21} parent=0 // loop_header_branch
    %14 = sbr.rel (%p12) target = $region8
  $region5: #{dydensenet_forward.21} parent=0 // loop_body
    %s16 = ssub.s32 %s11, 1
    %s17 = ssub.s32 %s11, 2
    %s24 = sadd.s32 1, %s19
    %p25 = scmp.ge.s32.totalorder %s24, 1
    %s26 = scalar_select %p25, 0, %s24
    %s27 = sadd.s32 1, %s18
    %s28 = scalar_select %p25, %s27, %s18
    %p29 = scmp.ge.s32.totalorder %s28, 2
    %s30 = scalar_select %p29, 0, %s28
    %s31 = ssub.s32 %s18, %s30
    %s32 = ssub.s32 %s19, %s26
    %s33 = sor.u32 %s31, %s32
    %p34 = scmp.eq.s32.totalorder %s33, 0
    %s36 = sadd.s32 %s35, 1
    %s37 = scalar_select %p34, %s35, %s36
    %p40 = pneg %p34
    %p41 = scmp.eq.s32.totalorder %s11, 1
    %p42 = por %p40, %p41
    %p43 = scmp.ne.s32.totalorder %s35, %s38
    %p44 = scmp.eq.s32.totalorder %s11, 0
    %p45 = por %p43, %p44
    %p46 = scmp.ne.s32.totalorder %s35, %s38
    %p47 = scmp.eq.s32.totalorder %s16, 1
    %p48 = por %p46, %p47
    %p49 = scmp.ne.s32.totalorder %s38, %s39
    %p50 = scmp.eq.s32.totalorder %s16, 0
    %p51 = por %p49, %p50
    %p52 = scmp.ne.s32.totalorder %s38, %s39
    %p53 = scmp.eq.s32.totalorder %s17, 1
    %p54 = por %p52, %p53
    %p56 = scmp.ne.s32.totalorder %s39, %s55
    %p57 = scmp.eq.s32.totalorder %s17, 0
    %p58 = por %p56, %p57
    %s60 = sadd.s32 %s59, 1
    %p63 = scmp.eq.s32.totalorder %s11, 1
    %p64 = scmp.ne.s32.totalorder %s59, %s61
    %p65 = scmp.eq.s32.totalorder %s11, 0
    %p66 = por %p64, %p65
    %p67 = scmp.ne.s32.totalorder %s59, %s61
    %p68 = scmp.eq.s32.totalorder %s16, 1
    %p69 = por %p67, %p68
    %p70 = scmp.ne.s32.totalorder %s61, %s62
    %p71 = scmp.eq.s32.totalorder %s16, 0
    %p72 = por %p70, %p71
    %p73 = scmp.ne.s32.totalorder %s61, %s62
    %p74 = scmp.eq.s32.totalorder %s17, 1
    %p75 = por %p73, %p74
    %p77 = scmp.ne.s32.totalorder %s62, %s76
    %p78 = scmp.eq.s32.totalorder %s17, 0
    %p79 = por %p77, %p78
    %s81 = sadd.s32 %s80, 1
    %p84 = scmp.eq.s32.totalorder %s11, 1
    %p85 = scmp.ne.s32.totalorder %s80, %s82
    %p86 = scmp.eq.s32.totalorder %s11, 0
    %p87 = por %p85, %p86
    %p88 = scmp.ne.s32.totalorder %s80, %s82
    %p89 = scmp.eq.s32.totalorder %s16, 1
    %p90 = por %p88, %p89
    %p91 = scmp.ne.s32.totalorder %s82, %s83
    %p92 = scmp.eq.s32.totalorder %s16, 0
    %p93 = por %p91, %p92
    %p94 = scmp.ne.s32.totalorder %s82, %s83
    %p95 = scmp.eq.s32.totalorder %s17, 1
    %p96 = por %p94, %p95
    %p98 = scmp.ne.s32.totalorder %s83, %s97
    %p99 = scmp.eq.s32.totalorder %s17, 0
    %p100 = por %p98, %p99
    %s101 = ssub.s32 %s18, %s30
    %s102 = ssub.s32 %s19, %s26
    %s103 = sor.u32 %s101, %s102
    %p104 = scmp.eq.s32.totalorder %s103, 0
    %s106 = sadd.s32 %s105, 1
    %s107 = scalar_select %p104, %s105, %s106
    %p110 = pneg %p104
    %p111 = scmp.eq.s32.totalorder %s11, 1
    %p112 = por %p110, %p111
    %p113 = scmp.ne.s32.totalorder %s105, %s108
    %p114 = scmp.eq.s32.totalorder %s11, 0
    %p115 = por %p113, %p114
    %p116 = scmp.ne.s32.totalorder %s105, %s108
    %p117 = scmp.eq.s32.totalorder %s16, 1
    %p118 = por %p116, %p117
    %p119 = scmp.ne.s32.totalorder %s108, %s109
    %p120 = scmp.eq.s32.totalorder %s16, 0
    %p121 = por %p119, %p120
    %p122 = scmp.ne.s32.totalorder %s108, %s109
    %p123 = scmp.eq.s32.totalorder %s17, 1
    %p124 = por %p122, %p123
    %p126 = scmp.ne.s32.totalorder %s109, %s125
    %p127 = scmp.eq.s32.totalorder %s17, 0
    %p128 = por %p126, %p127
    %s129 = ssub.s32 %s18, %s30
    %p130 = scmp.eq.s32.totalorder %s129, 0
    %s132 = sadd.s32 %s131, 1
    %s133 = scalar_select %p130, %s131, %s132
    %p136 = pneg %p130
    %p137 = scmp.eq.s32.totalorder %s11, 1
    %p138 = por %p136, %p137
    %p139 = scmp.ne.s32.totalorder %s131, %s134
    %p140 = scmp.eq.s32.totalorder %s11, 0
    %p141 = por %p139, %p140
    %p142 = scmp.ne.s32.totalorder %s131, %s134
    %p143 = scmp.eq.s32.totalorder %s16, 1
    %p144 = por %p142, %p143
    %p145 = scmp.ne.s32.totalorder %s134, %s135
    %p146 = scmp.eq.s32.totalorder %s16, 0
    %p147 = por %p145, %p146
    %p148 = scmp.ne.s32.totalorder %s134, %s135
    %p149 = scmp.eq.s32.totalorder %s17, 1
    %p150 = por %p148, %p149
    %p152 = scmp.ne.s32.totalorder %s135, %s151
    %p153 = scmp.eq.s32.totalorder %s17, 0
    %p154 = por %p152, %p153
    %p155 = scmp.le.s32.totalorder 1, %s11
    %p156 = scmp.lt.s32.totalorder %s11, 3
    %p157 = pnand %p155, %p156
    %p158 = pneg %p157
    // Predicated region
    $region9: #{dydensenet_forward.21} parent=5 // pred_check
      _
    $region10: #{dydensenet_forward.21} parent=5 // pred_check_branch
      %160 = sbr.rel (%p157) target = $region12
    $region11: #{dydensenet_forward.21} parent=5 // pred_region
      %s161 = ssub.s32 %s11, 1
      // Predicated region
      $region13: #{dydensenet_forward.21} parent=11 // pred_check
        %p162 = pneg %p72
      $region14: #{dydensenet_forward.21} parent=11 // pred_check_branch
        %164 = sbr.rel (%p162) target = $region16
      $region15: #{dydensenet_forward.21} parent=11 // pred_region
        _
      $region16: #{dydensenet_forward.21} parent=11 // pred_fallthru
        _
      // Predicated region
      $region17: #{dydensenet_forward.21} parent=11 // pred_check
        %p165 = pneg %p93
      $region18: #{dydensenet_forward.21} parent=11 // pred_check_branch
        %167 = sbr.rel (%p165) target = $region20
      $region19: #{dydensenet_forward.21} parent=11 // pred_region
        _
      $region20: #{dydensenet_forward.21} parent=11 // pred_fallthru
        _
    $region12: #{dydensenet_forward.21} parent=5 // pred_fallthru
      _
    %p168 = scmp.lt.s32.totalorder %s11, 2
    // Predicated region
    $region21: #{dydensenet_forward.21} parent=5 // pred_check
      %p169 = pneg %p168
    $region22: #{dydensenet_forward.21} parent=5 // pred_check_branch
      %171 = sbr.rel (%p169) target = $region24
    $region23: #{dydensenet_forward.21} parent=5 // pred_region
      // Predicated region
      $region25: #{dydensenet_forward.21} parent=23 // pred_check
        %p172 = pneg %p45
      $region26: #{dydensenet_forward.21} parent=23 // pred_check_branch
        %174 = sbr.rel (%p172) target = $region28
      $region27: #{dydensenet_forward.21} parent=23 // pred_region
        %s175 = smul.u32 8, %s19
        %p176 = scmp.lt.s32.totalorder %s18, 1
        %s177 = scalar_select %p176, %s18, 1
        %p178 = scmp.lt.s32.totalorder %s175, 7
        %s179 = scalar_select %p178, %s175, 7
        %s180 = smul.addr %s177, 8
        %s181 = sadd.s32 %s179, %s180
        %s182 = smul.addr %s181, 4
        %s183 = scalar_lea.vmem %s0, %s182
        %s184 = smul.u32 8, %s19
      $region28: #{dydensenet_forward.21} parent=23 // pred_fallthru
        _
    $region24: #{dydensenet_forward.21} parent=5 // pred_fallthru
      _
    %p185 = scmp.le.s32.totalorder 1, %s11
    %p186 = scmp.lt.s32.totalorder %s11, 3
    %p187 = pnand %p185, %p186
    %p188 = pneg %p187
    // Predicated region
    $region29: #{dydensenet_forward.21} parent=5 // pred_check
      _
    $region30: #{dydensenet_forward.21} parent=5 // pred_check_branch
      %190 = sbr.rel (%p187) target = $region32
    $region31: #{dydensenet_forward.21} parent=5 // pred_region
      %s191 = ssub.s32 %s11, 1
      %s192 = smul.u32 8, %s21
      %p193 = scmp.lt.s32.totalorder %s20, 1
      %s194 = scalar_select %p193, %s20, 1
      %p195 = scmp.lt.s32.totalorder %s192, 7
      %s196 = scalar_select %p195, %s192, 7
      %s197 = smul.addr %s194, 8
      %s198 = sadd.s32 %s196, %s197
      %s199 = smul.addr %s198, 4
      %s200 = scalar_lea.vmem %s0, %s199
      %p201 = pneg %p51
      %p202 = pneg %p48
      %p203 = pneg %p72
      %p204 = pneg %p69
      %p205 = pneg %p93
      %p206 = pneg %p90
      %p207 = pneg %p121
      %p208 = pneg %p118
      %s209 = smul.u32 8, %s21
      %p210 = scmp.lt.s32.totalorder %s20, 1
      %s211 = scalar_select %p210, %s20, 1
      %p212 = scmp.lt.s32.totalorder %s209, 7
      %s213 = scalar_select %p212, %s209, 7
      %s214 = smul.addr %s211, 8
      %s215 = sadd.s32 %s213, %s214
      %s216 = smul.addr %s215, 4
      %s217 = scalar_lea.vmem %s3, %s216
      %p218 = pneg %p147
      %p219 = pneg %p144
      %p220 = scmp.lt.s32.totalorder %s20, 1
      %s221 = scalar_select %p220, %s20, 1
      %s222 = scalar_lea.vmem %s4, %s221
      %s223 = smul.u32 8, %s21
      %p224 = scmp.lt.s32.totalorder %s20, 1
      %s225 = scalar_select %p224, %s20, 1
      %p226 = scmp.lt.s32.totalorder %s223, 7
      %s227 = scalar_select %p226, %s223, 7
      %s228 = smul.addr %s225, 8
      %s229 = sadd.s32 %s227, %s228
      %s230 = smul.addr %s229, 4
      %s231 = scalar_lea.vmem %s0, %s230
      %s232 = smul.u32 8, %s21
      %s233 = smul.u32 8, %s21
      %p234 = scmp.lt.s32.totalorder %s20, 1
      %s235 = scalar_select %p234, %s20, 1
      %p236 = scmp.lt.s32.totalorder %s233, 7
      %s237 = scalar_select %p236, %s233, 7
      %s238 = smul.addr %s235, 8
      %s239 = sadd.s32 %s237, %s238
      %s240 = smul.addr %s239, 4
      %s241 = scalar_lea.vmem %s3, %s240
      %s242 = smul.u32 8, %s21
      %p243 = scmp.lt.s32.totalorder %s20, 1
      %s244 = scalar_select %p243, %s20, 1
      %s245 = scalar_lea.vmem %s4, %s244
      %p246 = scmp.eq.s32.totalorder %s21, 0
      // Predicated region
      $region33: #{dydensenet_forward.21} parent=31 // pred_check
        %p247 = pneg %p246
      $region34: #{dydensenet_forward.21} parent=31 // pred_check_branch
        %249 = sbr.rel (%p247) target = $region36
      $region35: #{dydensenet_forward.21} parent=31 // pred_region
        %vm250 = vcmask 122880
        %251 = vst.msk [vmem:[#allocation2] sm:$0x1] %vm250, 0.0
      $region36: #{dydensenet_forward.21} parent=31 // pred_fallthru
        _
      %v252 = vld [vmem:[%s231] sm:$0xf]
      %v253 = vld [vmem:[%s231 + $0x4] sm:$0xf]
      %v254 = vld [vmem:[%s231 + $0x8] sm:$0xf]
      %v255 = vld [vmem:[%s231 + $0xc] sm:$0xf]
      %v256 = vld [vmem:[%s231 + $0x10] sm:$0xf]
      %v257 = vld [vmem:[%s231 + $0x14] sm:$0xf]
      %v258 = vld [vmem:[%s231 + $0x18] sm:$0xf]
      %v259 = vld [vmem:[%s231 + $0x1c] sm:$0xf]
      %v260 = vunpack.c.l.bf16 %v252
      %v261 = vunpack.c.l.bf16 %v253
      %v262 = vunpack.c.l.bf16 %v254
      %v263 = vunpack.c.l.bf16 %v255
      %v264 = vunpack.c.l.bf16 %v256
      %v265 = vunpack.c.l.bf16 %v257
      %v266 = vunpack.c.l.bf16 %v258
      %v267 = vunpack.c.l.bf16 %v259
      %v268 = vld [vmem:[%s1] sm:$0x1]
      %v270 = vlaneseq
      %v271 = vshrl.u32 %v270, 7
      %v272 = vsub.s32 0, %v271
      %v273 = vrot.slane %v268, %v272
      %v275 = vmul.f32 %v260, %v273
      %v276 = vmul.f32 %v261, %v273
      %v277 = vmul.f32 %v262, %v273
      %v278 = vmul.f32 %v263, %v273
      %v279 = vmul.f32 %v264, %v273
      %v280 = vmul.f32 %v265, %v273
      %v281 = vmul.f32 %v266, %v273
      %v282 = vmul.f32 %v267, %v273
      %v283 = vld [vmem:[%s2] sm:$0x1]
      %v285 = vlaneseq
      %v286 = vshrl.u32 %v285, 7
      %v287 = vsub.s32 0, %v286
      %v288 = vrot.slane %v283, %v287
      %v290 = vadd.f32 %v275, %v288
      %v291 = vadd.f32 %v276, %v288
      %v292 = vadd.f32 %v277, %v288
      %v293 = vadd.f32 %v278, %v288
      %v294 = vadd.f32 %v279, %v288
      %v295 = vadd.f32 %v280, %v288
      %v296 = vadd.f32 %v281, %v288
      %v297 = vadd.f32 %v282, %v288
      %v298 = vmax.f32 %v290, 0.0
      %v299 = vmax.f32 %v291, 0.0
      %v300 = vmax.f32 %v292, 0.0
      %v301 = vmax.f32 %v293, 0.0
      %v302 = vmax.f32 %v294, 0.0
      %v303 = vmax.f32 %v295, 0.0
      %v304 = vmax.f32 %v296, 0.0
      %v305 = vmax.f32 %v297, 0.0
      %v306 = vpack.c.bf16 %v299, %v298
      %v307 = vpack.c.bf16 %v301, %v300
      %v308 = vpack.c.bf16 %v303, %v302
      %v309 = vpack.c.bf16 %v305, %v304
      %v314 = vunpack.c.l.b16 %v306
      %v315 = vunpack.c.h.b16 %v306
      %v316 = vunpack.c.l.b16 %v307
      %v317 = vunpack.c.h.b16 %v307
      %v318 = vunpack.c.l.b16 %v308
      %v319 = vunpack.c.h.b16 %v308
      %v320 = vunpack.c.l.b16 %v309
      %v321 = vunpack.c.h.b16 %v309
      %v322 = vpack.c.b16 %v314, %v314
      %v323 = vpack.c.b16 %v315, %v315
      %v324 = vpack.c.b16 %v316, %v316
      %v325 = vpack.c.b16 %v317, %v317
      %v326 = vpack.c.b16 %v318, %v318
      %v327 = vpack.c.b16 %v319, %v319
      %v328 = vpack.c.b16 %v320, %v320
      %v329 = vpack.c.b16 %v321, %v321
      %vm338 = vcmask 125952
      %339 = vst.msk [vmem:[%s241] sm:$0xf] %vm338, %v322
      %340 = vst.msk [vmem:[%s241 + $0x4] sm:$0xf] %vm338, %v323
      %341 = vst.msk [vmem:[%s241 + $0x8] sm:$0xf] %vm338, %v324
      %342 = vst.msk [vmem:[%s241 + $0xc] sm:$0xf] %vm338, %v325
      %343 = vst.msk [vmem:[%s241 + $0x10] sm:$0xf] %vm338, %v326
      %344 = vst.msk [vmem:[%s241 + $0x14] sm:$0xf] %vm338, %v327
      %345 = vst.msk [vmem:[%s241 + $0x18] sm:$0xf] %vm338, %v328
      %346 = vst.msk [vmem:[%s241 + $0x1c] sm:$0xf] %vm338, %v329
      %v347 = vld [vmem:[#allocation2] sm:$0x1]
      %vm348 = vcmask 130048
      %v349 = vsel %vm348, %v298, 0.0
      %v350 = vsel %vm348, %v299, 0.0
      %v351 = vadd.f32 %v349, %v350
      %v352 = vsel %vm348, %v300, 0.0
      %v353 = vadd.f32 %v351, %v352
      %v354 = vsel %vm348, %v301, 0.0
      %v355 = vadd.f32 %v353, %v354
      %v356 = vsel %vm348, %v302, 0.0
      %v357 = vadd.f32 %v355, %v356
      %v358 = vsel %vm348, %v303, 0.0
      %v359 = vadd.f32 %v357, %v358
      %v360 = vsel %vm348, %v304, 0.0
      %v361 = vadd.f32 %v359, %v360
      %v362 = vsel %vm348, %v305, 0.0
      %v363 = vadd.f32 %v361, %v362
      %v364 = vrot.slane %v363, 4
      %v365 = vadd.f32 %v363, %v364
      %v366 = vrot.slane %v365, 2
      %v367 = vadd.f32 %v365, %v366
      %v368 = vrot.slane %v367, 1
      %v369 = vadd.f32 %v367, %v368
      %v370 = vadd.f32 %v347, %v369
      %vm371 = vcmask 122880
      %372 = vst.msk [vmem:[#allocation2] sm:$0x1] %vm371, %v370
      // Predicated region
      $region37: #{dydensenet_forward.21} parent=31 // pred_check
        %p373 = pneg %p246
      $region38: #{dydensenet_forward.21} parent=31 // pred_check_branch
        %375 = sbr.rel (%p373) target = $region40
      $region39: #{dydensenet_forward.21} parent=31 // pred_region
        %v376 = vld [vmem:[#allocation2] sm:$0x1]
        %v377 = vmul.f32 %v376, 0.015625
        %378 = vst.msk [vmem:[%s245] sm:$0x1] %vm371, %v377
      $region40: #{dydensenet_forward.21} parent=31 // pred_fallthru
        _
      %s379 = smul.u32 8, %s21
      %p380 = scmp.lt.s32.totalorder %s20, 1
      %s381 = scalar_select %p380, %s20, 1
      %p382 = scmp.lt.s32.totalorder %s379, 7
      %s383 = scalar_select %p382, %s379, 7
      %s384 = smul.addr %s381, 8
      %s385 = sadd.s32 %s383, %s384
      %s386 = smul.addr %s385, 4
      %s387 = scalar_lea.vmem %s3, %s386
      %p388 = scmp.lt.s32.totalorder %s20, 1
      %s389 = scalar_select %p388, %s20, 1
      %s390 = scalar_lea.vmem %s4, %s389
      // Predicated region
      $region41: #{dydensenet_forward.21} parent=31 // pred_check
        %p391 = pneg %p118
      $region42: #{dydensenet_forward.21} parent=31 // pred_check_branch
        %393 = sbr.rel (%p391) target = $region44
      $region43: #{dydensenet_forward.21} parent=31 // pred_region
        %s394 = smul.u32 8, %s21
      $region44: #{dydensenet_forward.21} parent=31 // pred_fallthru
        _
      // Predicated region
      $region45: #{dydensenet_forward.21} parent=31 // pred_check
        %p395 = pneg %p144
      $region46: #{dydensenet_forward.21} parent=31 // pred_check_branch
        %397 = sbr.rel (%p395) target = $region48
      $region47: #{dydensenet_forward.21} parent=31 // pred_region
        _
      $region48: #{dydensenet_forward.21} parent=31 // pred_fallthru
        _
    $region32: #{dydensenet_forward.21} parent=5 // pred_fallthru
      _
    %p398 = scmp.le.s32.totalorder 2, %s11
    // Predicated region
    $region49: #{dydensenet_forward.21} parent=5 // pred_check
      %p399 = pneg %p398
    $region50: #{dydensenet_forward.21} parent=5 // pred_check_branch
      %401 = sbr.rel (%p399) target = $region52
    $region51: #{dydensenet_forward.21} parent=5 // pred_region
      %s402 = ssub.s32 %s11, 2
      // Predicated region
      $region53: #{dydensenet_forward.21} parent=51 // pred_check
        %p403 = pneg %p124
      $region54: #{dydensenet_forward.21} parent=51 // pred_check_branch
        %405 = sbr.rel (%p403) target = $region56
      $region55: #{dydensenet_forward.21} parent=51 // pred_region
        %s406 = smul.u32 8, %s23
        %p407 = scmp.lt.s32.totalorder %s22, 1
        %s408 = scalar_select %p407, %s22, 1
        %p409 = scmp.lt.s32.totalorder %s406, 7
        %s410 = scalar_select %p409, %s406, 7
        %s411 = smul.addr %s408, 8
        %s412 = sadd.s32 %s410, %s411
        %s413 = smul.addr %s412, 4
        %s414 = scalar_lea.vmem %s3, %s413
      $region56: #{dydensenet_forward.21} parent=51 // pred_fallthru
        _
      // Predicated region
      $region57: #{dydensenet_forward.21} parent=51 // pred_check
        %p415 = pneg %p150
      $region58: #{dydensenet_forward.21} parent=51 // pred_check_branch
        %417 = sbr.rel (%p415) target = $region60
      $region59: #{dydensenet_forward.21} parent=51 // pred_region
        %p418 = scmp.lt.s32.totalorder %s22, 1
        %s419 = scalar_select %p418, %s22, 1
        %s420 = scalar_lea.vmem %s4, %s419
      $region60: #{dydensenet_forward.21} parent=51 // pred_fallthru
        _
    $region52: #{dydensenet_forward.21} parent=5 // pred_fallthru
      _
  $region6: #{dydensenet_forward.21} parent=0 // loop_footer
    %s15 = sadd.s32 1, %s11
  $region7: #{dydensenet_forward.21} parent=0 // loop_footer_branch
    %10 = sbr.rel target = $region3
  $region8: #{dydensenet_forward.21} parent=0 // loop_exit
    _

// kernel: dydensenet_forward.19
$region0: #{dydensenet_forward.19}
  #allocation0 [shape = 'u32[]', space=smem, size = 0x4, offset = 0x4, fixed_abs, tag = 'smem constant byte address 0x4 - core index']
  #allocation1 [shape = 'u32[144,128]{1,0:T(1,128)}', space=vmem, size = 0x12000, scoped, tag = 'internal scratch']
  #allocation2 [shape = 'f32[256,16]{1,0:T(8,128)}', space=vmem, size = 0x20000, scoped, tag = 'scratch operand']
  %s0 = inlined_call_operand.vmem [shape: bf16[2,256,12], index: 0, kind: input, shape index: {}]
  %s1 = inlined_call_operand.vmem [shape: bf16[2,12,16], index: 1, kind: input, shape index: {}]
  %s2 = inlined_call_operand.vmem [shape: f32[1,1,16], index: 2, kind: input, shape index: {}]
  %s3 = inlined_call_operand.vmem [shape: f32[1,1,16], index: 3, kind: input, shape index: {}]
  %s4 = inlined_call_operand.vmem [shape: bf16[2,256,16], index: 4, kind: output, shape index: {}]
  %s5 = sld [smem:[#allocation0]]
  $region57: #{dydensenet_forward.19} parent=0
    _
  %s7 = ssub.s32 1, %s5
  %s8 = scalar_select 0, %s7, %s5
  loop: start=0, step=1, limit=4
  $region2: #{dydensenet_forward.19} parent=0 // loop_pre_header
    _
  $region3: #{dydensenet_forward.19} parent=0 // loop_header
    %s10 = sphi 0, %s14
    %p11 = scmp.ge.s32.totalorder %s10, 4
    %s17 = sphi 0, %s43
    %s18 = sphi 0, %s39
    %s19 = sphi 0, %s35
    %s20 = sphi 0, %s31
    %s21 = sphi 0, %s17
    %s22 = sphi 0, %s18
    %s23 = sphi 0, %s19
    %s24 = sphi 0, %s20
    %s25 = sphi 0, %s21
    %s26 = sphi 0, %s22
    %s27 = sphi 0, %s23
    %s28 = sphi 0, %s24
    %s50 = sphi 0, %s52
    %s53 = sphi 0, %s50
    %s54 = sphi 0, %s53
    %s70 = sphi 0, %s54
    %s80 = sphi 0, %s82
    %s83 = sphi 0, %s80
    %s84 = sphi 0, %s83
    %s100 = sphi 0, %s84
    %s106 = sphi 0, %s108
    %s109 = sphi 0, %s106
    %s110 = sphi 0, %s109
    %s126 = sphi 0, %s110
    %s132 = sphi 0, %s134
    %s135 = sphi 0, %s132
    %s136 = sphi 0, %s135
    %s152 = sphi 0, %s136
    %s162 = sphi 0, %s164
    %s165 = sphi 0, %s162
    %s166 = sphi 0, %s165
    %s182 = sphi 0, %s166
  $region4: #{dydensenet_forward.19} parent=0 // loop_header_branch
    %13 = sbr.rel (%p11) target = $region8
  $region5: #{dydensenet_forward.19} parent=0 // loop_body
    %s15 = ssub.s32 %s10, 1
    %s16 = ssub.s32 %s10, 2
    %s29 = sadd.s32 1, %s20
    %p30 = scmp.ge.s32.totalorder %s29, 1
    %s31 = scalar_select %p30, 0, %s29
    %s32 = sadd.s32 1, %s19
    %s33 = scalar_select %p30, %s32, %s19
    %p34 = scmp.ge.s32.totalorder %s33, 1
    %s35 = scalar_select %p34, 0, %s33
    %s36 = sadd.s32 1, %s18
    %s37 = scalar_select %p34, %s36, %s18
    %p38 = scmp.ge.s32.totalorder %s37, 1
    %s39 = scalar_select %p38, 0, %s37
    %s40 = sadd.s32 1, %s17
    %s41 = scalar_select %p38, %s40, %s17
    %p42 = scmp.ge.s32.totalorder %s41, 2
    %s43 = scalar_select %p42, 0, %s41
    %s44 = ssub.s32 %s17, %s43
    %s45 = ssub.s32 %s18, %s39
    %s46 = sor.u32 %s44, %s45
    %s47 = ssub.s32 %s20, %s31
    %s48 = sor.u32 %s46, %s47
    %p49 = scmp.eq.s32.totalorder %s48, 0
    %s51 = sadd.s32 %s50, 1
    %s52 = scalar_select %p49, %s50, %s51
    %p55 = pneg %p49
    %p56 = scmp.eq.s32.totalorder %s10, 1
    %p57 = por %p55, %p56
    %p58 = scmp.ne.s32.totalorder %s50, %s53
    %p59 = scmp.eq.s32.totalorder %s10, 0
    %p60 = por %p58, %p59
    %p61 = scmp.ne.s32.totalorder %s50, %s53
    %p62 = scmp.eq.s32.totalorder %s15, 1
    %p63 = por %p61, %p62
    %p64 = scmp.ne.s32.totalorder %s53, %s54
    %p65 = scmp.eq.s32.totalorder %s15, 0
    %p66 = por %p64, %p65
    %p67 = scmp.ne.s32.totalorder %s53, %s54
    %p68 = scmp.eq.s32.totalorder %s16, 1
    %p69 = por %p67, %p68
    %p71 = scmp.ne.s32.totalorder %s54, %s70
    %p72 = scmp.eq.s32.totalorder %s16, 0
    %p73 = por %p71, %p72
    %s74 = ssub.s32 %s17, %s43
    %s75 = ssub.s32 %s20, %s31
    %s76 = sor.u32 %s74, %s75
    %s77 = ssub.s32 %s19, %s35
    %s78 = sor.u32 %s76, %s77
    %p79 = scmp.eq.s32.totalorder %s78, 0
    %s81 = sadd.s32 %s80, 1
    %s82 = scalar_select %p79, %s80, %s81
    %p85 = pneg %p79
    %p86 = scmp.eq.s32.totalorder %s10, 1
    %p87 = por %p85, %p86
    %p88 = scmp.ne.s32.totalorder %s80, %s83
    %p89 = scmp.eq.s32.totalorder %s10, 0
    %p90 = por %p88, %p89
    %p91 = scmp.ne.s32.totalorder %s80, %s83
    %p92 = scmp.eq.s32.totalorder %s15, 1
    %p93 = por %p91, %p92
    %p94 = scmp.ne.s32.totalorder %s83, %s84
    %p95 = scmp.eq.s32.totalorder %s15, 0
    %p96 = por %p94, %p95
    %p97 = scmp.ne.s32.totalorder %s83, %s84
    %p98 = scmp.eq.s32.totalorder %s16, 1
    %p99 = por %p97, %p98
    %p101 = scmp.ne.s32.totalorder %s84, %s100
    %p102 = scmp.eq.s32.totalorder %s16, 0
    %p103 = por %p101, %p102
    %s104 = ssub.s32 %s19, %s35
    %p105 = scmp.eq.s32.totalorder %s104, 0
    %s107 = sadd.s32 %s106, 1
    %s108 = scalar_select %p105, %s106, %s107
    %p111 = pneg %p105
    %p112 = scmp.eq.s32.totalorder %s10, 1
    %p113 = por %p111, %p112
    %p114 = scmp.ne.s32.totalorder %s106, %s109
    %p115 = scmp.eq.s32.totalorder %s10, 0
    %p116 = por %p114, %p115
    %p117 = scmp.ne.s32.totalorder %s106, %s109
    %p118 = scmp.eq.s32.totalorder %s15, 1
    %p119 = por %p117, %p118
    %p120 = scmp.ne.s32.totalorder %s109, %s110
    %p121 = scmp.eq.s32.totalorder %s15, 0
    %p122 = por %p120, %p121
    %p123 = scmp.ne.s32.totalorder %s109, %s110
    %p124 = scmp.eq.s32.totalorder %s16, 1
    %p125 = por %p123, %p124
    %p127 = scmp.ne.s32.totalorder %s110, %s126
    %p128 = scmp.eq.s32.totalorder %s16, 0
    %p129 = por %p127, %p128
    %s130 = ssub.s32 %s19, %s35
    %p131 = scmp.eq.s32.totalorder %s130, 0
    %s133 = sadd.s32 %s132, 1
    %s134 = scalar_select %p131, %s132, %s133
    %p137 = pneg %p131
    %p138 = scmp.eq.s32.totalorder %s10, 1
    %p139 = por %p137, %p138
    %p140 = scmp.ne.s32.totalorder %s132, %s135
    %p141 = scmp.eq.s32.totalorder %s10, 0
    %p142 = por %p140, %p141
    %p143 = scmp.ne.s32.totalorder %s132, %s135
    %p144 = scmp.eq.s32.totalorder %s15, 1
    %p145 = por %p143, %p144
    %p146 = scmp.ne.s32.totalorder %s135, %s136
    %p147 = scmp.eq.s32.totalorder %s15, 0
    %p148 = por %p146, %p147
    %p149 = scmp.ne.s32.totalorder %s135, %s136
    %p150 = scmp.eq.s32.totalorder %s16, 1
    %p151 = por %p149, %p150
    %p153 = scmp.ne.s32.totalorder %s136, %s152
    %p154 = scmp.eq.s32.totalorder %s16, 0
    %p155 = por %p153, %p154
    %s156 = ssub.s32 %s17, %s43
    %s157 = ssub.s32 %s18, %s39
    %s158 = sor.u32 %s156, %s157
    %s159 = ssub.s32 %s19, %s35
    %s160 = sor.u32 %s158, %s159
    %p161 = scmp.eq.s32.totalorder %s160, 0
    %s163 = sadd.s32 %s162, 1
    %s164 = scalar_select %p161, %s162, %s163
    %p167 = pneg %p161
    %p168 = scmp.eq.s32.totalorder %s10, 1
    %p169 = por %p167, %p168
    %p170 = scmp.ne.s32.totalorder %s162, %s165
    %p171 = scmp.eq.s32.totalorder %s10, 0
    %p172 = por %p170, %p171
    %p173 = scmp.ne.s32.totalorder %s162, %s165
    %p174 = scmp.eq.s32.totalorder %s15, 1
    %p175 = por %p173, %p174
    %p176 = scmp.ne.s32.totalorder %s165, %s166
    %p177 = scmp.eq.s32.totalorder %s15, 0
    %p178 = por %p176, %p177
    %p179 = scmp.ne.s32.totalorder %s165, %s166
    %p180 = scmp.eq.s32.totalorder %s16, 1
    %p181 = por %p179, %p180
    %p183 = scmp.ne.s32.totalorder %s166, %s182
    %p184 = scmp.eq.s32.totalorder %s16, 0
    %p185 = por %p183, %p184
    %p186 = scmp.le.s32.totalorder 1, %s10
    %p187 = scmp.lt.s32.totalorder %s10, 3
    %p188 = pnand %p186, %p187
    %p189 = pneg %p188
    // Predicated region
    $region9: #{dydensenet_forward.19} parent=5 // pred_check
      _
    $region10: #{dydensenet_forward.19} parent=5 // pred_check_branch
      %191 = sbr.rel (%p188) target = $region12
    $region11: #{dydensenet_forward.19} parent=5 // pred_region
      %s192 = ssub.s32 %s10, 1
      // Predicated region
      $region13: #{dydensenet_forward.19} parent=11 // pred_check
        %p193 = pneg %p122
      $region14: #{dydensenet_forward.19} parent=11 // pred_check_branch
        %195 = sbr.rel (%p193) target = $region16
      $region15: #{dydensenet_forward.19} parent=11 // pred_region
        %p196 = scmp.lt.s32.totalorder %s23, 0
        %s197 = scalar_select %p196, %s23, 0
        %s198 = scalar_lea.vmem %s2, %s197
      $region16: #{dydensenet_forward.19} parent=11 // pred_fallthru
        _
      // Predicated region
      $region17: #{dydensenet_forward.19} parent=11 // pred_check
        %p199 = pneg %p148
      $region18: #{dydensenet_forward.19} parent=11 // pred_check_branch
        %201 = sbr.rel (%p199) target = $region20
      $region19: #{dydensenet_forward.19} parent=11 // pred_region
        %p202 = scmp.lt.s32.totalorder %s23, 0
        %s203 = scalar_select %p202, %s23, 0
        %s204 = scalar_lea.vmem %s3, %s203
      $region20: #{dydensenet_forward.19} parent=11 // pred_fallthru
        _
    $region12: #{dydensenet_forward.19} parent=5 // pred_fallthru
      _
    %p205 = scmp.lt.s32.totalorder %s10, 2
    // Predicated region
    $region21: #{dydensenet_forward.19} parent=5 // pred_check
      %p206 = pneg %p205
    $region22: #{dydensenet_forward.19} parent=5 // pred_check_branch
      %208 = sbr.rel (%p206) target = $region24
    $region23: #{dydensenet_forward.19} parent=5 // pred_region
      // Predicated region
      $region25: #{dydensenet_forward.19} parent=23 // pred_check
        %p209 = pneg %p60
      $region26: #{dydensenet_forward.19} parent=23 // pred_check_branch
        %211 = sbr.rel (%p209) target = $region28
      $region27: #{dydensenet_forward.19} parent=23 // pred_region
        %s212 = smul.u32 32, %s18
        %p213 = scmp.lt.s32.totalorder %s17, 1
        %s214 = scalar_select %p213, %s17, 1
        %p215 = scmp.lt.s32.totalorder %s212, 31
        %s216 = scalar_select %p215, %s212, 31
        %p217 = scmp.lt.s32.totalorder %s20, 0
        %s218 = scalar_select %p217, %s20, 0
        %s219 = sadd.s32 %s218, %s216
        %s220 = smul.addr %s214, 32
        %s221 = sadd.s32 %s219, %s220
        %s222 = smul.addr %s221, 4
        %s223 = scalar_lea.vmem %s0, %s222
        %s224 = smul.u32 32, %s18
      $region28: #{dydensenet_forward.19} parent=23 // pred_fallthru
        _
      // Predicated region
      $region29: #{dydensenet_forward.19} parent=23 // pred_check
        %p225 = pneg %p90
      $region30: #{dydensenet_forward.19} parent=23 // pred_check_branch
        %227 = sbr.rel (%p225) target = $region32
      $region31: #{dydensenet_forward.19} parent=23 // pred_region
        %s228 = smul.u32 2, %s20
        %p229 = scmp.lt.s32.totalorder %s17, 1
        %s230 = scalar_select %p229, %s17, 1
        %p231 = scmp.lt.s32.totalorder %s228, 1
        %s232 = scalar_select %p231, %s228, 1
        %p233 = scmp.lt.s32.totalorder %s19, 0
        %s234 = scalar_select %p233, %s19, 0
        %s235 = sadd.s32 %s234, %s232
        %s236 = smul.addr %s230, 2
        %s237 = sadd.s32 %s235, %s236
        %s238 = smul.addr %s237, 4
        %s239 = scalar_lea.vmem %s1, %s238
        %s240 = smul.u32 2, %s20
      $region32: #{dydensenet_forward.19} parent=23 // pred_fallthru
        _
    $region24: #{dydensenet_forward.19} parent=5 // pred_fallthru
      _
    %p241 = scmp.le.s32.totalorder 1, %s10
    %p242 = scmp.lt.s32.totalorder %s10, 3
    %p243 = pnand %p241, %p242
    %p244 = pneg %p243
    // Predicated region
    $region33: #{dydensenet_forward.19} parent=5 // pred_check
      _
    $region34: #{dydensenet_forward.19} parent=5 // pred_check_branch
      %246 = sbr.rel (%p243) target = $region36
    $region35: #{dydensenet_forward.19} parent=5 // pred_region
      %s247 = ssub.s32 %s10, 1
      %s248 = smul.u32 32, %s22
      %p249 = scmp.lt.s32.totalorder %s21, 1
      %s250 = scalar_select %p249, %s21, 1
      %p251 = scmp.lt.s32.totalorder %s248, 31
      %s252 = scalar_select %p251, %s248, 31
      %p253 = scmp.lt.s32.totalorder %s24, 0
      %s254 = scalar_select %p253, %s24, 0
      %s255 = sadd.s32 %s254, %s252
      %s256 = smul.addr %s250, 32
      %s257 = sadd.s32 %s255, %s256
      %s258 = smul.addr %s257, 4
      %s259 = scalar_lea.vmem %s0, %s258
      %p260 = pneg %p66
      %p261 = pneg %p63
      %s262 = smul.u32 2, %s24
      %p263 = scmp.lt.s32.totalorder %s21, 1
      %s264 = scalar_select %p263, %s21, 1
      %p265 = scmp.lt.s32.totalorder %s262, 1
      %s266 = scalar_select %p265, %s262, 1
      %p267 = scmp.lt.s32.totalorder %s23, 0
      %s268 = scalar_select %p267, %s23, 0
      %s269 = sadd.s32 %s268, %s266
      %s270 = smul.addr %s264, 2
      %s271 = sadd.s32 %s269, %s270
      %s272 = smul.addr %s271, 4
      %s273 = scalar_lea.vmem %s1, %s272
      %p274 = pneg %p96
      %p275 = pneg %p93
      %p276 = scmp.lt.s32.totalorder %s23, 0
      %s277 = scalar_select %p276, %s23, 0
      %s278 = scalar_lea.vmem %s2, %s277
      %p279 = pneg %p122
      %p280 = pneg %p119
      %p281 = scmp.lt.s32.totalorder %s23, 0
      %s282 = scalar_select %p281, %s23, 0
      %s283 = scalar_lea.vmem %s3, %s282
      %p284 = pneg %p148
      %p285 = pneg %p145
      %p286 = pneg %p178
      %p287 = pneg %p175
      %s288 = smul.u32 32, %s22
      %p289 = scmp.lt.s32.totalorder %s21, 1
      %s290 = scalar_select %p289, %s21, 1
      %p291 = scmp.lt.s32.totalorder %s288, 31
      %s292 = scalar_select %p291, %s288, 31
      %p293 = scmp.lt.s32.totalorder %s23, 0
      %s294 = scalar_select %p293, %s23, 0
      %s295 = sadd.s32 %s294, %s292
      %s296 = smul.addr %s290, 32
      %s297 = sadd.s32 %s295, %s296
      %s298 = smul.addr %s297, 4
      %s299 = scalar_lea.vmem %s4, %s298
      %s300 = smul.u32 32, %s22
      %p301 = scmp.lt.s32.totalorder %s21, 1
      %s302 = scalar_select %p301, %s21, 1
      %p303 = scmp.lt.s32.totalorder %s300, 31
      %s304 = scalar_select %p303, %s300, 31
      %p305 = scmp.lt.s32.totalorder %s24, 0
      %s306 = scalar_select %p305, %s24, 0
      %s307 = sadd.s32 %s306, %s304
      %s308 = smul.addr %s302, 32
      %s309 = sadd.s32 %s307, %s308
      %s310 = smul.addr %s309, 4
      %s311 = scalar_lea.vmem %s0, %s310
      %s312 = smul.u32 32, %s22
      %s313 = smul.u32 2, %s24
      %p314 = scmp.lt.s32.totalorder %s21, 1
      %s315 = scalar_select %p314, %s21, 1
      %p316 = scmp.lt.s32.totalorder %s313, 1
      %s317 = scalar_select %p316, %s313, 1
      %p318 = scmp.lt.s32.totalorder %s23, 0
      %s319 = scalar_select %p318, %s23, 0
      %s320 = sadd.s32 %s319, %s317
      %s321 = smul.addr %s315, 2
      %s322 = sadd.s32 %s320, %s321
      %s323 = smul.addr %s322, 4
      %s324 = scalar_lea.vmem %s1, %s323
      %s325 = smul.u32 2, %s24
      %p326 = scmp.lt.s32.totalorder %s23, 0
      %s327 = scalar_select %p326, %s23, 0
      %s328 = scalar_lea.vmem %s2, %s327
      %p329 = scmp.lt.s32.totalorder %s23, 0
      %s330 = scalar_select %p329, %s23, 0
      %s331 = scalar_lea.vmem %s3, %s330
      %s332 = smul.u32 32, %s22
      %p333 = scmp.lt.s32.totalorder %s21, 1
      %s334 = scalar_select %p333, %s21, 1
      %p335 = scmp.lt.s32.totalorder %s332, 31
      %s336 = scalar_select %p335, %s332, 31
      %p337 = scmp.lt.s32.totalorder %s23, 0
      %s338 = scalar_select %p337, %s23, 0
      %s339 = sadd.s32 %s338, %s336
      %s340 = smul.addr %s334, 32
      %s341 = sadd.s32 %s339, %s340
      %s342 = smul.addr %s341, 4
      %s343 = scalar_lea.vmem %s4, %s342
      %s344 = smul.u32 32, %s22
      %p346 = scmp.eq.s32.totalorder %s24, 0
      // Predicated region
      $region37: #{dydensenet_forward.19} parent=35 // pred_check
        %p347 = pneg %p346
      $region38: #{dydensenet_forward.19} parent=35 // pred_check_branch
        %349 = sbr.rel (%p347) target = $region40
      $region39: #{dydensenet_forward.19} parent=35 // pred_region
        %vm350 = vcmask 130048
        %351 = vst.msk [vmem:[#allocation2] sm:$0xff] %vm350, 0.0
        %352 = vst.msk [vmem:[#allocation2 + $0x8] sm:$0xff] %vm350, 0.0
        %353 = vst.msk [vmem:[#allocation2 + $0x10] sm:$0xff] %vm350, 0.0
        %354 = vst.msk [vmem:[#allocation2 + $0x18] sm:$0xff] %vm350, 0.0
        %355 = vst.msk [vmem:[#allocation2 + $0x20] sm:$0xff] %vm350, 0.0
        %356 = vst.msk [vmem:[#allocation2 + $0x28] sm:$0xff] %vm350, 0.0
        %357 = vst.msk [vmem:[#allocation2 + $0x30] sm:$0xff] %vm350, 0.0
        %358 = vst.msk [vmem:[#allocation2 + $0x38] sm:$0xff] %vm350, 0.0
        %359 = vst.msk [vmem:[#allocation2 + $0x40] sm:$0xff] %vm350, 0.0
        %360 = vst.msk [vmem:[#allocation2 + $0x48] sm:$0xff] %vm350, 0.0
        %361 = vst.msk [vmem:[#allocation2 + $0x50] sm:$0xff] %vm350, 0.0
        %362 = vst.msk [vmem:[#allocation2 + $0x58] sm:$0xff] %vm350, 0.0
        %363 = vst.msk [vmem:[#allocation2 + $0x60] sm:$0xff] %vm350, 0.0
        %364 = vst.msk [vmem:[#allocation2 + $0x68] sm:$0xff] %vm350, 0.0
        %365 = vst.msk [vmem:[#allocation2 + $0x70] sm:$0xff] %vm350, 0.0
        %366 = vst.msk [vmem:[#allocation2 + $0x78] sm:$0xff] %vm350, 0.0
        %367 = vst.msk [vmem:[#allocation2 + $0x80] sm:$0xff] %vm350, 0.0
        %368 = vst.msk [vmem:[#allocation2 + $0x88] sm:$0xff] %vm350, 0.0
        %369 = vst.msk [vmem:[#allocation2 + $0x90] sm:$0xff] %vm350, 0.0
        %370 = vst.msk [vmem:[#allocation2 + $0x98] sm:$0xff] %vm350, 0.0
        %371 = vst.msk [vmem:[#allocation2 + $0xa0] sm:$0xff] %vm350, 0.0
        %372 = vst.msk [vmem:[#allocation2 + $0xa8] sm:$0xff] %vm350, 0.0
        %373 = vst.msk [vmem:[#allocation2 + $0xb0] sm:$0xff] %vm350, 0.0
        %374 = vst.msk [vmem:[#allocation2 + $0xb8] sm:$0xff] %vm350, 0.0
        %375 = vst.msk [vmem:[#allocation2 + $0xc0] sm:$0xff] %vm350, 0.0
        %376 = vst.msk [vmem:[#allocation2 + $0xc8] sm:$0xff] %vm350, 0.0
        %377 = vst.msk [vmem:[#allocation2 + $0xd0] sm:$0xff] %vm350, 0.0
        %378 = vst.msk [vmem:[#allocation2 + $0xd8] sm:$0xff] %vm350, 0.0
        %379 = vst.msk [vmem:[#allocation2 + $0xe0] sm:$0xff] %vm350, 0.0
        %380 = vst.msk [vmem:[#allocation2 + $0xe8] sm:$0xff] %vm350, 0.0
        %381 = vst.msk [vmem:[#allocation2 + $0xf0] sm:$0xff] %vm350, 0.0
        %382 = vst.msk [vmem:[#allocation2 + $0xf8] sm:$0xff] %vm350, 0.0
      $region40: #{dydensenet_forward.19} parent=35 // pred_fallthru
        _
      %v383 = vld [vmem:[#allocation2] sm:$0xff]
      %v384 = vld [vmem:[#allocation2 + $0x8] sm:$0xff]
      %v385 = vld [vmem:[#allocation2 + $0x10] sm:$0xff]
      %v386 = vld [vmem:[#allocation2 + $0x18] sm:$0xff]
      %v387 = vld [vmem:[#allocation2 + $0x20] sm:$0xff]
      %v388 = vld [vmem:[#allocation2 + $0x28] sm:$0xff]
      %v389 = vld [vmem:[#allocation2 + $0x30] sm:$0xff]
      %v390 = vld [vmem:[#allocation2 + $0x38] sm:$0xff]
      %v391 = vld [vmem:[#allocation2 + $0x40] sm:$0xff]
      %v392 = vld [vmem:[#allocation2 + $0x48] sm:$0xff]
      %v393 = vld [vmem:[#allocation2 + $0x50] sm:$0xff]
      %v394 = vld [vmem:[#allocation2 + $0x58] sm:$0xff]
      %v395 = vld [vmem:[#allocation2 + $0x60] sm:$0xff]
      %v396 = vld [vmem:[#allocation2 + $0x68] sm:$0xff]
      %v397 = vld [vmem:[#allocation2 + $0x70] sm:$0xff]
      %v398 = vld [vmem:[#allocation2 + $0x78] sm:$0xff]
      %v399 = vld [vmem:[#allocation2 + $0x80] sm:$0xff]
      %v400 = vld [vmem:[#allocation2 + $0x88] sm:$0xff]
      %v401 = vld [vmem:[#allocation2 + $0x90] sm:$0xff]
      %v402 = vld [vmem:[#allocation2 + $0x98] sm:$0xff]
      %v403 = vld [vmem:[#allocation2 + $0xa0] sm:$0xff]
      %v404 = vld [vmem:[#allocation2 + $0xa8] sm:$0xff]
      %v405 = vld [vmem:[#allocation2 + $0xb0] sm:$0xff]
      %v406 = vld [vmem:[#allocation2 + $0xb8] sm:$0xff]
      %v407 = vld [vmem:[#allocation2 + $0xc0] sm:$0xff]
      %v408 = vld [vmem:[#allocation2 + $0xc8] sm:$0xff]
      %v409 = vld [vmem:[#allocation2 + $0xd0] sm:$0xff]
      %v410 = vld [vmem:[#allocation2 + $0xd8] sm:$0xff]
      %v411 = vld [vmem:[#allocation2 + $0xe0] sm:$0xff]
      %v412 = vld [vmem:[#allocation2 + $0xe8] sm:$0xff]
      %v413 = vld [vmem:[#allocation2 + $0xf0] sm:$0xff]
      %v414 = vld [vmem:[#allocation2 + $0xf8] sm:$0xff]
      %v415 = vld [vmem:[%s311] sm:$0xf]
      %v416 = vld [vmem:[%s311 + $0x4] sm:$0xf]
      %v417 = vld [vmem:[%s311 + $0x8] sm:$0xf]
      %v418 = vld [vmem:[%s311 + $0xc] sm:$0xf]
      %v419 = vld [vmem:[%s311 + $0x10] sm:$0xf]
      %v420 = vld [vmem:[%s311 + $0x14] sm:$0xf]
      %v421 = vld [vmem:[%s311 + $0x18] sm:$0xf]
      %v422 = vld [vmem:[%s311 + $0x1c] sm:$0xf]
      %v423 = vld [vmem:[%s311 + $0x20] sm:$0xf]
      %v424 = vld [vmem:[%s311 + $0x24] sm:$0xf]
      %v425 = vld [vmem:[%s311 + $0x28] sm:$0xf]
      %v426 = vld [vmem:[%s311 + $0x2c] sm:$0xf]
      %v427 = vld [vmem:[%s311 + $0x30] sm:$0xf]
      %v428 = vld [vmem:[%s311 + $0x34] sm:$0xf]
      %v429 = vld [vmem:[%s311 + $0x38] sm:$0xf]
      %v430 = vld [vmem:[%s311 + $0x3c] sm:$0xf]
      %v431 = vld [vmem:[%s311 + $0x40] sm:$0xf]
      %v432 = vld [vmem:[%s311 + $0x44] sm:$0xf]
      %v433 = vld [vmem:[%s311 + $0x48] sm:$0xf]
      %v434 = vld [vmem:[%s311 + $0x4c] sm:$0xf]
      %v435 = vld [vmem:[%s311 + $0x50] sm:$0xf]
      %v436 = vld [vmem:[%s311 + $0x54] sm:$0xf]
      %v437 = vld [vmem:[%s311 + $0x58] sm:$0xf]
      %v438 = vld [vmem:[%s311 + $0x5c] sm:$0xf]
      %v439 = vld [vmem:[%s311 + $0x60] sm:$0xf]
      %v440 = vld [vmem:[%s311 + $0x64] sm:$0xf]
      %v441 = vld [vmem:[%s311 + $0x68] sm:$0xf]
      %v442 = vld [vmem:[%s311 + $0x6c] sm:$0xf]
      %v443 = vld [vmem:[%s311 + $0x70] sm:$0xf]
      %v444 = vld [vmem:[%s311 + $0x74] sm:$0xf]
      %v445 = vld [vmem:[%s311 + $0x78] sm:$0xf]
      %v446 = vld [vmem:[%s311 + $0x7c] sm:$0xf]
      %v447 = vld [vmem:[%s324] sm:$0xf]
      %v448 = vld [vmem:[%s324 + $0x4] sm:$0x3]
      %v481 = vunpack.c.l.b16 %v415
      %v482 = vunpack.c.l.b16 %v416
      %v483 = vunpack.c.l.b16 %v417
      %v484 = vunpack.c.l.b16 %v418
      %v485 = vunpack.c.l.b16 %v419
      %v486 = vunpack.c.l.b16 %v420
      %v487 = vunpack.c.l.b16 %v421
      %v488 = vunpack.c.l.b16 %v422
      %v489 = vunpack.c.l.b16 %v423
      %v490 = vunpack.c.l.b16 %v424
      %v491 = vunpack.c.l.b16 %v425
      %v492 = vunpack.c.l.b16 %v426
      %v493 = vunpack.c.l.b16 %v427
      %v494 = vunpack.c.l.b16 %v428
      %v495 = vunpack.c.l.b16 %v429
      %v496 = vunpack.c.l.b16 %v430
      %v497 = vunpack.c.l.b16 %v431
      %v498 = vunpack.c.l.b16 %v432
      %v499 = vunpack.c.l.b16 %v433
      %v500 = vunpack.c.l.b16 %v434
      %v501 = vunpack.c.l.b16 %v435
      %v502 = vunpack.c.l.b16 %v436
      %v503 = vunpack.c.l.b16 %v437
      %v504 = vunpack.c.l.b16 %v438
      %v505 = vunpack.c.l.b16 %v439
      %v506 = vunpack.c.l.b16 %v440
      %v507 = vunpack.c.l.b16 %v441
      %v508 = vunpack.c.l.b16 %v442
      %v509 = vunpack.c.l.b16 %v443
      %v510 = vunpack.c.l.b16 %v444
      %v511 = vunpack.c.l.b16 %v445
      %v512 = vunpack.c.l.b16 %v446
      %v513 = vpack.c.b16 %v482, %v481
      %v514 = vpack.c.b16 %v484, %v483
      %v515 = vpack.c.b16 %v486, %v485
      %v516 = vpack.c.b16 %v488, %v487
      %v517 = vpack.c.b16 %v490, %v489
      %v518 = vpack.c.b16 %v492, %v491
      %v519 = vpack.c.b16 %v494, %v493
      %v520 = vpack.c.b16 %v496, %v495
      %v521 = vpack.c.b16 %v498, %v497
      %v522 = vpack.c.b16 %v500, %v499
      %v523 = vpack.c.b16 %v502, %v501
      %v524 = vpack.c.b16 %v504, %v503
      %v525 = vpack.c.b16 %v506, %v505
      %v526 = vpack.c.b16 %v508, %v507
      %v527 = vpack.c.b16 %v510, %v509
      %v528 = vpack.c.b16 %v512, %v511
      %v531 = vunpack.c.l.b16 %v447
      %v532 = vunpack.c.l.b16 %v448
      %v533 = vpack.c.b16 %v532, %v531
      %vm534 = vcmask 97280
      %v536 = vsel %vm534, %v513, 0
      %v539 = vsel %vm534, %v514, 0
      %v542 = vsel %vm534, %v515, 0
      %v545 = vsel %vm534, %v516, 0
      %v548 = vsel %vm534, %v517, 0
      %v551 = vsel %vm534, %v518, 0
      %v554 = vsel %vm534, %v519, 0
      %v557 = vsel %vm534, %v520, 0
      %v560 = vsel %vm534, %v521, 0
      %v563 = vsel %vm534, %v522, 0
      %v566 = vsel %vm534, %v523, 0
      %v569 = vsel %vm534, %v524, 0
      %v572 = vsel %vm534, %v525, 0
      %v575 = vsel %vm534, %v526, 0
      %v578 = vsel %vm534, %v527, 0
      %v581 = vsel %vm534, %v528, 0
      %vm583 = vcmask 1045504
      %v585 = vsel %vm583, %v533, 0
      %587 = vmatprep.subr.bf16.mxu0 0
      %588 = vmatpush1.bf16.msra.mxu0 0
      %589 = vmatprep.subr.bf16.mxu0 0
      %590 = vmatpush1.bf16.msra.mxu0 0
      %591 = vmatprep.subr.bf16.mxu0 0
      %592 = vmatpush1.bf16.msra.mxu0 0
      %593 = vmatprep.subr.bf16.mxu0 0
      %594 = vmatpush1.bf16.msra.mxu0 0
      %595 = vmatprep.subr.bf16.mxu0 0
      %596 = vmatpush1.bf16.msra.mxu0 0
      %597 = vmatprep.subr.bf16.mxu0 0
      %598 = vmatpush1.bf16.msra.mxu0 0
      %599 = vmatprep.subr.bf16.mxu0 0
      %600 = vmatpush1.bf16.msra.mxu0 0
      %601 = vmatprep.subr.bf16.mxu0 0
      %602 = vmatpush1.bf16.msra.mxu0 %v585
      %603 = vmatprep.subr.bf16.mxu0 0
      %604 = vmatpush2.bf16.msra.mxu0 0
      %605 = vmatprep.subr.bf16.mxu0 0
      %606 = vmatpush2.bf16.msra.mxu0 0
      %607 = vmatprep.subr.bf16.mxu0 0
      %608 = vmatpush2.bf16.msra.mxu0 0
      %609 = vmatprep.subr.bf16.mxu0 0
      %610 = vmatpush2.bf16.msra.mxu0 0
      %611 = vmatprep.subr.bf16.mxu0 0
      %612 = vmatpush2.bf16.msra.mxu0 0
      %613 = vmatprep.subr.bf16.mxu0 0
      %614 = vmatpush2.bf16.msra.mxu0 0
      %615 = vmatprep.subr.bf16.mxu0 0
      %616 = vmatpush2.bf16.msra.mxu0 0
      %617 = vmatprep.subr.bf16.mxu0 0
      %618 = vmatpush2.bf16.msra.mxu0 0
      %619 = vmatprep.mubr.bf16.mxu0 0
      %620 = vmatmul.mubr.bf16.gmra.mxu0 %v536
      %v621 = vpop.f32.mrf.mxu0
      %v622 = vadd.f32 0.0, %v621
      %v623 = vpop.f32.mrf.mxu0
      %v624 = vpop.f32.mrf.mxu0
      %v625 = vadd.f32 0.0, %v624
      %v626 = vpop.f32.mrf.mxu0
      %627 = vmatprep.mubr.bf16.mxu0 0
      %628 = vmatmul.mubr.bf16.gmra.mxu0 %v539
      %v629 = vpop.f32.mrf.mxu0
      %v630 = vadd.f32 0.0, %v629
      %v631 = vpop.f32.mrf.mxu0
      %v632 = vpop.f32.mrf.mxu0
      %v633 = vadd.f32 0.0, %v632
      %v634 = vpop.f32.mrf.mxu0
      %635 = vmatprep.mubr.bf16.mxu0 0
      %636 = vmatmul.mubr.bf16.gmra.mxu0 %v542
      %v637 = vpop.f32.mrf.mxu0
      %v638 = vadd.f32 0.0, %v637
      %v639 = vpop.f32.mrf.mxu0
      %v640 = vpop.f32.mrf.mxu0
      %v641 = vadd.f32 0.0, %v640
      %v642 = vpop.f32.mrf.mxu0
      %643 = vmatprep.mubr.bf16.mxu0 0
      %644 = vmatmul.mubr.bf16.gmra.mxu0 %v545
      %v645 = vpop.f32.mrf.mxu0
      %v646 = vadd.f32 0.0, %v645
      %v647 = vpop.f32.mrf.mxu0
      %v648 = vpop.f32.mrf.mxu0
      %v649 = vadd.f32 0.0, %v648
      %v650 = vpop.f32.mrf.mxu0
      %651 = vmatprep.mubr.bf16.mxu0 0
      %652 = vmatmul.mubr.bf16.gmra.mxu0 %v548
      %v653 = vpop.f32.mrf.mxu0
      %v654 = vadd.f32 0.0, %v653
      %v655 = vpop.f32.mrf.mxu0
      %v656 = vpop.f32.mrf.mxu0
      %v657 = vadd.f32 0.0, %v656
      %v658 = vpop.f32.mrf.mxu0
      %659 = vmatprep.mubr.bf16.mxu0 0
      %660 = vmatmul.mubr.bf16.gmra.mxu0 %v551
      %v661 = vpop.f32.mrf.mxu0
      %v662 = vadd.f32 0.0, %v661
      %v663 = vpop.f32.mrf.mxu0
      %v664 = vpop.f32.mrf.mxu0
      %v665 = vadd.f32 0.0, %v664
      %v666 = vpop.f32.mrf.mxu0
      %667 = vmatprep.mubr.bf16.mxu0 0
      %668 = vmatmul.mubr.bf16.gmra.mxu0 %v554
      %v669 = vpop.f32.mrf.mxu0
      %v670 = vadd.f32 0.0, %v669
      %v671 = vpop.f32.mrf.mxu0
      %v672 = vpop.f32.mrf.mxu0
      %v673 = vadd.f32 0.0, %v672
      %v674 = vpop.f32.mrf.mxu0
      %675 = vmatprep.mubr.bf16.mxu0 0
      %676 = vmatmul.mubr.bf16.gmra.mxu0 %v557
      %v677 = vpop.f32.mrf.mxu0
      %v678 = vadd.f32 0.0, %v677
      %v679 = vpop.f32.mrf.mxu0
      %v680 = vpop.f32.mrf.mxu0
      %v681 = vadd.f32 0.0, %v680
      %v682 = vpop.f32.mrf.mxu0
      %683 = vmatprep.mubr.bf16.mxu0 0
      %684 = vmatmul.mubr.bf16.gmra.mxu0 %v560
      %v685 = vpop.f32.mrf.mxu0
      %v686 = vadd.f32 0.0, %v685
      %v687 = vpop.f32.mrf.mxu0
      %v688 = vpop.f32.mrf.mxu0
      %v689 = vadd.f32 0.0, %v688
      %v690 = vpop.f32.mrf.mxu0
      %691 = vmatprep.mubr.bf16.mxu0 0
      %692 = vmatmul.mubr.bf16.gmra.mxu0 %v563
      %v693 = vpop.f32.mrf.mxu0
      %v694 = vadd.f32 0.0, %v693
      %v695 = vpop.f32.mrf.mxu0
      %v696 = vpop.f32.mrf.mxu0
      %v697 = vadd.f32 0.0, %v696
      %v698 = vpop.f32.mrf.mxu0
      %699 = vmatprep.mubr.bf16.mxu0 0
      %700 = vmatmul.mubr.bf16.gmra.mxu0 %v566
      %v701 = vpop.f32.mrf.mxu0
      %v702 = vadd.f32 0.0, %v701
      %v703 = vpop.f32.mrf.mxu0
      %v704 = vpop.f32.mrf.mxu0
      %v705 = vadd.f32 0.0, %v704
      %v706 = vpop.f32.mrf.mxu0
      %707 = vmatprep.mubr.bf16.mxu0 0
      %708 = vmatmul.mubr.bf16.gmra.mxu0 %v569
      %v709 = vpop.f32.mrf.mxu0
      %v710 = vadd.f32 0.0, %v709
      %v711 = vpop.f32.mrf.mxu0
      %v712 = vpop.f32.mrf.mxu0
      %v713 = vadd.f32 0.0, %v712
      %v714 = vpop.f32.mrf.mxu0
      %715 = vmatprep.mubr.bf16.mxu0 0
      %716 = vmatmul.mubr.bf16.gmra.mxu0 %v572
      %v717 = vpop.f32.mrf.mxu0
      %v718 = vadd.f32 0.0, %v717
      %v719 = vpop.f32.mrf.mxu0
      %v720 = vpop.f32.mrf.mxu0
      %v721 = vadd.f32 0.0, %v720
      %v722 = vpop.f32.mrf.mxu0
      %723 = vmatprep.mubr.bf16.mxu0 0
      %724 = vmatmul.mubr.bf16.gmra.mxu0 %v575
      %v725 = vpop.f32.mrf.mxu0
      %v726 = vadd.f32 0.0, %v725
      %v727 = vpop.f32.mrf.mxu0
      %v728 = vpop.f32.mrf.mxu0
      %v729 = vadd.f32 0.0, %v728
      %v730 = vpop.f32.mrf.mxu0
      %731 = vmatprep.mubr.bf16.mxu0 0
      %732 = vmatmul.mubr.bf16.gmra.mxu0 %v578
      %v733 = vpop.f32.mrf.mxu0
      %v734 = vadd.f32 0.0, %v733
      %v735 = vpop.f32.mrf.mxu0
      %v736 = vpop.f32.mrf.mxu0
      %v737 = vadd.f32 0.0, %v736
      %v738 = vpop.f32.mrf.mxu0
      %739 = vmatprep.mubr.bf16.mxu0 0
      %740 = vmatmul.mubr.bf16.gmra.mxu0 %v581
      %v741 = vpop.f32.mrf.mxu0
      %v742 = vadd.f32 0.0, %v741
      %v743 = vpop.f32.mrf.mxu0
      %v744 = vpop.f32.mrf.mxu0
      %v745 = vadd.f32 0.0, %v744
      %v746 = vpop.f32.mrf.mxu0
      %747 = vdwg.mxu0
      %v748 = vadd.f32 %v383, %v622
      %v749 = vadd.f32 %v384, %v625
      %v750 = vadd.f32 %v385, %v630
      %v751 = vadd.f32 %v386, %v633
      %v752 = vadd.f32 %v387, %v638
      %v753 = vadd.f32 %v388, %v641
      %v754 = vadd.f32 %v389, %v646
      %v755 = vadd.f32 %v390, %v649
      %v756 = vadd.f32 %v391, %v654
      %v757 = vadd.f32 %v392, %v657
      %v758 = vadd.f32 %v393, %v662
      %v759 = vadd.f32 %v394, %v665
      %v760 = vadd.f32 %v395, %v670
      %v761 = vadd.f32 %v396, %v673
      %v762 = vadd.f32 %v397, %v678
      %v763 = vadd.f32 %v398, %v681
      %v764 = vadd.f32 %v399, %v686
      %v765 = vadd.f32 %v400, %v689
      %v766 = vadd.f32 %v401, %v694
      %v767 = vadd.f32 %v402, %v697
      %v768 = vadd.f32 %v403, %v702
      %v769 = vadd.f32 %v404, %v705
      %v770 = vadd.f32 %v405, %v710
      %v771 = vadd.f32 %v406, %v713
      %v772 = vadd.f32 %v407, %v718
      %v773 = vadd.f32 %v408, %v721
      %v774 = vadd.f32 %v409, %v726
      %v775 = vadd.f32 %v410, %v729
      %v776 = vadd.f32 %v411, %v734
      %v777 = vadd.f32 %v412, %v737
      %v778 = vadd.f32 %v413, %v742
      %v779 = vadd.f32 %v414, %v745
      %vm780 = vcmask 130048
      %781 = vst.msk [vmem:[#allocation2] sm:$0xff] %vm780, %v748
      %782 = vst.msk [vmem:[#allocation2 + $0x8] sm:$0xff] %vm780, %v749
      %783 = vst.msk [vmem:[#allocation2 + $0x10] sm:$0xff] %vm780, %v750
      %784 = vst.msk [vmem:[#allocation2 + $0x18] sm:$0xff] %vm780, %v751
      %785 = vst.msk [vmem:[#allocation2 + $0x20] sm:$0xff] %vm780, %v752
      %786 = vst.msk [vmem:[#allocation2 + $0x28] sm:$0xff] %vm780, %v753
      %787 = vst.msk [vmem:[#allocation2 + $0x30] sm:$0xff] %vm780, %v754
      %788 = vst.msk [vmem:[#allocation2 + $0x38] sm:$0xff] %vm780, %v755
      %789 = vst.msk [vmem:[#allocation2 + $0x40] sm:$0xff] %vm780, %v756
      %790 = vst.msk [vmem:[#allocation2 + $0x48] sm:$0xff] %vm780, %v757
      %791 = vst.msk [vmem:[#allocation2 + $0x50] sm:$0xff] %vm780, %v758
      %792 = vst.msk [vmem:[#allocation2 + $0x58] sm:$0xff] %vm780, %v759
      %793 = vst.msk [vmem:[#allocation2 + $0x60] sm:$0xff] %vm780, %v760
      %794 = vst.msk [vmem:[#allocation2 + $0x68] sm:$0xff] %vm780, %v761
      %795 = vst.msk [vmem:[#allocation2 + $0x70] sm:$0xff] %vm780, %v762
      %796 = vst.msk [vmem:[#allocation2 + $0x78] sm:$0xff] %vm780, %v763
      %797 = vst.msk [vmem:[#allocation2 + $0x80] sm:$0xff] %vm780, %v764
      %798 = vst.msk [vmem:[#allocation2 + $0x88] sm:$0xff] %vm780, %v765
      %799 = vst.msk [vmem:[#allocation2 + $0x90] sm:$0xff] %vm780, %v766
      %800 = vst.msk [vmem:[#allocation2 + $0x98] sm:$0xff] %vm780, %v767
      %801 = vst.msk [vmem:[#allocation2 + $0xa0] sm:$0xff] %vm780, %v768
      %802 = vst.msk [vmem:[#allocation2 + $0xa8] sm:$0xff] %vm780, %v769
      %803 = vst.msk [vmem:[#allocation2 + $0xb0] sm:$0xff] %vm780, %v770
      %804 = vst.msk [vmem:[#allocation2 + $0xb8] sm:$0xff] %vm780, %v771
      %805 = vst.msk [vmem:[#allocation2 + $0xc0] sm:$0xff] %vm780, %v772
      %806 = vst.msk [vmem:[#allocation2 + $0xc8] sm:$0xff] %vm780, %v773
      %807 = vst.msk [vmem:[#allocation2 + $0xd0] sm:$0xff] %vm780, %v774
      %808 = vst.msk [vmem:[#allocation2 + $0xd8] sm:$0xff] %vm780, %v775
      %809 = vst.msk [vmem:[#allocation2 + $0xe0] sm:$0xff] %vm780, %v776
      %810 = vst.msk [vmem:[#allocation2 + $0xe8] sm:$0xff] %vm780, %v777
      %811 = vst.msk [vmem:[#allocation2 + $0xf0] sm:$0xff] %vm780, %v778
      %812 = vst.msk [vmem:[#allocation2 + $0xf8] sm:$0xff] %vm780, %v779
      // Predicated region
      $region41: #{dydensenet_forward.19} parent=35 // pred_check
        %p813 = pneg %p346
      $region42: #{dydensenet_forward.19} parent=35 // pred_check_branch
        %815 = sbr.rel (%p813) target = $region44
      $region43: #{dydensenet_forward.19} parent=35 // pred_region
        %v816 = vld [vmem:[#allocation2] sm:$0xff]
        %v817 = vld [vmem:[#allocation2 + $0x8] sm:$0xff]
        %v818 = vld [vmem:[#allocation2 + $0x10] sm:$0xff]
        %v819 = vld [vmem:[#allocation2 + $0x18] sm:$0xff]
        %v820 = vld [vmem:[#allocation2 + $0x20] sm:$0xff]
        %v821 = vld [vmem:[#allocation2 + $0x28] sm:$0xff]
        %v822 = vld [vmem:[#allocation2 + $0x30] sm:$0xff]
        %v823 = vld [vmem:[#allocation2 + $0x38] sm:$0xff]
        %v824 = vld [vmem:[#allocation2 + $0x40] sm:$0xff]
        %v825 = vld [vmem:[#allocation2 + $0x48] sm:$0xff]
        %v826 = vld [vmem:[#allocation2 + $0x50] sm:$0xff]
        %v827 = vld [vmem:[#allocation2 + $0x58] sm:$0xff]
        %v828 = vld [vmem:[#allocation2 + $0x60] sm:$0xff]
        %v829 = vld [vmem:[#allocation2 + $0x68] sm:$0xff]
        %v830 = vld [vmem:[#allocation2 + $0x70] sm:$0xff]
        %v831 = vld [vmem:[#allocation2 + $0x78] sm:$0xff]
        %v832 = vld [vmem:[#allocation2 + $0x80] sm:$0xff]
        %v833 = vld [vmem:[#allocation2 + $0x88] sm:$0xff]
        %v834 = vld [vmem:[#allocation2 + $0x90] sm:$0xff]
        %v835 = vld [vmem:[#allocation2 + $0x98] sm:$0xff]
        %v836 = vld [vmem:[#allocation2 + $0xa0] sm:$0xff]
        %v837 = vld [vmem:[#allocation2 + $0xa8] sm:$0xff]
        %v838 = vld [vmem:[#allocation2 + $0xb0] sm:$0xff]
        %v839 = vld [vmem:[#allocation2 + $0xb8] sm:$0xff]
        %v840 = vld [vmem:[#allocation2 + $0xc0] sm:$0xff]
        %v841 = vld [vmem:[#allocation2 + $0xc8] sm:$0xff]
        %v842 = vld [vmem:[#allocation2 + $0xd0] sm:$0xff]
        %v843 = vld [vmem:[#allocation2 + $0xd8] sm:$0xff]
        %v844 = vld [vmem:[#allocation2 + $0xe0] sm:$0xff]
        %v845 = vld [vmem:[#allocation2 + $0xe8] sm:$0xff]
        %v846 = vld [vmem:[#allocation2 + $0xf0] sm:$0xff]
        %v847 = vld [vmem:[#allocation2 + $0xf8] sm:$0xff]
        %v848 = vld [vmem:[%s328] sm:$0x1]
        %v850 = vlaneseq
        %v851 = vshrl.u32 %v850, 7
        %v852 = vsub.s32 0, %v851
        %v853 = vrot.slane %v848, %v852
        %v855 = vmul.f32 %v816, %v853
        %v856 = vmul.f32 %v817, %v853
        %v857 = vmul.f32 %v818, %v853
        %v858 = vmul.f32 %v819, %v853
        %v859 = vmul.f32 %v820, %v853
        %v860 = vmul.f32 %v821, %v853
        %v861 = vmul.f32 %v822, %v853
        %v862 = vmul.f32 %v823, %v853
        %v863 = vmul.f32 %v824, %v853
        %v864 = vmul.f32 %v825, %v853
        %v865 = vmul.f32 %v826, %v853
        %v866 = vmul.f32 %v827, %v853
        %v867 = vmul.f32 %v828, %v853
        %v868 = vmul.f32 %v829, %v853
        %v869 = vmul.f32 %v830, %v853
        %v870 = vmul.f32 %v831, %v853
        %v871 = vmul.f32 %v832, %v853
        %v872 = vmul.f32 %v833, %v853
        %v873 = vmul.f32 %v834, %v853
        %v874 = vmul.f32 %v835, %v853
        %v875 = vmul.f32 %v836, %v853
        %v876 = vmul.f32 %v837, %v853
        %v877 = vmul.f32 %v838, %v853
        %v878 = vmul.f32 %v839, %v853
        %v879 = vmul.f32 %v840, %v853
        %v880 = vmul.f32 %v841, %v853
        %v881 = vmul.f32 %v842, %v853
        %v882 = vmul.f32 %v843, %v853
        %v883 = vmul.f32 %v844, %v853
        %v884 = vmul.f32 %v845, %v853
        %v885 = vmul.f32 %v846, %v853
        %v886 = vmul.f32 %v847, %v853
        %v887 = vld [vmem:[%s331] sm:$0x1]
        %v889 = vlaneseq
        %v890 = vshrl.u32 %v889, 7
        %v891 = vsub.s32 0, %v890
        %v892 = vrot.slane %v887, %v891
        %v894 = vadd.f32 %v855, %v892
        %v895 = vadd.f32 %v856, %v892
        %v896 = vadd.f32 %v857, %v892
        %v897 = vadd.f32 %v858, %v892
        %v898 = vadd.f32 %v859, %v892
        %v899 = vadd.f32 %v860, %v892
        %v900 = vadd.f32 %v861, %v892
        %v901 = vadd.f32 %v862, %v892
        %v902 = vadd.f32 %v863, %v892
        %v903 = vadd.f32 %v864, %v892
        %v904 = vadd.f32 %v865, %v892
        %v905 = vadd.f32 %v866, %v892
        %v906 = vadd.f32 %v867, %v892
        %v907 = vadd.f32 %v868, %v892
        %v908 = vadd.f32 %v869, %v892
        %v909 = vadd.f32 %v870, %v892
        %v910 = vadd.f32 %v871, %v892
        %v911 = vadd.f32 %v872, %v892
        %v912 = vadd.f32 %v873, %v892
        %v913 = vadd.f32 %v874, %v892
        %v914 = vadd.f32 %v875, %v892
        %v915 = vadd.f32 %v876, %v892
        %v916 = vadd.f32 %v877, %v892
        %v917 = vadd.f32 %v878, %v892
        %v918 = vadd.f32 %v879, %v892
        %v919 = vadd.f32 %v880, %v892
        %v920 = vadd.f32 %v881, %v892
        %v921 = vadd.f32 %v882, %v892
        %v922 = vadd.f32 %v883, %v892
        %v923 = vadd.f32 %v884, %v892
        %v924 = vadd.f32 %v885, %v892
        %v925 = vadd.f32 %v886, %v892
        %v926 = vmax.f32 %v894, 0.0
        %v927 = vmax.f32 %v895, 0.0
        %v928 = vmax.f32 %v896, 0.0
        %v929 = vmax.f32 %v897, 0.0
        %v930 = vmax.f32 %v898, 0.0
        %v931 = vmax.f32 %v899, 0.0
        %v932 = vmax.f32 %v900, 0.0
        %v933 = vmax.f32 %v901, 0.0
        %v934 = vmax.f32 %v902, 0.0
        %v935 = vmax.f32 %v903, 0.0
        %v936 = vmax.f32 %v904, 0.0
        %v937 = vmax.f32 %v905, 0.0
        %v938 = vmax.f32 %v906, 0.0
        %v939 = vmax.f32 %v907, 0.0
        %v940 = vmax.f32 %v908, 0.0
        %v941 = vmax.f32 %v909, 0.0
        %v942 = vmax.f32 %v910, 0.0
        %v943 = vmax.f32 %v911, 0.0
        %v944 = vmax.f32 %v912, 0.0
        %v945 = vmax.f32 %v913, 0.0
        %v946 = vmax.f32 %v914, 0.0
        %v947 = vmax.f32 %v915, 0.0
        %v948 = vmax.f32 %v916, 0.0
        %v949 = vmax.f32 %v917, 0.0
        %v950 = vmax.f32 %v918, 0.0
        %v951 = vmax.f32 %v919, 0.0
        %v952 = vmax.f32 %v920, 0.0
        %v953 = vmax.f32 %v921, 0.0
        %v954 = vmax.f32 %v922, 0.0
        %v955 = vmax.f32 %v923, 0.0
        %v956 = vmax.f32 %v924, 0.0
        %v957 = vmax.f32 %v925, 0.0
        %v958 = vpack.c.bf16 %v927, %v926
        %v959 = vpack.c.bf16 %v929, %v928
        %v960 = vpack.c.bf16 %v931, %v930
        %v961 = vpack.c.bf16 %v933, %v932
        %v962 = vpack.c.bf16 %v935, %v934
        %v963 = vpack.c.bf16 %v937, %v936
        %v964 = vpack.c.bf16 %v939, %v938
        %v965 = vpack.c.bf16 %v941, %v940
        %v966 = vpack.c.bf16 %v943, %v942
        %v967 = vpack.c.bf16 %v945, %v944
        %v968 = vpack.c.bf16 %v947, %v946
        %v969 = vpack.c.bf16 %v949, %v948
        %v970 = vpack.c.bf16 %v951, %v950
        %v971 = vpack.c.bf16 %v953, %v952
        %v972 = vpack.c.bf16 %v955, %v954
        %v973 = vpack.c.bf16 %v957, %v956
        %v990 = vunpack.c.l.b16 %v958
        %v991 = vunpack.c.h.b16 %v958
        %v992 = vunpack.c.l.b16 %v959
        %v993 = vunpack.c.h.b16 %v959
        %v994 = vunpack.c.l.b16 %v960
        %v995 = vunpack.c.h.b16 %v960
        %v996 = vunpack.c.l.b16 %v961
        %v997 = vunpack.c.h.b16 %v961
        %v998 = vunpack.c.l.b16 %v962
        %v999 = vunpack.c.h.b16 %v962
        %v1000 = vunpack.c.l.b16 %v963
        %v1001 = vunpack.c.h.b16 %v963
        %v1002 = vunpack.c.l.b16 %v964
        %v1003 = vunpack.c.h.b16 %v964
        %v1004 = vunpack.c.l.b16 %v965
        %v1005 = vunpack.c.h.b16 %v965
        %v1006 = vunpack.c.l.b16 %v966
        %v1007 = vunpack.c.h.b16 %v966
        %v1008 = vunpack.c.l.b16 %v967
        %v1009 = vunpack.c.h.b16 %v967
        %v1010 = vunpack.c.l.b16 %v968
        %v1011 = vunpack.c.h.b16 %v968
        %v1012 = vunpack.c.l.b16 %v969
        %v1013 = vunpack.c.h.b16 %v969
        %v1014 = vunpack.c.l.b16 %v970
        %v1015 = vunpack.c.h.b16 %v970
        %v1016 = vunpack.c.l.b16 %v971
        %v1017 = vunpack.c.h.b16 %v971
        %v1018 = vunpack.c.l.b16 %v972
        %v1019 = vunpack.c.h.b16 %v972
        %v1020 = vunpack.c.l.b16 %v973
        %v1021 = vunpack.c.h.b16 %v973
        %v1022 = vpack.c.b16 %v990, %v990
        %v1023 = vpack.c.b16 %v991, %v991
        %v1024 = vpack.c.b16 %v992, %v992
        %v1025 = vpack.c.b16 %v993, %v993
        %v1026 = vpack.c.b16 %v994, %v994
        %v1027 = vpack.c.b16 %v995, %v995
        %v1028 = vpack.c.b16 %v996, %v996
        %v1029 = vpack.c.b16 %v997, %v997
        %v1030 = vpack.c.b16 %v998, %v998
        %v1031 = vpack.c.b16 %v999, %v999
        %v1032 = vpack.c.b16 %v1000, %v1000
        %v1033 = vpack.c.b16 %v1001, %v1001
        %v1034 = vpack.c.b16 %v1002, %v1002
        %v1035 = vpack.c.b16 %v1003, %v1003
        %v1036 = vpack.c.b16 %v1004, %v1004
        %v1037 = vpack.c.b16 %v1005, %v1005
        %v1038 = vpack.c.b16 %v1006, %v1006
        %v1039 = vpack.c.b16 %v1007, %v1007
        %v1040 = vpack.c.b16 %v1008, %v1008
        %v1041 = vpack.c.b16 %v1009, %v1009
        %v1042 = vpack.c.b16 %v1010, %v1010
        %v1043 = vpack.c.b16 %v1011, %v1011
        %v1044 = vpack.c.b16 %v1012, %v1012
        %v1045 = vpack.c.b16 %v1013, %v1013
        %v1046 = vpack.c.b16 %v1014, %v1014
        %v1047 = vpack.c.b16 %v1015, %v1015
        %v1048 = vpack.c.b16 %v1016, %v1016
        %v1049 = vpack.c.b16 %v1017, %v1017
        %v1050 = vpack.c.b16 %v1018, %v1018
        %v1051 = vpack.c.b16 %v1019, %v1019
        %v1052 = vpack.c.b16 %v1020, %v1020
        %v1053 = vpack.c.b16 %v1021, %v1021
        %vm1086 = vcmask 125952
        %1087 = vst.msk [vmem:[%s343] sm:$0xf] %vm1086, %v1022
        %1088 = vst.msk [vmem:[%s343 + $0x4] sm:$0xf] %vm1086, %v1023
        %1089 = vst.msk [vmem:[%s343 + $0x8] sm:$0xf] %vm1086, %v1024
        %1090 = vst.msk [vmem:[%s343 + $0xc] sm:$0xf] %vm1086, %v1025
        %1091 = vst.msk [vmem:[%s343 + $0x10] sm:$0xf] %vm1086, %v1026
        %1092 = vst.msk [vmem:[%s343 + $0x14] sm:$0xf] %vm1086, %v1027
        %1093 = vst.msk [vmem:[%s343 + $0x18] sm:$0xf] %vm1086, %v1028
        %1094 = vst.msk [vmem:[%s343 + $0x1c] sm:$0xf] %vm1086, %v1029
        %1095 = vst.msk [vmem:[%s343 + $0x20] sm:$0xf] %vm1086, %v1030
        %1096 = vst.msk [vmem:[%s343 + $0x24] sm:$0xf] %vm1086, %v1031
        %1097 = vst.msk [vmem:[%s343 + $0x28] sm:$0xf] %vm1086, %v1032
        %1098 = vst.msk [vmem:[%s343 + $0x2c] sm:$0xf] %vm1086, %v1033
        %1099 = vst.msk [vmem:[%s343 + $0x30] sm:$0xf] %vm1086, %v1034
        %1100 = vst.msk [vmem:[%s343 + $0x34] sm:$0xf] %vm1086, %v1035
        %1101 = vst.msk [vmem:[%s343 + $0x38] sm:$0xf] %vm1086, %v1036
        %1102 = vst.msk [vmem:[%s343 + $0x3c] sm:$0xf] %vm1086, %v1037
        %1103 = vst.msk [vmem:[%s343 + $0x40] sm:$0xf] %vm1086, %v1038
        %1104 = vst.msk [vmem:[%s343 + $0x44] sm:$0xf] %vm1086, %v1039
        %1105 = vst.msk [vmem:[%s343 + $0x48] sm:$0xf] %vm1086, %v1040
        %1106 = vst.msk [vmem:[%s343 + $0x4c] sm:$0xf] %vm1086, %v1041
        %1107 = vst.msk [vmem:[%s343 + $0x50] sm:$0xf] %vm1086, %v1042
        %1108 = vst.msk [vmem:[%s343 + $0x54] sm:$0xf] %vm1086, %v1043
        %1109 = vst.msk [vmem:[%s343 + $0x58] sm:$0xf] %vm1086, %v1044
        %1110 = vst.msk [vmem:[%s343 + $0x5c] sm:$0xf] %vm1086, %v1045
        %1111 = vst.msk [vmem:[%s343 + $0x60] sm:$0xf] %vm1086, %v1046
        %1112 = vst.msk [vmem:[%s343 + $0x64] sm:$0xf] %vm1086, %v1047
        %1113 = vst.msk [vmem:[%s343 + $0x68] sm:$0xf] %vm1086, %v1048
        %1114 = vst.msk [vmem:[%s343 + $0x6c] sm:$0xf] %vm1086, %v1049
        %1115 = vst.msk [vmem:[%s343 + $0x70] sm:$0xf] %vm1086, %v1050
        %1116 = vst.msk [vmem:[%s343 + $0x74] sm:$0xf] %vm1086, %v1051
        %1117 = vst.msk [vmem:[%s343 + $0x78] sm:$0xf] %vm1086, %v1052
        %1118 = vst.msk [vmem:[%s343 + $0x7c] sm:$0xf] %vm1086, %v1053
      $region44: #{dydensenet_forward.19} parent=35 // pred_fallthru
        _
      %s1119 = smul.u32 32, %s22
      %p1120 = scmp.lt.s32.totalorder %s21, 1
      %s1121 = scalar_select %p1120, %s21, 1
      %p1122 = scmp.lt.s32.totalorder %s1119, 31
      %s1123 = scalar_select %p1122, %s1119, 31
      %p1124 = scmp.lt.s32.totalorder %s23, 0
      %s1125 = scalar_select %p1124, %s23, 0
      %s1126 = sadd.s32 %s1125, %s1123
      %s1127 = smul.addr %s1121, 32
      %s1128 = sadd.s32 %s1126, %s1127
      %s1129 = smul.addr %s1128, 4
      %s1130 = scalar_lea.vmem %s4, %s1129
      // Predicated region
      $region45: #{dydensenet_forward.19} parent=35 // pred_check
        %p1131 = pneg %p175
      $region46: #{dydensenet_forward.19} parent=35 // pred_check_branch
        %1133 = sbr.rel (%p1131) target = $region48
      $region47: #{dydensenet_forward.19} parent=35 // pred_region
        %s1134 = smul.u32 32, %s22
      $region48: #{dydensenet_forward.19} parent=35 // pred_fallthru
        _
    $region36: #{dydensenet_forward.19} parent=5 // pred_fallthru
      _
    %p1135 = scmp.le.s32.totalorder 2, %s10
    // Predicated region
    $region49: #{dydensenet_forward.19} parent=5 // pred_check
      %p1136 = pneg %p1135
    $region50: #{dydensenet_forward.19} parent=5 // pred_check_branch
      %1138 = sbr.rel (%p1136) target = $region52
    $region51: #{dydensenet_forward.19} parent=5 // pred_region
      %s1139 = ssub.s32 %s10, 2
      // Predicated region
      $region53: #{dydensenet_forward.19} parent=51 // pred_check
        %p1140 = pneg %p181
      $region54: #{dydensenet_forward.19} parent=51 // pred_check_branch
        %1142 = sbr.rel (%p1140) target = $region56
      $region55: #{dydensenet_forward.19} parent=51 // pred_region
        %s1143 = smul.u32 32, %s26
        %p1144 = scmp.lt.s32.totalorder %s25, 1
        %s1145 = scalar_select %p1144, %s25, 1
        %p1146 = scmp.lt.s32.totalorder %s1143, 31
        %s1147 = scalar_select %p1146, %s1143, 31
        %p1148 = scmp.lt.s32.totalorder %s27, 0
        %s1149 = scalar_select %p1148, %s27, 0
        %s1150 = sadd.s32 %s1149, %s1147
        %s1151 = smul.addr %s1145, 32
        %s1152 = sadd.s32 %s1150, %s1151
        %s1153 = smul.addr %s1152, 4
        %s1154 = scalar_lea.vmem %s4, %s1153
      $region56: #{dydensenet_forward.19} parent=51 // pred_fallthru
        _
    $region52: #{dydensenet_forward.19} parent=5 // pred_fallthru
      _
  $region6: #{dydensenet_forward.19} parent=0 // loop_footer
    %s14 = sadd.s32 1, %s10
  $region7: #{dydensenet_forward.19} parent=0 // loop_footer_branch
    %9 = sbr.rel target = $region3
  $region8: #{dydensenet_forward.19} parent=0 // loop_exit
    _

// kernel: dydensenet_forward.22
$region0: #{dydensenet_forward.22}
  #allocation0 [shape = 'u32[]', space=smem, size = 0x4, offset = 0x4, fixed_abs, tag = 'smem constant byte address 0x4 - core index']
  #allocation1 [shape = 'u32[144,128]{1,0:T(1,128)}', space=vmem, size = 0x12000, scoped, tag = 'internal scratch']
  #allocation2 [shape = 'f32[64,16]{1,0:T(8,128)}', space=vmem, size = 0x8000, scoped, tag = 'scratch operand']
  %s0 = inlined_call_operand.vmem [shape: bf16[2,64,16], index: 0, kind: input, shape index: {}]
  %s1 = inlined_call_operand.vmem [shape: bf16[2,16,16], index: 1, kind: input, shape index: {}]
  %s2 = inlined_call_operand.vmem [shape: f32[1,1,16], index: 2, kind: input, shape index: {}]
  %s3 = inlined_call_operand.vmem [shape: f32[1,1,16], index: 3, kind: input, shape index: {}]
  %s4 = inlined_call_operand.vmem [shape: bf16[2,64,16], index: 4, kind: output, shape index: {}]
  %s5 = sld [smem:[#allocation0]]
  $region57: #{dydensenet_forward.22} parent=0
    _
  %s7 = ssub.s32 1, %s5
  %s8 = scalar_select 0, %s7, %s5
  loop: start=0, step=1, limit=4
  $region2: #{dydensenet_forward.22} parent=0 // loop_pre_header
    _
  $region3: #{dydensenet_forward.22} parent=0 // loop_header
    %s10 = sphi 0, %s14
    %p11 = scmp.ge.s32.totalorder %s10, 4
    %s17 = sphi 0, %s43
    %s18 = sphi 0, %s39
    %s19 = sphi 0, %s35
    %s20 = sphi 0, %s31
    %s21 = sphi 0, %s17
    %s22 = sphi 0, %s18
    %s23 = sphi 0, %s19
    %s24 = sphi 0, %s20
    %s25 = sphi 0, %s21
    %s26 = sphi 0, %s22
    %s27 = sphi 0, %s23
    %s28 = sphi 0, %s24
    %s50 = sphi 0, %s52
    %s53 = sphi 0, %s50
    %s54 = sphi 0, %s53
    %s70 = sphi 0, %s54
    %s80 = sphi 0, %s82
    %s83 = sphi 0, %s80
    %s84 = sphi 0, %s83
    %s100 = sphi 0, %s84
    %s106 = sphi 0, %s108
    %s109 = sphi 0, %s106
    %s110 = sphi 0, %s109
    %s126 = sphi 0, %s110
    %s132 = sphi 0, %s134
    %s135 = sphi 0, %s132
    %s136 = sphi 0, %s135
    %s152 = sphi 0, %s136
    %s162 = sphi 0, %s164
    %s165 = sphi 0, %s162
    %s166 = sphi 0, %s165
    %s182 = sphi 0, %s166
  $region4: #{dydensenet_forward.22} parent=0 // loop_header_branch
    %13 = sbr.rel (%p11) target = $region8
  $region5: #{dydensenet_forward.22} parent=0 // loop_body
    %s15 = ssub.s32 %s10, 1
    %s16 = ssub.s32 %s10, 2
    %s29 = sadd.s32 1, %s20
    %p30 = scmp.ge.s32.totalorder %s29, 1
    %s31 = scalar_select %p30, 0, %s29
    %s32 = sadd.s32 1, %s19
    %s33 = scalar_select %p30, %s32, %s19
    %p34 = scmp.ge.s32.totalorder %s33, 1
    %s35 = scalar_select %p34, 0, %s33
    %s36 = sadd.s32 1, %s18
    %s37 = scalar_select %p34, %s36, %s18
    %p38 = scmp.ge.s32.totalorder %s37, 1
    %s39 = scalar_select %p38, 0, %s37
    %s40 = sadd.s32 1, %s17
    %s41 = scalar_select %p38, %s40, %s17
    %p42 = scmp.ge.s32.totalorder %s41, 2
    %s43 = scalar_select %p42, 0, %s41
    %s44 = ssub.s32 %s17, %s43
    %s45 = ssub.s32 %s18, %s39
    %s46 = sor.u32 %s44, %s45
    %s47 = ssub.s32 %s20, %s31
    %s48 = sor.u32 %s46, %s47
    %p49 = scmp.eq.s32.totalorder %s48, 0
    %s51 = sadd.s32 %s50, 1
    %s52 = scalar_select %p49, %s50, %s51
    %p55 = pneg %p49
    %p56 = scmp.eq.s32.totalorder %s10, 1
    %p57 = por %p55, %p56
    %p58 = scmp.ne.s32.totalorder %s50, %s53
    %p59 = scmp.eq.s32.totalorder %s10, 0
    %p60 = por %p58, %p59
    %p61 = scmp.ne.s32.totalorder %s50, %s53
    %p62 = scmp.eq.s32.totalorder %s15, 1
    %p63 = por %p61, %p62
    %p64 = scmp.ne.s32.totalorder %s53, %s54
    %p65 = scmp.eq.s32.totalorder %s15, 0
    %p66 = por %p64, %p65
    %p67 = scmp.ne.s32.totalorder %s53, %s54
    %p68 = scmp.eq.s32.totalorder %s16, 1
    %p69 = por %p67, %p68
    %p71 = scmp.ne.s32.totalorder %s54, %s70
    %p72 = scmp.eq.s32.totalorder %s16, 0
    %p73 = por %p71, %p72
    %s74 = ssub.s32 %s17, %s43
    %s75 = ssub.s32 %s20, %s31
    %s76 = sor.u32 %s74, %s75
    %s77 = ssub.s32 %s19, %s35
    %s78 = sor.u32 %s76, %s77
    %p79 = scmp.eq.s32.totalorder %s78, 0
    %s81 = sadd.s32 %s80, 1
    %s82 = scalar_select %p79, %s80, %s81
    %p85 = pneg %p79
    %p86 = scmp.eq.s32.totalorder %s10, 1
    %p87 = por %p85, %p86
    %p88 = scmp.ne.s32.totalorder %s80, %s83
    %p89 = scmp.eq.s32.totalorder %s10, 0
    %p90 = por %p88, %p89
    %p91 = scmp.ne.s32.totalorder %s80, %s83
    %p92 = scmp.eq.s32.totalorder %s15, 1
    %p93 = por %p91, %p92
    %p94 = scmp.ne.s32.totalorder %s83, %s84
    %p95 = scmp.eq.s32.totalorder %s15, 0
    %p96 = por %p94, %p95
    %p97 = scmp.ne.s32.totalorder %s83, %s84
    %p98 = scmp.eq.s32.totalorder %s16, 1
    %p99 = por %p97, %p98
    %p101 = scmp.ne.s32.totalorder %s84, %s100
    %p102 = scmp.eq.s32.totalorder %s16, 0
    %p103 = por %p101, %p102
    %s104 = ssub.s32 %s19, %s35
    %p105 = scmp.eq.s32.totalorder %s104, 0
    %s107 = sadd.s32 %s106, 1
    %s108 = scalar_select %p105, %s106, %s107
    %p111 = pneg %p105
    %p112 = scmp.eq.s32.totalorder %s10, 1
    %p113 = por %p111, %p112
    %p114 = scmp.ne.s32.totalorder %s106, %s109
    %p115 = scmp.eq.s32.totalorder %s10, 0
    %p116 = por %p114, %p115
    %p117 = scmp.ne.s32.totalorder %s106, %s109
    %p118 = scmp.eq.s32.totalorder %s15, 1
    %p119 = por %p117, %p118
    %p120 = scmp.ne.s32.totalorder %s109, %s110
    %p121 = scmp.eq.s32.totalorder %s15, 0
    %p122 = por %p120, %p121
    %p123 = scmp.ne.s32.totalorder %s109, %s110
    %p124 = scmp.eq.s32.totalorder %s16, 1
    %p125 = por %p123, %p124
    %p127 = scmp.ne.s32.totalorder %s110, %s126
    %p128 = scmp.eq.s32.totalorder %s16, 0
    %p129 = por %p127, %p128
    %s130 = ssub.s32 %s19, %s35
    %p131 = scmp.eq.s32.totalorder %s130, 0
    %s133 = sadd.s32 %s132, 1
    %s134 = scalar_select %p131, %s132, %s133
    %p137 = pneg %p131
    %p138 = scmp.eq.s32.totalorder %s10, 1
    %p139 = por %p137, %p138
    %p140 = scmp.ne.s32.totalorder %s132, %s135
    %p141 = scmp.eq.s32.totalorder %s10, 0
    %p142 = por %p140, %p141
    %p143 = scmp.ne.s32.totalorder %s132, %s135
    %p144 = scmp.eq.s32.totalorder %s15, 1
    %p145 = por %p143, %p144
    %p146 = scmp.ne.s32.totalorder %s135, %s136
    %p147 = scmp.eq.s32.totalorder %s15, 0
    %p148 = por %p146, %p147
    %p149 = scmp.ne.s32.totalorder %s135, %s136
    %p150 = scmp.eq.s32.totalorder %s16, 1
    %p151 = por %p149, %p150
    %p153 = scmp.ne.s32.totalorder %s136, %s152
    %p154 = scmp.eq.s32.totalorder %s16, 0
    %p155 = por %p153, %p154
    %s156 = ssub.s32 %s17, %s43
    %s157 = ssub.s32 %s18, %s39
    %s158 = sor.u32 %s156, %s157
    %s159 = ssub.s32 %s19, %s35
    %s160 = sor.u32 %s158, %s159
    %p161 = scmp.eq.s32.totalorder %s160, 0
    %s163 = sadd.s32 %s162, 1
    %s164 = scalar_select %p161, %s162, %s163
    %p167 = pneg %p161
    %p168 = scmp.eq.s32.totalorder %s10, 1
    %p169 = por %p167, %p168
    %p170 = scmp.ne.s32.totalorder %s162, %s165
    %p171 = scmp.eq.s32.totalorder %s10, 0
    %p172 = por %p170, %p171
    %p173 = scmp.ne.s32.totalorder %s162, %s165
    %p174 = scmp.eq.s32.totalorder %s15, 1
    %p175 = por %p173, %p174
    %p176 = scmp.ne.s32.totalorder %s165, %s166
    %p177 = scmp.eq.s32.totalorder %s15, 0
    %p178 = por %p176, %p177
    %p179 = scmp.ne.s32.totalorder %s165, %s166
    %p180 = scmp.eq.s32.totalorder %s16, 1
    %p181 = por %p179, %p180
    %p183 = scmp.ne.s32.totalorder %s166, %s182
    %p184 = scmp.eq.s32.totalorder %s16, 0
    %p185 = por %p183, %p184
    %p186 = scmp.le.s32.totalorder 1, %s10
    %p187 = scmp.lt.s32.totalorder %s10, 3
    %p188 = pnand %p186, %p187
    %p189 = pneg %p188
    // Predicated region
    $region9: #{dydensenet_forward.22} parent=5 // pred_check
      _
    $region10: #{dydensenet_forward.22} parent=5 // pred_check_branch
      %191 = sbr.rel (%p188) target = $region12
    $region11: #{dydensenet_forward.22} parent=5 // pred_region
      %s192 = ssub.s32 %s10, 1
      // Predicated region
      $region13: #{dydensenet_forward.22} parent=11 // pred_check
        %p193 = pneg %p122
      $region14: #{dydensenet_forward.22} parent=11 // pred_check_branch
        %195 = sbr.rel (%p193) target = $region16
      $region15: #{dydensenet_forward.22} parent=11 // pred_region
        %p196 = scmp.lt.s32.totalorder %s23, 0
        %s197 = scalar_select %p196, %s23, 0
        %s198 = scalar_lea.vmem %s2, %s197
      $region16: #{dydensenet_forward.22} parent=11 // pred_fallthru
        _
      // Predicated region
      $region17: #{dydensenet_forward.22} parent=11 // pred_check
        %p199 = pneg %p148
      $region18: #{dydensenet_forward.22} parent=11 // pred_check_branch
        %201 = sbr.rel (%p199) target = $region20
      $region19: #{dydensenet_forward.22} parent=11 // pred_region
        %p202 = scmp.lt.s32.totalorder %s23, 0
        %s203 = scalar_select %p202, %s23, 0
        %s204 = scalar_lea.vmem %s3, %s203
      $region20: #{dydensenet_forward.22} parent=11 // pred_fallthru
        _
    $region12: #{dydensenet_forward.22} parent=5 // pred_fallthru
      _
    %p205 = scmp.lt.s32.totalorder %s10, 2
    // Predicated region
    $region21: #{dydensenet_forward.22} parent=5 // pred_check
      %p206 = pneg %p205
    $region22: #{dydensenet_forward.22} parent=5 // pred_check_branch
      %208 = sbr.rel (%p206) target = $region24
    $region23: #{dydensenet_forward.22} parent=5 // pred_region
      // Predicated region
      $region25: #{dydensenet_forward.22} parent=23 // pred_check
        %p209 = pneg %p60
      $region26: #{dydensenet_forward.22} parent=23 // pred_check_branch
        %211 = sbr.rel (%p209) target = $region28
      $region27: #{dydensenet_forward.22} parent=23 // pred_region
        %s212 = smul.u32 8, %s18
        %p213 = scmp.lt.s32.totalorder %s17, 1
        %s214 = scalar_select %p213, %s17, 1
        %p215 = scmp.lt.s32.totalorder %s212, 7
        %s216 = scalar_select %p215, %s212, 7
        %p217 = scmp.lt.s32.totalorder %s20, 0
        %s218 = scalar_select %p217, %s20, 0
        %s219 = sadd.s32 %s218, %s216
        %s220 = smul.addr %s214, 8
        %s221 = sadd.s32 %s219, %s220
        %s222 = smul.addr %s221, 4
        %s223 = scalar_lea.vmem %s0, %s222
        %s224 = smul.u32 8, %s18
      $region28: #{dydensenet_forward.22} parent=23 // pred_fallthru
        _
      // Predicated region
      $region29: #{dydensenet_forward.22} parent=23 // pred_check
        %p225 = pneg %p90
      $region30: #{dydensenet_forward.22} parent=23 // pred_check_branch
        %227 = sbr.rel (%p225) target = $region32
      $region31: #{dydensenet_forward.22} parent=23 // pred_region
        %s228 = smul.u32 2, %s20
        %p229 = scmp.lt.s32.totalorder %s17, 1
        %s230 = scalar_select %p229, %s17, 1
        %p231 = scmp.lt.s32.totalorder %s228, 1
        %s232 = scalar_select %p231, %s228, 1
        %p233 = scmp.lt.s32.totalorder %s19, 0
        %s234 = scalar_select %p233, %s19, 0
        %s235 = sadd.s32 %s234, %s232
        %s236 = smul.addr %s230, 2
        %s237 = sadd.s32 %s235, %s236
        %s238 = smul.addr %s237, 4
        %s239 = scalar_lea.vmem %s1, %s238
        %s240 = smul.u32 2, %s20
      $region32: #{dydensenet_forward.22} parent=23 // pred_fallthru
        _
    $region24: #{dydensenet_forward.22} parent=5 // pred_fallthru
      _
    %p241 = scmp.le.s32.totalorder 1, %s10
    %p242 = scmp.lt.s32.totalorder %s10, 3
    %p243 = pnand %p241, %p242
    %p244 = pneg %p243
    // Predicated region
    $region33: #{dydensenet_forward.22} parent=5 // pred_check
      _
    $region34: #{dydensenet_forward.22} parent=5 // pred_check_branch
      %246 = sbr.rel (%p243) target = $region36
    $region35: #{dydensenet_forward.22} parent=5 // pred_region
      %s247 = ssub.s32 %s10, 1
      %s248 = smul.u32 8, %s22
      %p249 = scmp.lt.s32.totalorder %s21, 1
      %s250 = scalar_select %p249, %s21, 1
      %p251 = scmp.lt.s32.totalorder %s248, 7
      %s252 = scalar_select %p251, %s248, 7
      %p253 = scmp.lt.s32.totalorder %s24, 0
      %s254 = scalar_select %p253, %s24, 0
      %s255 = sadd.s32 %s254, %s252
      %s256 = smul.addr %s250, 8
      %s257 = sadd.s32 %s255, %s256
      %s258 = smul.addr %s257, 4
      %s259 = scalar_lea.vmem %s0, %s258
      %p260 = pneg %p66
      %p261 = pneg %p63
      %s262 = smul.u32 2, %s24
      %p263 = scmp.lt.s32.totalorder %s21, 1
      %s264 = scalar_select %p263, %s21, 1
      %p265 = scmp.lt.s32.totalorder %s262, 1
      %s266 = scalar_select %p265, %s262, 1
      %p267 = scmp.lt.s32.totalorder %s23, 0
      %s268 = scalar_select %p267, %s23, 0
      %s269 = sadd.s32 %s268, %s266
      %s270 = smul.addr %s264, 2
      %s271 = sadd.s32 %s269, %s270
      %s272 = smul.addr %s271, 4
      %s273 = scalar_lea.vmem %s1, %s272
      %p274 = pneg %p96
      %p275 = pneg %p93
      %p276 = scmp.lt.s32.totalorder %s23, 0
      %s277 = scalar_select %p276, %s23, 0
      %s278 = scalar_lea.vmem %s2, %s277
      %p279 = pneg %p122
      %p280 = pneg %p119
      %p281 = scmp.lt.s32.totalorder %s23, 0
      %s282 = scalar_select %p281, %s23, 0
      %s283 = scalar_lea.vmem %s3, %s282
      %p284 = pneg %p148
      %p285 = pneg %p145
      %p286 = pneg %p178
      %p287 = pneg %p175
      %s288 = smul.u32 8, %s22
      %p289 = scmp.lt.s32.totalorder %s21, 1
      %s290 = scalar_select %p289, %s21, 1
      %p291 = scmp.lt.s32.totalorder %s288, 7
      %s292 = scalar_select %p291, %s288, 7
      %p293 = scmp.lt.s32.totalorder %s23, 0
      %s294 = scalar_select %p293, %s23, 0
      %s295 = sadd.s32 %s294, %s292
      %s296 = smul.addr %s290, 8
      %s297 = sadd.s32 %s295, %s296
      %s298 = smul.addr %s297, 4
      %s299 = scalar_lea.vmem %s4, %s298
      %s300 = smul.u32 8, %s22
      %p301 = scmp.lt.s32.totalorder %s21, 1
      %s302 = scalar_select %p301, %s21, 1
      %p303 = scmp.lt.s32.totalorder %s300, 7
      %s304 = scalar_select %p303, %s300, 7
      %p305 = scmp.lt.s32.totalorder %s24, 0
      %s306 = scalar_select %p305, %s24, 0
      %s307 = sadd.s32 %s306, %s304
      %s308 = smul.addr %s302, 8
      %s309 = sadd.s32 %s307, %s308
      %s310 = smul.addr %s309, 4
      %s311 = scalar_lea.vmem %s0, %s310
      %s312 = smul.u32 8, %s22
      %s313 = smul.u32 2, %s24
      %p314 = scmp.lt.s32.totalorder %s21, 1
      %s315 = scalar_select %p314, %s21, 1
      %p316 = scmp.lt.s32.totalorder %s313, 1
      %s317 = scalar_select %p316, %s313, 1
      %p318 = scmp.lt.s32.totalorder %s23, 0
      %s319 = scalar_select %p318, %s23, 0
      %s320 = sadd.s32 %s319, %s317
      %s321 = smul.addr %s315, 2
      %s322 = sadd.s32 %s320, %s321
      %s323 = smul.addr %s322, 4
      %s324 = scalar_lea.vmem %s1, %s323
      %s325 = smul.u32 2, %s24
      %p326 = scmp.lt.s32.totalorder %s23, 0
      %s327 = scalar_select %p326, %s23, 0
      %s328 = scalar_lea.vmem %s2, %s327
      %p329 = scmp.lt.s32.totalorder %s23, 0
      %s330 = scalar_select %p329, %s23, 0
      %s331 = scalar_lea.vmem %s3, %s330
      %s332 = smul.u32 8, %s22
      %p333 = scmp.lt.s32.totalorder %s21, 1
      %s334 = scalar_select %p333, %s21, 1
      %p335 = scmp.lt.s32.totalorder %s332, 7
      %s336 = scalar_select %p335, %s332, 7
      %p337 = scmp.lt.s32.totalorder %s23, 0
      %s338 = scalar_select %p337, %s23, 0
      %s339 = sadd.s32 %s338, %s336
      %s340 = smul.addr %s334, 8
      %s341 = sadd.s32 %s339, %s340
      %s342 = smul.addr %s341, 4
      %s343 = scalar_lea.vmem %s4, %s342
      %s344 = smul.u32 8, %s22
      %p346 = scmp.eq.s32.totalorder %s24, 0
      // Predicated region
      $region37: #{dydensenet_forward.22} parent=35 // pred_check
        %p347 = pneg %p346
      $region38: #{dydensenet_forward.22} parent=35 // pred_check_branch
        %349 = sbr.rel (%p347) target = $region40
      $region39: #{dydensenet_forward.22} parent=35 // pred_region
        %vm350 = vcmask 130048
        %351 = vst.msk [vmem:[#allocation2] sm:$0xff] %vm350, 0.0
        %352 = vst.msk [vmem:[#allocation2 + $0x8] sm:$0xff] %vm350, 0.0
        %353 = vst.msk [vmem:[#allocation2 + $0x10] sm:$0xff] %vm350, 0.0
        %354 = vst.msk [vmem:[#allocation2 + $0x18] sm:$0xff] %vm350, 0.0
        %355 = vst.msk [vmem:[#allocation2 + $0x20] sm:$0xff] %vm350, 0.0
        %356 = vst.msk [vmem:[#allocation2 + $0x28] sm:$0xff] %vm350, 0.0
        %357 = vst.msk [vmem:[#allocation2 + $0x30] sm:$0xff] %vm350, 0.0
        %358 = vst.msk [vmem:[#allocation2 + $0x38] sm:$0xff] %vm350, 0.0
      $region40: #{dydensenet_forward.22} parent=35 // pred_fallthru
        _
      %v359 = vld [vmem:[#allocation2] sm:$0xff]
      %v360 = vld [vmem:[#allocation2 + $0x8] sm:$0xff]
      %v361 = vld [vmem:[#allocation2 + $0x10] sm:$0xff]
      %v362 = vld [vmem:[#allocation2 + $0x18] sm:$0xff]
      %v363 = vld [vmem:[#allocation2 + $0x20] sm:$0xff]
      %v364 = vld [vmem:[#allocation2 + $0x28] sm:$0xff]
      %v365 = vld [vmem:[#allocation2 + $0x30] sm:$0xff]
      %v366 = vld [vmem:[#allocation2 + $0x38] sm:$0xff]
      %v367 = vld [vmem:[%s311] sm:$0xf]
      %v368 = vld [vmem:[%s311 + $0x4] sm:$0xf]
      %v369 = vld [vmem:[%s311 + $0x8] sm:$0xf]
      %v370 = vld [vmem:[%s311 + $0xc] sm:$0xf]
      %v371 = vld [vmem:[%s311 + $0x10] sm:$0xf]
      %v372 = vld [vmem:[%s311 + $0x14] sm:$0xf]
      %v373 = vld [vmem:[%s311 + $0x18] sm:$0xf]
      %v374 = vld [vmem:[%s311 + $0x1c] sm:$0xf]
      %v375 = vld [vmem:[%s324] sm:$0xf]
      %v376 = vld [vmem:[%s324 + $0x4] sm:$0xf]
      %v385 = vunpack.c.l.b16 %v367
      %v386 = vunpack.c.l.b16 %v368
      %v387 = vunpack.c.l.b16 %v369
      %v388 = vunpack.c.l.b16 %v370
      %v389 = vunpack.c.l.b16 %v371
      %v390 = vunpack.c.l.b16 %v372
      %v391 = vunpack.c.l.b16 %v373
      %v392 = vunpack.c.l.b16 %v374
      %v393 = vpack.c.b16 %v386, %v385
      %v394 = vpack.c.b16 %v388, %v387
      %v395 = vpack.c.b16 %v390, %v389
      %v396 = vpack.c.b16 %v392, %v391
      %v399 = vunpack.c.l.b16 %v375
      %v400 = vunpack.c.l.b16 %v376
      %v401 = vpack.c.b16 %v400, %v399
      %vm403 = vcmask 130048
      %v405 = vsel %vm403, %v393, 0
      %v408 = vsel %vm403, %v394, 0
      %v411 = vsel %vm403, %v395, 0
      %v414 = vsel %vm403, %v396, 0
      %416 = vmatprep.subr.bf16.mxu0 0
      %417 = vmatpush1.bf16.msra.mxu0 0
      %418 = vmatprep.subr.bf16.mxu0 0
      %419 = vmatpush1.bf16.msra.mxu0 0
      %420 = vmatprep.subr.bf16.mxu0 0
      %421 = vmatpush1.bf16.msra.mxu0 0
      %422 = vmatprep.subr.bf16.mxu0 0
      %423 = vmatpush1.bf16.msra.mxu0 0
      %424 = vmatprep.subr.bf16.mxu0 0
      %425 = vmatpush1.bf16.msra.mxu0 0
      %426 = vmatprep.subr.bf16.mxu0 0
      %427 = vmatpush1.bf16.msra.mxu0 0
      %428 = vmatprep.subr.bf16.mxu0 0
      %429 = vmatpush1.bf16.msra.mxu0 0
      %430 = vmatprep.subr.bf16.mxu0 0
      %431 = vmatpush1.bf16.msra.mxu0 %v401
      %432 = vmatprep.subr.bf16.mxu0 0
      %433 = vmatpush2.bf16.msra.mxu0 0
      %434 = vmatprep.subr.bf16.mxu0 0
      %435 = vmatpush2.bf16.msra.mxu0 0
      %436 = vmatprep.subr.bf16.mxu0 0
      %437 = vmatpush2.bf16.msra.mxu0 0
      %438 = vmatprep.subr.bf16.mxu0 0
      %439 = vmatpush2.bf16.msra.mxu0 0
      %440 = vmatprep.subr.bf16.mxu0 0
      %441 = vmatpush2.bf16.msra.mxu0 0
      %442 = vmatprep.subr.bf16.mxu0 0
      %443 = vmatpush2.bf16.msra.mxu0 0
      %444 = vmatprep.subr.bf16.mxu0 0
      %445 = vmatpush2.bf16.msra.mxu0 0
      %446 = vmatprep.subr.bf16.mxu0 0
      %447 = vmatpush2.bf16.msra.mxu0 0
      %448 = vmatprep.mubr.bf16.mxu0 0
      %449 = vmatmul.mubr.bf16.gmra.mxu0 %v405
      %v450 = vpop.f32.mrf.mxu0
      %v451 = vadd.f32 0.0, %v450
      %v452 = vpop.f32.mrf.mxu0
      %v453 = vpop.f32.mrf.mxu0
      %v454 = vadd.f32 0.0, %v453
      %v455 = vpop.f32.mrf.mxu0
      %456 = vmatprep.mubr.bf16.mxu0 0
      %457 = vmatmul.mubr.bf16.gmra.mxu0 %v408
      %v458 = vpop.f32.mrf.mxu0
      %v459 = vadd.f32 0.0, %v458
      %v460 = vpop.f32.mrf.mxu0
      %v461 = vpop.f32.mrf.mxu0
      %v462 = vadd.f32 0.0, %v461
      %v463 = vpop.f32.mrf.mxu0
      %464 = vmatprep.mubr.bf16.mxu0 0
      %465 = vmatmul.mubr.bf16.gmra.mxu0 %v411
      %v466 = vpop.f32.mrf.mxu0
      %v467 = vadd.f32 0.0, %v466
      %v468 = vpop.f32.mrf.mxu0
      %v469 = vpop.f32.mrf.mxu0
      %v470 = vadd.f32 0.0, %v469
      %v471 = vpop.f32.mrf.mxu0
      %472 = vmatprep.mubr.bf16.mxu0 0
      %473 = vmatmul.mubr.bf16.gmra.mxu0 %v414
      %v474 = vpop.f32.mrf.mxu0
      %v475 = vadd.f32 0.0, %v474
      %v476 = vpop.f32.mrf.mxu0
      %v477 = vpop.f32.mrf.mxu0
      %v478 = vadd.f32 0.0, %v477
      %v479 = vpop.f32.mrf.mxu0
      %480 = vdwg.mxu0
      %v481 = vadd.f32 %v359, %v451
      %v482 = vadd.f32 %v360, %v454
      %v483 = vadd.f32 %v361, %v459
      %v484 = vadd.f32 %v362, %v462
      %v485 = vadd.f32 %v363, %v467
      %v486 = vadd.f32 %v364, %v470
      %v487 = vadd.f32 %v365, %v475
      %v488 = vadd.f32 %v366, %v478
      %489 = vst.msk [vmem:[#allocation2] sm:$0xff] %vm403, %v481
      %490 = vst.msk [vmem:[#allocation2 + $0x8] sm:$0xff] %vm403, %v482
      %491 = vst.msk [vmem:[#allocation2 + $0x10] sm:$0xff] %vm403, %v483
      %492 = vst.msk [vmem:[#allocation2 + $0x18] sm:$0xff] %vm403, %v484
      %493 = vst.msk [vmem:[#allocation2 + $0x20] sm:$0xff] %vm403, %v485
      %494 = vst.msk [vmem:[#allocation2 + $0x28] sm:$0xff] %vm403, %v486
      %495 = vst.msk [vmem:[#allocation2 + $0x30] sm:$0xff] %vm403, %v487
      %496 = vst.msk [vmem:[#allocation2 + $0x38] sm:$0xff] %vm403, %v488
      // Predicated region
      $region41: #{dydensenet_forward.22} parent=35 // pred_check
        %p497 = pneg %p346
      $region42: #{dydensenet_forward.22} parent=35 // pred_check_branch
        %499 = sbr.rel (%p497) target = $region44
      $region43: #{dydensenet_forward.22} parent=35 // pred_region
        %v500 = vld [vmem:[#allocation2] sm:$0xff]
        %v501 = vld [vmem:[#allocation2 + $0x8] sm:$0xff]
        %v502 = vld [vmem:[#allocation2 + $0x10] sm:$0xff]
        %v503 = vld [vmem:[#allocation2 + $0x18] sm:$0xff]
        %v504 = vld [vmem:[#allocation2 + $0x20] sm:$0xff]
        %v505 = vld [vmem:[#allocation2 + $0x28] sm:$0xff]
        %v506 = vld [vmem:[#allocation2 + $0x30] sm:$0xff]
        %v507 = vld [vmem:[#allocation2 + $0x38] sm:$0xff]
        %v508 = vld [vmem:[%s328] sm:$0x1]
        %v510 = vlaneseq
        %v511 = vshrl.u32 %v510, 7
        %v512 = vsub.s32 0, %v511
        %v513 = vrot.slane %v508, %v512
        %v515 = vmul.f32 %v500, %v513
        %v516 = vmul.f32 %v501, %v513
        %v517 = vmul.f32 %v502, %v513
        %v518 = vmul.f32 %v503, %v513
        %v519 = vmul.f32 %v504, %v513
        %v520 = vmul.f32 %v505, %v513
        %v521 = vmul.f32 %v506, %v513
        %v522 = vmul.f32 %v507, %v513
        %v523 = vld [vmem:[%s331] sm:$0x1]
        %v525 = vlaneseq
        %v526 = vshrl.u32 %v525, 7
        %v527 = vsub.s32 0, %v526
        %v528 = vrot.slane %v523, %v527
        %v530 = vadd.f32 %v515, %v528
        %v531 = vadd.f32 %v516, %v528
        %v532 = vadd.f32 %v517, %v528
        %v533 = vadd.f32 %v518, %v528
        %v534 = vadd.f32 %v519, %v528
        %v535 = vadd.f32 %v520, %v528
        %v536 = vadd.f32 %v521, %v528
        %v537 = vadd.f32 %v522, %v528
        %v538 = vmax.f32 %v530, 0.0
        %v539 = vmax.f32 %v531, 0.0
        %v540 = vmax.f32 %v532, 0.0
        %v541 = vmax.f32 %v533, 0.0
        %v542 = vmax.f32 %v534, 0.0
        %v543 = vmax.f32 %v535, 0.0
        %v544 = vmax.f32 %v536, 0.0
        %v545 = vmax.f32 %v537, 0.0
        %v546 = vpack.c.bf16 %v539, %v538
        %v547 = vpack.c.bf16 %v541, %v540
        %v548 = vpack.c.bf16 %v543, %v542
        %v549 = vpack.c.bf16 %v545, %v544
        %v554 = vunpack.c.l.b16 %v546
        %v555 = vunpack.c.h.b16 %v546
        %v556 = vunpack.c.l.b16 %v547
        %v557 = vunpack.c.h.b16 %v547
        %v558 = vunpack.c.l.b16 %v548
        %v559 = vunpack.c.h.b16 %v548
        %v560 = vunpack.c.l.b16 %v549
        %v561 = vunpack.c.h.b16 %v549
        %v562 = vpack.c.b16 %v554, %v554
        %v563 = vpack.c.b16 %v555, %v555
        %v564 = vpack.c.b16 %v556, %v556
        %v565 = vpack.c.b16 %v557, %v557
        %v566 = vpack.c.b16 %v558, %v558
        %v567 = vpack.c.b16 %v559, %v559
        %v568 = vpack.c.b16 %v560, %v560
        %v569 = vpack.c.b16 %v561, %v561
        %vm578 = vcmask 125952
        %579 = vst.msk [vmem:[%s343] sm:$0xf] %vm578, %v562
        %580 = vst.msk [vmem:[%s343 + $0x4] sm:$0xf] %vm578, %v563
        %581 = vst.msk [vmem:[%s343 + $0x8] sm:$0xf] %vm578, %v564
        %582 = vst.msk [vmem:[%s343 + $0xc] sm:$0xf] %vm578, %v565
        %583 = vst.msk [vmem:[%s343 + $0x10] sm:$0xf] %vm578, %v566
        %584 = vst.msk [vmem:[%s343 + $0x14] sm:$0xf] %vm578, %v567
        %585 = vst.msk [vmem:[%s343 + $0x18] sm:$0xf] %vm578, %v568
        %586 = vst.msk [vmem:[%s343 + $0x1c] sm:$0xf] %vm578, %v569
      $region44: #{dydensenet_forward.22} parent=35 // pred_fallthru
        _
      %s587 = smul.u32 8, %s22
      %p588 = scmp.lt.s32.totalorder %s21, 1
      %s589 = scalar_select %p588, %s21, 1
      %p590 = scmp.lt.s32.totalorder %s587, 7
      %s591 = scalar_select %p590, %s587, 7
      %p592 = scmp.lt.s32.totalorder %s23, 0
      %s593 = scalar_select %p592, %s23, 0
      %s594 = sadd.s32 %s593, %s591
      %s595 = smul.addr %s589, 8
      %s596 = sadd.s32 %s594, %s595
      %s597 = smul.addr %s596, 4
      %s598 = scalar_lea.vmem %s4, %s597
      // Predicated region
      $region45: #{dydensenet_forward.22} parent=35 // pred_check
        %p599 = pneg %p175
      $region46: #{dydensenet_forward.22} parent=35 // pred_check_branch
        %601 = sbr.rel (%p599) target = $region48
      $region47: #{dydensenet_forward.22} parent=35 // pred_region
        %s602 = smul.u32 8, %s22
      $region48: #{dydensenet_forward.22} parent=35 // pred_fallthru
        _
    $region36: #{dydensenet_forward.22} parent=5 // pred_fallthru
      _
    %p603 = scmp.le.s32.totalorder 2, %s10
    // Predicated region
    $region49: #{dydensenet_forward.22} parent=5 // pred_check
      %p604 = pneg %p603
    $region50: #{dydensenet_forward.22} parent=5 // pred_check_branch
      %606 = sbr.rel (%p604) target = $region52
    $region51: #{dydensenet_forward.22} parent=5 // pred_region
      %s607 = ssub.s32 %s10, 2
      // Predicated region
      $region53: #{dydensenet_forward.22} parent=51 // pred_check
        %p608 = pneg %p181
      $region54: #{dydensenet_forward.22} parent=51 // pred_check_branch
        %610 = sbr.rel (%p608) target = $region56
      $region55: #{dydensenet_forward.22} parent=51 // pred_region
        %s611 = smul.u32 8, %s26
        %p612 = scmp.lt.s32.totalorder %s25, 1
        %s613 = scalar_select %p612, %s25, 1
        %p614 = scmp.lt.s32.totalorder %s611, 7
        %s615 = scalar_select %p614, %s611, 7
        %p616 = scmp.lt.s32.totalorder %s27, 0
        %s617 = scalar_select %p616, %s27, 0
        %s618 = sadd.s32 %s617, %s615
        %s619 = smul.addr %s613, 8
        %s620 = sadd.s32 %s618, %s619
        %s621 = smul.addr %s620, 4
        %s622 = scalar_lea.vmem %s4, %s621
      $region56: #{dydensenet_forward.22} parent=51 // pred_fallthru
        _
    $region52: #{dydensenet_forward.22} parent=5 // pred_fallthru
      _
  $region6: #{dydensenet_forward.22} parent=0 // loop_footer
    %s14 = sadd.s32 1, %s10
  $region7: #{dydensenet_forward.22} parent=0 // loop_footer_branch
    %9 = sbr.rel target = $region3
  $region8: #{dydensenet_forward.22} parent=0 // loop_exit
    _

// kernel: dydensenet_forward.23
$region0: #{dydensenet_forward.23}
  #allocation0 [shape = 'u32[]', space=smem, size = 0x4, offset = 0x4, fixed_abs, tag = 'smem constant byte address 0x4 - core index']
  #allocation1 [shape = 'u32[144,128]{1,0:T(1,128)}', space=vmem, size = 0x12000, scoped, tag = 'internal scratch']
  #allocation2 [shape = 'f32[64,4]{1,0:T(8,128)}', space=vmem, size = 0x8000, scoped, tag = 'scratch operand']
  %s0 = inlined_call_operand.vmem [shape: bf16[2,64,144], index: 0, kind: input, shape index: {}]
  %s1 = inlined_call_operand.vmem [shape: bf16[2,144,4], index: 1, kind: input, shape index: {}]
  %s2 = inlined_call_operand.vmem [shape: bf16[2,64,4], index: 2, kind: output, shape index: {}]
  %s3 = sld [smem:[#allocation0]]
  $region49: #{dydensenet_forward.23} parent=0
    _
  %s5 = ssub.s32 1, %s3
  %s6 = scalar_select 0, %s5, %s3
  loop: start=0, step=1, limit=4
  $region2: #{dydensenet_forward.23} parent=0 // loop_pre_header
    _
  $region3: #{dydensenet_forward.23} parent=0 // loop_header
    %s8 = sphi 0, %s12
    %p9 = scmp.ge.s32.totalorder %s8, 4
    %s15 = sphi 0, %s41
    %s16 = sphi 0, %s37
    %s17 = sphi 0, %s33
    %s18 = sphi 0, %s29
    %s19 = sphi 0, %s15
    %s20 = sphi 0, %s16
    %s21 = sphi 0, %s17
    %s22 = sphi 0, %s18
    %s23 = sphi 0, %s19
    %s24 = sphi 0, %s20
    %s25 = sphi 0, %s21
    %s26 = sphi 0, %s22
    %s48 = sphi 0, %s50
    %s51 = sphi 0, %s48
    %s52 = sphi 0, %s51
    %s68 = sphi 0, %s52
    %s78 = sphi 0, %s80
    %s81 = sphi 0, %s78
    %s82 = sphi 0, %s81
    %s98 = sphi 0, %s82
    %s108 = sphi 0, %s110
    %s111 = sphi 0, %s108
    %s112 = sphi 0, %s111
    %s128 = sphi 0, %s112
  $region4: #{dydensenet_forward.23} parent=0 // loop_header_branch
    %11 = sbr.rel (%p9) target = $region8
  $region5: #{dydensenet_forward.23} parent=0 // loop_body
    %s13 = ssub.s32 %s8, 1
    %s14 = ssub.s32 %s8, 2
    %s27 = sadd.s32 1, %s18
    %p28 = scmp.ge.s32.totalorder %s27, 1
    %s29 = scalar_select %p28, 0, %s27
    %s30 = sadd.s32 1, %s17
    %s31 = scalar_select %p28, %s30, %s17
    %p32 = scmp.ge.s32.totalorder %s31, 1
    %s33 = scalar_select %p32, 0, %s31
    %s34 = sadd.s32 1, %s16
    %s35 = scalar_select %p32, %s34, %s16
    %p36 = scmp.ge.s32.totalorder %s35, 1
    %s37 = scalar_select %p36, 0, %s35
    %s38 = sadd.s32 1, %s15
    %s39 = scalar_select %p36, %s38, %s15
    %p40 = scmp.ge.s32.totalorder %s39, 2
    %s41 = scalar_select %p40, 0, %s39
    %s42 = ssub.s32 %s15, %s41
    %s43 = ssub.s32 %s16, %s37
    %s44 = sor.u32 %s42, %s43
    %s45 = ssub.s32 %s18, %s29
    %s46 = sor.u32 %s44, %s45
    %p47 = scmp.eq.s32.totalorder %s46, 0
    %s49 = sadd.s32 %s48, 1
    %s50 = scalar_select %p47, %s48, %s49
    %p53 = pneg %p47
    %p54 = scmp.eq.s32.totalorder %s8, 1
    %p55 = por %p53, %p54
    %p56 = scmp.ne.s32.totalorder %s48, %s51
    %p57 = scmp.eq.s32.totalorder %s8, 0
    %p58 = por %p56, %p57
    %p59 = scmp.ne.s32.totalorder %s48, %s51
    %p60 = scmp.eq.s32.totalorder %s13, 1
    %p61 = por %p59, %p60
    %p62 = scmp.ne.s32.totalorder %s51, %s52
    %p63 = scmp.eq.s32.totalorder %s13, 0
    %p64 = por %p62, %p63
    %p65 = scmp.ne.s32.totalorder %s51, %s52
    %p66 = scmp.eq.s32.totalorder %s14, 1
    %p67 = por %p65, %p66
    %p69 = scmp.ne.s32.totalorder %s52, %s68
    %p70 = scmp.eq.s32.totalorder %s14, 0
    %p71 = por %p69, %p70
    %s72 = ssub.s32 %s15, %s41
    %s73 = ssub.s32 %s18, %s29
    %s74 = sor.u32 %s72, %s73
    %s75 = ssub.s32 %s17, %s33
    %s76 = sor.u32 %s74, %s75
    %p77 = scmp.eq.s32.totalorder %s76, 0
    %s79 = sadd.s32 %s78, 1
    %s80 = scalar_select %p77, %s78, %s79
    %p83 = pneg %p77
    %p84 = scmp.eq.s32.totalorder %s8, 1
    %p85 = por %p83, %p84
    %p86 = scmp.ne.s32.totalorder %s78, %s81
    %p87 = scmp.eq.s32.totalorder %s8, 0
    %p88 = por %p86, %p87
    %p89 = scmp.ne.s32.totalorder %s78, %s81
    %p90 = scmp.eq.s32.totalorder %s13, 1
    %p91 = por %p89, %p90
    %p92 = scmp.ne.s32.totalorder %s81, %s82
    %p93 = scmp.eq.s32.totalorder %s13, 0
    %p94 = por %p92, %p93
    %p95 = scmp.ne.s32.totalorder %s81, %s82
    %p96 = scmp.eq.s32.totalorder %s14, 1
    %p97 = por %p95, %p96
    %p99 = scmp.ne.s32.totalorder %s82, %s98
    %p100 = scmp.eq.s32.totalorder %s14, 0
    %p101 = por %p99, %p100
    %s102 = ssub.s32 %s15, %s41
    %s103 = ssub.s32 %s16, %s37
    %s104 = sor.u32 %s102, %s103
    %s105 = ssub.s32 %s17, %s33
    %s106 = sor.u32 %s104, %s105
    %p107 = scmp.eq.s32.totalorder %s106, 0
    %s109 = sadd.s32 %s108, 1
    %s110 = scalar_select %p107, %s108, %s109
    %p113 = pneg %p107
    %p114 = scmp.eq.s32.totalorder %s8, 1
    %p115 = por %p113, %p114
    %p116 = scmp.ne.s32.totalorder %s108, %s111
    %p117 = scmp.eq.s32.totalorder %s8, 0
    %p118 = por %p116, %p117
    %p119 = scmp.ne.s32.totalorder %s108, %s111
    %p120 = scmp.eq.s32.totalorder %s13, 1
    %p121 = por %p119, %p120
    %p122 = scmp.ne.s32.totalorder %s111, %s112
    %p123 = scmp.eq.s32.totalorder %s13, 0
    %p124 = por %p122, %p123
    %p125 = scmp.ne.s32.totalorder %s111, %s112
    %p126 = scmp.eq.s32.totalorder %s14, 1
    %p127 = por %p125, %p126
    %p129 = scmp.ne.s32.totalorder %s112, %s128
    %p130 = scmp.eq.s32.totalorder %s14, 0
    %p131 = por %p129, %p130
    %p132 = scmp.le.s32.totalorder 1, %s8
    %p133 = scmp.lt.s32.totalorder %s8, 3
    %p134 = pnand %p132, %p133
    %p135 = pneg %p134
    // Predicated region
    $region9: #{dydensenet_forward.23} parent=5 // pred_check
      _
    $region10: #{dydensenet_forward.23} parent=5 // pred_check_branch
      %137 = sbr.rel (%p134) target = $region12
    $region11: #{dydensenet_forward.23} parent=5 // pred_region
      %s138 = ssub.s32 %s8, 1
    $region12: #{dydensenet_forward.23} parent=5 // pred_fallthru
      _
    %p139 = scmp.lt.s32.totalorder %s8, 2
    // Predicated region
    $region13: #{dydensenet_forward.23} parent=5 // pred_check
      %p140 = pneg %p139
    $region14: #{dydensenet_forward.23} parent=5 // pred_check_branch
      %142 = sbr.rel (%p140) target = $region16
    $region15: #{dydensenet_forward.23} parent=5 // pred_region
      // Predicated region
      $region17: #{dydensenet_forward.23} parent=15 // pred_check
        %p143 = pneg %p58
      $region18: #{dydensenet_forward.23} parent=15 // pred_check_branch
        %145 = sbr.rel (%p143) target = $region20
      $region19: #{dydensenet_forward.23} parent=15 // pred_region
        %s146 = smul.u32 8, %s16
        %s147 = smul.u32 2, %s18
        %p148 = scmp.lt.s32.totalorder %s15, 1
        %s149 = scalar_select %p148, %s15, 1
        %p150 = scmp.lt.s32.totalorder %s146, 7
        %s151 = scalar_select %p150, %s146, 7
        %p152 = scmp.lt.s32.totalorder %s147, 1
        %s153 = scalar_select %p152, %s147, 1
        %s154 = smul.addr %s151, 2
        %s155 = sadd.s32 %s153, %s154
        %s156 = smul.addr %s149, 16
        %s157 = sadd.s32 %s155, %s156
        %s158 = smul.addr %s157, 4
        %s159 = scalar_lea.vmem %s0, %s158
        %s160 = smul.u32 8, %s16
        %s161 = smul.u32 2, %s18
      $region20: #{dydensenet_forward.23} parent=15 // pred_fallthru
        _
      // Predicated region
      $region21: #{dydensenet_forward.23} parent=15 // pred_check
        %p162 = pneg %p88
      $region22: #{dydensenet_forward.23} parent=15 // pred_check_branch
        %164 = sbr.rel (%p162) target = $region24
      $region23: #{dydensenet_forward.23} parent=15 // pred_region
        %s165 = smul.u32 18, %s18
        %p166 = scmp.lt.s32.totalorder %s15, 1
        %s167 = scalar_select %p166, %s15, 1
        %p168 = scmp.lt.s32.totalorder %s165, 17
        %s169 = scalar_select %p168, %s165, 17
        %p170 = scmp.lt.s32.totalorder %s17, 0
        %s171 = scalar_select %p170, %s17, 0
        %s172 = sadd.s32 %s171, %s169
        %s173 = smul.addr %s167, 18
        %s174 = sadd.s32 %s172, %s173
        %s175 = smul.addr %s174, 4
        %s176 = scalar_lea.vmem %s1, %s175
        %s177 = smul.u32 18, %s18
      $region24: #{dydensenet_forward.23} parent=15 // pred_fallthru
        _
    $region16: #{dydensenet_forward.23} parent=5 // pred_fallthru
      _
    %p178 = scmp.le.s32.totalorder 1, %s8
    %p179 = scmp.lt.s32.totalorder %s8, 3
    %p180 = pnand %p178, %p179
    %p181 = pneg %p180
    // Predicated region
    $region25: #{dydensenet_forward.23} parent=5 // pred_check
      _
    $region26: #{dydensenet_forward.23} parent=5 // pred_check_branch
      %183 = sbr.rel (%p180) target = $region28
    $region27: #{dydensenet_forward.23} parent=5 // pred_region
      %s184 = ssub.s32 %s8, 1
      %s185 = smul.u32 8, %s20
      %s186 = smul.u32 2, %s22
      %p187 = scmp.lt.s32.totalorder %s19, 1
      %s188 = scalar_select %p187, %s19, 1
      %p189 = scmp.lt.s32.totalorder %s185, 7
      %s190 = scalar_select %p189, %s185, 7
      %p191 = scmp.lt.s32.totalorder %s186, 1
      %s192 = scalar_select %p191, %s186, 1
      %s193 = smul.addr %s190, 2
      %s194 = sadd.s32 %s192, %s193
      %s195 = smul.addr %s188, 16
      %s196 = sadd.s32 %s194, %s195
      %s197 = smul.addr %s196, 4
      %s198 = scalar_lea.vmem %s0, %s197
      %p199 = pneg %p64
      %p200 = pneg %p61
      %s201 = smul.u32 18, %s22
      %p202 = scmp.lt.s32.totalorder %s19, 1
      %s203 = scalar_select %p202, %s19, 1
      %p204 = scmp.lt.s32.totalorder %s201, 17
      %s205 = scalar_select %p204, %s201, 17
      %p206 = scmp.lt.s32.totalorder %s21, 0
      %s207 = scalar_select %p206, %s21, 0
      %s208 = sadd.s32 %s207, %s205
      %s209 = smul.addr %s203, 18
      %s210 = sadd.s32 %s208, %s209
      %s211 = smul.addr %s210, 4
      %s212 = scalar_lea.vmem %s1, %s211
      %p213 = pneg %p94
      %p214 = pneg %p91
      %p215 = pneg %p124
      %p216 = pneg %p121
      %s217 = smul.u32 8, %s20
      %p218 = scmp.lt.s32.totalorder %s19, 1
      %s219 = scalar_select %p218, %s19, 1
      %p220 = scmp.lt.s32.totalorder %s217, 7
      %s221 = scalar_select %p220, %s217, 7
      %p222 = scmp.lt.s32.totalorder %s21, 0
      %s223 = scalar_select %p222, %s21, 0
      %s224 = sadd.s32 %s223, %s221
      %s225 = smul.addr %s219, 8
      %s226 = sadd.s32 %s224, %s225
      %s227 = smul.addr %s226, 4
      %s228 = scalar_lea.vmem %s2, %s227
      %s229 = smul.u32 8, %s20
      %s230 = smul.u32 2, %s22
      %p231 = scmp.lt.s32.totalorder %s19, 1
      %s232 = scalar_select %p231, %s19, 1
      %p233 = scmp.lt.s32.totalorder %s229, 7
      %s234 = scalar_select %p233, %s229, 7
      %p235 = scmp.lt.s32.totalorder %s230, 1
      %s236 = scalar_select %p235, %s230, 1
      %s237 = smul.addr %s234, 2
      %s238 = sadd.s32 %s236, %s237
      %s239 = smul.addr %s232, 16
      %s240 = sadd.s32 %s238, %s239
      %s241 = smul.addr %s240, 4
      %s242 = scalar_lea.vmem %s0, %s241
      %s243 = smul.u32 8, %s20
      %s244 = smul.u32 2, %s22
      %s245 = smul.u32 18, %s22
      %p246 = scmp.lt.s32.totalorder %s19, 1
      %s247 = scalar_select %p246, %s19, 1
      %p248 = scmp.lt.s32.totalorder %s245, 17
      %s249 = scalar_select %p248, %s245, 17
      %p250 = scmp.lt.s32.totalorder %s21, 0
      %s251 = scalar_select %p250, %s21, 0
      %s252 = sadd.s32 %s251, %s249
      %s253 = smul.addr %s247, 18
      %s254 = sadd.s32 %s252, %s253
      %s255 = smul.addr %s254, 4
      %s256 = scalar_lea.vmem %s1, %s255
      %s257 = smul.u32 18, %s22
      %s258 = smul.u32 8, %s20
      %p259 = scmp.lt.s32.totalorder %s19, 1
      %s260 = scalar_select %p259, %s19, 1
      %p261 = scmp.lt.s32.totalorder %s258, 7
      %s262 = scalar_select %p261, %s258, 7
      %p263 = scmp.lt.s32.totalorder %s21, 0
      %s264 = scalar_select %p263, %s21, 0
      %s265 = sadd.s32 %s264, %s262
      %s266 = smul.addr %s260, 8
      %s267 = sadd.s32 %s265, %s266
      %s268 = smul.addr %s267, 4
      %s269 = scalar_lea.vmem %s2, %s268
      %s270 = smul.u32 8, %s20
      %p272 = scmp.eq.s32.totalorder %s22, 0
      // Predicated region
      $region29: #{dydensenet_forward.23} parent=27 // pred_check
        %p273 = pneg %p272
      $region30: #{dydensenet_forward.23} parent=27 // pred_check_branch
        %275 = sbr.rel (%p273) target = $region32
      $region31: #{dydensenet_forward.23} parent=27 // pred_region
        %vm276 = vcmask 31744
        %277 = vst.msk [vmem:[#allocation2] sm:$0xff] %vm276, 0.0
        %278 = vst.msk [vmem:[#allocation2 + $0x8] sm:$0xff] %vm276, 0.0
        %279 = vst.msk [vmem:[#allocation2 + $0x10] sm:$0xff] %vm276, 0.0
        %280 = vst.msk [vmem:[#allocation2 + $0x18] sm:$0xff] %vm276, 0.0
        %281 = vst.msk [vmem:[#allocation2 + $0x20] sm:$0xff] %vm276, 0.0
        %282 = vst.msk [vmem:[#allocation2 + $0x28] sm:$0xff] %vm276, 0.0
        %283 = vst.msk [vmem:[#allocation2 + $0x30] sm:$0xff] %vm276, 0.0
        %284 = vst.msk [vmem:[#allocation2 + $0x38] sm:$0xff] %vm276, 0.0
      $region32: #{dydensenet_forward.23} parent=27 // pred_fallthru
        _
      %v285 = vld [vmem:[#allocation2] sm:$0xff]
      %v286 = vld [vmem:[#allocation2 + $0x8] sm:$0xff]
      %v287 = vld [vmem:[#allocation2 + $0x10] sm:$0xff]
      %v288 = vld [vmem:[#allocation2 + $0x18] sm:$0xff]
      %v289 = vld [vmem:[#allocation2 + $0x20] sm:$0xff]
      %v290 = vld [vmem:[#allocation2 + $0x28] sm:$0xff]
      %v291 = vld [vmem:[#allocation2 + $0x30] sm:$0xff]
      %v292 = vld [vmem:[#allocation2 + $0x38] sm:$0xff]
      %v293 = vld [vmem:[%s242] sm:$0xff]
      %v294 = vld [vmem:[%s242 + $0x8] sm:$0xff]
      %v295 = vld [vmem:[%s242 + $0x10] sm:$0xff]
      %v296 = vld [vmem:[%s242 + $0x18] sm:$0xff]
      %v297 = vld [vmem:[%s242 + $0x20] sm:$0xff]
      %v298 = vld [vmem:[%s242 + $0x28] sm:$0xff]
      %v299 = vld [vmem:[%s242 + $0x30] sm:$0xff]
      %v300 = vld [vmem:[%s242 + $0x38] sm:$0xff]
      %v301 = vld [vmem:[%s256] sm:$0xf]
      %v302 = vld [vmem:[%s256 + $0x4] sm:$0xf]
      %v303 = vld [vmem:[%s256 + $0x8] sm:$0xf]
      %v304 = vld [vmem:[%s256 + $0xc] sm:$0xf]
      %v305 = vld [vmem:[%s256 + $0x10] sm:$0xf]
      %v306 = vld [vmem:[%s256 + $0x14] sm:$0xf]
      %v307 = vld [vmem:[%s256 + $0x18] sm:$0xf]
      %v308 = vld [vmem:[%s256 + $0x1c] sm:$0xf]
      %v309 = vld [vmem:[%s256 + $0x20] sm:$0xf]
      %v310 = vld [vmem:[%s256 + $0x24] sm:$0xf]
      %v311 = vld [vmem:[%s256 + $0x28] sm:$0xf]
      %v312 = vld [vmem:[%s256 + $0x2c] sm:$0xf]
      %v313 = vld [vmem:[%s256 + $0x30] sm:$0xf]
      %v314 = vld [vmem:[%s256 + $0x34] sm:$0xf]
      %v315 = vld [vmem:[%s256 + $0x38] sm:$0xf]
      %v316 = vld [vmem:[%s256 + $0x3c] sm:$0xf]
      %v317 = vld [vmem:[%s256 + $0x40] sm:$0xf]
      %v318 = vld [vmem:[%s256 + $0x44] sm:$0xf]
      %v327 = vunpack.c.l.b16 %v293
      %v328 = vunpack.c.h.b16 %v293
      %v329 = vunpack.c.l.b16 %v294
      %v330 = vunpack.c.h.b16 %v294
      %v331 = vunpack.c.l.b16 %v295
      %v332 = vunpack.c.h.b16 %v295
      %v333 = vunpack.c.l.b16 %v296
      %v334 = vunpack.c.h.b16 %v296
      %v335 = vunpack.c.l.b16 %v297
      %v336 = vunpack.c.h.b16 %v297
      %v337 = vunpack.c.l.b16 %v298
      %v338 = vunpack.c.h.b16 %v298
      %v339 = vunpack.c.l.b16 %v299
      %v340 = vunpack.c.h.b16 %v299
      %v341 = vunpack.c.l.b16 %v300
      %v342 = vunpack.c.h.b16 %v300
      %v343 = vpack.c.b16 %v329, %v327
      %v344 = vpack.c.b16 %v330, %v328
      %v345 = vpack.c.b16 %v333, %v331
      %v346 = vpack.c.b16 %v334, %v332
      %v347 = vpack.c.b16 %v337, %v335
      %v348 = vpack.c.b16 %v338, %v336
      %v349 = vpack.c.b16 %v341, %v339
      %v350 = vpack.c.b16 %v342, %v340
      %v373 = vunpack.c.l.b16 %v301
      %v374 = vunpack.c.l.b16 %v302
      %v375 = vunpack.c.l.b16 %v303
      %v376 = vunpack.c.l.b16 %v304
      %v377 = vunpack.c.l.b16 %v305
      %v378 = vunpack.c.l.b16 %v306
      %v379 = vunpack.c.l.b16 %v307
      %v380 = vunpack.c.l.b16 %v308
      %v381 = vunpack.c.l.b16 %v309
      %v382 = vunpack.c.l.b16 %v310
      %v383 = vunpack.c.l.b16 %v311
      %v384 = vunpack.c.l.b16 %v312
      %v385 = vunpack.c.l.b16 %v313
      %v386 = vunpack.c.l.b16 %v314
      %v387 = vunpack.c.l.b16 %v315
      %v388 = vunpack.c.l.b16 %v316
      %v389 = vunpack.c.l.b16 %v317
      %v390 = vunpack.c.l.b16 %v318
      %v391 = vpack.c.b16 %v374, %v373
      %v392 = vpack.c.b16 %v376, %v375
      %v393 = vpack.c.b16 %v378, %v377
      %v394 = vpack.c.b16 %v380, %v379
      %v395 = vpack.c.b16 %v382, %v381
      %v396 = vpack.c.b16 %v384, %v383
      %v397 = vpack.c.b16 %v386, %v385
      %v398 = vpack.c.b16 %v388, %v387
      %v399 = vpack.c.b16 %v390, %v389
      %vm409 = vcmask 130048
      %v411 = vsel %vm409, %v344, 0
      %v414 = vsel %vm409, %v346, 0
      %v417 = vsel %vm409, %v348, 0
      %v420 = vsel %vm409, %v350, 0
      %422 = vmatprep.subr.bf16.mxu0 0
      %423 = vmatpush1.bf16.msra.mxu0 %v398
      %424 = vmatprep.subr.bf16.mxu0 0
      %425 = vmatpush1.bf16.msra.mxu0 %v397
      %426 = vmatprep.subr.bf16.mxu0 0
      %427 = vmatpush1.bf16.msra.mxu0 %v396
      %428 = vmatprep.subr.bf16.mxu0 0
      %429 = vmatpush1.bf16.msra.mxu0 %v395
      %430 = vmatprep.subr.bf16.mxu0 0
      %431 = vmatpush1.bf16.msra.mxu0 %v394
      %432 = vmatprep.subr.bf16.mxu0 0
      %433 = vmatpush1.bf16.msra.mxu0 %v393
      %434 = vmatprep.subr.bf16.mxu0 0
      %435 = vmatpush1.bf16.msra.mxu0 %v392
      %436 = vmatprep.subr.bf16.mxu0 0
      %437 = vmatpush1.bf16.msra.mxu0 %v391
      %438 = vmatprep.subr.bf16.mxu0 0
      %439 = vmatpush2.bf16.msra.mxu0 0
      %440 = vmatprep.subr.bf16.mxu0 0
      %441 = vmatpush2.bf16.msra.mxu0 0
      %442 = vmatprep.subr.bf16.mxu0 0
      %443 = vmatpush2.bf16.msra.mxu0 0
      %444 = vmatprep.subr.bf16.mxu0 0
      %445 = vmatpush2.bf16.msra.mxu0 0
      %446 = vmatprep.subr.bf16.mxu0 0
      %447 = vmatpush2.bf16.msra.mxu0 0
      %448 = vmatprep.subr.bf16.mxu0 0
      %449 = vmatpush2.bf16.msra.mxu0 0
      %450 = vmatprep.subr.bf16.mxu0 0
      %451 = vmatpush2.bf16.msra.mxu0 0
      %452 = vmatprep.subr.bf16.mxu0 0
      %453 = vmatpush2.bf16.msra.mxu0 %v399
      %454 = vmatprep.mubr.bf16.mxu0 %v411
      %455 = vmatmul.mubr.bf16.gmra.mxu0 %v343
      %v456 = vpop.f32.mrf.mxu0
      %v457 = vadd.f32 0.0, %v456
      %v458 = vpop.f32.mrf.mxu0
      %v459 = vpop.f32.mrf.mxu0
      %v460 = vadd.f32 0.0, %v459
      %v461 = vpop.f32.mrf.mxu0
      %462 = vmatprep.mubr.bf16.mxu0 %v414
      %463 = vmatmul.mubr.bf16.gmra.mxu0 %v345
      %v464 = vpop.f32.mrf.mxu0
      %v465 = vadd.f32 0.0, %v464
      %v466 = vpop.f32.mrf.mxu0
      %v467 = vpop.f32.mrf.mxu0
      %v468 = vadd.f32 0.0, %v467
      %v469 = vpop.f32.mrf.mxu0
      %470 = vmatprep.mubr.bf16.mxu0 %v417
      %471 = vmatmul.mubr.bf16.gmra.mxu0 %v347
      %v472 = vpop.f32.mrf.mxu0
      %v473 = vadd.f32 0.0, %v472
      %v474 = vpop.f32.mrf.mxu0
      %v475 = vpop.f32.mrf.mxu0
      %v476 = vadd.f32 0.0, %v475
      %v477 = vpop.f32.mrf.mxu0
      %478 = vmatprep.mubr.bf16.mxu0 %v420
      %479 = vmatmul.mubr.bf16.gmra.mxu0 %v349
      %v480 = vpop.f32.mrf.mxu0
      %v481 = vadd.f32 0.0, %v480
      %v482 = vpop.f32.mrf.mxu0
      %v483 = vpop.f32.mrf.mxu0
      %v484 = vadd.f32 0.0, %v483
      %v485 = vpop.f32.mrf.mxu0
      %486 = vdwg.mxu0
      %v487 = vadd.f32 %v285, %v457
      %v488 = vadd.f32 %v286, %v460
      %v489 = vadd.f32 %v287, %v465
      %v490 = vadd.f32 %v288, %v468
      %v491 = vadd.f32 %v289, %v473
      %v492 = vadd.f32 %v290, %v476
      %v493 = vadd.f32 %v291, %v481
      %v494 = vadd.f32 %v292, %v484
      %vm495 = vcmask 31744
      %496 = vst.msk [vmem:[#allocation2] sm:$0xff] %vm495, %v487
      %497 = vst.msk [vmem:[#allocation2 + $0x8] sm:$0xff] %vm495, %v488
      %498 = vst.msk [vmem:[#allocation2 + $0x10] sm:$0xff] %vm495, %v489
      %499 = vst.msk [vmem:[#allocation2 + $0x18] sm:$0xff] %vm495, %v490
      %500 = vst.msk [vmem:[#allocation2 + $0x20] sm:$0xff] %vm495, %v491
      %501 = vst.msk [vmem:[#allocation2 + $0x28] sm:$0xff] %vm495, %v492
      %502 = vst.msk [vmem:[#allocation2 + $0x30] sm:$0xff] %vm495, %v493
      %503 = vst.msk [vmem:[#allocation2 + $0x38] sm:$0xff] %vm495, %v494
      // Predicated region
      $region33: #{dydensenet_forward.23} parent=27 // pred_check
        %p504 = pneg %p272
      $region34: #{dydensenet_forward.23} parent=27 // pred_check_branch
        %506 = sbr.rel (%p504) target = $region36
      $region35: #{dydensenet_forward.23} parent=27 // pred_region
        %v507 = vld [vmem:[#allocation2] sm:$0xff]
        %v508 = vld [vmem:[#allocation2 + $0x8] sm:$0xff]
        %v509 = vld [vmem:[#allocation2 + $0x10] sm:$0xff]
        %v510 = vld [vmem:[#allocation2 + $0x18] sm:$0xff]
        %v511 = vld [vmem:[#allocation2 + $0x20] sm:$0xff]
        %v512 = vld [vmem:[#allocation2 + $0x28] sm:$0xff]
        %v513 = vld [vmem:[#allocation2 + $0x30] sm:$0xff]
        %v514 = vld [vmem:[#allocation2 + $0x38] sm:$0xff]
        %v515 = vpack.c.bf16 %v508, %v507
        %v516 = vpack.c.bf16 %v510, %v509
        %v517 = vpack.c.bf16 %v512, %v511
        %v518 = vpack.c.bf16 %v514, %v513
        %v523 = vunpack.c.l.b16 %v515
        %v524 = vunpack.c.h.b16 %v515
        %v525 = vunpack.c.l.b16 %v516
        %v526 = vunpack.c.h.b16 %v516
        %v527 = vunpack.c.l.b16 %v517
        %v528 = vunpack.c.h.b16 %v517
        %v529 = vunpack.c.l.b16 %v518
        %v530 = vunpack.c.h.b16 %v518
        %v531 = vpack.c.b16 %v523, %v523
        %v532 = vpack.c.b16 %v524, %v524
        %v533 = vpack.c.b16 %v525, %v525
        %v534 = vpack.c.b16 %v526, %v526
        %v535 = vpack.c.b16 %v527, %v527
        %v536 = vpack.c.b16 %v528, %v528
        %v537 = vpack.c.b16 %v529, %v529
        %v538 = vpack.c.b16 %v530, %v530
        %vm547 = vcmask 27648
        %548 = vst.msk [vmem:[%s269] sm:$0xf] %vm547, %v531
        %549 = vst.msk [vmem:[%s269 + $0x4] sm:$0xf] %vm547, %v532
        %550 = vst.msk [vmem:[%s269 + $0x8] sm:$0xf] %vm547, %v533
        %551 = vst.msk [vmem:[%s269 + $0xc] sm:$0xf] %vm547, %v534
        %552 = vst.msk [vmem:[%s269 + $0x10] sm:$0xf] %vm547, %v535
        %553 = vst.msk [vmem:[%s269 + $0x14] sm:$0xf] %vm547, %v536
        %554 = vst.msk [vmem:[%s269 + $0x18] sm:$0xf] %vm547, %v537
        %555 = vst.msk [vmem:[%s269 + $0x1c] sm:$0xf] %vm547, %v538
      $region36: #{dydensenet_forward.23} parent=27 // pred_fallthru
        _
      %s556 = smul.u32 8, %s20
      %p557 = scmp.lt.s32.totalorder %s19, 1
      %s558 = scalar_select %p557, %s19, 1
      %p559 = scmp.lt.s32.totalorder %s556, 7
      %s560 = scalar_select %p559, %s556, 7
      %p561 = scmp.lt.s32.totalorder %s21, 0
      %s562 = scalar_select %p561, %s21, 0
      %s563 = sadd.s32 %s562, %s560
      %s564 = smul.addr %s558, 8
      %s565 = sadd.s32 %s563, %s564
      %s566 = smul.addr %s565, 4
      %s567 = scalar_lea.vmem %s2, %s566
      // Predicated region
      $region37: #{dydensenet_forward.23} parent=27 // pred_check
        %p568 = pneg %p121
      $region38: #{dydensenet_forward.23} parent=27 // pred_check_branch
        %570 = sbr.rel (%p568) target = $region40
      $region39: #{dydensenet_forward.23} parent=27 // pred_region
        %s571 = smul.u32 8, %s20
      $region40: #{dydensenet_forward.23} parent=27 // pred_fallthru
        _
    $region28: #{dydensenet_forward.23} parent=5 // pred_fallthru
      _
    %p572 = scmp.le.s32.totalorder 2, %s8
    // Predicated region
    $region41: #{dydensenet_forward.23} parent=5 // pred_check
      %p573 = pneg %p572
    $region42: #{dydensenet_forward.23} parent=5 // pred_check_branch
      %575 = sbr.rel (%p573) target = $region44
    $region43: #{dydensenet_forward.23} parent=5 // pred_region
      %s576 = ssub.s32 %s8, 2
      // Predicated region
      $region45: #{dydensenet_forward.23} parent=43 // pred_check
        %p577 = pneg %p127
      $region46: #{dydensenet_forward.23} parent=43 // pred_check_branch
        %579 = sbr.rel (%p577) target = $region48
      $region47: #{dydensenet_forward.23} parent=43 // pred_region
        %s580 = smul.u32 8, %s24
        %p581 = scmp.lt.s32.totalorder %s23, 1
        %s582 = scalar_select %p581, %s23, 1
        %p583 = scmp.lt.s32.totalorder %s580, 7
        %s584 = scalar_select %p583, %s580, 7
        %p585 = scmp.lt.s32.totalorder %s25, 0
        %s586 = scalar_select %p585, %s25, 0
        %s587 = sadd.s32 %s586, %s584
        %s588 = smul.addr %s582, 8
        %s589 = sadd.s32 %s587, %s588
        %s590 = smul.addr %s589, 4
        %s591 = scalar_lea.vmem %s2, %s590
      $region48: #{dydensenet_forward.23} parent=43 // pred_fallthru
        _
    $region44: #{dydensenet_forward.23} parent=5 // pred_fallthru
      _
  $region6: #{dydensenet_forward.23} parent=0 // loop_footer
    %s12 = sadd.s32 1, %s8
  $region7: #{dydensenet_forward.23} parent=0 // loop_footer_branch
    %7 = sbr.rel target = $region3
  $region8: #{dydensenet_forward.23} parent=0 // loop_exit
    _

// kernel: dydensenet_forward.24
$region0: #{dydensenet_forward.24}
  #allocation0 [shape = 'u32[]', space=smem, size = 0x4, offset = 0x4, fixed_abs, tag = 'smem constant byte address 0x4 - core index']
  #allocation1 [shape = 'u32[144,128]{1,0:T(1,128)}', space=vmem, size = 0x12000, scoped, tag = 'internal scratch']
  #allocation2 [shape = 'f32[1,20]{1,0:T(1,128)}', space=vmem, size = 0x200, scoped, tag = 'scratch operand']
  %s0 = inlined_call_operand.vmem [shape: bf16[2,64,20], index: 0, kind: input, shape index: {}]
  %s1 = inlined_call_operand.vmem [shape: f32[1,1,20], index: 1, kind: input, shape index: {}]
  %s2 = inlined_call_operand.vmem [shape: f32[1,1,20], index: 2, kind: input, shape index: {}]
  %s3 = inlined_call_operand.vmem [shape: bf16[2,64,20], index: 3, kind: output, shape index: {0}]
  %s4 = inlined_call_operand.vmem [shape: f32[2,1,20], index: 4, kind: output, shape index: {1}]
  %5 = xla_tuple %s3, %s4
  %s6 = sld [smem:[#allocation0]]
  $region61: #{dydensenet_forward.24} parent=0
    _
  %s8 = ssub.s32 1, %s6
  %s9 = scalar_select 0, %s8, %s6
  loop: start=0, step=1, limit=4
  $region2: #{dydensenet_forward.24} parent=0 // loop_pre_header
    _
  $region3: #{dydensenet_forward.24} parent=0 // loop_header
    %s11 = sphi 0, %s15
    %p12 = scmp.ge.s32.totalorder %s11, 4
    %s18 = sphi 0, %s30
    %s19 = sphi 0, %s26
    %s20 = sphi 0, %s18
    %s21 = sphi 0, %s19
    %s22 = sphi 0, %s20
    %s23 = sphi 0, %s21
    %s35 = sphi 0, %s37
    %s38 = sphi 0, %s35
    %s39 = sphi 0, %s38
    %s55 = sphi 0, %s39
    %s59 = sphi 0, %s59
    %s61 = sphi 0, %s59
    %s62 = sphi 0, %s61
    %s76 = sphi 0, %s62
    %s80 = sphi 0, %s80
    %s82 = sphi 0, %s80
    %s83 = sphi 0, %s82
    %s97 = sphi 0, %s83
    %s105 = sphi 0, %s107
    %s108 = sphi 0, %s105
    %s109 = sphi 0, %s108
    %s125 = sphi 0, %s109
    %s131 = sphi 0, %s133
    %s134 = sphi 0, %s131
    %s135 = sphi 0, %s134
    %s151 = sphi 0, %s135
  $region4: #{dydensenet_forward.24} parent=0 // loop_header_branch
    %14 = sbr.rel (%p12) target = $region8
  $region5: #{dydensenet_forward.24} parent=0 // loop_body
    %s16 = ssub.s32 %s11, 1
    %s17 = ssub.s32 %s11, 2
    %s24 = sadd.s32 1, %s19
    %p25 = scmp.ge.s32.totalorder %s24, 1
    %s26 = scalar_select %p25, 0, %s24
    %s27 = sadd.s32 1, %s18
    %s28 = scalar_select %p25, %s27, %s18
    %p29 = scmp.ge.s32.totalorder %s28, 2
    %s30 = scalar_select %p29, 0, %s28
    %s31 = ssub.s32 %s18, %s30
    %s32 = ssub.s32 %s19, %s26
    %s33 = sor.u32 %s31, %s32
    %p34 = scmp.eq.s32.totalorder %s33, 0
    %s36 = sadd.s32 %s35, 1
    %s37 = scalar_select %p34, %s35, %s36
    %p40 = pneg %p34
    %p41 = scmp.eq.s32.totalorder %s11, 1
    %p42 = por %p40, %p41
    %p43 = scmp.ne.s32.totalorder %s35, %s38
    %p44 = scmp.eq.s32.totalorder %s11, 0
    %p45 = por %p43, %p44
    %p46 = scmp.ne.s32.totalorder %s35, %s38
    %p47 = scmp.eq.s32.totalorder %s16, 1
    %p48 = por %p46, %p47
    %p49 = scmp.ne.s32.totalorder %s38, %s39
    %p50 = scmp.eq.s32.totalorder %s16, 0
    %p51 = por %p49, %p50
    %p52 = scmp.ne.s32.totalorder %s38, %s39
    %p53 = scmp.eq.s32.totalorder %s17, 1
    %p54 = por %p52, %p53
    %p56 = scmp.ne.s32.totalorder %s39, %s55
    %p57 = scmp.eq.s32.totalorder %s17, 0
    %p58 = por %p56, %p57
    %s60 = sadd.s32 %s59, 1
    %p63 = scmp.eq.s32.totalorder %s11, 1
    %p64 = scmp.ne.s32.totalorder %s59, %s61
    %p65 = scmp.eq.s32.totalorder %s11, 0
    %p66 = por %p64, %p65
    %p67 = scmp.ne.s32.totalorder %s59, %s61
    %p68 = scmp.eq.s32.totalorder %s16, 1
    %p69 = por %p67, %p68
    %p70 = scmp.ne.s32.totalorder %s61, %s62
    %p71 = scmp.eq.s32.totalorder %s16, 0
    %p72 = por %p70, %p71
    %p73 = scmp.ne.s32.totalorder %s61, %s62
    %p74 = scmp.eq.s32.totalorder %s17, 1
    %p75 = por %p73, %p74
    %p77 = scmp.ne.s32.totalorder %s62, %s76
    %p78 = scmp.eq.s32.totalorder %s17, 0
    %p79 = por %p77, %p78
    %s81 = sadd.s32 %s80, 1
    %p84 = scmp.eq.s32.totalorder %s11, 1
    %p85 = scmp.ne.s32.totalorder %s80, %s82
    %p86 = scmp.eq.s32.totalorder %s11, 0
    %p87 = por %p85, %p86
    %p88 = scmp.ne.s32.totalorder %s80, %s82
    %p89 = scmp.eq.s32.totalorder %s16, 1
    %p90 = por %p88, %p89
    %p91 = scmp.ne.s32.totalorder %s82, %s83
    %p92 = scmp.eq.s32.totalorder %s16, 0
    %p93 = por %p91, %p92
    %p94 = scmp.ne.s32.totalorder %s82, %s83
    %p95 = scmp.eq.s32.totalorder %s17, 1
    %p96 = por %p94, %p95
    %p98 = scmp.ne.s32.totalorder %s83, %s97
    %p99 = scmp.eq.s32.totalorder %s17, 0
    %p100 = por %p98, %p99
    %s101 = ssub.s32 %s18, %s30
    %s102 = ssub.s32 %s19, %s26
    %s103 = sor.u32 %s101, %s102
    %p104 = scmp.eq.s32.totalorder %s103, 0
    %s106 = sadd.s32 %s105, 1
    %s107 = scalar_select %p104, %s105, %s106
    %p110 = pneg %p104
    %p111 = scmp.eq.s32.totalorder %s11, 1
    %p112 = por %p110, %p111
    %p113 = scmp.ne.s32.totalorder %s105, %s108
    %p114 = scmp.eq.s32.totalorder %s11, 0
    %p115 = por %p113, %p114
    %p116 = scmp.ne.s32.totalorder %s105, %s108
    %p117 = scmp.eq.s32.totalorder %s16, 1
    %p118 = por %p116, %p117
    %p119 = scmp.ne.s32.totalorder %s108, %s109
    %p120 = scmp.eq.s32.totalorder %s16, 0
    %p121 = por %p119, %p120
    %p122 = scmp.ne.s32.totalorder %s108, %s109
    %p123 = scmp.eq.s32.totalorder %s17, 1
    %p124 = por %p122, %p123
    %p126 = scmp.ne.s32.totalorder %s109, %s125
    %p127 = scmp.eq.s32.totalorder %s17, 0
    %p128 = por %p126, %p127
    %s129 = ssub.s32 %s18, %s30
    %p130 = scmp.eq.s32.totalorder %s129, 0
    %s132 = sadd.s32 %s131, 1
    %s133 = scalar_select %p130, %s131, %s132
    %p136 = pneg %p130
    %p137 = scmp.eq.s32.totalorder %s11, 1
    %p138 = por %p136, %p137
    %p139 = scmp.ne.s32.totalorder %s131, %s134
    %p140 = scmp.eq.s32.totalorder %s11, 0
    %p141 = por %p139, %p140
    %p142 = scmp.ne.s32.totalorder %s131, %s134
    %p143 = scmp.eq.s32.totalorder %s16, 1
    %p144 = por %p142, %p143
    %p145 = scmp.ne.s32.totalorder %s134, %s135
    %p146 = scmp.eq.s32.totalorder %s16, 0
    %p147 = por %p145, %p146
    %p148 = scmp.ne.s32.totalorder %s134, %s135
    %p149 = scmp.eq.s32.totalorder %s17, 1
    %p150 = por %p148, %p149
    %p152 = scmp.ne.s32.totalorder %s135, %s151
    %p153 = scmp.eq.s32.totalorder %s17, 0
    %p154 = por %p152, %p153
    %p155 = scmp.le.s32.totalorder 1, %s11
    %p156 = scmp.lt.s32.totalorder %s11, 3
    %p157 = pnand %p155, %p156
    %p158 = pneg %p157
    // Predicated region
    $region9: #{dydensenet_forward.24} parent=5 // pred_check
      _
    $region10: #{dydensenet_forward.24} parent=5 // pred_check_branch
      %160 = sbr.rel (%p157) target = $region12
    $region11: #{dydensenet_forward.24} parent=5 // pred_region
      %s161 = ssub.s32 %s11, 1
      // Predicated region
      $region13: #{dydensenet_forward.24} parent=11 // pred_check
        %p162 = pneg %p72
      $region14: #{dydensenet_forward.24} parent=11 // pred_check_branch
        %164 = sbr.rel (%p162) target = $region16
      $region15: #{dydensenet_forward.24} parent=11 // pred_region
        _
      $region16: #{dydensenet_forward.24} parent=11 // pred_fallthru
        _
      // Predicated region
      $region17: #{dydensenet_forward.24} parent=11 // pred_check
        %p165 = pneg %p93
      $region18: #{dydensenet_forward.24} parent=11 // pred_check_branch
        %167 = sbr.rel (%p165) target = $region20
      $region19: #{dydensenet_forward.24} parent=11 // pred_region
        _
      $region20: #{dydensenet_forward.24} parent=11 // pred_fallthru
        _
    $region12: #{dydensenet_forward.24} parent=5 // pred_fallthru
      _
    %p168 = scmp.lt.s32.totalorder %s11, 2
    // Predicated region
    $region21: #{dydensenet_forward.24} parent=5 // pred_check
      %p169 = pneg %p168
    $region22: #{dydensenet_forward.24} parent=5 // pred_check_branch
      %171 = sbr.rel (%p169) target = $region24
    $region23: #{dydensenet_forward.24} parent=5 // pred_region
      // Predicated region
      $region25: #{dydensenet_forward.24} parent=23 // pred_check
        %p172 = pneg %p45
      $region26: #{dydensenet_forward.24} parent=23 // pred_check_branch
        %174 = sbr.rel (%p172) target = $region28
      $region27: #{dydensenet_forward.24} parent=23 // pred_region
        %s175 = smul.u32 8, %s19
        %p176 = scmp.lt.s32.totalorder %s18, 1
        %s177 = scalar_select %p176, %s18, 1
        %p178 = scmp.lt.s32.totalorder %s175, 7
        %s179 = scalar_select %p178, %s175, 7
        %s180 = smul.addr %s177, 8
        %s181 = sadd.s32 %s179, %s180
        %s182 = smul.addr %s181, 4
        %s183 = scalar_lea.vmem %s0, %s182
        %s184 = smul.u32 8, %s19
      $region28: #{dydensenet_forward.24} parent=23 // pred_fallthru
        _
    $region24: #{dydensenet_forward.24} parent=5 // pred_fallthru
      _
    %p185 = scmp.le.s32.totalorder 1, %s11
    %p186 = scmp.lt.s32.totalorder %s11, 3
    %p187 = pnand %p185, %p186
    %p188 = pneg %p187
    // Predicated region
    $region29: #{dydensenet_forward.24} parent=5 // pred_check
      _
    $region30: #{dydensenet_forward.24} parent=5 // pred_check_branch
      %190 = sbr.rel (%p187) target = $region32
    $region31: #{dydensenet_forward.24} parent=5 // pred_region
      %s191 = ssub.s32 %s11, 1
      %s192 = smul.u32 8, %s21
      %p193 = scmp.lt.s32.totalorder %s20, 1
      %s194 = scalar_select %p193, %s20, 1
      %p195 = scmp.lt.s32.totalorder %s192, 7
      %s196 = scalar_select %p195, %s192, 7
      %s197 = smul.addr %s194, 8
      %s198 = sadd.s32 %s196, %s197
      %s199 = smul.addr %s198, 4
      %s200 = scalar_lea.vmem %s0, %s199
      %p201 = pneg %p51
      %p202 = pneg %p48
      %p203 = pneg %p72
      %p204 = pneg %p69
      %p205 = pneg %p93
      %p206 = pneg %p90
      %p207 = pneg %p121
      %p208 = pneg %p118
      %s209 = smul.u32 8, %s21
      %p210 = scmp.lt.s32.totalorder %s20, 1
      %s211 = scalar_select %p210, %s20, 1
      %p212 = scmp.lt.s32.totalorder %s209, 7
      %s213 = scalar_select %p212, %s209, 7
      %s214 = smul.addr %s211, 8
      %s215 = sadd.s32 %s213, %s214
      %s216 = smul.addr %s215, 4
      %s217 = scalar_lea.vmem %s3, %s216
      %p218 = pneg %p147
      %p219 = pneg %p144
      %p220 = scmp.lt.s32.totalorder %s20, 1
      %s221 = scalar_select %p220, %s20, 1
      %s222 = scalar_lea.vmem %s4, %s221
      %s223 = smul.u32 8, %s21
      %p224 = scmp.lt.s32.totalorder %s20, 1
      %s225 = scalar_select %p224, %s20, 1
      %p226 = scmp.lt.s32.totalorder %s223, 7
      %s227 = scalar_select %p226, %s223, 7
      %s228 = smul.addr %s225, 8
      %s229 = sadd.s32 %s227, %s228
      %s230 = smul.addr %s229, 4
      %s231 = scalar_lea.vmem %s0, %s230
      %s232 = smul.u32 8, %s21
      %s233 = smul.u32 8, %s21
      %p234 = scmp.lt.s32.totalorder %s20, 1
      %s235 = scalar_select %p234, %s20, 1
      %p236 = scmp.lt.s32.totalorder %s233, 7
      %s237 = scalar_select %p236, %s233, 7
      %s238 = smul.addr %s235, 8
      %s239 = sadd.s32 %s237, %s238
      %s240 = smul.addr %s239, 4
      %s241 = scalar_lea.vmem %s3, %s240
      %s242 = smul.u32 8, %s21
      %p243 = scmp.lt.s32.totalorder %s20, 1
      %s244 = scalar_select %p243, %s20, 1
      %s245 = scalar_lea.vmem %s4, %s244
      %p246 = scmp.eq.s32.totalorder %s21, 0
      // Predicated region
      $region33: #{dydensenet_forward.24} parent=31 // pred_check
        %p247 = pneg %p246
      $region34: #{dydensenet_forward.24} parent=31 // pred_check_branch
        %249 = sbr.rel (%p247) target = $region36
      $region35: #{dydensenet_forward.24} parent=31 // pred_region
        %vm250 = vcmask 155648
        %251 = vst.msk [vmem:[#allocation2] sm:$0x1] %vm250, 0.0
      $region36: #{dydensenet_forward.24} parent=31 // pred_fallthru
        _
      %v252 = vld [vmem:[%s231] sm:$0xf]
      %v253 = vld [vmem:[%s231 + $0x4] sm:$0xf]
      %v254 = vld [vmem:[%s231 + $0x8] sm:$0xf]
      %v255 = vld [vmem:[%s231 + $0xc] sm:$0xf]
      %v256 = vld [vmem:[%s231 + $0x10] sm:$0xf]
      %v257 = vld [vmem:[%s231 + $0x14] sm:$0xf]
      %v258 = vld [vmem:[%s231 + $0x18] sm:$0xf]
      %v259 = vld [vmem:[%s231 + $0x1c] sm:$0xf]
      %v260 = vunpack.c.l.bf16 %v252
      %v261 = vunpack.c.l.bf16 %v253
      %v262 = vunpack.c.l.bf16 %v254
      %v263 = vunpack.c.l.bf16 %v255
      %v264 = vunpack.c.l.bf16 %v256
      %v265 = vunpack.c.l.bf16 %v257
      %v266 = vunpack.c.l.bf16 %v258
      %v267 = vunpack.c.l.bf16 %v259
      %v268 = vld [vmem:[%s1] sm:$0x1]
      %v270 = vlaneseq
      %v271 = vshrl.u32 %v270, 7
      %v272 = vsub.s32 0, %v271
      %v273 = vrot.slane %v268, %v272
      %v275 = vmul.f32 %v260, %v273
      %v276 = vmul.f32 %v261, %v273
      %v277 = vmul.f32 %v262, %v273
      %v278 = vmul.f32 %v263, %v273
      %v279 = vmul.f32 %v264, %v273
      %v280 = vmul.f32 %v265, %v273
      %v281 = vmul.f32 %v266, %v273
      %v282 = vmul.f32 %v267, %v273
      %v283 = vld [vmem:[%s2] sm:$0x1]
      %v285 = vlaneseq
      %v286 = vshrl.u32 %v285, 7
      %v287 = vsub.s32 0, %v286
      %v288 = vrot.slane %v283, %v287
      %v290 = vadd.f32 %v275, %v288
      %v291 = vadd.f32 %v276, %v288
      %v292 = vadd.f32 %v277, %v288
      %v293 = vadd.f32 %v278, %v288
      %v294 = vadd.f32 %v279, %v288
      %v295 = vadd.f32 %v280, %v288
      %v296 = vadd.f32 %v281, %v288
      %v297 = vadd.f32 %v282, %v288
      %v298 = vmax.f32 %v290, 0.0
      %v299 = vmax.f32 %v291, 0.0
      %v300 = vmax.f32 %v292, 0.0
      %v301 = vmax.f32 %v293, 0.0
      %v302 = vmax.f32 %v294, 0.0
      %v303 = vmax.f32 %v295, 0.0
      %v304 = vmax.f32 %v296, 0.0
      %v305 = vmax.f32 %v297, 0.0
      %v306 = vpack.c.bf16 %v299, %v298
      %v307 = vpack.c.bf16 %v301, %v300
      %v308 = vpack.c.bf16 %v303, %v302
      %v309 = vpack.c.bf16 %v305, %v304
      %v314 = vunpack.c.l.b16 %v306
      %v315 = vunpack.c.h.b16 %v306
      %v316 = vunpack.c.l.b16 %v307
      %v317 = vunpack.c.h.b16 %v307
      %v318 = vunpack.c.l.b16 %v308
      %v319 = vunpack.c.h.b16 %v308
      %v320 = vunpack.c.l.b16 %v309
      %v321 = vunpack.c.h.b16 %v309
      %v322 = vpack.c.b16 %v314, %v314
      %v323 = vpack.c.b16 %v315, %v315
      %v324 = vpack.c.b16 %v316, %v316
      %v325 = vpack.c.b16 %v317, %v317
      %v326 = vpack.c.b16 %v318, %v318
      %v327 = vpack.c.b16 %v319, %v319
      %v328 = vpack.c.b16 %v320, %v320
      %v329 = vpack.c.b16 %v321, %v321
      %vm338 = vcmask 158720
      %339 = vst.msk [vmem:[%s241] sm:$0xf] %vm338, %v322
      %340 = vst.msk [vmem:[%s241 + $0x4] sm:$0xf] %vm338, %v323
      %341 = vst.msk [vmem:[%s241 + $0x8] sm:$0xf] %vm338, %v324
      %342 = vst.msk [vmem:[%s241 + $0xc] sm:$0xf] %vm338, %v325
      %343 = vst.msk [vmem:[%s241 + $0x10] sm:$0xf] %vm338, %v326
      %344 = vst.msk [vmem:[%s241 + $0x14] sm:$0xf] %vm338, %v327
      %345 = vst.msk [vmem:[%s241 + $0x18] sm:$0xf] %vm338, %v328
      %346 = vst.msk [vmem:[%s241 + $0x1c] sm:$0xf] %vm338, %v329
      %v347 = vld [vmem:[#allocation2] sm:$0x1]
      %vm348 = vcmask 162816
      %v349 = vsel %vm348, %v298, 0.0
      %v350 = vsel %vm348, %v299, 0.0
      %v351 = vadd.f32 %v349, %v350
      %v352 = vsel %vm348, %v300, 0.0
      %v353 = vadd.f32 %v351, %v352
      %v354 = vsel %vm348, %v301, 0.0
      %v355 = vadd.f32 %v353, %v354
      %v356 = vsel %vm348, %v302, 0.0
      %v357 = vadd.f32 %v355, %v356
      %v358 = vsel %vm348, %v303, 0.0
      %v359 = vadd.f32 %v357, %v358
      %v360 = vsel %vm348, %v304, 0.0
      %v361 = vadd.f32 %v359, %v360
      %v362 = vsel %vm348, %v305, 0.0
      %v363 = vadd.f32 %v361, %v362
      %v364 = vrot.slane %v363, 4
      %v365 = vadd.f32 %v363, %v364
      %v366 = vrot.slane %v365, 2
      %v367 = vadd.f32 %v365, %v366
      %v368 = vrot.slane %v367, 1
      %v369 = vadd.f32 %v367, %v368
      %v370 = vadd.f32 %v347, %v369
      %vm371 = vcmask 155648
      %372 = vst.msk [vmem:[#allocation2] sm:$0x1] %vm371, %v370
      // Predicated region
      $region37: #{dydensenet_forward.24} parent=31 // pred_check
        %p373 = pneg %p246
      $region38: #{dydensenet_forward.24} parent=31 // pred_check_branch
        %375 = sbr.rel (%p373) target = $region40
      $region39: #{dydensenet_forward.24} parent=31 // pred_region
        %v376 = vld [vmem:[#allocation2] sm:$0x1]
        %v377 = vmul.f32 %v376, 0.015625
        %378 = vst.msk [vmem:[%s245] sm:$0x1] %vm371, %v377
      $region40: #{dydensenet_forward.24} parent=31 // pred_fallthru
        _
      %s379 = smul.u32 8, %s21
      %p380 = scmp.lt.s32.totalorder %s20, 1
      %s381 = scalar_select %p380, %s20, 1
      %p382 = scmp.lt.s32.totalorder %s379, 7
      %s383 = scalar_select %p382, %s379, 7
      %s384 = smul.addr %s381, 8
      %s385 = sadd.s32 %s383, %s384
      %s386 = smul.addr %s385, 4
      %s387 = scalar_lea.vmem %s3, %s386
      %p388 = scmp.lt.s32.totalorder %s20, 1
      %s389 = scalar_select %p388, %s20, 1
      %s390 = scalar_lea.vmem %s4, %s389
      // Predicated region
      $region41: #{dydensenet_forward.24} parent=31 // pred_check
        %p391 = pneg %p118
      $region42: #{dydensenet_forward.24} parent=31 // pred_check_branch
        %393 = sbr.rel (%p391) target = $region44
      $region43: #{dydensenet_forward.24} parent=31 // pred_region
        %s394 = smul.u32 8, %s21
      $region44: #{dydensenet_forward.24} parent=31 // pred_fallthru
        _
      // Predicated region
      $region45: #{dydensenet_forward.24} parent=31 // pred_check
        %p395 = pneg %p144
      $region46: #{dydensenet_forward.24} parent=31 // pred_check_branch
        %397 = sbr.rel (%p395) target = $region48
      $region47: #{dydensenet_forward.24} parent=31 // pred_region
        _
      $region48: #{dydensenet_forward.24} parent=31 // pred_fallthru
        _
    $region32: #{dydensenet_forward.24} parent=5 // pred_fallthru
      _
    %p398 = scmp.le.s32.totalorder 2, %s11
    // Predicated region
    $region49: #{dydensenet_forward.24} parent=5 // pred_check
      %p399 = pneg %p398
    $region50: #{dydensenet_forward.24} parent=5 // pred_check_branch
      %401 = sbr.rel (%p399) target = $region52
    $region51: #{dydensenet_forward.24} parent=5 // pred_region
      %s402 = ssub.s32 %s11, 2
      // Predicated region
      $region53: #{dydensenet_forward.24} parent=51 // pred_check
        %p403 = pneg %p124
      $region54: #{dydensenet_forward.24} parent=51 // pred_check_branch
        %405 = sbr.rel (%p403) target = $region56
      $region55: #{dydensenet_forward.24} parent=51 // pred_region
        %s406 = smul.u32 8, %s23
        %p407 = scmp.lt.s32.totalorder %s22, 1
        %s408 = scalar_select %p407, %s22, 1
        %p409 = scmp.lt.s32.totalorder %s406, 7
        %s410 = scalar_select %p409, %s406, 7
        %s411 = smul.addr %s408, 8
        %s412 = sadd.s32 %s410, %s411
        %s413 = smul.addr %s412, 4
        %s414 = scalar_lea.vmem %s3, %s413
      $region56: #{dydensenet_forward.24} parent=51 // pred_fallthru
        _
      // Predicated region
      $region57: #{dydensenet_forward.24} parent=51 // pred_check
        %p415 = pneg %p150
      $region58: #{dydensenet_forward.24} parent=51 // pred_check_branch
        %417 = sbr.rel (%p415) target = $region60
      $region59: #{dydensenet_forward.24} parent=51 // pred_region
        %p418 = scmp.lt.s32.totalorder %s22, 1
        %s419 = scalar_select %p418, %s22, 1
        %s420 = scalar_lea.vmem %s4, %s419
      $region60: #{dydensenet_forward.24} parent=51 // pred_fallthru
        _
    $region52: #{dydensenet_forward.24} parent=5 // pred_fallthru
      _
  $region6: #{dydensenet_forward.24} parent=0 // loop_footer
    %s15 = sadd.s32 1, %s11
  $region7: #{dydensenet_forward.24} parent=0 // loop_footer_branch
    %10 = sbr.rel target = $region3
  $region8: #{dydensenet_forward.24} parent=0 // loop_exit
    _

// kernel: dydensenet_forward.25
$region0: #{dydensenet_forward.25}
  #allocation0 [shape = 'u32[]', space=smem, size = 0x4, offset = 0x4, fixed_abs, tag = 'smem constant byte address 0x4 - core index']
  #allocation1 [shape = 'u32[144,128]{1,0:T(1,128)}', space=vmem, size = 0x12000, scoped, tag = 'internal scratch']
  #allocation2 [shape = 'f32[64,16]{1,0:T(8,128)}', space=vmem, size = 0x8000, scoped, tag = 'scratch operand']
  %s0 = inlined_call_operand.vmem [shape: bf16[2,64,20], index: 0, kind: input, shape index: {}]
  %s1 = inlined_call_operand.vmem [shape: bf16[2,20,16], index: 1, kind: input, shape index: {}]
  %s2 = inlined_call_operand.vmem [shape: f32[1,1,16], index: 2, kind: input, shape index: {}]
  %s3 = inlined_call_operand.vmem [shape: f32[1,1,16], index: 3, kind: input, shape index: {}]
  %s4 = inlined_call_operand.vmem [shape: bf16[2,64,16], index: 4, kind: output, shape index: {}]
  %s5 = sld [smem:[#allocation0]]
  $region57: #{dydensenet_forward.25} parent=0
    _
  %s7 = ssub.s32 1, %s5
  %s8 = scalar_select 0, %s7, %s5
  loop: start=0, step=1, limit=4
  $region2: #{dydensenet_forward.25} parent=0 // loop_pre_header
    _
  $region3: #{dydensenet_forward.25} parent=0 // loop_header
    %s10 = sphi 0, %s14
    %p11 = scmp.ge.s32.totalorder %s10, 4
    %s17 = sphi 0, %s43
    %s18 = sphi 0, %s39
    %s19 = sphi 0, %s35
    %s20 = sphi 0, %s31
    %s21 = sphi 0, %s17
    %s22 = sphi 0, %s18
    %s23 = sphi 0, %s19
    %s24 = sphi 0, %s20
    %s25 = sphi 0, %s21
    %s26 = sphi 0, %s22
    %s27 = sphi 0, %s23
    %s28 = sphi 0, %s24
    %s50 = sphi 0, %s52
    %s53 = sphi 0, %s50
    %s54 = sphi 0, %s53
    %s70 = sphi 0, %s54
    %s80 = sphi 0, %s82
    %s83 = sphi 0, %s80
    %s84 = sphi 0, %s83
    %s100 = sphi 0, %s84
    %s106 = sphi 0, %s108
    %s109 = sphi 0, %s106
    %s110 = sphi 0, %s109
    %s126 = sphi 0, %s110
    %s132 = sphi 0, %s134
    %s135 = sphi 0, %s132
    %s136 = sphi 0, %s135
    %s152 = sphi 0, %s136
    %s162 = sphi 0, %s164
    %s165 = sphi 0, %s162
    %s166 = sphi 0, %s165
    %s182 = sphi 0, %s166
  $region4: #{dydensenet_forward.25} parent=0 // loop_header_branch
    %13 = sbr.rel (%p11) target = $region8
  $region5: #{dydensenet_forward.25} parent=0 // loop_body
    %s15 = ssub.s32 %s10, 1
    %s16 = ssub.s32 %s10, 2
    %s29 = sadd.s32 1, %s20
    %p30 = scmp.ge.s32.totalorder %s29, 1
    %s31 = scalar_select %p30, 0, %s29
    %s32 = sadd.s32 1, %s19
    %s33 = scalar_select %p30, %s32, %s19
    %p34 = scmp.ge.s32.totalorder %s33, 1
    %s35 = scalar_select %p34, 0, %s33
    %s36 = sadd.s32 1, %s18
    %s37 = scalar_select %p34, %s36, %s18
    %p38 = scmp.ge.s32.totalorder %s37, 1
    %s39 = scalar_select %p38, 0, %s37
    %s40 = sadd.s32 1, %s17
    %s41 = scalar_select %p38, %s40, %s17
    %p42 = scmp.ge.s32.totalorder %s41, 2
    %s43 = scalar_select %p42, 0, %s41
    %s44 = ssub.s32 %s17, %s43
    %s45 = ssub.s32 %s18, %s39
    %s46 = sor.u32 %s44, %s45
    %s47 = ssub.s32 %s20, %s31
    %s48 = sor.u32 %s46, %s47
    %p49 = scmp.eq.s32.totalorder %s48, 0
    %s51 = sadd.s32 %s50, 1
    %s52 = scalar_select %p49, %s50, %s51
    %p55 = pneg %p49
    %p56 = scmp.eq.s32.totalorder %s10, 1
    %p57 = por %p55, %p56
    %p58 = scmp.ne.s32.totalorder %s50, %s53
    %p59 = scmp.eq.s32.totalorder %s10, 0
    %p60 = por %p58, %p59
    %p61 = scmp.ne.s32.totalorder %s50, %s53
    %p62 = scmp.eq.s32.totalorder %s15, 1
    %p63 = por %p61, %p62
    %p64 = scmp.ne.s32.totalorder %s53, %s54
    %p65 = scmp.eq.s32.totalorder %s15, 0
    %p66 = por %p64, %p65
    %p67 = scmp.ne.s32.totalorder %s53, %s54
    %p68 = scmp.eq.s32.totalorder %s16, 1
    %p69 = por %p67, %p68
    %p71 = scmp.ne.s32.totalorder %s54, %s70
    %p72 = scmp.eq.s32.totalorder %s16, 0
    %p73 = por %p71, %p72
    %s74 = ssub.s32 %s17, %s43
    %s75 = ssub.s32 %s20, %s31
    %s76 = sor.u32 %s74, %s75
    %s77 = ssub.s32 %s19, %s35
    %s78 = sor.u32 %s76, %s77
    %p79 = scmp.eq.s32.totalorder %s78, 0
    %s81 = sadd.s32 %s80, 1
    %s82 = scalar_select %p79, %s80, %s81
    %p85 = pneg %p79
    %p86 = scmp.eq.s32.totalorder %s10, 1
    %p87 = por %p85, %p86
    %p88 = scmp.ne.s32.totalorder %s80, %s83
    %p89 = scmp.eq.s32.totalorder %s10, 0
    %p90 = por %p88, %p89
    %p91 = scmp.ne.s32.totalorder %s80, %s83
    %p92 = scmp.eq.s32.totalorder %s15, 1
    %p93 = por %p91, %p92
    %p94 = scmp.ne.s32.totalorder %s83, %s84
    %p95 = scmp.eq.s32.totalorder %s15, 0
    %p96 = por %p94, %p95
    %p97 = scmp.ne.s32.totalorder %s83, %s84
    %p98 = scmp.eq.s32.totalorder %s16, 1
    %p99 = por %p97, %p98
    %p101 = scmp.ne.s32.totalorder %s84, %s100
    %p102 = scmp.eq.s32.totalorder %s16, 0
    %p103 = por %p101, %p102
    %s104 = ssub.s32 %s19, %s35
    %p105 = scmp.eq.s32.totalorder %s104, 0
    %s107 = sadd.s32 %s106, 1
    %s108 = scalar_select %p105, %s106, %s107
    %p111 = pneg %p105
    %p112 = scmp.eq.s32.totalorder %s10, 1
    %p113 = por %p111, %p112
    %p114 = scmp.ne.s32.totalorder %s106, %s109
    %p115 = scmp.eq.s32.totalorder %s10, 0
    %p116 = por %p114, %p115
    %p117 = scmp.ne.s32.totalorder %s106, %s109
    %p118 = scmp.eq.s32.totalorder %s15, 1
    %p119 = por %p117, %p118
    %p120 = scmp.ne.s32.totalorder %s109, %s110
    %p121 = scmp.eq.s32.totalorder %s15, 0
    %p122 = por %p120, %p121
    %p123 = scmp.ne.s32.totalorder %s109, %s110
    %p124 = scmp.eq.s32.totalorder %s16, 1
    %p125 = por %p123, %p124
    %p127 = scmp.ne.s32.totalorder %s110, %s126
    %p128 = scmp.eq.s32.totalorder %s16, 0
    %p129 = por %p127, %p128
    %s130 = ssub.s32 %s19, %s35
    %p131 = scmp.eq.s32.totalorder %s130, 0
    %s133 = sadd.s32 %s132, 1
    %s134 = scalar_select %p131, %s132, %s133
    %p137 = pneg %p131
    %p138 = scmp.eq.s32.totalorder %s10, 1
    %p139 = por %p137, %p138
    %p140 = scmp.ne.s32.totalorder %s132, %s135
    %p141 = scmp.eq.s32.totalorder %s10, 0
    %p142 = por %p140, %p141
    %p143 = scmp.ne.s32.totalorder %s132, %s135
    %p144 = scmp.eq.s32.totalorder %s15, 1
    %p145 = por %p143, %p144
    %p146 = scmp.ne.s32.totalorder %s135, %s136
    %p147 = scmp.eq.s32.totalorder %s15, 0
    %p148 = por %p146, %p147
    %p149 = scmp.ne.s32.totalorder %s135, %s136
    %p150 = scmp.eq.s32.totalorder %s16, 1
    %p151 = por %p149, %p150
    %p153 = scmp.ne.s32.totalorder %s136, %s152
    %p154 = scmp.eq.s32.totalorder %s16, 0
    %p155 = por %p153, %p154
    %s156 = ssub.s32 %s17, %s43
    %s157 = ssub.s32 %s18, %s39
    %s158 = sor.u32 %s156, %s157
    %s159 = ssub.s32 %s19, %s35
    %s160 = sor.u32 %s158, %s159
    %p161 = scmp.eq.s32.totalorder %s160, 0
    %s163 = sadd.s32 %s162, 1
    %s164 = scalar_select %p161, %s162, %s163
    %p167 = pneg %p161
    %p168 = scmp.eq.s32.totalorder %s10, 1
    %p169 = por %p167, %p168
    %p170 = scmp.ne.s32.totalorder %s162, %s165
    %p171 = scmp.eq.s32.totalorder %s10, 0
    %p172 = por %p170, %p171
    %p173 = scmp.ne.s32.totalorder %s162, %s165
    %p174 = scmp.eq.s32.totalorder %s15, 1
    %p175 = por %p173, %p174
    %p176 = scmp.ne.s32.totalorder %s165, %s166
    %p177 = scmp.eq.s32.totalorder %s15, 0
    %p178 = por %p176, %p177
    %p179 = scmp.ne.s32.totalorder %s165, %s166
    %p180 = scmp.eq.s32.totalorder %s16, 1
    %p181 = por %p179, %p180
    %p183 = scmp.ne.s32.totalorder %s166, %s182
    %p184 = scmp.eq.s32.totalorder %s16, 0
    %p185 = por %p183, %p184
    %p186 = scmp.le.s32.totalorder 1, %s10
    %p187 = scmp.lt.s32.totalorder %s10, 3
    %p188 = pnand %p186, %p187
    %p189 = pneg %p188
    // Predicated region
    $region9: #{dydensenet_forward.25} parent=5 // pred_check
      _
    $region10: #{dydensenet_forward.25} parent=5 // pred_check_branch
      %191 = sbr.rel (%p188) target = $region12
    $region11: #{dydensenet_forward.25} parent=5 // pred_region
      %s192 = ssub.s32 %s10, 1
      // Predicated region
      $region13: #{dydensenet_forward.25} parent=11 // pred_check
        %p193 = pneg %p122
      $region14: #{dydensenet_forward.25} parent=11 // pred_check_branch
        %195 = sbr.rel (%p193) target = $region16
      $region15: #{dydensenet_forward.25} parent=11 // pred_region
        %p196 = scmp.lt.s32.totalorder %s23, 0
        %s197 = scalar_select %p196, %s23, 0
        %s198 = scalar_lea.vmem %s2, %s197
      $region16: #{dydensenet_forward.25} parent=11 // pred_fallthru
        _
      // Predicated region
      $region17: #{dydensenet_forward.25} parent=11 // pred_check
        %p199 = pneg %p148
      $region18: #{dydensenet_forward.25} parent=11 // pred_check_branch
        %201 = sbr.rel (%p199) target = $region20
      $region19: #{dydensenet_forward.25} parent=11 // pred_region
        %p202 = scmp.lt.s32.totalorder %s23, 0
        %s203 = scalar_select %p202, %s23, 0
        %s204 = scalar_lea.vmem %s3, %s203
      $region20: #{dydensenet_forward.25} parent=11 // pred_fallthru
        _
    $region12: #{dydensenet_forward.25} parent=5 // pred_fallthru
      _
    %p205 = scmp.lt.s32.totalorder %s10, 2
    // Predicated region
    $region21: #{dydensenet_forward.25} parent=5 // pred_check
      %p206 = pneg %p205
    $region22: #{dydensenet_forward.25} parent=5 // pred_check_branch
      %208 = sbr.rel (%p206) target = $region24
    $region23: #{dydensenet_forward.25} parent=5 // pred_region
      // Predicated region
      $region25: #{dydensenet_forward.25} parent=23 // pred_check
        %p209 = pneg %p60
      $region26: #{dydensenet_forward.25} parent=23 // pred_check_branch
        %211 = sbr.rel (%p209) target = $region28
      $region27: #{dydensenet_forward.25} parent=23 // pred_region
        %s212 = smul.u32 8, %s18
        %p213 = scmp.lt.s32.totalorder %s17, 1
        %s214 = scalar_select %p213, %s17, 1
        %p215 = scmp.lt.s32.totalorder %s212, 7
        %s216 = scalar_select %p215, %s212, 7
        %p217 = scmp.lt.s32.totalorder %s20, 0
        %s218 = scalar_select %p217, %s20, 0
        %s219 = sadd.s32 %s218, %s216
        %s220 = smul.addr %s214, 8
        %s221 = sadd.s32 %s219, %s220
        %s222 = smul.addr %s221, 4
        %s223 = scalar_lea.vmem %s0, %s222
        %s224 = smul.u32 8, %s18
      $region28: #{dydensenet_forward.25} parent=23 // pred_fallthru
        _
      // Predicated region
      $region29: #{dydensenet_forward.25} parent=23 // pred_check
        %p225 = pneg %p90
      $region30: #{dydensenet_forward.25} parent=23 // pred_check_branch
        %227 = sbr.rel (%p225) target = $region32
      $region31: #{dydensenet_forward.25} parent=23 // pred_region
        %s228 = smul.u32 3, %s20
        %p229 = scmp.lt.s32.totalorder %s17, 1
        %s230 = scalar_select %p229, %s17, 1
        %p231 = scmp.lt.s32.totalorder %s228, 2
        %s232 = scalar_select %p231, %s228, 2
        %p233 = scmp.lt.s32.totalorder %s19, 0
        %s234 = scalar_select %p233, %s19, 0
        %s235 = sadd.s32 %s234, %s232
        %s236 = smul.addr %s230, 3
        %s237 = sadd.s32 %s235, %s236
        %s238 = smul.addr %s237, 4
        %s239 = scalar_lea.vmem %s1, %s238
        %s240 = smul.u32 3, %s20
      $region32: #{dydensenet_forward.25} parent=23 // pred_fallthru
        _
    $region24: #{dydensenet_forward.25} parent=5 // pred_fallthru
      _
    %p241 = scmp.le.s32.totalorder 1, %s10
    %p242 = scmp.lt.s32.totalorder %s10, 3
    %p243 = pnand %p241, %p242
    %p244 = pneg %p243
    // Predicated region
    $region33: #{dydensenet_forward.25} parent=5 // pred_check
      _
    $region34: #{dydensenet_forward.25} parent=5 // pred_check_branch
      %246 = sbr.rel (%p243) target = $region36
    $region35: #{dydensenet_forward.25} parent=5 // pred_region
      %s247 = ssub.s32 %s10, 1
      %s248 = smul.u32 8, %s22
      %p249 = scmp.lt.s32.totalorder %s21, 1
      %s250 = scalar_select %p249, %s21, 1
      %p251 = scmp.lt.s32.totalorder %s248, 7
      %s252 = scalar_select %p251, %s248, 7
      %p253 = scmp.lt.s32.totalorder %s24, 0
      %s254 = scalar_select %p253, %s24, 0
      %s255 = sadd.s32 %s254, %s252
      %s256 = smul.addr %s250, 8
      %s257 = sadd.s32 %s255, %s256
      %s258 = smul.addr %s257, 4
      %s259 = scalar_lea.vmem %s0, %s258
      %p260 = pneg %p66
      %p261 = pneg %p63
      %s262 = smul.u32 3, %s24
      %p263 = scmp.lt.s32.totalorder %s21, 1
      %s264 = scalar_select %p263, %s21, 1
      %p265 = scmp.lt.s32.totalorder %s262, 2
      %s266 = scalar_select %p265, %s262, 2
      %p267 = scmp.lt.s32.totalorder %s23, 0
      %s268 = scalar_select %p267, %s23, 0
      %s269 = sadd.s32 %s268, %s266
      %s270 = smul.addr %s264, 3
      %s271 = sadd.s32 %s269, %s270
      %s272 = smul.addr %s271, 4
      %s273 = scalar_lea.vmem %s1, %s272
      %p274 = pneg %p96
      %p275 = pneg %p93
      %p276 = scmp.lt.s32.totalorder %s23, 0
      %s277 = scalar_select %p276, %s23, 0
      %s278 = scalar_lea.vmem %s2, %s277
      %p279 = pneg %p122
      %p280 = pneg %p119
      %p281 = scmp.lt.s32.totalorder %s23, 0
      %s282 = scalar_select %p281, %s23, 0
      %s283 = scalar_lea.vmem %s3, %s282
      %p284 = pneg %p148
      %p285 = pneg %p145
      %p286 = pneg %p178
      %p287 = pneg %p175
      %s288 = smul.u32 8, %s22
      %p289 = scmp.lt.s32.totalorder %s21, 1
      %s290 = scalar_select %p289, %s21, 1
      %p291 = scmp.lt.s32.totalorder %s288, 7
      %s292 = scalar_select %p291, %s288, 7
      %p293 = scmp.lt.s32.totalorder %s23, 0
      %s294 = scalar_select %p293, %s23, 0
      %s295 = sadd.s32 %s294, %s292
      %s296 = smul.addr %s290, 8
      %s297 = sadd.s32 %s295, %s296
      %s298 = smul.addr %s297, 4
      %s299 = scalar_lea.vmem %s4, %s298
      %s300 = smul.u32 8, %s22
      %p301 = scmp.lt.s32.totalorder %s21, 1
      %s302 = scalar_select %p301, %s21, 1
      %p303 = scmp.lt.s32.totalorder %s300, 7
      %s304 = scalar_select %p303, %s300, 7
      %p305 = scmp.lt.s32.totalorder %s24, 0
      %s306 = scalar_select %p305, %s24, 0
      %s307 = sadd.s32 %s306, %s304
      %s308 = smul.addr %s302, 8
      %s309 = sadd.s32 %s307, %s308
      %s310 = smul.addr %s309, 4
      %s311 = scalar_lea.vmem %s0, %s310
      %s312 = smul.u32 8, %s22
      %s313 = smul.u32 3, %s24
      %p314 = scmp.lt.s32.totalorder %s21, 1
      %s315 = scalar_select %p314, %s21, 1
      %p316 = scmp.lt.s32.totalorder %s313, 2
      %s317 = scalar_select %p316, %s313, 2
      %p318 = scmp.lt.s32.totalorder %s23, 0
      %s319 = scalar_select %p318, %s23, 0
      %s320 = sadd.s32 %s319, %s317
      %s321 = smul.addr %s315, 3
      %s322 = sadd.s32 %s320, %s321
      %s323 = smul.addr %s322, 4
      %s324 = scalar_lea.vmem %s1, %s323
      %s325 = smul.u32 3, %s24
      %p326 = scmp.lt.s32.totalorder %s23, 0
      %s327 = scalar_select %p326, %s23, 0
      %s328 = scalar_lea.vmem %s2, %s327
      %p329 = scmp.lt.s32.totalorder %s23, 0
      %s330 = scalar_select %p329, %s23, 0
      %s331 = scalar_lea.vmem %s3, %s330
      %s332 = smul.u32 8, %s22
      %p333 = scmp.lt.s32.totalorder %s21, 1
      %s334 = scalar_select %p333, %s21, 1
      %p335 = scmp.lt.s32.totalorder %s332, 7
      %s336 = scalar_select %p335, %s332, 7
      %p337 = scmp.lt.s32.totalorder %s23, 0
      %s338 = scalar_select %p337, %s23, 0
      %s339 = sadd.s32 %s338, %s336
      %s340 = smul.addr %s334, 8
      %s341 = sadd.s32 %s339, %s340
      %s342 = smul.addr %s341, 4
      %s343 = scalar_lea.vmem %s4, %s342
      %s344 = smul.u32 8, %s22
      %p346 = scmp.eq.s32.totalorder %s24, 0
      // Predicated region
      $region37: #{dydensenet_forward.25} parent=35 // pred_check
        %p347 = pneg %p346
      $region38: #{dydensenet_forward.25} parent=35 // pred_check_branch
        %349 = sbr.rel (%p347) target = $region40
      $region39: #{dydensenet_forward.25} parent=35 // pred_region
        %vm350 = vcmask 130048
        %351 = vst.msk [vmem:[#allocation2] sm:$0xff] %vm350, 0.0
        %352 = vst.msk [vmem:[#allocation2 + $0x8] sm:$0xff] %vm350, 0.0
        %353 = vst.msk [vmem:[#allocation2 + $0x10] sm:$0xff] %vm350, 0.0
        %354 = vst.msk [vmem:[#allocation2 + $0x18] sm:$0xff] %vm350, 0.0
        %355 = vst.msk [vmem:[#allocation2 + $0x20] sm:$0xff] %vm350, 0.0
        %356 = vst.msk [vmem:[#allocation2 + $0x28] sm:$0xff] %vm350, 0.0
        %357 = vst.msk [vmem:[#allocation2 + $0x30] sm:$0xff] %vm350, 0.0
        %358 = vst.msk [vmem:[#allocation2 + $0x38] sm:$0xff] %vm350, 0.0
      $region40: #{dydensenet_forward.25} parent=35 // pred_fallthru
        _
      %v359 = vld [vmem:[#allocation2] sm:$0xff]
      %v360 = vld [vmem:[#allocation2 + $0x8] sm:$0xff]
      %v361 = vld [vmem:[#allocation2 + $0x10] sm:$0xff]
      %v362 = vld [vmem:[#allocation2 + $0x18] sm:$0xff]
      %v363 = vld [vmem:[#allocation2 + $0x20] sm:$0xff]
      %v364 = vld [vmem:[#allocation2 + $0x28] sm:$0xff]
      %v365 = vld [vmem:[#allocation2 + $0x30] sm:$0xff]
      %v366 = vld [vmem:[#allocation2 + $0x38] sm:$0xff]
      %v367 = vld [vmem:[%s311] sm:$0xf]
      %v368 = vld [vmem:[%s311 + $0x4] sm:$0xf]
      %v369 = vld [vmem:[%s311 + $0x8] sm:$0xf]
      %v370 = vld [vmem:[%s311 + $0xc] sm:$0xf]
      %v371 = vld [vmem:[%s311 + $0x10] sm:$0xf]
      %v372 = vld [vmem:[%s311 + $0x14] sm:$0xf]
      %v373 = vld [vmem:[%s311 + $0x18] sm:$0xf]
      %v374 = vld [vmem:[%s311 + $0x1c] sm:$0xf]
      %v375 = vld [vmem:[%s324] sm:$0xf]
      %v376 = vld [vmem:[%s324 + $0x4] sm:$0xf]
      %v377 = vld [vmem:[%s324 + $0x8] sm:$0x3]
      %v386 = vunpack.c.l.b16 %v367
      %v387 = vunpack.c.l.b16 %v368
      %v388 = vunpack.c.l.b16 %v369
      %v389 = vunpack.c.l.b16 %v370
      %v390 = vunpack.c.l.b16 %v371
      %v391 = vunpack.c.l.b16 %v372
      %v392 = vunpack.c.l.b16 %v373
      %v393 = vunpack.c.l.b16 %v374
      %v394 = vpack.c.b16 %v387, %v386
      %v395 = vpack.c.b16 %v389, %v388
      %v396 = vpack.c.b16 %v391, %v390
      %v397 = vpack.c.b16 %v393, %v392
      %v401 = vunpack.c.l.b16 %v375
      %v402 = vunpack.c.l.b16 %v376
      %v403 = vunpack.c.l.b16 %v377
      %v404 = vpack.c.b16 %v402, %v401
      %v405 = vpack.c.b16 %v403, %v403
      %vm407 = vcmask 162816
      %v409 = vsel %vm407, %v394, 0
      %v412 = vsel %vm407, %v395, 0
      %v415 = vsel %vm407, %v396, 0
      %v418 = vsel %vm407, %v397, 0
      %vm420 = vcmask 1041408
      %v422 = vsel %vm420, %v405, 0
      %424 = vmatprep.subr.bf16.mxu0 0
      %425 = vmatpush1.bf16.msra.mxu0 0
      %426 = vmatprep.subr.bf16.mxu0 0
      %427 = vmatpush1.bf16.msra.mxu0 0
      %428 = vmatprep.subr.bf16.mxu0 0
      %429 = vmatpush1.bf16.msra.mxu0 0
      %430 = vmatprep.subr.bf16.mxu0 0
      %431 = vmatpush1.bf16.msra.mxu0 0
      %432 = vmatprep.subr.bf16.mxu0 0
      %433 = vmatpush1.bf16.msra.mxu0 0
      %434 = vmatprep.subr.bf16.mxu0 0
      %435 = vmatpush1.bf16.msra.mxu0 0
      %436 = vmatprep.subr.bf16.mxu0 0
      %437 = vmatpush1.bf16.msra.mxu0 %v422
      %438 = vmatprep.subr.bf16.mxu0 0
      %439 = vmatpush1.bf16.msra.mxu0 %v404
      %440 = vmatprep.subr.bf16.mxu0 0
      %441 = vmatpush2.bf16.msra.mxu0 0
      %442 = vmatprep.subr.bf16.mxu0 0
      %443 = vmatpush2.bf16.msra.mxu0 0
      %444 = vmatprep.subr.bf16.mxu0 0
      %445 = vmatpush2.bf16.msra.mxu0 0
      %446 = vmatprep.subr.bf16.mxu0 0
      %447 = vmatpush2.bf16.msra.mxu0 0
      %448 = vmatprep.subr.bf16.mxu0 0
      %449 = vmatpush2.bf16.msra.mxu0 0
      %450 = vmatprep.subr.bf16.mxu0 0
      %451 = vmatpush2.bf16.msra.mxu0 0
      %452 = vmatprep.subr.bf16.mxu0 0
      %453 = vmatpush2.bf16.msra.mxu0 0
      %454 = vmatprep.subr.bf16.mxu0 0
      %455 = vmatpush2.bf16.msra.mxu0 0
      %456 = vmatprep.mubr.bf16.mxu0 0
      %457 = vmatmul.mubr.bf16.gmra.mxu0 %v409
      %v458 = vpop.f32.mrf.mxu0
      %v459 = vadd.f32 0.0, %v458
      %v460 = vpop.f32.mrf.mxu0
      %v461 = vpop.f32.mrf.mxu0
      %v462 = vadd.f32 0.0, %v461
      %v463 = vpop.f32.mrf.mxu0
      %464 = vmatprep.mubr.bf16.mxu0 0
      %465 = vmatmul.mubr.bf16.gmra.mxu0 %v412
      %v466 = vpop.f32.mrf.mxu0
      %v467 = vadd.f32 0.0, %v466
      %v468 = vpop.f32.mrf.mxu0
      %v469 = vpop.f32.mrf.mxu0
      %v470 = vadd.f32 0.0, %v469
      %v471 = vpop.f32.mrf.mxu0
      %472 = vmatprep.mubr.bf16.mxu0 0
      %473 = vmatmul.mubr.bf16.gmra.mxu0 %v415
      %v474 = vpop.f32.mrf.mxu0
      %v475 = vadd.f32 0.0, %v474
      %v476 = vpop.f32.mrf.mxu0
      %v477 = vpop.f32.mrf.mxu0
      %v478 = vadd.f32 0.0, %v477
      %v479 = vpop.f32.mrf.mxu0
      %480 = vmatprep.mubr.bf16.mxu0 0
      %481 = vmatmul.mubr.bf16.gmra.mxu0 %v418
      %v482 = vpop.f32.mrf.mxu0
      %v483 = vadd.f32 0.0, %v482
      %v484 = vpop.f32.mrf.mxu0
      %v485 = vpop.f32.mrf.mxu0
      %v486 = vadd.f32 0.0, %v485
      %v487 = vpop.f32.mrf.mxu0
      %488 = vdwg.mxu0
      %v489 = vadd.f32 %v359, %v459
      %v490 = vadd.f32 %v360, %v462
      %v491 = vadd.f32 %v361, %v467
      %v492 = vadd.f32 %v362, %v470
      %v493 = vadd.f32 %v363, %v475
      %v494 = vadd.f32 %v364, %v478
      %v495 = vadd.f32 %v365, %v483
      %v496 = vadd.f32 %v366, %v486
      %vm497 = vcmask 130048
      %498 = vst.msk [vmem:[#allocation2] sm:$0xff] %vm497, %v489
      %499 = vst.msk [vmem:[#allocation2 + $0x8] sm:$0xff] %vm497, %v490
      %500 = vst.msk [vmem:[#allocation2 + $0x10] sm:$0xff] %vm497, %v491
      %501 = vst.msk [vmem:[#allocation2 + $0x18] sm:$0xff] %vm497, %v492
      %502 = vst.msk [vmem:[#allocation2 + $0x20] sm:$0xff] %vm497, %v493
      %503 = vst.msk [vmem:[#allocation2 + $0x28] sm:$0xff] %vm497, %v494
      %504 = vst.msk [vmem:[#allocation2 + $0x30] sm:$0xff] %vm497, %v495
      %505 = vst.msk [vmem:[#allocation2 + $0x38] sm:$0xff] %vm497, %v496
      // Predicated region
      $region41: #{dydensenet_forward.25} parent=35 // pred_check
        %p506 = pneg %p346
      $region42: #{dydensenet_forward.25} parent=35 // pred_check_branch
        %508 = sbr.rel (%p506) target = $region44
      $region43: #{dydensenet_forward.25} parent=35 // pred_region
        %v509 = vld [vmem:[#allocation2] sm:$0xff]
        %v510 = vld [vmem:[#allocation2 + $0x8] sm:$0xff]
        %v511 = vld [vmem:[#allocation2 + $0x10] sm:$0xff]
        %v512 = vld [vmem:[#allocation2 + $0x18] sm:$0xff]
        %v513 = vld [vmem:[#allocation2 + $0x20] sm:$0xff]
        %v514 = vld [vmem:[#allocation2 + $0x28] sm:$0xff]
        %v515 = vld [vmem:[#allocation2 + $0x30] sm:$0xff]
        %v516 = vld [vmem:[#allocation2 + $0x38] sm:$0xff]
        %v517 = vld [vmem:[%s328] sm:$0x1]
        %v519 = vlaneseq
        %v520 = vshrl.u32 %v519, 7
        %v521 = vsub.s32 0, %v520
        %v522 = vrot.slane %v517, %v521
        %v524 = vmul.f32 %v509, %v522
        %v525 = vmul.f32 %v510, %v522
        %v526 = vmul.f32 %v511, %v522
        %v527 = vmul.f32 %v512, %v522
        %v528 = vmul.f32 %v513, %v522
        %v529 = vmul.f32 %v514, %v522
        %v530 = vmul.f32 %v515, %v522
        %v531 = vmul.f32 %v516, %v522
        %v532 = vld [vmem:[%s331] sm:$0x1]
        %v534 = vlaneseq
        %v535 = vshrl.u32 %v534, 7
        %v536 = vsub.s32 0, %v535
        %v537 = vrot.slane %v532, %v536
        %v539 = vadd.f32 %v524, %v537
        %v540 = vadd.f32 %v525, %v537
        %v541 = vadd.f32 %v526, %v537
        %v542 = vadd.f32 %v527, %v537
        %v543 = vadd.f32 %v528, %v537
        %v544 = vadd.f32 %v529, %v537
        %v545 = vadd.f32 %v530, %v537
        %v546 = vadd.f32 %v531, %v537
        %v547 = vmax.f32 %v539, 0.0
        %v548 = vmax.f32 %v540, 0.0
        %v549 = vmax.f32 %v541, 0.0
        %v550 = vmax.f32 %v542, 0.0
        %v551 = vmax.f32 %v543, 0.0
        %v552 = vmax.f32 %v544, 0.0
        %v553 = vmax.f32 %v545, 0.0
        %v554 = vmax.f32 %v546, 0.0
        %v555 = vpack.c.bf16 %v548, %v547
        %v556 = vpack.c.bf16 %v550, %v549
        %v557 = vpack.c.bf16 %v552, %v551
        %v558 = vpack.c.bf16 %v554, %v553
        %v563 = vunpack.c.l.b16 %v555
        %v564 = vunpack.c.h.b16 %v555
        %v565 = vunpack.c.l.b16 %v556
        %v566 = vunpack.c.h.b16 %v556
        %v567 = vunpack.c.l.b16 %v557
        %v568 = vunpack.c.h.b16 %v557
        %v569 = vunpack.c.l.b16 %v558
        %v570 = vunpack.c.h.b16 %v558
        %v571 = vpack.c.b16 %v563, %v563
        %v572 = vpack.c.b16 %v564, %v564
        %v573 = vpack.c.b16 %v565, %v565
        %v574 = vpack.c.b16 %v566, %v566
        %v575 = vpack.c.b16 %v567, %v567
        %v576 = vpack.c.b16 %v568, %v568
        %v577 = vpack.c.b16 %v569, %v569
        %v578 = vpack.c.b16 %v570, %v570
        %vm587 = vcmask 125952
        %588 = vst.msk [vmem:[%s343] sm:$0xf] %vm587, %v571
        %589 = vst.msk [vmem:[%s343 + $0x4] sm:$0xf] %vm587, %v572
        %590 = vst.msk [vmem:[%s343 + $0x8] sm:$0xf] %vm587, %v573
        %591 = vst.msk [vmem:[%s343 + $0xc] sm:$0xf] %vm587, %v574
        %592 = vst.msk [vmem:[%s343 + $0x10] sm:$0xf] %vm587, %v575
        %593 = vst.msk [vmem:[%s343 + $0x14] sm:$0xf] %vm587, %v576
        %594 = vst.msk [vmem:[%s343 + $0x18] sm:$0xf] %vm587, %v577
        %595 = vst.msk [vmem:[%s343 + $0x1c] sm:$0xf] %vm587, %v578
      $region44: #{dydensenet_forward.25} parent=35 // pred_fallthru
        _
      %s596 = smul.u32 8, %s22
      %p597 = scmp.lt.s32.totalorder %s21, 1
      %s598 = scalar_select %p597, %s21, 1
      %p599 = scmp.lt.s32.totalorder %s596, 7
      %s600 = scalar_select %p599, %s596, 7
      %p601 = scmp.lt.s32.totalorder %s23, 0
      %s602 = scalar_select %p601, %s23, 0
      %s603 = sadd.s32 %s602, %s600
      %s604 = smul.addr %s598, 8
      %s605 = sadd.s32 %s603, %s604
      %s606 = smul.addr %s605, 4
      %s607 = scalar_lea.vmem %s4, %s606
      // Predicated region
      $region45: #{dydensenet_forward.25} parent=35 // pred_check
        %p608 = pneg %p175
      $region46: #{dydensenet_forward.25} parent=35 // pred_check_branch
        %610 = sbr.rel (%p608) target = $region48
      $region47: #{dydensenet_forward.25} parent=35 // pred_region
        %s611 = smul.u32 8, %s22
      $region48: #{dydensenet_forward.25} parent=35 // pred_fallthru
        _
    $region36: #{dydensenet_forward.25} parent=5 // pred_fallthru
      _
    %p612 = scmp.le.s32.totalorder 2, %s10
    // Predicated region
    $region49: #{dydensenet_forward.25} parent=5 // pred_check
      %p613 = pneg %p612
    $region50: #{dydensenet_forward.25} parent=5 // pred_check_branch
      %615 = sbr.rel (%p613) target = $region52
    $region51: #{dydensenet_forward.25} parent=5 // pred_region
      %s616 = ssub.s32 %s10, 2
      // Predicated region
      $region53: #{dydensenet_forward.25} parent=51 // pred_check
        %p617 = pneg %p181
      $region54: #{dydensenet_forward.25} parent=51 // pred_check_branch
        %619 = sbr.rel (%p617) target = $region56
      $region55: #{dydensenet_forward.25} parent=51 // pred_region
        %s620 = smul.u32 8, %s26
        %p621 = scmp.lt.s32.totalorder %s25, 1
        %s622 = scalar_select %p621, %s25, 1
        %p623 = scmp.lt.s32.totalorder %s620, 7
        %s624 = scalar_select %p623, %s620, 7
        %p625 = scmp.lt.s32.totalorder %s27, 0
        %s626 = scalar_select %p625, %s27, 0
        %s627 = sadd.s32 %s626, %s624
        %s628 = smul.addr %s622, 8
        %s629 = sadd.s32 %s627, %s628
        %s630 = smul.addr %s629, 4
        %s631 = scalar_lea.vmem %s4, %s630
      $region56: #{dydensenet_forward.25} parent=51 // pred_fallthru
        _
    $region52: #{dydensenet_forward.25} parent=5 // pred_fallthru
      _
  $region6: #{dydensenet_forward.25} parent=0 // loop_footer
    %s14 = sadd.s32 1, %s10
  $region7: #{dydensenet_forward.25} parent=0 // loop_footer_branch
    %9 = sbr.rel target = $region3
  $region8: #{dydensenet_forward.25} parent=0 // loop_exit
    _

// kernel: dydensenet_forward.27
$region0: #{dydensenet_forward.27}
  #allocation0 [shape = 'u32[]', space=smem, size = 0x4, offset = 0x4, fixed_abs, tag = 'smem constant byte address 0x4 - core index']
  #allocation1 [shape = 'u32[144,128]{1,0:T(1,128)}', space=vmem, size = 0x12000, scoped, tag = 'internal scratch']
  #allocation2 [shape = 'f32[1,24]{1,0:T(1,128)}', space=vmem, size = 0x200, scoped, tag = 'scratch operand']
  %s0 = inlined_call_operand.vmem [shape: bf16[2,64,24], index: 0, kind: input, shape index: {}]
  %s1 = inlined_call_operand.vmem [shape: f32[1,1,24], index: 1, kind: input, shape index: {}]
  %s2 = inlined_call_operand.vmem [shape: f32[1,1,24], index: 2, kind: input, shape index: {}]
  %s3 = inlined_call_operand.hbm [shape: bf16[2,64,24], index: 3, kind: output, shape index: {0}]
  %s4 = inlined_call_operand.vmem [shape: f32[2,1,24], index: 4, kind: output, shape index: {1}]
  %5 = xla_tuple %s3, %s4
  %s6 = sld [smem:[#allocation0]]
  $region61: #{dydensenet_forward.27} parent=0
    _
  %s8 = ssub.s32 1, %s6
  %s9 = scalar_select 0, %s8, %s6
  $region1: #{dydensenet_forward.27} parent=0
    #allocation3 [shape = 'u8[32768]{0}', space=vmem, size = 0x8000, scoped, tag = 'output window, operand 0']
    #allocation4 [shape = 's32[2]{0}', space=sflag, size = 0x8, scoped, tag = 'scoped memory for dydensenet_forward.27']
    %10 = vsyncpa [#allocation4], 0
    %s11 = scalar_lea.sflag [#allocation4], 1
    %12 = vsyncpa %s11, 0
    loop: start=0, step=1, limit=4
    $region2: #{dydensenet_forward.27} parent=1 // loop_pre_header
      _
    $region3: #{dydensenet_forward.27} parent=1 // loop_header
      %s14 = sphi 0, %s18
      %p15 = scmp.ge.s32.totalorder %s14, 4
      %s21 = sphi 0, %s33
      %s22 = sphi 0, %s29
      %s23 = sphi 0, %s21
      %s24 = sphi 0, %s22
      %s25 = sphi 0, %s23
      %s26 = sphi 0, %s24
      %s38 = sphi 0, %s40
      %s41 = sphi 0, %s38
      %s42 = sphi 0, %s41
      %s58 = sphi 0, %s42
      %s62 = sphi 0, %s62
      %s64 = sphi 0, %s62
      %s65 = sphi 0, %s64
      %s79 = sphi 0, %s65
      %s83 = sphi 0, %s83
      %s85 = sphi 0, %s83
      %s86 = sphi 0, %s85
      %s100 = sphi 0, %s86
      %s108 = sphi 0, %s110
      %s111 = sphi 0, %s108
      %s112 = sphi 0, %s111
      %s128 = sphi 0, %s112
      %s134 = sphi 0, %s136
      %s137 = sphi 0, %s134
      %s138 = sphi 0, %s137
      %s154 = sphi 0, %s138
    $region4: #{dydensenet_forward.27} parent=1 // loop_header_branch
      %17 = sbr.rel (%p15) target = $region8
    $region5: #{dydensenet_forward.27} parent=1 // loop_body
      %s19 = ssub.s32 %s14, 1
      %s20 = ssub.s32 %s14, 2
      %s27 = sadd.s32 1, %s22
      %p28 = scmp.ge.s32.totalorder %s27, 1
      %s29 = scalar_select %p28, 0, %s27
      %s30 = sadd.s32 1, %s21
      %s31 = scalar_select %p28, %s30, %s21
      %p32 = scmp.ge.s32.totalorder %s31, 2
      %s33 = scalar_select %p32, 0, %s31
      %s34 = ssub.s32 %s21, %s33
      %s35 = ssub.s32 %s22, %s29
      %s36 = sor.u32 %s34, %s35
      %p37 = scmp.eq.s32.totalorder %s36, 0
      %s39 = sadd.s32 %s38, 1
      %s40 = scalar_select %p37, %s38, %s39
      %p43 = pneg %p37
      %p44 = scmp.eq.s32.totalorder %s14, 1
      %p45 = por %p43, %p44
      %p46 = scmp.ne.s32.totalorder %s38, %s41
      %p47 = scmp.eq.s32.totalorder %s14, 0
      %p48 = por %p46, %p47
      %p49 = scmp.ne.s32.totalorder %s38, %s41
      %p50 = scmp.eq.s32.totalorder %s19, 1
      %p51 = por %p49, %p50
      %p52 = scmp.ne.s32.totalorder %s41, %s42
      %p53 = scmp.eq.s32.totalorder %s19, 0
      %p54 = por %p52, %p53
      %p55 = scmp.ne.s32.totalorder %s41, %s42
      %p56 = scmp.eq.s32.totalorder %s20, 1
      %p57 = por %p55, %p56
      %p59 = scmp.ne.s32.totalorder %s42, %s58
      %p60 = scmp.eq.s32.totalorder %s20, 0
      %p61 = por %p59, %p60
      %s63 = sadd.s32 %s62, 1
      %p66 = scmp.eq.s32.totalorder %s14, 1
      %p67 = scmp.ne.s32.totalorder %s62, %s64
      %p68 = scmp.eq.s32.totalorder %s14, 0
      %p69 = por %p67, %p68
      %p70 = scmp.ne.s32.totalorder %s62, %s64
      %p71 = scmp.eq.s32.totalorder %s19, 1
      %p72 = por %p70, %p71
      %p73 = scmp.ne.s32.totalorder %s64, %s65
      %p74 = scmp.eq.s32.totalorder %s19, 0
      %p75 = por %p73, %p74
      %p76 = scmp.ne.s32.totalorder %s64, %s65
      %p77 = scmp.eq.s32.totalorder %s20, 1
      %p78 = por %p76, %p77
      %p80 = scmp.ne.s32.totalorder %s65, %s79
      %p81 = scmp.eq.s32.totalorder %s20, 0
      %p82 = por %p80, %p81
      %s84 = sadd.s32 %s83, 1
      %p87 = scmp.eq.s32.totalorder %s14, 1
      %p88 = scmp.ne.s32.totalorder %s83, %s85
      %p89 = scmp.eq.s32.totalorder %s14, 0
      %p90 = por %p88, %p89
      %p91 = scmp.ne.s32.totalorder %s83, %s85
      %p92 = scmp.eq.s32.totalorder %s19, 1
      %p93 = por %p91, %p92
      %p94 = scmp.ne.s32.totalorder %s85, %s86
      %p95 = scmp.eq.s32.totalorder %s19, 0
      %p96 = por %p94, %p95
      %p97 = scmp.ne.s32.totalorder %s85, %s86
      %p98 = scmp.eq.s32.totalorder %s20, 1
      %p99 = por %p97, %p98
      %p101 = scmp.ne.s32.totalorder %s86, %s100
      %p102 = scmp.eq.s32.totalorder %s20, 0
      %p103 = por %p101, %p102
      %s104 = ssub.s32 %s21, %s33
      %s105 = ssub.s32 %s22, %s29
      %s106 = sor.u32 %s104, %s105
      %p107 = scmp.eq.s32.totalorder %s106, 0
      %s109 = sadd.s32 %s108, 1
      %s110 = scalar_select %p107, %s108, %s109
      %p113 = pneg %p107
      %p114 = scmp.eq.s32.totalorder %s14, 1
      %p115 = por %p113, %p114
      %p116 = scmp.ne.s32.totalorder %s108, %s111
      %p117 = scmp.eq.s32.totalorder %s14, 0
      %p118 = por %p116, %p117
      %p119 = scmp.ne.s32.totalorder %s108, %s111
      %p120 = scmp.eq.s32.totalorder %s19, 1
      %p121 = por %p119, %p120
      %p122 = scmp.ne.s32.totalorder %s111, %s112
      %p123 = scmp.eq.s32.totalorder %s19, 0
      %p124 = por %p122, %p123
      %p125 = scmp.ne.s32.totalorder %s111, %s112
      %p126 = scmp.eq.s32.totalorder %s20, 1
      %p127 = por %p125, %p126
      %p129 = scmp.ne.s32.totalorder %s112, %s128
      %p130 = scmp.eq.s32.totalorder %s20, 0
      %p131 = por %p129, %p130
      %s132 = ssub.s32 %s21, %s33
      %p133 = scmp.eq.s32.totalorder %s132, 0
      %s135 = sadd.s32 %s134, 1
      %s136 = scalar_select %p133, %s134, %s135
      %p139 = pneg %p133
      %p140 = scmp.eq.s32.totalorder %s14, 1
      %p141 = por %p139, %p140
      %p142 = scmp.ne.s32.totalorder %s134, %s137
      %p143 = scmp.eq.s32.totalorder %s14, 0
      %p144 = por %p142, %p143
      %p145 = scmp.ne.s32.totalorder %s134, %s137
      %p146 = scmp.eq.s32.totalorder %s19, 1
      %p147 = por %p145, %p146
      %p148 = scmp.ne.s32.totalorder %s137, %s138
      %p149 = scmp.eq.s32.totalorder %s19, 0
      %p150 = por %p148, %p149
      %p151 = scmp.ne.s32.totalorder %s137, %s138
      %p152 = scmp.eq.s32.totalorder %s20, 1
      %p153 = por %p151, %p152
      %p155 = scmp.ne.s32.totalorder %s138, %s154
      %p156 = scmp.eq.s32.totalorder %s20, 0
      %p157 = por %p155, %p156
      %p158 = scmp.le.s32.totalorder 1, %s14
      %p159 = scmp.lt.s32.totalorder %s14, 3
      %p160 = pnand %p158, %p159
      %p161 = pneg %p160
      // Predicated region
      $region9: #{dydensenet_forward.27} parent=5 // pred_check
        _
      $region10: #{dydensenet_forward.27} parent=5 // pred_check_branch
        %163 = sbr.rel (%p160) target = $region12
      $region11: #{dydensenet_forward.27} parent=5 // pred_region
        %s164 = ssub.s32 %s14, 1
        // Predicated region
        $region13: #{dydensenet_forward.27} parent=11 // pred_check
          %p165 = pneg %p75
        $region14: #{dydensenet_forward.27} parent=11 // pred_check_branch
          %167 = sbr.rel (%p165) target = $region16
        $region15: #{dydensenet_forward.27} parent=11 // pred_region
          _
        $region16: #{dydensenet_forward.27} parent=11 // pred_fallthru
          _
        // Predicated region
        $region17: #{dydensenet_forward.27} parent=11 // pred_check
          %p168 = pneg %p96
        $region18: #{dydensenet_forward.27} parent=11 // pred_check_branch
          %170 = sbr.rel (%p168) target = $region20
        $region19: #{dydensenet_forward.27} parent=11 // pred_region
          _
        $region20: #{dydensenet_forward.27} parent=11 // pred_fallthru
          _
      $region12: #{dydensenet_forward.27} parent=5 // pred_fallthru
        _
      %p171 = scmp.lt.s32.totalorder %s14, 2
      // Predicated region
      $region21: #{dydensenet_forward.27} parent=5 // pred_check
        %p172 = pneg %p171
      $region22: #{dydensenet_forward.27} parent=5 // pred_check_branch
        %174 = sbr.rel (%p172) target = $region24
      $region23: #{dydensenet_forward.27} parent=5 // pred_region
        // Predicated region
        $region25: #{dydensenet_forward.27} parent=23 // pred_check
          %p175 = pneg %p48
        $region26: #{dydensenet_forward.27} parent=23 // pred_check_branch
          %177 = sbr.rel (%p175) target = $region28
        $region27: #{dydensenet_forward.27} parent=23 // pred_region
          %s178 = smul.u32 8, %s22
          %p179 = scmp.lt.s32.totalorder %s21, 1
          %s180 = scalar_select %p179, %s21, 1
          %p181 = scmp.lt.s32.totalorder %s178, 7
          %s182 = scalar_select %p181, %s178, 7
          %s183 = smul.addr %s180, 8
          %s184 = sadd.s32 %s182, %s183
          %s185 = smul.addr %s184, 4
          %s186 = scalar_lea.vmem %s0, %s185
          %s187 = smul.u32 8, %s22
        $region28: #{dydensenet_forward.27} parent=23 // pred_fallthru
          _
      $region24: #{dydensenet_forward.27} parent=5 // pred_fallthru
        _
      %p188 = scmp.le.s32.totalorder 1, %s14
      %p189 = scmp.lt.s32.totalorder %s14, 3
      %p190 = pnand %p188, %p189
      %p191 = pneg %p190
      // Predicated region
      $region29: #{dydensenet_forward.27} parent=5 // pred_check
        _
      $region30: #{dydensenet_forward.27} parent=5 // pred_check_branch
        %193 = sbr.rel (%p190) target = $region32
      $region31: #{dydensenet_forward.27} parent=5 // pred_region
        %s194 = ssub.s32 %s14, 1
        %s195 = smul.u32 8, %s24
        %p196 = scmp.lt.s32.totalorder %s23, 1
        %s197 = scalar_select %p196, %s23, 1
        %p198 = scmp.lt.s32.totalorder %s195, 7
        %s199 = scalar_select %p198, %s195, 7
        %s200 = smul.addr %s197, 8
        %s201 = sadd.s32 %s199, %s200
        %s202 = smul.addr %s201, 4
        %s203 = scalar_lea.vmem %s0, %s202
        %p204 = pneg %p54
        %p205 = pneg %p51
        %p206 = pneg %p75
        %p207 = pneg %p72
        %p208 = pneg %p96
        %p209 = pneg %p93
        %p210 = pneg %p124
        %p211 = pneg %p121
        %s212 = sand.u32 %s111, 1
        %s213 = scalar_lea.sflag [#allocation4], %s212
        %s214 = sand.u32 %s111, 1
        %s215 = smul.addr %s214, 32
        %s216 = scalar_lea.vmem [#allocation3], %s215
        %p217 = pneg %p150
        %p218 = pneg %p147
        %p219 = scmp.lt.s32.totalorder %s23, 1
        %s220 = scalar_select %p219, %s23, 1
        %s221 = scalar_lea.vmem %s4, %s220
        %s222 = smul.u32 8, %s24
        %p223 = scmp.lt.s32.totalorder %s23, 1
        %s224 = scalar_select %p223, %s23, 1
        %p225 = scmp.lt.s32.totalorder %s222, 7
        %s226 = scalar_select %p225, %s222, 7
        %s227 = smul.addr %s224, 8
        %s228 = sadd.s32 %s226, %s227
        %s229 = smul.addr %s228, 4
        %s230 = scalar_lea.vmem %s0, %s229
        %s231 = smul.u32 8, %s24
        %s232 = smul.u32 8, %s24
        %p233 = scmp.lt.s32.totalorder %s23, 1
        %s234 = scalar_select %p233, %s23, 1
        %s235 = scalar_lea.vmem %s4, %s234
        %p236 = scmp.eq.s32.totalorder %s24, 0
        // Predicated region
        $region33: #{dydensenet_forward.27} parent=31 // pred_check
          %p237 = pneg %p236
        $region34: #{dydensenet_forward.27} parent=31 // pred_check_branch
          %239 = sbr.rel (%p237) target = $region36
        $region35: #{dydensenet_forward.27} parent=31 // pred_region
          %vm240 = vcmask 188416
          %241 = vst.msk [vmem:[#allocation2] sm:$0x1] %vm240, 0.0
        $region36: #{dydensenet_forward.27} parent=31 // pred_fallthru
          _
        %v242 = vld [vmem:[%s230] sm:$0xf]
        %v243 = vld [vmem:[%s230 + $0x4] sm:$0xf]
        %v244 = vld [vmem:[%s230 + $0x8] sm:$0xf]
        %v245 = vld [vmem:[%s230 + $0xc] sm:$0xf]
        %v246 = vld [vmem:[%s230 + $0x10] sm:$0xf]
        %v247 = vld [vmem:[%s230 + $0x14] sm:$0xf]
        %v248 = vld [vmem:[%s230 + $0x18] sm:$0xf]
        %v249 = vld [vmem:[%s230 + $0x1c] sm:$0xf]
        %v250 = vunpack.c.l.bf16 %v242
        %v251 = vunpack.c.l.bf16 %v243
        %v252 = vunpack.c.l.bf16 %v244
        %v253 = vunpack.c.l.bf16 %v245
        %v254 = vunpack.c.l.bf16 %v246
        %v255 = vunpack.c.l.bf16 %v247
        %v256 = vunpack.c.l.bf16 %v248
        %v257 = vunpack.c.l.bf16 %v249
        %v258 = vld [vmem:[%s1] sm:$0x1]
        %v260 = vlaneseq
        %v261 = vshrl.u32 %v260, 7
        %v262 = vsub.s32 0, %v261
        %v263 = vrot.slane %v258, %v262
        %v265 = vmul.f32 %v250, %v263
        %v266 = vmul.f32 %v251, %v263
        %v267 = vmul.f32 %v252, %v263
        %v268 = vmul.f32 %v253, %v263
        %v269 = vmul.f32 %v254, %v263
        %v270 = vmul.f32 %v255, %v263
        %v271 = vmul.f32 %v256, %v263
        %v272 = vmul.f32 %v257, %v263
        %v273 = vld [vmem:[%s2] sm:$0x1]
        %v275 = vlaneseq
        %v276 = vshrl.u32 %v275, 7
        %v277 = vsub.s32 0, %v276
        %v278 = vrot.slane %v273, %v277
        %v280 = vadd.f32 %v265, %v278
        %v281 = vadd.f32 %v266, %v278
        %v282 = vadd.f32 %v267, %v278
        %v283 = vadd.f32 %v268, %v278
        %v284 = vadd.f32 %v269, %v278
        %v285 = vadd.f32 %v270, %v278
        %v286 = vadd.f32 %v271, %v278
        %v287 = vadd.f32 %v272, %v278
        %v288 = vmax.f32 %v280, 0.0
        %v289 = vmax.f32 %v281, 0.0
        %v290 = vmax.f32 %v282, 0.0
        %v291 = vmax.f32 %v283, 0.0
        %v292 = vmax.f32 %v284, 0.0
        %v293 = vmax.f32 %v285, 0.0
        %v294 = vmax.f32 %v286, 0.0
        %v295 = vmax.f32 %v287, 0.0
        %v296 = vpack.c.bf16 %v289, %v288
        %v297 = vpack.c.bf16 %v291, %v290
        %v298 = vpack.c.bf16 %v293, %v292
        %v299 = vpack.c.bf16 %v295, %v294
        %v304 = vunpack.c.l.b16 %v296
        %v305 = vunpack.c.h.b16 %v296
        %v306 = vunpack.c.l.b16 %v297
        %v307 = vunpack.c.h.b16 %v297
        %v308 = vunpack.c.l.b16 %v298
        %v309 = vunpack.c.h.b16 %v298
        %v310 = vunpack.c.l.b16 %v299
        %v311 = vunpack.c.h.b16 %v299
        %v312 = vpack.c.b16 %v304, %v304
        %v313 = vpack.c.b16 %v305, %v305
        %v314 = vpack.c.b16 %v306, %v306
        %v315 = vpack.c.b16 %v307, %v307
        %v316 = vpack.c.b16 %v308, %v308
        %v317 = vpack.c.b16 %v309, %v309
        %v318 = vpack.c.b16 %v310, %v310
        %v319 = vpack.c.b16 %v311, %v311
        %vm328 = vcmask 191488
        %329 = vst.msk [vmem:[%s216] sm:$0xf] %vm328, %v312
        %330 = vst.msk [vmem:[%s216 + $0x4] sm:$0xf] %vm328, %v313
        %331 = vst.msk [vmem:[%s216 + $0x8] sm:$0xf] %vm328, %v314
        %332 = vst.msk [vmem:[%s216 + $0xc] sm:$0xf] %vm328, %v315
        %333 = vst.msk [vmem:[%s216 + $0x10] sm:$0xf] %vm328, %v316
        %334 = vst.msk [vmem:[%s216 + $0x14] sm:$0xf] %vm328, %v317
        %335 = vst.msk [vmem:[%s216 + $0x18] sm:$0xf] %vm328, %v318
        %336 = vst.msk [vmem:[%s216 + $0x1c] sm:$0xf] %vm328, %v319
        %v337 = vld [vmem:[#allocation2] sm:$0x1]
        %vm338 = vcmask 195584
        %v339 = vsel %vm338, %v288, 0.0
        %v340 = vsel %vm338, %v289, 0.0
        %v341 = vadd.f32 %v339, %v340
        %v342 = vsel %vm338, %v290, 0.0
        %v343 = vadd.f32 %v341, %v342
        %v344 = vsel %vm338, %v291, 0.0
        %v345 = vadd.f32 %v343, %v344
        %v346 = vsel %vm338, %v292, 0.0
        %v347 = vadd.f32 %v345, %v346
        %v348 = vsel %vm338, %v293, 0.0
        %v349 = vadd.f32 %v347, %v348
        %v350 = vsel %vm338, %v294, 0.0
        %v351 = vadd.f32 %v349, %v350
        %v352 = vsel %vm338, %v295, 0.0
        %v353 = vadd.f32 %v351, %v352
        %v354 = vrot.slane %v353, 4
        %v355 = vadd.f32 %v353, %v354
        %v356 = vrot.slane %v355, 2
        %v357 = vadd.f32 %v355, %v356
        %v358 = vrot.slane %v357, 1
        %v359 = vadd.f32 %v357, %v358
        %v360 = vadd.f32 %v337, %v359
        %vm361 = vcmask 188416
        %362 = vst.msk [vmem:[#allocation2] sm:$0x1] %vm361, %v360
        // Predicated region
        $region37: #{dydensenet_forward.27} parent=31 // pred_check
          %p363 = pneg %p236
        $region38: #{dydensenet_forward.27} parent=31 // pred_check_branch
          %365 = sbr.rel (%p363) target = $region40
        $region39: #{dydensenet_forward.27} parent=31 // pred_region
          %v366 = vld [vmem:[#allocation2] sm:$0x1]
          %v367 = vmul.f32 %v366, 0.015625
          %368 = vst.msk [vmem:[%s235] sm:$0x1] %vm361, %v367
        $region40: #{dydensenet_forward.27} parent=31 // pred_fallthru
          _
        %s369 = sand.u32 %s111, 1
        %s370 = scalar_lea.sflag [#allocation4], %s369
        %s371 = sand.u32 %s111, 1
        %s372 = smul.addr %s371, 32
        %s373 = scalar_lea.vmem [#allocation3], %s372
        %p374 = scmp.lt.s32.totalorder %s23, 1
        %s375 = scalar_select %p374, %s23, 1
        %s376 = scalar_lea.vmem %s4, %s375
        // Predicated region
        $region41: #{dydensenet_forward.27} parent=31 // pred_check
          %p377 = pneg %p121
        $region42: #{dydensenet_forward.27} parent=31 // pred_check_branch
          %379 = sbr.rel (%p377) target = $region44
        $region43: #{dydensenet_forward.27} parent=31 // pred_region
          %s380 = smul.u32 8, %s24
          %s382 = ssub.s32 512, 512
          %383 = vsyncadd %s370, %s382
          %s384 = smul.addr %s23, 8
          %s385 = sadd.s32 %s380, %s384
          %s386 = smul.addr %s385, 64
          %s387 = scalar_lea.hbm %s3, %s386
          %s388 = sshll.u32 %s373, 4
          %s389 = int_to_ptr.vmem [resolvable:$true] %s388
          %394 = dma.vmem_to_hbm [thread:$0]  %s389, 512, %s387, %s370, 64, 64, 4
        $region44: #{dydensenet_forward.27} parent=31 // pred_fallthru
          _
        // Predicated region
        $region45: #{dydensenet_forward.27} parent=31 // pred_check
          %p395 = pneg %p147
        $region46: #{dydensenet_forward.27} parent=31 // pred_check_branch
          %397 = sbr.rel (%p395) target = $region48
        $region47: #{dydensenet_forward.27} parent=31 // pred_region
          _
        $region48: #{dydensenet_forward.27} parent=31 // pred_fallthru
          _
      $region32: #{dydensenet_forward.27} parent=5 // pred_fallthru
        _
      %p398 = scmp.le.s32.totalorder 2, %s14
      // Predicated region
      $region49: #{dydensenet_forward.27} parent=5 // pred_check
        %p399 = pneg %p398
      $region50: #{dydensenet_forward.27} parent=5 // pred_check_branch
        %401 = sbr.rel (%p399) target = $region52
      $region51: #{dydensenet_forward.27} parent=5 // pred_region
        %s402 = ssub.s32 %s14, 2
        // Predicated region
        $region53: #{dydensenet_forward.27} parent=51 // pred_check
          %p403 = pneg %p127
        $region54: #{dydensenet_forward.27} parent=51 // pred_check_branch
          %405 = sbr.rel (%p403) target = $region56
        $region55: #{dydensenet_forward.27} parent=51 // pred_region
          %s406 = sand.u32 %s112, 1
          %s407 = scalar_lea.sflag [#allocation4], %s406
          %s408 = sand.u32 %s112, 1
          %s409 = smul.addr %s408, 32
          %s410 = scalar_lea.vmem [#allocation3], %s409
          %411 = dma.done %s407, 512
        $region56: #{dydensenet_forward.27} parent=51 // pred_fallthru
          _
        // Predicated region
        $region57: #{dydensenet_forward.27} parent=51 // pred_check
          %p412 = pneg %p153
        $region58: #{dydensenet_forward.27} parent=51 // pred_check_branch
          %414 = sbr.rel (%p412) target = $region60
        $region59: #{dydensenet_forward.27} parent=51 // pred_region
          %p415 = scmp.lt.s32.totalorder %s25, 1
          %s416 = scalar_select %p415, %s25, 1
          %s417 = scalar_lea.vmem %s4, %s416
        $region60: #{dydensenet_forward.27} parent=51 // pred_fallthru
          _
      $region52: #{dydensenet_forward.27} parent=5 // pred_fallthru
        _
    $region6: #{dydensenet_forward.27} parent=1 // loop_footer
      %s18 = sadd.s32 1, %s14
    $region7: #{dydensenet_forward.27} parent=1 // loop_footer_branch
      %13 = sbr.rel target = $region3
    $region8: #{dydensenet_forward.27} parent=1 // loop_exit
      _
    %418 = vsyncpa [#allocation4], 1
    %s419 = scalar_lea.sflag [#allocation4], 1
    %420 = vsyncpa %s419, 1

</llo_original>
